<compile_context>
chip_gen: v5e
topology: v5e:2x2
jax: 0.10.0
libtpu: 0.0.40
codegen_flags: <defaults>
</compile_context>

<pallas_src>
import math

import jax
import jax.numpy as jnp
from jax.experimental import pallas as pl
from jax.experimental.pallas import tpu as pltpu

EPS = 1e-5          # BatchNorm eps
NUM_CLASSES = 10    # config.NumClasses (not FinetuneSilence mode)
LANES = 128         # channel (lane) padding target


# ----------------------------------------------------------------------------
# Parameter construction & packing (single lane-dense (R, 128) weight slab)
# ----------------------------------------------------------------------------
class _WeightPacker:
    """Packs (r, 128) parameter chunks into one array; 8-row aligned offsets."""

    def __init__(self):
        self._chunks = []
        self._offsets = {}
        self._cursor = 0

    def add(self, name, arr):
        arr = jnp.asarray(arr, jnp.float32)
        assert arr.ndim == 2 and arr.shape[1] == LANES, (name, arr.shape)
        r = arr.shape[0]
        r_pad = ((r + 7) // 8) * 8
        if r_pad != r:
            arr = jnp.pad(arr, ((0, r_pad - r), (0, 0)))
        self._offsets[name] = (self._cursor, r)
        self._chunks.append(arr)
        self._cursor += r_pad

    def finish(self):
        return jnp.concatenate(self._chunks, axis=0), dict(self._offsets)


def _normal(key, shape, std=0.01):
    return std * jax.random.normal(key, shape, jnp.float32)


def _bn_affine(c):
    """Eval-mode BatchNorm folded to scale/shift (gamma=1, beta=0, mean=0, var=1)."""
    gamma = jnp.ones((c,), jnp.float32)
    beta = jnp.zeros((c,), jnp.float32)
    mean = jnp.zeros((c,), jnp.float32)
    var = jnp.ones((c,), jnp.float32)
    scale = gamma / jnp.sqrt(var + EPS)
    shift = beta - mean * scale
    # lane-pad: padded channels must stay exactly zero -> shift pad = 0.
    scale = jnp.concatenate([scale, jnp.ones((LANES - c,), jnp.float32)])
    shift = jnp.concatenate([shift, jnp.zeros((LANES - c,), jnp.float32)])
    return scale.reshape(1, LANES), shift.reshape(1, LANES)


def _conv3_taps(key, c_out, c_in):
    """PyTorch Conv2d weight (c_out, c_in, 3[,1]) -> three (128, 128) tap matrices."""
    w = _normal(key, (c_out, c_in, 3))
    taps = []
    for t in range(3):
        m = jnp.transpose(w[:, :, t])                          # (c_in, c_out)
        taps.append(jnp.pad(m, ((0, LANES - c_in), (0, LANES - c_out))))
    return taps


def _linear(key, c_in, c_out):
    """PyTorch Linear(c_in->c_out), normal_init std=0.01, bias=0; lane padded."""
    w = jnp.transpose(_normal(key, (c_out, c_in)))             # (c_in, c_out)
    w = jnp.pad(w, ((0, LANES - c_in), (0, LANES - c_out)))
    b = jnp.zeros((1, LANES), jnp.float32)
    return w, b


def _sinusoidal_pe(t, d_model):
    pos = jnp.arange(t, dtype=jnp.float32)[:, None]
    div = jnp.exp(jnp.arange(0, d_model, 2, dtype=jnp.float32)
                  * (-math.log(10000.0) / d_model))
    pe = jnp.zeros((t, d_model), jnp.float32)
    pe = pe.at[:, 0::2].set(jnp.sin(pos * div))
    pe = pe.at[:, 1::2].set(jnp.cos(pos * div))
    return jnp.pad(pe, ((0, 0), (0, LANES - d_model)))


def build_lgnet6_params(key, k=1.5, c_in=40, num_classes=NUM_CLASSES):
    c24, c32, c48, c56 = int(24 * k), int(32 * k), int(48 * k), int(56 * k)
    # (c_in, c_out, stride, pe_len) per LGBlock; pe_len == block output length.
    block_cfg = [
        (c24, c32, 2, 51), (c32, c32, 1, 51),
        (c32, c48, 2, 26), (c48, c48, 1, 26),
        (c48, c56, 2, 13), (c56, c56, 1, 13),
    ]
    kit = iter(jax.random.split(key, 64))
    pk = _WeightPacker()

    # conv1: Conv2d(40, 36, (3,1), padding=(1,0), bias=True); bias init 0.
    for j, m in enumerate(_conv3_taps(next(kit), c24, c_in)):
        pk.add(f"conv1.w{j}", m)
    pk.add("conv1.b", jnp.zeros((1, LANES), jnp.float32))

    for i, (ci, co, s, pe_len) in enumerate(block_cfg):
        p = f"b{i}."
        for j, m in enumerate(_conv3_taps(next(kit), co, ci)):
            pk.add(p + f"c1.w{j}", m)
        sc, sh = _bn_affine(co)
        pk.add(p + "bn1.scale", sc); pk.add(p + "bn1.shift", sh)
        for j, m in enumerate(_conv3_taps(next(kit), co, co)):
            pk.add(p + f"c2.w{j}", m)
        sc, sh = _bn_affine(co)
        pk.add(p + "bn2.scale", sc); pk.add(p + "bn2.shift", sh)
        if s != 1:
            w = jnp.pad(jnp.transpose(_normal(next(kit), (co, ci))),
                        ((0, LANES - ci), (0, LANES - co)))     # 1x1 conv
            pk.add(p + "sc.w", w)
            sc, sh = _bn_affine(co)
            pk.add(p + "sc.scale", sc); pk.add(p + "sc.shift", sh)
        pk.add(p + "pe", _sinusoidal_pe(pe_len, co))
        for nm in ("q", "k", "v", "o"):
            w, b = _linear(next(kit), co, co)
            pk.add(p + "w" + nm, w); pk.add(p + "b" + nm, b)

    w, b = _linear(next(kit), c56, num_classes)
    pk.add("cls.w", w); pk.add("cls.b", b)

    packed, offsets = pk.finish()
    kernel_cfg = tuple((co, s) for _, co, s, _ in block_cfg)
    return packed, offsets, kernel_cfg


# ----------------------------------------------------------------------------
# The single fused Pallas kernel (whole forward pass, one batch row per step)
# ----------------------------------------------------------------------------
def _make_lgnet6_kernel(offsets, block_cfg):
    def get(w_ref, name):
        off, nrows = offsets[name]
        return w_ref[off:off + nrows, :]

    def gather_mat(t_out, t_in, stride, shift):
        """{0,1} matrix D with D[t', t] = 1 iff t == stride*t' + shift."""
        r = jax.lax.broadcasted_iota(jnp.int32, (t_out, t_in), 0)
        c = jax.lax.broadcasted_iota(jnp.int32, (t_out, t_in), 1)
        return (c == stride * r + shift).astype(jnp.float32)

    def conv3(w_ref, x, prefix, stride):
        """Kernel-3, pad-1, stride-`stride` temporal conv as shifted matmuls."""
        t_in = x.shape[0]
        t_out = (t_in - 1) // stride + 1
        y = jnp.zeros((t_out, LANES), jnp.float32)
        for t in range(3):
            w = get(w_ref, prefix + f"w{t}")
            m = jnp.dot(x, w, preferred_element_type=jnp.float32)        # (t_in,128)
            d = gather_mat(t_out, t_in, stride, t - 1)
            y = y + jnp.dot(d, m, preferred_element_type=jnp.float32)    # (t_out,128)
        return y

    def downsample(x, stride):
        """x[::stride] along time, expressed as a gather matmul."""
        t_in = x.shape[0]
        t_out = (t_in - 1) // stride + 1
        d = gather_mat(t_out, t_in, stride, 0)
        return jnp.dot(d, x, preferred_element_type=jnp.float32)

    def kernel(x_ref, w_ref, o_ref):
        h = x_ref[0]                                                     # (T0, 128)
        # conv1 (bias, no BN/ReLU)
        h = conv3(w_ref, h, "conv1.", 1) + get(w_ref, "conv1.b")

        for i, (c_out, stride) in enumerate(block_cfg):
            p = f"b{i}."
            # shortcut
            if stride == 1:
                res = h
            else:
                res = jnp.dot(downsample(h, stride), get(w_ref, p + "sc.w"),
                              preferred_element_type=jnp.float32)
                res = res * get(w_ref, p + "sc.scale") + get(w_ref, p + "sc.shift")
            # TConv: conv3(stride) + BN + ReLU + conv3(1) + BN, then +res, ReLU
            y = conv3(w_ref, h, p + "c1.", stride)
            y = y * get(w_ref, p + "bn1.scale") + get(w_ref, p + "bn1.shift")
            y = jnp.maximum(y, 0.0)
            y = conv3(w_ref, y, p + "c2.", 1)
            y = y * get(w_ref, p + "bn2.scale") + get(w_ref, p + "bn2.shift")
            y = jnp.maximum(y + res, 0.0)
            # positional encoding + single-head scaled dot-product attention
            xa = y + get(w_ref, p + "pe")
            q = jnp.dot(xa, get(w_ref, p + "wq"),
                        preferred_element_type=jnp.float32) + get(w_ref, p + "bq")
            kk = jnp.dot(xa, get(w_ref, p + "wk"),
                         preferred_element_type=jnp.float32) + get(w_ref, p + "bk")
            v = jnp.dot(xa, get(w_ref, p + "wv"),
                        preferred_element_type=jnp.float32) + get(w_ref, p + "bv")
            s = jax.lax.dot_general(q, kk, (((1,), (1,)), ((), ())),
                                    preferred_element_type=jnp.float32)
            s = s * (1.0 / math.sqrt(c_out))
            m = jnp.max(s, axis=-1, keepdims=True)
            e = jnp.exp(s - m)
            pa = e * pl.reciprocal(jnp.sum(e, axis=-1, keepdims=True), approx=True)
            ctx = jnp.dot(pa, v, preferred_element_type=jnp.float32)
            h = jnp.dot(ctx, get(w_ref, p + "wo"),
                        preferred_element_type=jnp.float32) + get(w_ref, p + "bo")

        # AvgPool2d((13,1)) + flatten + Dropout(eval=identity) + classifier
        pooled = jnp.mean(h, axis=0, keepdims=True)                      # (1, 128)
        o_ref[0] = jnp.dot(pooled, get(w_ref, "cls.w"),
                           preferred_element_type=jnp.float32) + get(w_ref, "cls.b")

    return kernel


def make_lgnet6_forward(offsets, kernel_cfg, r_total, batch, t0,
                        num_classes=NUM_CLASSES):
    kernel = _make_lgnet6_kernel(offsets, kernel_cfg)
    call = pl.pallas_call(
        kernel,
        out_shape=jax.ShapeDtypeStruct((batch, 1, LANES), jnp.float32),
        grid=(batch,),
        in_specs=[
            pl.BlockSpec((1, t0, LANES), lambda b: (b, 0, 0)),   # activations
            pl.BlockSpec((r_total, LANES), lambda b: (0, 0)),    # packed weights
        ],
        out_specs=pl.BlockSpec((1, 1, LANES), lambda b: (b, 0, 0)),
        compiler_params=pltpu.CompilerParams(
            dimension_semantics=("parallel",),       # v7x: split batch over 2 TCs
            vmem_limit_bytes=32 * 1024 * 1024),
    )

    def forward(packed_w, x_mfcc):
        """x_mfcc: (B, 1, n_mfcc=40, T) -- the torchaudio MFCC output."""
        c_in = x_mfcc.shape[2]
        x = jnp.transpose(x_mfcc[:, 0, :, :], (0, 2, 1))         # (B, T, C_in)
        x = jnp.pad(x, ((0, 0), (0, 0), (0, LANES - c_in)))      # lane-pad to 128
        out = call(x, packed_w)                                  # (B, 1, 128)
        return out[:, 0, :num_classes]

    return forward


# ----------------------------------------------------------------------------
if __name__ == "__main__":
    key = jax.random.PRNGKey(0)
    pkey, xkey = jax.random.split(key)
    packed_w, offsets, kernel_cfg = build_lgnet6_params(pkey)

    # MFCC features: batch=2, 1 channel, 40 coeffs, 101 frames (~1 s @ 16 kHz,
    # hop 160) -- consistent with AvgPool2d((13,1)) and PE max_lens 51/26/13.
    B, n_mfcc, T = 2, 40, 101
    x = jax.random.normal(xkey, (B, 1, n_mfcc, T), jnp.float32)

    fwd = jax.jit(make_lgnet6_forward(offsets, kernel_cfg, packed_w.shape[0], B, T))
    out = fwd(packed_w, x)
    jax.block_until_ready(out)
    assert out.shape == (B, NUM_CLASSES), out.shape
    assert bool(jnp.all(jnp.isfinite(out)))
    print("KERNEL_OK")
</pallas_src>

<mosaic_0001>
module attributes {stable_mosaic.version = 11 : i64} {
  func.func @kernel(%arg0: i32, %arg1: memref<1x101x128xf32, #tpu.memory_space<vmem>>, %arg2: memref<9232x128xf32, #tpu.memory_space<vmem>>, %arg3: memref<1x1x128xf32, #tpu.memory_space<vmem>>) attributes {dimension_semantics = [#tpu.dimension_semantics<parallel>], iteration_bounds = array<i64: 2>, scalar_prefetch = 0 : i64, scratch_operands = 0 : i64, tpu.core_type = #tpu.core_type<tc>, window_params = [{transform_indices = @transform_0, window_bounds = array<i64: 1, 101, 128>}, {pipeline_mode = #tpu.pipeline_mode<synchronous>, transform_indices = @transform_1, window_bounds = array<i64: 9232, 128>}, {transform_indices = @transform_2, window_bounds = array<i64: 1, 1, 128>}]} {
    %c0 = arith.constant 0 : index
    %c0_0 = arith.constant 0 : index
    %c0_1 = arith.constant 0 : index
    %0 = vector.load %arg1[%c0, %c0_0, %c0_1] : memref<1x101x128xf32, #tpu.memory_space<vmem>>, vector<1x101x128xf32>
    %1 = vector.shape_cast %0 : vector<1x101x128xf32> to vector<101x128xf32>
    %cst = arith.constant 0.000000e+00 : f32
    %2 = vector.broadcast %cst : f32 to vector<101x128xf32>
    %c0_2 = arith.constant 0 : index
    %c0_3 = arith.constant 0 : index
    %3 = vector.load %arg2[%c0_2, %c0_3] : memref<9232x128xf32, #tpu.memory_space<vmem>>, vector<128x128xf32>
    %cst_4 = arith.constant dense<0.000000e+00> : vector<101x128xf32>
    %4 = tpu.matmul %1, %3, %cst_4 {dimension_numbers = #tpu.dot_dimension_numbers<[1], [0], [0], [1], [0, 0, 1, 1], [], []>} : vector<101x128xf32>, vector<128x128xf32>, vector<101x128xf32> -> vector<101x128xf32>
    %5 = tpu.iota {dimensions = array<i32: 0>} : vector<101x101xi32>
    %6 = tpu.iota {dimensions = array<i32: 1>} : vector<101x101xi32>
    %c1_i32 = arith.constant 1 : i32
    %7 = vector.broadcast %c1_i32 : i32 to vector<101x101xi32>
    %8 = arith.muli %7, %5 : vector<101x101xi32>
    %c-1_i32 = arith.constant -1 : i32
    %9 = vector.broadcast %c-1_i32 : i32 to vector<101x101xi32>
    %10 = arith.addi %8, %9 : vector<101x101xi32>
    %11 = arith.cmpi eq, %6, %10 : vector<101x101xi32>
    %12 = arith.extui %11 : vector<101x101xi1> to vector<101x101xi32>
    %13 = arith.sitofp %12 : vector<101x101xi32> to vector<101x101xf32>
    %cst_5 = arith.constant dense<0.000000e+00> : vector<101x128xf32>
    %14 = tpu.matmul %13, %4, %cst_5 {dimension_numbers = #tpu.dot_dimension_numbers<[1], [0], [0], [1], [0, 0, 1, 1], [], []>} : vector<101x101xf32>, vector<101x128xf32>, vector<101x128xf32> -> vector<101x128xf32>
    %15 = arith.addf %2, %14 : vector<101x128xf32>
    %c128 = arith.constant 128 : index
    %c0_6 = arith.constant 0 : index
    %16 = vector.load %arg2[%c128, %c0_6] : memref<9232x128xf32, #tpu.memory_space<vmem>>, vector<128x128xf32>
    %cst_7 = arith.constant dense<0.000000e+00> : vector<101x128xf32>
    %17 = tpu.matmul %1, %16, %cst_7 {dimension_numbers = #tpu.dot_dimension_numbers<[1], [0], [0], [1], [0, 0, 1, 1], [], []>} : vector<101x128xf32>, vector<128x128xf32>, vector<101x128xf32> -> vector<101x128xf32>
    %18 = tpu.iota {dimensions = array<i32: 0>} : vector<101x101xi32>
    %19 = tpu.iota {dimensions = array<i32: 1>} : vector<101x101xi32>
    %c1_i32_8 = arith.constant 1 : i32
    %20 = vector.broadcast %c1_i32_8 : i32 to vector<101x101xi32>
    %21 = arith.muli %20, %18 : vector<101x101xi32>
    %c0_i32 = arith.constant 0 : i32
    %22 = vector.broadcast %c0_i32 : i32 to vector<101x101xi32>
    %23 = arith.addi %21, %22 : vector<101x101xi32>
    %24 = arith.cmpi eq, %19, %23 : vector<101x101xi32>
    %25 = arith.extui %24 : vector<101x101xi1> to vector<101x101xi32>
    %26 = arith.sitofp %25 : vector<101x101xi32> to vector<101x101xf32>
    %cst_9 = arith.constant dense<0.000000e+00> : vector<101x128xf32>
    %27 = tpu.matmul %26, %17, %cst_9 {dimension_numbers = #tpu.dot_dimension_numbers<[1], [0], [0], [1], [0, 0, 1, 1], [], []>} : vector<101x101xf32>, vector<101x128xf32>, vector<101x128xf32> -> vector<101x128xf32>
    %28 = arith.addf %15, %27 : vector<101x128xf32>
    %c256 = arith.constant 256 : index
    %c0_10 = arith.constant 0 : index
    %29 = vector.load %arg2[%c256, %c0_10] : memref<9232x128xf32, #tpu.memory_space<vmem>>, vector<128x128xf32>
    %cst_11 = arith.constant dense<0.000000e+00> : vector<101x128xf32>
    %30 = tpu.matmul %1, %29, %cst_11 {dimension_numbers = #tpu.dot_dimension_numbers<[1], [0], [0], [1], [0, 0, 1, 1], [], []>} : vector<101x128xf32>, vector<128x128xf32>, vector<101x128xf32> -> vector<101x128xf32>
    %31 = tpu.iota {dimensions = array<i32: 0>} : vector<101x101xi32>
    %32 = tpu.iota {dimensions = array<i32: 1>} : vector<101x101xi32>
    %c1_i32_12 = arith.constant 1 : i32
    %33 = vector.broadcast %c1_i32_12 : i32 to vector<101x101xi32>
    %34 = arith.muli %33, %31 : vector<101x101xi32>
    %c1_i32_13 = arith.constant 1 : i32
    %35 = vector.broadcast %c1_i32_13 : i32 to vector<101x101xi32>
    %36 = arith.addi %34, %35 : vector<101x101xi32>
    %37 = arith.cmpi eq, %32, %36 : vector<101x101xi32>
    %38 = arith.extui %37 : vector<101x101xi1> to vector<101x101xi32>
    %39 = arith.sitofp %38 : vector<101x101xi32> to vector<101x101xf32>
    %cst_14 = arith.constant dense<0.000000e+00> : vector<101x128xf32>
    %40 = tpu.matmul %39, %30, %cst_14 {dimension_numbers = #tpu.dot_dimension_numbers<[1], [0], [0], [1], [0, 0, 1, 1], [], []>} : vector<101x101xf32>, vector<101x128xf32>, vector<101x128xf32> -> vector<101x128xf32>
    %41 = arith.addf %28, %40 : vector<101x128xf32>
    %c384 = arith.constant 384 : index
    %c0_15 = arith.constant 0 : index
    %42 = vector.load %arg2[%c384, %c0_15] : memref<9232x128xf32, #tpu.memory_space<vmem>>, vector<1x128xf32>
    %43 = vector.broadcast %42 : vector<1x128xf32> to vector<101x128xf32>
    %44 = arith.addf %41, %43 : vector<101x128xf32>
    %45 = tpu.iota {dimensions = array<i32: 0>} : vector<51x101xi32>
    %46 = tpu.iota {dimensions = array<i32: 1>} : vector<51x101xi32>
    %c2_i32 = arith.constant 2 : i32
    %47 = vector.broadcast %c2_i32 : i32 to vector<51x101xi32>
    %48 = arith.muli %47, %45 : vector<51x101xi32>
    %c0_i32_16 = arith.constant 0 : i32
    %49 = vector.broadcast %c0_i32_16 : i32 to vector<51x101xi32>
    %50 = arith.addi %48, %49 : vector<51x101xi32>
    %51 = arith.cmpi eq, %46, %50 : vector<51x101xi32>
    %52 = arith.extui %51 : vector<51x101xi1> to vector<51x101xi32>
    %53 = arith.sitofp %52 : vector<51x101xi32> to vector<51x101xf32>
    %cst_17 = arith.constant dense<0.000000e+00> : vector<51x128xf32>
    %54 = tpu.matmul %53, %44, %cst_17 {dimension_numbers = #tpu.dot_dimension_numbers<[1], [0], [0], [1], [0, 0, 1, 1], [], []>} : vector<51x101xf32>, vector<101x128xf32>, vector<51x128xf32> -> vector<51x128xf32>
    %c1192 = arith.constant 1192 : index
    %c0_18 = arith.constant 0 : index
    %55 = vector.load %arg2[%c1192, %c0_18] : memref<9232x128xf32, #tpu.memory_space<vmem>>, vector<128x128xf32>
    %cst_19 = arith.constant dense<0.000000e+00> : vector<51x128xf32>
    %56 = tpu.matmul %54, %55, %cst_19 {dimension_numbers = #tpu.dot_dimension_numbers<[1], [0], [0], [1], [0, 0, 1, 1], [], []>} : vector<51x128xf32>, vector<128x128xf32>, vector<51x128xf32> -> vector<51x128xf32>
    %c1320 = arith.constant 1320 : index
    %c0_20 = arith.constant 0 : index
    %57 = vector.load %arg2[%c1320, %c0_20] : memref<9232x128xf32, #tpu.memory_space<vmem>>, vector<1x128xf32>
    %58 = vector.broadcast %57 : vector<1x128xf32> to vector<51x128xf32>
    %59 = arith.mulf %56, %58 : vector<51x128xf32>
    %c1328 = arith.constant 1328 : index
    %c0_21 = arith.constant 0 : index
    %60 = vector.load %arg2[%c1328, %c0_21] : memref<9232x128xf32, #tpu.memory_space<vmem>>, vector<1x128xf32>
    %61 = vector.broadcast %60 : vector<1x128xf32> to vector<51x128xf32>
    %62 = arith.addf %59, %61 : vector<51x128xf32>
    %cst_22 = arith.constant 0.000000e+00 : f32
    %63 = vector.broadcast %cst_22 : f32 to vector<51x128xf32>
    %c392 = arith.constant 392 : index
    %c0_23 = arith.constant 0 : index
    %64 = vector.load %arg2[%c392, %c0_23] : memref<9232x128xf32, #tpu.memory_space<vmem>>, vector<128x128xf32>
    %cst_24 = arith.constant dense<0.000000e+00> : vector<101x128xf32>
    %65 = tpu.matmul %44, %64, %cst_24 {dimension_numbers = #tpu.dot_dimension_numbers<[1], [0], [0], [1], [0, 0, 1, 1], [], []>} : vector<101x128xf32>, vector<128x128xf32>, vector<101x128xf32> -> vector<101x128xf32>
    %66 = tpu.iota {dimensions = array<i32: 0>} : vector<51x101xi32>
    %67 = tpu.iota {dimensions = array<i32: 1>} : vector<51x101xi32>
    %c2_i32_25 = arith.constant 2 : i32
    %68 = vector.broadcast %c2_i32_25 : i32 to vector<51x101xi32>
    %69 = arith.muli %68, %66 : vector<51x101xi32>
    %c-1_i32_26 = arith.constant -1 : i32
    %70 = vector.broadcast %c-1_i32_26 : i32 to vector<51x101xi32>
    %71 = arith.addi %69, %70 : vector<51x101xi32>
    %72 = arith.cmpi eq, %67, %71 : vector<51x101xi32>
    %73 = arith.extui %72 : vector<51x101xi1> to vector<51x101xi32>
    %74 = arith.sitofp %73 : vector<51x101xi32> to vector<51x101xf32>
    %cst_27 = arith.constant dense<0.000000e+00> : vector<51x128xf32>
    %75 = tpu.matmul %74, %65, %cst_27 {dimension_numbers = #tpu.dot_dimension_numbers<[1], [0], [0], [1], [0, 0, 1, 1], [], []>} : vector<51x101xf32>, vector<101x128xf32>, vector<51x128xf32> -> vector<51x128xf32>
    %76 = arith.addf %63, %75 : vector<51x128xf32>
    %c520 = arith.constant 520 : index
    %c0_28 = arith.constant 0 : index
    %77 = vector.load %arg2[%c520, %c0_28] : memref<9232x128xf32, #tpu.memory_space<vmem>>, vector<128x128xf32>
    %cst_29 = arith.constant dense<0.000000e+00> : vector<101x128xf32>
    %78 = tpu.matmul %44, %77, %cst_29 {dimension_numbers = #tpu.dot_dimension_numbers<[1], [0], [0], [1], [0, 0, 1, 1], [], []>} : vector<101x128xf32>, vector<128x128xf32>, vector<101x128xf32> -> vector<101x128xf32>
    %79 = tpu.iota {dimensions = array<i32: 0>} : vector<51x101xi32>
    %80 = tpu.iota {dimensions = array<i32: 1>} : vector<51x101xi32>
    %c2_i32_30 = arith.constant 2 : i32
    %81 = vector.broadcast %c2_i32_30 : i32 to vector<51x101xi32>
    %82 = arith.muli %81, %79 : vector<51x101xi32>
    %c0_i32_31 = arith.constant 0 : i32
    %83 = vector.broadcast %c0_i32_31 : i32 to vector<51x101xi32>
    %84 = arith.addi %82, %83 : vector<51x101xi32>
    %85 = arith.cmpi eq, %80, %84 : vector<51x101xi32>
    %86 = arith.extui %85 : vector<51x101xi1> to vector<51x101xi32>
    %87 = arith.sitofp %86 : vector<51x101xi32> to vector<51x101xf32>
    %cst_32 = arith.constant dense<0.000000e+00> : vector<51x128xf32>
    %88 = tpu.matmul %87, %78, %cst_32 {dimension_numbers = #tpu.dot_dimension_numbers<[1], [0], [0], [1], [0, 0, 1, 1], [], []>} : vector<51x101xf32>, vector<101x128xf32>, vector<51x128xf32> -> vector<51x128xf32>
    %89 = arith.addf %76, %88 : vector<51x128xf32>
    %c648 = arith.constant 648 : index
    %c0_33 = arith.constant 0 : index
    %90 = vector.load %arg2[%c648, %c0_33] : memref<9232x128xf32, #tpu.memory_space<vmem>>, vector<128x128xf32>
    %cst_34 = arith.constant dense<0.000000e+00> : vector<101x128xf32>
    %91 = tpu.matmul %44, %90, %cst_34 {dimension_numbers = #tpu.dot_dimension_numbers<[1], [0], [0], [1], [0, 0, 1, 1], [], []>} : vector<101x128xf32>, vector<128x128xf32>, vector<101x128xf32> -> vector<101x128xf32>
    %92 = tpu.iota {dimensions = array<i32: 0>} : vector<51x101xi32>
    %93 = tpu.iota {dimensions = array<i32: 1>} : vector<51x101xi32>
    %c2_i32_35 = arith.constant 2 : i32
    %94 = vector.broadcast %c2_i32_35 : i32 to vector<51x101xi32>
    %95 = arith.muli %94, %92 : vector<51x101xi32>
    %c1_i32_36 = arith.constant 1 : i32
    %96 = vector.broadcast %c1_i32_36 : i32 to vector<51x101xi32>
    %97 = arith.addi %95, %96 : vector<51x101xi32>
    %98 = arith.cmpi eq, %93, %97 : vector<51x101xi32>
    %99 = arith.extui %98 : vector<51x101xi1> to vector<51x101xi32>
    %100 = arith.sitofp %99 : vector<51x101xi32> to vector<51x101xf32>
    %cst_37 = arith.constant dense<0.000000e+00> : vector<51x128xf32>
    %101 = tpu.matmul %100, %91, %cst_37 {dimension_numbers = #tpu.dot_dimension_numbers<[1], [0], [0], [1], [0, 0, 1, 1], [], []>} : vector<51x101xf32>, vector<101x128xf32>, vector<51x128xf32> -> vector<51x128xf32>
    %102 = arith.addf %89, %101 : vector<51x128xf32>
    %c776 = arith.constant 776 : index
    %c0_38 = arith.constant 0 : index
    %103 = vector.load %arg2[%c776, %c0_38] : memref<9232x128xf32, #tpu.memory_space<vmem>>, vector<1x128xf32>
    %104 = vector.broadcast %103 : vector<1x128xf32> to vector<51x128xf32>
    %105 = arith.mulf %102, %104 : vector<51x128xf32>
    %c784 = arith.constant 784 : index
    %c0_39 = arith.constant 0 : index
    %106 = vector.load %arg2[%c784, %c0_39] : memref<9232x128xf32, #tpu.memory_space<vmem>>, vector<1x128xf32>
    %107 = vector.broadcast %106 : vector<1x128xf32> to vector<51x128xf32>
    %108 = arith.addf %105, %107 : vector<51x128xf32>
    %cst_40 = arith.constant 0.000000e+00 : f32
    %109 = vector.broadcast %cst_40 : f32 to vector<51x128xf32>
    %110 = arith.maximumf %108, %109 : vector<51x128xf32>
    %cst_41 = arith.constant 0.000000e+00 : f32
    %111 = vector.broadcast %cst_41 : f32 to vector<51x128xf32>
    %c792 = arith.constant 792 : index
    %c0_42 = arith.constant 0 : index
    %112 = vector.load %arg2[%c792, %c0_42] : memref<9232x128xf32, #tpu.memory_space<vmem>>, vector<128x128xf32>
    %cst_43 = arith.constant dense<0.000000e+00> : vector<51x128xf32>
    %113 = tpu.matmul %110, %112, %cst_43 {dimension_numbers = #tpu.dot_dimension_numbers<[1], [0], [0], [1], [0, 0, 1, 1], [], []>} : vector<51x128xf32>, vector<128x128xf32>, vector<51x128xf32> -> vector<51x128xf32>
    %114 = tpu.iota {dimensions = array<i32: 0>} : vector<51x51xi32>
    %115 = tpu.iota {dimensions = array<i32: 1>} : vector<51x51xi32>
    %c1_i32_44 = arith.constant 1 : i32
    %116 = vector.broadcast %c1_i32_44 : i32 to vector<51x51xi32>
    %117 = arith.muli %116, %114 : vector<51x51xi32>
    %c-1_i32_45 = arith.constant -1 : i32
    %118 = vector.broadcast %c-1_i32_45 : i32 to vector<51x51xi32>
    %119 = arith.addi %117, %118 : vector<51x51xi32>
    %120 = arith.cmpi eq, %115, %119 : vector<51x51xi32>
    %121 = arith.extui %120 : vector<51x51xi1> to vector<51x51xi32>
    %122 = arith.sitofp %121 : vector<51x51xi32> to vector<51x51xf32>
    %cst_46 = arith.constant dense<0.000000e+00> : vector<51x128xf32>
    %123 = tpu.matmul %122, %113, %cst_46 {dimension_numbers = #tpu.dot_dimension_numbers<[1], [0], [0], [1], [0, 0, 1, 1], [], []>} : vector<51x51xf32>, vector<51x128xf32>, vector<51x128xf32> -> vector<51x128xf32>
    %124 = arith.addf %111, %123 : vector<51x128xf32>
    %c920 = arith.constant 920 : index
    %c0_47 = arith.constant 0 : index
    %125 = vector.load %arg2[%c920, %c0_47] : memref<9232x128xf32, #tpu.memory_space<vmem>>, vector<128x128xf32>
    %cst_48 = arith.constant dense<0.000000e+00> : vector<51x128xf32>
    %126 = tpu.matmul %110, %125, %cst_48 {dimension_numbers = #tpu.dot_dimension_numbers<[1], [0], [0], [1], [0, 0, 1, 1], [], []>} : vector<51x128xf32>, vector<128x128xf32>, vector<51x128xf32> -> vector<51x128xf32>
    %127 = tpu.iota {dimensions = array<i32: 0>} : vector<51x51xi32>
    %128 = tpu.iota {dimensions = array<i32: 1>} : vector<51x51xi32>
    %c1_i32_49 = arith.constant 1 : i32
    %129 = vector.broadcast %c1_i32_49 : i32 to vector<51x51xi32>
    %130 = arith.muli %129, %127 : vector<51x51xi32>
    %c0_i32_50 = arith.constant 0 : i32
    %131 = vector.broadcast %c0_i32_50 : i32 to vector<51x51xi32>
    %132 = arith.addi %130, %131 : vector<51x51xi32>
    %133 = arith.cmpi eq, %128, %132 : vector<51x51xi32>
    %134 = arith.extui %133 : vector<51x51xi1> to vector<51x51xi32>
    %135 = arith.sitofp %134 : vector<51x51xi32> to vector<51x51xf32>
    %cst_51 = arith.constant dense<0.000000e+00> : vector<51x128xf32>
    %136 = tpu.matmul %135, %126, %cst_51 {dimension_numbers = #tpu.dot_dimension_numbers<[1], [0], [0], [1], [0, 0, 1, 1], [], []>} : vector<51x51xf32>, vector<51x128xf32>, vector<51x128xf32> -> vector<51x128xf32>
    %137 = arith.addf %124, %136 : vector<51x128xf32>
    %c1048 = arith.constant 1048 : index
    %c0_52 = arith.constant 0 : index
    %138 = vector.load %arg2[%c1048, %c0_52] : memref<9232x128xf32, #tpu.memory_space<vmem>>, vector<128x128xf32>
    %cst_53 = arith.constant dense<0.000000e+00> : vector<51x128xf32>
    %139 = tpu.matmul %110, %138, %cst_53 {dimension_numbers = #tpu.dot_dimension_numbers<[1], [0], [0], [1], [0, 0, 1, 1], [], []>} : vector<51x128xf32>, vector<128x128xf32>, vector<51x128xf32> -> vector<51x128xf32>
    %140 = tpu.iota {dimensions = array<i32: 0>} : vector<51x51xi32>
    %141 = tpu.iota {dimensions = array<i32: 1>} : vector<51x51xi32>
    %c1_i32_54 = arith.constant 1 : i32
    %142 = vector.broadcast %c1_i32_54 : i32 to vector<51x51xi32>
    %143 = arith.muli %142, %140 : vector<51x51xi32>
    %c1_i32_55 = arith.constant 1 : i32
    %144 = vector.broadcast %c1_i32_55 : i32 to vector<51x51xi32>
    %145 = arith.addi %143, %144 : vector<51x51xi32>
    %146 = arith.cmpi eq, %141, %145 : vector<51x51xi32>
    %147 = arith.extui %146 : vector<51x51xi1> to vector<51x51xi32>
    %148 = arith.sitofp %147 : vector<51x51xi32> to vector<51x51xf32>
    %cst_56 = arith.constant dense<0.000000e+00> : vector<51x128xf32>
    %149 = tpu.matmul %148, %139, %cst_56 {dimension_numbers = #tpu.dot_dimension_numbers<[1], [0], [0], [1], [0, 0, 1, 1], [], []>} : vector<51x51xf32>, vector<51x128xf32>, vector<51x128xf32> -> vector<51x128xf32>
    %150 = arith.addf %137, %149 : vector<51x128xf32>
    %c1176 = arith.constant 1176 : index
    %c0_57 = arith.constant 0 : index
    %151 = vector.load %arg2[%c1176, %c0_57] : memref<9232x128xf32, #tpu.memory_space<vmem>>, vector<1x128xf32>
    %152 = vector.broadcast %151 : vector<1x128xf32> to vector<51x128xf32>
    %153 = arith.mulf %150, %152 : vector<51x128xf32>
    %c1184 = arith.constant 1184 : index
    %c0_58 = arith.constant 0 : index
    %154 = vector.load %arg2[%c1184, %c0_58] : memref<9232x128xf32, #tpu.memory_space<vmem>>, vector<1x128xf32>
    %155 = vector.broadcast %154 : vector<1x128xf32> to vector<51x128xf32>
    %156 = arith.addf %153, %155 : vector<51x128xf32>
    %157 = arith.addf %156, %62 : vector<51x128xf32>
    %cst_59 = arith.constant 0.000000e+00 : f32
    %158 = vector.broadcast %cst_59 : f32 to vector<51x128xf32>
    %159 = arith.maximumf %157, %158 : vector<51x128xf32>
    %c1336 = arith.constant 1336 : index
    %c0_60 = arith.constant 0 : index
    %160 = vector.load %arg2[%c1336, %c0_60] : memref<9232x128xf32, #tpu.memory_space<vmem>>, vector<51x128xf32>
    %161 = arith.addf %159, %160 : vector<51x128xf32>
    %c1392 = arith.constant 1392 : index
    %c0_61 = arith.constant 0 : index
    %162 = vector.load %arg2[%c1392, %c0_61] : memref<9232x128xf32, #tpu.memory_space<vmem>>, vector<128x128xf32>
    %cst_62 = arith.constant dense<0.000000e+00> : vector<51x128xf32>
    %163 = tpu.matmul %161, %162, %cst_62 {dimension_numbers = #tpu.dot_dimension_numbers<[1], [0], [0], [1], [0, 0, 1, 1], [], []>} : vector<51x128xf32>, vector<128x128xf32>, vector<51x128xf32> -> vector<51x128xf32>
    %c1520 = arith.constant 1520 : index
    %c0_63 = arith.constant 0 : index
    %164 = vector.load %arg2[%c1520, %c0_63] : memref<9232x128xf32, #tpu.memory_space<vmem>>, vector<1x128xf32>
    %165 = vector.broadcast %164 : vector<1x128xf32> to vector<51x128xf32>
    %166 = arith.addf %163, %165 : vector<51x128xf32>
    %c1528 = arith.constant 1528 : index
    %c0_64 = arith.constant 0 : index
    %167 = vector.load %arg2[%c1528, %c0_64] : memref<9232x128xf32, #tpu.memory_space<vmem>>, vector<128x128xf32>
    %cst_65 = arith.constant dense<0.000000e+00> : vector<51x128xf32>
    %168 = tpu.matmul %161, %167, %cst_65 {dimension_numbers = #tpu.dot_dimension_numbers<[1], [0], [0], [1], [0, 0, 1, 1], [], []>} : vector<51x128xf32>, vector<128x128xf32>, vector<51x128xf32> -> vector<51x128xf32>
    %c1656 = arith.constant 1656 : index
    %c0_66 = arith.constant 0 : index
    %169 = vector.load %arg2[%c1656, %c0_66] : memref<9232x128xf32, #tpu.memory_space<vmem>>, vector<1x128xf32>
    %170 = vector.broadcast %169 : vector<1x128xf32> to vector<51x128xf32>
    %171 = arith.addf %168, %170 : vector<51x128xf32>
    %c1664 = arith.constant 1664 : index
    %c0_67 = arith.constant 0 : index
    %172 = vector.load %arg2[%c1664, %c0_67] : memref<9232x128xf32, #tpu.memory_space<vmem>>, vector<128x128xf32>
    %cst_68 = arith.constant dense<0.000000e+00> : vector<51x128xf32>
    %173 = tpu.matmul %161, %172, %cst_68 {dimension_numbers = #tpu.dot_dimension_numbers<[1], [0], [0], [1], [0, 0, 1, 1], [], []>} : vector<51x128xf32>, vector<128x128xf32>, vector<51x128xf32> -> vector<51x128xf32>
    %c1792 = arith.constant 1792 : index
    %c0_69 = arith.constant 0 : index
    %174 = vector.load %arg2[%c1792, %c0_69] : memref<9232x128xf32, #tpu.memory_space<vmem>>, vector<1x128xf32>
    %175 = vector.broadcast %174 : vector<1x128xf32> to vector<51x128xf32>
    %176 = arith.addf %173, %175 : vector<51x128xf32>
    %cst_70 = arith.constant dense<0.000000e+00> : vector<51x51xf32>
    %177 = tpu.matmul %166, %171, %cst_70 {dimension_numbers = #tpu.dot_dimension_numbers<[1], [1], [0], [0], [0, 0, 1, 0], [], []>} : vector<51x128xf32>, vector<51x128xf32>, vector<51x51xf32> -> vector<51x51xf32>
    %cst_71 = arith.constant 0.144337565 : f32
    %178 = vector.broadcast %cst_71 : f32 to vector<51x51xf32>
    %179 = arith.mulf %177, %178 : vector<51x51xf32>
    %cst_72 = arith.constant dense<0xFF800000> : vector<51xf32>
    %180 = vector.multi_reduction <maximumf>, %179, %cst_72 [1] : vector<51x51xf32> to vector<51xf32>
    %181 = vector.shape_cast %180 : vector<51xf32> to vector<51x1xf32>
    %182 = vector.broadcast %181 : vector<51x1xf32> to vector<51x51xf32>
    %183 = arith.subf %179, %182 : vector<51x51xf32>
    %184 = math.exp %183 : vector<51x51xf32>
    %cst_73 = arith.constant dense<0.000000e+00> : vector<51xf32>
    %185 = vector.multi_reduction <add>, %184, %cst_73 [1] : vector<51x51xf32> to vector<51xf32>
    %186 = vector.shape_cast %185 : vector<51xf32> to vector<51x1xf32>
    %187 = tpu.reciprocal %186 {approx = true} : vector<51x1xf32> -> vector<51x1xf32>
    %188 = vector.broadcast %187 : vector<51x1xf32> to vector<51x51xf32>
    %189 = arith.mulf %184, %188 : vector<51x51xf32>
    %cst_74 = arith.constant dense<0.000000e+00> : vector<51x128xf32>
    %190 = tpu.matmul %189, %176, %cst_74 {dimension_numbers = #tpu.dot_dimension_numbers<[1], [0], [0], [1], [0, 0, 1, 1], [], []>} : vector<51x51xf32>, vector<51x128xf32>, vector<51x128xf32> -> vector<51x128xf32>
    %c1800 = arith.constant 1800 : index
    %c0_75 = arith.constant 0 : index
    %191 = vector.load %arg2[%c1800, %c0_75] : memref<9232x128xf32, #tpu.memory_space<vmem>>, vector<128x128xf32>
    %cst_76 = arith.constant dense<0.000000e+00> : vector<51x128xf32>
    %192 = tpu.matmul %190, %191, %cst_76 {dimension_numbers = #tpu.dot_dimension_numbers<[1], [0], [0], [1], [0, 0, 1, 1], [], []>} : vector<51x128xf32>, vector<128x128xf32>, vector<51x128xf32> -> vector<51x128xf32>
    %c1928 = arith.constant 1928 : index
    %c0_77 = arith.constant 0 : index
    %193 = vector.load %arg2[%c1928, %c0_77] : memref<9232x128xf32, #tpu.memory_space<vmem>>, vector<1x128xf32>
    %194 = vector.broadcast %193 : vector<1x128xf32> to vector<51x128xf32>
    %195 = arith.addf %192, %194 : vector<51x128xf32>
    %cst_78 = arith.constant 0.000000e+00 : f32
    %196 = vector.broadcast %cst_78 : f32 to vector<51x128xf32>
    %c1936 = arith.constant 1936 : index
    %c0_79 = arith.constant 0 : index
    %197 = vector.load %arg2[%c1936, %c0_79] : memref<9232x128xf32, #tpu.memory_space<vmem>>, vector<128x128xf32>
    %cst_80 = arith.constant dense<0.000000e+00> : vector<51x128xf32>
    %198 = tpu.matmul %195, %197, %cst_80 {dimension_numbers = #tpu.dot_dimension_numbers<[1], [0], [0], [1], [0, 0, 1, 1], [], []>} : vector<51x128xf32>, vector<128x128xf32>, vector<51x128xf32> -> vector<51x128xf32>
    %199 = tpu.iota {dimensions = array<i32: 0>} : vector<51x51xi32>
    %200 = tpu.iota {dimensions = array<i32: 1>} : vector<51x51xi32>
    %c1_i32_81 = arith.constant 1 : i32
    %201 = vector.broadcast %c1_i32_81 : i32 to vector<51x51xi32>
    %202 = arith.muli %201, %199 : vector<51x51xi32>
    %c-1_i32_82 = arith.constant -1 : i32
    %203 = vector.broadcast %c-1_i32_82 : i32 to vector<51x51xi32>
    %204 = arith.addi %202, %203 : vector<51x51xi32>
    %205 = arith.cmpi eq, %200, %204 : vector<51x51xi32>
    %206 = arith.extui %205 : vector<51x51xi1> to vector<51x51xi32>
    %207 = arith.sitofp %206 : vector<51x51xi32> to vector<51x51xf32>
    %cst_83 = arith.constant dense<0.000000e+00> : vector<51x128xf32>
    %208 = tpu.matmul %207, %198, %cst_83 {dimension_numbers = #tpu.dot_dimension_numbers<[1], [0], [0], [1], [0, 0, 1, 1], [], []>} : vector<51x51xf32>, vector<51x128xf32>, vector<51x128xf32> -> vector<51x128xf32>
    %209 = arith.addf %196, %208 : vector<51x128xf32>
    %c2064 = arith.constant 2064 : index
    %c0_84 = arith.constant 0 : index
    %210 = vector.load %arg2[%c2064, %c0_84] : memref<9232x128xf32, #tpu.memory_space<vmem>>, vector<128x128xf32>
    %cst_85 = arith.constant dense<0.000000e+00> : vector<51x128xf32>
    %211 = tpu.matmul %195, %210, %cst_85 {dimension_numbers = #tpu.dot_dimension_numbers<[1], [0], [0], [1], [0, 0, 1, 1], [], []>} : vector<51x128xf32>, vector<128x128xf32>, vector<51x128xf32> -> vector<51x128xf32>
    %212 = tpu.iota {dimensions = array<i32: 0>} : vector<51x51xi32>
    %213 = tpu.iota {dimensions = array<i32: 1>} : vector<51x51xi32>
    %c1_i32_86 = arith.constant 1 : i32
    %214 = vector.broadcast %c1_i32_86 : i32 to vector<51x51xi32>
    %215 = arith.muli %214, %212 : vector<51x51xi32>
    %c0_i32_87 = arith.constant 0 : i32
    %216 = vector.broadcast %c0_i32_87 : i32 to vector<51x51xi32>
    %217 = arith.addi %215, %216 : vector<51x51xi32>
    %218 = arith.cmpi eq, %213, %217 : vector<51x51xi32>
    %219 = arith.extui %218 : vector<51x51xi1> to vector<51x51xi32>
    %220 = arith.sitofp %219 : vector<51x51xi32> to vector<51x51xf32>
    %cst_88 = arith.constant dense<0.000000e+00> : vector<51x128xf32>
    %221 = tpu.matmul %220, %211, %cst_88 {dimension_numbers = #tpu.dot_dimension_numbers<[1], [0], [0], [1], [0, 0, 1, 1], [], []>} : vector<51x51xf32>, vector<51x128xf32>, vector<51x128xf32> -> vector<51x128xf32>
    %222 = arith.addf %209, %221 : vector<51x128xf32>
    %c2192 = arith.constant 2192 : index
    %c0_89 = arith.constant 0 : index
    %223 = vector.load %arg2[%c2192, %c0_89] : memref<9232x128xf32, #tpu.memory_space<vmem>>, vector<128x128xf32>
    %cst_90 = arith.constant dense<0.000000e+00> : vector<51x128xf32>
    %224 = tpu.matmul %195, %223, %cst_90 {dimension_numbers = #tpu.dot_dimension_numbers<[1], [0], [0], [1], [0, 0, 1, 1], [], []>} : vector<51x128xf32>, vector<128x128xf32>, vector<51x128xf32> -> vector<51x128xf32>
    %225 = tpu.iota {dimensions = array<i32: 0>} : vector<51x51xi32>
    %226 = tpu.iota {dimensions = array<i32: 1>} : vector<51x51xi32>
    %c1_i32_91 = arith.constant 1 : i32
    %227 = vector.broadcast %c1_i32_91 : i32 to vector<51x51xi32>
    %228 = arith.muli %227, %225 : vector<51x51xi32>
    %c1_i32_92 = arith.constant 1 : i32
    %229 = vector.broadcast %c1_i32_92 : i32 to vector<51x51xi32>
    %230 = arith.addi %228, %229 : vector<51x51xi32>
    %231 = arith.cmpi eq, %226, %230 : vector<51x51xi32>
    %232 = arith.extui %231 : vector<51x51xi1> to vector<51x51xi32>
    %233 = arith.sitofp %232 : vector<51x51xi32> to vector<51x51xf32>
    %cst_93 = arith.constant dense<0.000000e+00> : vector<51x128xf32>
    %234 = tpu.matmul %233, %224, %cst_93 {dimension_numbers = #tpu.dot_dimension_numbers<[1], [0], [0], [1], [0, 0, 1, 1], [], []>} : vector<51x51xf32>, vector<51x128xf32>, vector<51x128xf32> -> vector<51x128xf32>
    %235 = arith.addf %222, %234 : vector<51x128xf32>
    %c2320 = arith.constant 2320 : index
    %c0_94 = arith.constant 0 : index
    %236 = vector.load %arg2[%c2320, %c0_94] : memref<9232x128xf32, #tpu.memory_space<vmem>>, vector<1x128xf32>
    %237 = vector.broadcast %236 : vector<1x128xf32> to vector<51x128xf32>
    %238 = arith.mulf %235, %237 : vector<51x128xf32>
    %c2328 = arith.constant 2328 : index
    %c0_95 = arith.constant 0 : index
    %239 = vector.load %arg2[%c2328, %c0_95] : memref<9232x128xf32, #tpu.memory_space<vmem>>, vector<1x128xf32>
    %240 = vector.broadcast %239 : vector<1x128xf32> to vector<51x128xf32>
    %241 = arith.addf %238, %240 : vector<51x128xf32>
    %cst_96 = arith.constant 0.000000e+00 : f32
    %242 = vector.broadcast %cst_96 : f32 to vector<51x128xf32>
    %243 = arith.maximumf %241, %242 : vector<51x128xf32>
    %cst_97 = arith.constant 0.000000e+00 : f32
    %244 = vector.broadcast %cst_97 : f32 to vector<51x128xf32>
    %c2336 = arith.constant 2336 : index
    %c0_98 = arith.constant 0 : index
    %245 = vector.load %arg2[%c2336, %c0_98] : memref<9232x128xf32, #tpu.memory_space<vmem>>, vector<128x128xf32>
    %cst_99 = arith.constant dense<0.000000e+00> : vector<51x128xf32>
    %246 = tpu.matmul %243, %245, %cst_99 {dimension_numbers = #tpu.dot_dimension_numbers<[1], [0], [0], [1], [0, 0, 1, 1], [], []>} : vector<51x128xf32>, vector<128x128xf32>, vector<51x128xf32> -> vector<51x128xf32>
    %247 = tpu.iota {dimensions = array<i32: 0>} : vector<51x51xi32>
    %248 = tpu.iota {dimensions = array<i32: 1>} : vector<51x51xi32>
    %c1_i32_100 = arith.constant 1 : i32
    %249 = vector.broadcast %c1_i32_100 : i32 to vector<51x51xi32>
    %250 = arith.muli %249, %247 : vector<51x51xi32>
    %c-1_i32_101 = arith.constant -1 : i32
    %251 = vector.broadcast %c-1_i32_101 : i32 to vector<51x51xi32>
    %252 = arith.addi %250, %251 : vector<51x51xi32>
    %253 = arith.cmpi eq, %248, %252 : vector<51x51xi32>
    %254 = arith.extui %253 : vector<51x51xi1> to vector<51x51xi32>
    %255 = arith.sitofp %254 : vector<51x51xi32> to vector<51x51xf32>
    %cst_102 = arith.constant dense<0.000000e+00> : vector<51x128xf32>
    %256 = tpu.matmul %255, %246, %cst_102 {dimension_numbers = #tpu.dot_dimension_numbers<[1], [0], [0], [1], [0, 0, 1, 1], [], []>} : vector<51x51xf32>, vector<51x128xf32>, vector<51x128xf32> -> vector<51x128xf32>
    %257 = arith.addf %244, %256 : vector<51x128xf32>
    %c2464 = arith.constant 2464 : index
    %c0_103 = arith.constant 0 : index
    %258 = vector.load %arg2[%c2464, %c0_103] : memref<9232x128xf32, #tpu.memory_space<vmem>>, vector<128x128xf32>
    %cst_104 = arith.constant dense<0.000000e+00> : vector<51x128xf32>
    %259 = tpu.matmul %243, %258, %cst_104 {dimension_numbers = #tpu.dot_dimension_numbers<[1], [0], [0], [1], [0, 0, 1, 1], [], []>} : vector<51x128xf32>, vector<128x128xf32>, vector<51x128xf32> -> vector<51x128xf32>
    %260 = tpu.iota {dimensions = array<i32: 0>} : vector<51x51xi32>
    %261 = tpu.iota {dimensions = array<i32: 1>} : vector<51x51xi32>
    %c1_i32_105 = arith.constant 1 : i32
    %262 = vector.broadcast %c1_i32_105 : i32 to vector<51x51xi32>
    %263 = arith.muli %262, %260 : vector<51x51xi32>
    %c0_i32_106 = arith.constant 0 : i32
    %264 = vector.broadcast %c0_i32_106 : i32 to vector<51x51xi32>
    %265 = arith.addi %263, %264 : vector<51x51xi32>
    %266 = arith.cmpi eq, %261, %265 : vector<51x51xi32>
    %267 = arith.extui %266 : vector<51x51xi1> to vector<51x51xi32>
    %268 = arith.sitofp %267 : vector<51x51xi32> to vector<51x51xf32>
    %cst_107 = arith.constant dense<0.000000e+00> : vector<51x128xf32>
    %269 = tpu.matmul %268, %259, %cst_107 {dimension_numbers = #tpu.dot_dimension_numbers<[1], [0], [0], [1], [0, 0, 1, 1], [], []>} : vector<51x51xf32>, vector<51x128xf32>, vector<51x128xf32> -> vector<51x128xf32>
    %270 = arith.addf %257, %269 : vector<51x128xf32>
    %c2592 = arith.constant 2592 : index
    %c0_108 = arith.constant 0 : index
    %271 = vector.load %arg2[%c2592, %c0_108] : memref<9232x128xf32, #tpu.memory_space<vmem>>, vector<128x128xf32>
    %cst_109 = arith.constant dense<0.000000e+00> : vector<51x128xf32>
    %272 = tpu.matmul %243, %271, %cst_109 {dimension_numbers = #tpu.dot_dimension_numbers<[1], [0], [0], [1], [0, 0, 1, 1], [], []>} : vector<51x128xf32>, vector<128x128xf32>, vector<51x128xf32> -> vector<51x128xf32>
    %273 = tpu.iota {dimensions = array<i32: 0>} : vector<51x51xi32>
    %274 = tpu.iota {dimensions = array<i32: 1>} : vector<51x51xi32>
    %c1_i32_110 = arith.constant 1 : i32
    %275 = vector.broadcast %c1_i32_110 : i32 to vector<51x51xi32>
    %276 = arith.muli %275, %273 : vector<51x51xi32>
    %c1_i32_111 = arith.constant 1 : i32
    %277 = vector.broadcast %c1_i32_111 : i32 to vector<51x51xi32>
    %278 = arith.addi %276, %277 : vector<51x51xi32>
    %279 = arith.cmpi eq, %274, %278 : vector<51x51xi32>
    %280 = arith.extui %279 : vector<51x51xi1> to vector<51x51xi32>
    %281 = arith.sitofp %280 : vector<51x51xi32> to vector<51x51xf32>
    %cst_112 = arith.constant dense<0.000000e+00> : vector<51x128xf32>
    %282 = tpu.matmul %281, %272, %cst_112 {dimension_numbers = #tpu.dot_dimension_numbers<[1], [0], [0], [1], [0, 0, 1, 1], [], []>} : vector<51x51xf32>, vector<51x128xf32>, vector<51x128xf32> -> vector<51x128xf32>
    %283 = arith.addf %270, %282 : vector<51x128xf32>
    %c2720 = arith.constant 2720 : index
    %c0_113 = arith.constant 0 : index
    %284 = vector.load %arg2[%c2720, %c0_113] : memref<9232x128xf32, #tpu.memory_space<vmem>>, vector<1x128xf32>
    %285 = vector.broadcast %284 : vector<1x128xf32> to vector<51x128xf32>
    %286 = arith.mulf %283, %285 : vector<51x128xf32>
    %c2728 = arith.constant 2728 : index
    %c0_114 = arith.constant 0 : index
    %287 = vector.load %arg2[%c2728, %c0_114] : memref<9232x128xf32, #tpu.memory_space<vmem>>, vector<1x128xf32>
    %288 = vector.broadcast %287 : vector<1x128xf32> to vector<51x128xf32>
    %289 = arith.addf %286, %288 : vector<51x128xf32>
    %290 = arith.addf %289, %195 : vector<51x128xf32>
    %cst_115 = arith.constant 0.000000e+00 : f32
    %291 = vector.broadcast %cst_115 : f32 to vector<51x128xf32>
    %292 = arith.maximumf %290, %291 : vector<51x128xf32>
    %c2736 = arith.constant 2736 : index
    %c0_116 = arith.constant 0 : index
    %293 = vector.load %arg2[%c2736, %c0_116] : memref<9232x128xf32, #tpu.memory_space<vmem>>, vector<51x128xf32>
    %294 = arith.addf %292, %293 : vector<51x128xf32>
    %c2792 = arith.constant 2792 : index
    %c0_117 = arith.constant 0 : index
    %295 = vector.load %arg2[%c2792, %c0_117] : memref<9232x128xf32, #tpu.memory_space<vmem>>, vector<128x128xf32>
    %cst_118 = arith.constant dense<0.000000e+00> : vector<51x128xf32>
    %296 = tpu.matmul %294, %295, %cst_118 {dimension_numbers = #tpu.dot_dimension_numbers<[1], [0], [0], [1], [0, 0, 1, 1], [], []>} : vector<51x128xf32>, vector<128x128xf32>, vector<51x128xf32> -> vector<51x128xf32>
    %c2920 = arith.constant 2920 : index
    %c0_119 = arith.constant 0 : index
    %297 = vector.load %arg2[%c2920, %c0_119] : memref<9232x128xf32, #tpu.memory_space<vmem>>, vector<1x128xf32>
    %298 = vector.broadcast %297 : vector<1x128xf32> to vector<51x128xf32>
    %299 = arith.addf %296, %298 : vector<51x128xf32>
    %c2928 = arith.constant 2928 : index
    %c0_120 = arith.constant 0 : index
    %300 = vector.load %arg2[%c2928, %c0_120] : memref<9232x128xf32, #tpu.memory_space<vmem>>, vector<128x128xf32>
    %cst_121 = arith.constant dense<0.000000e+00> : vector<51x128xf32>
    %301 = tpu.matmul %294, %300, %cst_121 {dimension_numbers = #tpu.dot_dimension_numbers<[1], [0], [0], [1], [0, 0, 1, 1], [], []>} : vector<51x128xf32>, vector<128x128xf32>, vector<51x128xf32> -> vector<51x128xf32>
    %c3056 = arith.constant 3056 : index
    %c0_122 = arith.constant 0 : index
    %302 = vector.load %arg2[%c3056, %c0_122] : memref<9232x128xf32, #tpu.memory_space<vmem>>, vector<1x128xf32>
    %303 = vector.broadcast %302 : vector<1x128xf32> to vector<51x128xf32>
    %304 = arith.addf %301, %303 : vector<51x128xf32>
    %c3064 = arith.constant 3064 : index
    %c0_123 = arith.constant 0 : index
    %305 = vector.load %arg2[%c3064, %c0_123] : memref<9232x128xf32, #tpu.memory_space<vmem>>, vector<128x128xf32>
    %cst_124 = arith.constant dense<0.000000e+00> : vector<51x128xf32>
    %306 = tpu.matmul %294, %305, %cst_124 {dimension_numbers = #tpu.dot_dimension_numbers<[1], [0], [0], [1], [0, 0, 1, 1], [], []>} : vector<51x128xf32>, vector<128x128xf32>, vector<51x128xf32> -> vector<51x128xf32>
    %c3192 = arith.constant 3192 : index
    %c0_125 = arith.constant 0 : index
    %307 = vector.load %arg2[%c3192, %c0_125] : memref<9232x128xf32, #tpu.memory_space<vmem>>, vector<1x128xf32>
    %308 = vector.broadcast %307 : vector<1x128xf32> to vector<51x128xf32>
    %309 = arith.addf %306, %308 : vector<51x128xf32>
    %cst_126 = arith.constant dense<0.000000e+00> : vector<51x51xf32>
    %310 = tpu.matmul %299, %304, %cst_126 {dimension_numbers = #tpu.dot_dimension_numbers<[1], [1], [0], [0], [0, 0, 1, 0], [], []>} : vector<51x128xf32>, vector<51x128xf32>, vector<51x51xf32> -> vector<51x51xf32>
    %cst_127 = arith.constant 0.144337565 : f32
    %311 = vector.broadcast %cst_127 : f32 to vector<51x51xf32>
    %312 = arith.mulf %310, %311 : vector<51x51xf32>
    %cst_128 = arith.constant dense<0xFF800000> : vector<51xf32>
    %313 = vector.multi_reduction <maximumf>, %312, %cst_128 [1] : vector<51x51xf32> to vector<51xf32>
    %314 = vector.shape_cast %313 : vector<51xf32> to vector<51x1xf32>
    %315 = vector.broadcast %314 : vector<51x1xf32> to vector<51x51xf32>
    %316 = arith.subf %312, %315 : vector<51x51xf32>
    %317 = math.exp %316 : vector<51x51xf32>
    %cst_129 = arith.constant dense<0.000000e+00> : vector<51xf32>
    %318 = vector.multi_reduction <add>, %317, %cst_129 [1] : vector<51x51xf32> to vector<51xf32>
    %319 = vector.shape_cast %318 : vector<51xf32> to vector<51x1xf32>
    %320 = tpu.reciprocal %319 {approx = true} : vector<51x1xf32> -> vector<51x1xf32>
    %321 = vector.broadcast %320 : vector<51x1xf32> to vector<51x51xf32>
    %322 = arith.mulf %317, %321 : vector<51x51xf32>
    %cst_130 = arith.constant dense<0.000000e+00> : vector<51x128xf32>
    %323 = tpu.matmul %322, %309, %cst_130 {dimension_numbers = #tpu.dot_dimension_numbers<[1], [0], [0], [1], [0, 0, 1, 1], [], []>} : vector<51x51xf32>, vector<51x128xf32>, vector<51x128xf32> -> vector<51x128xf32>
    %c3200 = arith.constant 3200 : index
    %c0_131 = arith.constant 0 : index
    %324 = vector.load %arg2[%c3200, %c0_131] : memref<9232x128xf32, #tpu.memory_space<vmem>>, vector<128x128xf32>
    %cst_132 = arith.constant dense<0.000000e+00> : vector<51x128xf32>
    %325 = tpu.matmul %323, %324, %cst_132 {dimension_numbers = #tpu.dot_dimension_numbers<[1], [0], [0], [1], [0, 0, 1, 1], [], []>} : vector<51x128xf32>, vector<128x128xf32>, vector<51x128xf32> -> vector<51x128xf32>
    %c3328 = arith.constant 3328 : index
    %c0_133 = arith.constant 0 : index
    %326 = vector.load %arg2[%c3328, %c0_133] : memref<9232x128xf32, #tpu.memory_space<vmem>>, vector<1x128xf32>
    %327 = vector.broadcast %326 : vector<1x128xf32> to vector<51x128xf32>
    %328 = arith.addf %325, %327 : vector<51x128xf32>
    %329 = tpu.iota {dimensions = array<i32: 0>} : vector<26x51xi32>
    %330 = tpu.iota {dimensions = array<i32: 1>} : vector<26x51xi32>
    %c2_i32_134 = arith.constant 2 : i32
    %331 = vector.broadcast %c2_i32_134 : i32 to vector<26x51xi32>
    %332 = arith.muli %331, %329 : vector<26x51xi32>
    %c0_i32_135 = arith.constant 0 : i32
    %333 = vector.broadcast %c0_i32_135 : i32 to vector<26x51xi32>
    %334 = arith.addi %332, %333 : vector<26x51xi32>
    %335 = arith.cmpi eq, %330, %334 : vector<26x51xi32>
    %336 = arith.extui %335 : vector<26x51xi1> to vector<26x51xi32>
    %337 = arith.sitofp %336 : vector<26x51xi32> to vector<26x51xf32>
    %cst_136 = arith.constant dense<0.000000e+00> : vector<26x128xf32>
    %338 = tpu.matmul %337, %328, %cst_136 {dimension_numbers = #tpu.dot_dimension_numbers<[1], [0], [0], [1], [0, 0, 1, 1], [], []>} : vector<26x51xf32>, vector<51x128xf32>, vector<26x128xf32> -> vector<26x128xf32>
    %c4136 = arith.constant 4136 : index
    %c0_137 = arith.constant 0 : index
    %339 = vector.load %arg2[%c4136, %c0_137] : memref<9232x128xf32, #tpu.memory_space<vmem>>, vector<128x128xf32>
    %cst_138 = arith.constant dense<0.000000e+00> : vector<26x128xf32>
    %340 = tpu.matmul %338, %339, %cst_138 {dimension_numbers = #tpu.dot_dimension_numbers<[1], [0], [0], [1], [0, 0, 1, 1], [], []>} : vector<26x128xf32>, vector<128x128xf32>, vector<26x128xf32> -> vector<26x128xf32>
    %c4264 = arith.constant 4264 : index
    %c0_139 = arith.constant 0 : index
    %341 = vector.load %arg2[%c4264, %c0_139] : memref<9232x128xf32, #tpu.memory_space<vmem>>, vector<1x128xf32>
    %342 = vector.broadcast %341 : vector<1x128xf32> to vector<26x128xf32>
    %343 = arith.mulf %340, %342 : vector<26x128xf32>
    %c4272 = arith.constant 4272 : index
    %c0_140 = arith.constant 0 : index
    %344 = vector.load %arg2[%c4272, %c0_140] : memref<9232x128xf32, #tpu.memory_space<vmem>>, vector<1x128xf32>
    %345 = vector.broadcast %344 : vector<1x128xf32> to vector<26x128xf32>
    %346 = arith.addf %343, %345 : vector<26x128xf32>
    %cst_141 = arith.constant 0.000000e+00 : f32
    %347 = vector.broadcast %cst_141 : f32 to vector<26x128xf32>
    %c3336 = arith.constant 3336 : index
    %c0_142 = arith.constant 0 : index
    %348 = vector.load %arg2[%c3336, %c0_142] : memref<9232x128xf32, #tpu.memory_space<vmem>>, vector<128x128xf32>
    %cst_143 = arith.constant dense<0.000000e+00> : vector<51x128xf32>
    %349 = tpu.matmul %328, %348, %cst_143 {dimension_numbers = #tpu.dot_dimension_numbers<[1], [0], [0], [1], [0, 0, 1, 1], [], []>} : vector<51x128xf32>, vector<128x128xf32>, vector<51x128xf32> -> vector<51x128xf32>
    %350 = tpu.iota {dimensions = array<i32: 0>} : vector<26x51xi32>
    %351 = tpu.iota {dimensions = array<i32: 1>} : vector<26x51xi32>
    %c2_i32_144 = arith.constant 2 : i32
    %352 = vector.broadcast %c2_i32_144 : i32 to vector<26x51xi32>
    %353 = arith.muli %352, %350 : vector<26x51xi32>
    %c-1_i32_145 = arith.constant -1 : i32
    %354 = vector.broadcast %c-1_i32_145 : i32 to vector<26x51xi32>
    %355 = arith.addi %353, %354 : vector<26x51xi32>
    %356 = arith.cmpi eq, %351, %355 : vector<26x51xi32>
    %357 = arith.extui %356 : vector<26x51xi1> to vector<26x51xi32>
    %358 = arith.sitofp %357 : vector<26x51xi32> to vector<26x51xf32>
    %cst_146 = arith.constant dense<0.000000e+00> : vector<26x128xf32>
    %359 = tpu.matmul %358, %349, %cst_146 {dimension_numbers = #tpu.dot_dimension_numbers<[1], [0], [0], [1], [0, 0, 1, 1], [], []>} : vector<26x51xf32>, vector<51x128xf32>, vector<26x128xf32> -> vector<26x128xf32>
    %360 = arith.addf %347, %359 : vector<26x128xf32>
    %c3464 = arith.constant 3464 : index
    %c0_147 = arith.constant 0 : index
    %361 = vector.load %arg2[%c3464, %c0_147] : memref<9232x128xf32, #tpu.memory_space<vmem>>, vector<128x128xf32>
    %cst_148 = arith.constant dense<0.000000e+00> : vector<51x128xf32>
    %362 = tpu.matmul %328, %361, %cst_148 {dimension_numbers = #tpu.dot_dimension_numbers<[1], [0], [0], [1], [0, 0, 1, 1], [], []>} : vector<51x128xf32>, vector<128x128xf32>, vector<51x128xf32> -> vector<51x128xf32>
    %363 = tpu.iota {dimensions = array<i32: 0>} : vector<26x51xi32>
    %364 = tpu.iota {dimensions = array<i32: 1>} : vector<26x51xi32>
    %c2_i32_149 = arith.constant 2 : i32
    %365 = vector.broadcast %c2_i32_149 : i32 to vector<26x51xi32>
    %366 = arith.muli %365, %363 : vector<26x51xi32>
    %c0_i32_150 = arith.constant 0 : i32
    %367 = vector.broadcast %c0_i32_150 : i32 to vector<26x51xi32>
    %368 = arith.addi %366, %367 : vector<26x51xi32>
    %369 = arith.cmpi eq, %364, %368 : vector<26x51xi32>
    %370 = arith.extui %369 : vector<26x51xi1> to vector<26x51xi32>
    %371 = arith.sitofp %370 : vector<26x51xi32> to vector<26x51xf32>
    %cst_151 = arith.constant dense<0.000000e+00> : vector<26x128xf32>
    %372 = tpu.matmul %371, %362, %cst_151 {dimension_numbers = #tpu.dot_dimension_numbers<[1], [0], [0], [1], [0, 0, 1, 1], [], []>} : vector<26x51xf32>, vector<51x128xf32>, vector<26x128xf32> -> vector<26x128xf32>
    %373 = arith.addf %360, %372 : vector<26x128xf32>
    %c3592 = arith.constant 3592 : index
    %c0_152 = arith.constant 0 : index
    %374 = vector.load %arg2[%c3592, %c0_152] : memref<9232x128xf32, #tpu.memory_space<vmem>>, vector<128x128xf32>
    %cst_153 = arith.constant dense<0.000000e+00> : vector<51x128xf32>
    %375 = tpu.matmul %328, %374, %cst_153 {dimension_numbers = #tpu.dot_dimension_numbers<[1], [0], [0], [1], [0, 0, 1, 1], [], []>} : vector<51x128xf32>, vector<128x128xf32>, vector<51x128xf32> -> vector<51x128xf32>
    %376 = tpu.iota {dimensions = array<i32: 0>} : vector<26x51xi32>
    %377 = tpu.iota {dimensions = array<i32: 1>} : vector<26x51xi32>
    %c2_i32_154 = arith.constant 2 : i32
    %378 = vector.broadcast %c2_i32_154 : i32 to vector<26x51xi32>
    %379 = arith.muli %378, %376 : vector<26x51xi32>
    %c1_i32_155 = arith.constant 1 : i32
    %380 = vector.broadcast %c1_i32_155 : i32 to vector<26x51xi32>
    %381 = arith.addi %379, %380 : vector<26x51xi32>
    %382 = arith.cmpi eq, %377, %381 : vector<26x51xi32>
    %383 = arith.extui %382 : vector<26x51xi1> to vector<26x51xi32>
    %384 = arith.sitofp %383 : vector<26x51xi32> to vector<26x51xf32>
    %cst_156 = arith.constant dense<0.000000e+00> : vector<26x128xf32>
    %385 = tpu.matmul %384, %375, %cst_156 {dimension_numbers = #tpu.dot_dimension_numbers<[1], [0], [0], [1], [0, 0, 1, 1], [], []>} : vector<26x51xf32>, vector<51x128xf32>, vector<26x128xf32> -> vector<26x128xf32>
    %386 = arith.addf %373, %385 : vector<26x128xf32>
    %c3720 = arith.constant 3720 : index
    %c0_157 = arith.constant 0 : index
    %387 = vector.load %arg2[%c3720, %c0_157] : memref<9232x128xf32, #tpu.memory_space<vmem>>, vector<1x128xf32>
    %388 = vector.broadcast %387 : vector<1x128xf32> to vector<26x128xf32>
    %389 = arith.mulf %386, %388 : vector<26x128xf32>
    %c3728 = arith.constant 3728 : index
    %c0_158 = arith.constant 0 : index
    %390 = vector.load %arg2[%c3728, %c0_158] : memref<9232x128xf32, #tpu.memory_space<vmem>>, vector<1x128xf32>
    %391 = vector.broadcast %390 : vector<1x128xf32> to vector<26x128xf32>
    %392 = arith.addf %389, %391 : vector<26x128xf32>
    %cst_159 = arith.constant 0.000000e+00 : f32
    %393 = vector.broadcast %cst_159 : f32 to vector<26x128xf32>
    %394 = arith.maximumf %392, %393 : vector<26x128xf32>
    %cst_160 = arith.constant 0.000000e+00 : f32
    %395 = vector.broadcast %cst_160 : f32 to vector<26x128xf32>
    %c3736 = arith.constant 3736 : index
    %c0_161 = arith.constant 0 : index
    %396 = vector.load %arg2[%c3736, %c0_161] : memref<9232x128xf32, #tpu.memory_space<vmem>>, vector<128x128xf32>
    %cst_162 = arith.constant dense<0.000000e+00> : vector<26x128xf32>
    %397 = tpu.matmul %394, %396, %cst_162 {dimension_numbers = #tpu.dot_dimension_numbers<[1], [0], [0], [1], [0, 0, 1, 1], [], []>} : vector<26x128xf32>, vector<128x128xf32>, vector<26x128xf32> -> vector<26x128xf32>
    %398 = tpu.iota {dimensions = array<i32: 0>} : vector<26x26xi32>
    %399 = tpu.iota {dimensions = array<i32: 1>} : vector<26x26xi32>
    %c1_i32_163 = arith.constant 1 : i32
    %400 = vector.broadcast %c1_i32_163 : i32 to vector<26x26xi32>
    %401 = arith.muli %400, %398 : vector<26x26xi32>
    %c-1_i32_164 = arith.constant -1 : i32
    %402 = vector.broadcast %c-1_i32_164 : i32 to vector<26x26xi32>
    %403 = arith.addi %401, %402 : vector<26x26xi32>
    %404 = arith.cmpi eq, %399, %403 : vector<26x26xi32>
    %405 = arith.extui %404 : vector<26x26xi1> to vector<26x26xi32>
    %406 = arith.sitofp %405 : vector<26x26xi32> to vector<26x26xf32>
    %cst_165 = arith.constant dense<0.000000e+00> : vector<26x128xf32>
    %407 = tpu.matmul %406, %397, %cst_165 {dimension_numbers = #tpu.dot_dimension_numbers<[1], [0], [0], [1], [0, 0, 1, 1], [], []>} : vector<26x26xf32>, vector<26x128xf32>, vector<26x128xf32> -> vector<26x128xf32>
    %408 = arith.addf %395, %407 : vector<26x128xf32>
    %c3864 = arith.constant 3864 : index
    %c0_166 = arith.constant 0 : index
    %409 = vector.load %arg2[%c3864, %c0_166] : memref<9232x128xf32, #tpu.memory_space<vmem>>, vector<128x128xf32>
    %cst_167 = arith.constant dense<0.000000e+00> : vector<26x128xf32>
    %410 = tpu.matmul %394, %409, %cst_167 {dimension_numbers = #tpu.dot_dimension_numbers<[1], [0], [0], [1], [0, 0, 1, 1], [], []>} : vector<26x128xf32>, vector<128x128xf32>, vector<26x128xf32> -> vector<26x128xf32>
    %411 = tpu.iota {dimensions = array<i32: 0>} : vector<26x26xi32>
    %412 = tpu.iota {dimensions = array<i32: 1>} : vector<26x26xi32>
    %c1_i32_168 = arith.constant 1 : i32
    %413 = vector.broadcast %c1_i32_168 : i32 to vector<26x26xi32>
    %414 = arith.muli %413, %411 : vector<26x26xi32>
    %c0_i32_169 = arith.constant 0 : i32
    %415 = vector.broadcast %c0_i32_169 : i32 to vector<26x26xi32>
    %416 = arith.addi %414, %415 : vector<26x26xi32>
    %417 = arith.cmpi eq, %412, %416 : vector<26x26xi32>
    %418 = arith.extui %417 : vector<26x26xi1> to vector<26x26xi32>
    %419 = arith.sitofp %418 : vector<26x26xi32> to vector<26x26xf32>
    %cst_170 = arith.constant dense<0.000000e+00> : vector<26x128xf32>
    %420 = tpu.matmul %419, %410, %cst_170 {dimension_numbers = #tpu.dot_dimension_numbers<[1], [0], [0], [1], [0, 0, 1, 1], [], []>} : vector<26x26xf32>, vector<26x128xf32>, vector<26x128xf32> -> vector<26x128xf32>
    %421 = arith.addf %408, %420 : vector<26x128xf32>
    %c3992 = arith.constant 3992 : index
    %c0_171 = arith.constant 0 : index
    %422 = vector.load %arg2[%c3992, %c0_171] : memref<9232x128xf32, #tpu.memory_space<vmem>>, vector<128x128xf32>
    %cst_172 = arith.constant dense<0.000000e+00> : vector<26x128xf32>
    %423 = tpu.matmul %394, %422, %cst_172 {dimension_numbers = #tpu.dot_dimension_numbers<[1], [0], [0], [1], [0, 0, 1, 1], [], []>} : vector<26x128xf32>, vector<128x128xf32>, vector<26x128xf32> -> vector<26x128xf32>
    %424 = tpu.iota {dimensions = array<i32: 0>} : vector<26x26xi32>
    %425 = tpu.iota {dimensions = array<i32: 1>} : vector<26x26xi32>
    %c1_i32_173 = arith.constant 1 : i32
    %426 = vector.broadcast %c1_i32_173 : i32 to vector<26x26xi32>
    %427 = arith.muli %426, %424 : vector<26x26xi32>
    %c1_i32_174 = arith.constant 1 : i32
    %428 = vector.broadcast %c1_i32_174 : i32 to vector<26x26xi32>
    %429 = arith.addi %427, %428 : vector<26x26xi32>
    %430 = arith.cmpi eq, %425, %429 : vector<26x26xi32>
    %431 = arith.extui %430 : vector<26x26xi1> to vector<26x26xi32>
    %432 = arith.sitofp %431 : vector<26x26xi32> to vector<26x26xf32>
    %cst_175 = arith.constant dense<0.000000e+00> : vector<26x128xf32>
    %433 = tpu.matmul %432, %423, %cst_175 {dimension_numbers = #tpu.dot_dimension_numbers<[1], [0], [0], [1], [0, 0, 1, 1], [], []>} : vector<26x26xf32>, vector<26x128xf32>, vector<26x128xf32> -> vector<26x128xf32>
    %434 = arith.addf %421, %433 : vector<26x128xf32>
    %c4120 = arith.constant 4120 : index
    %c0_176 = arith.constant 0 : index
    %435 = vector.load %arg2[%c4120, %c0_176] : memref<9232x128xf32, #tpu.memory_space<vmem>>, vector<1x128xf32>
    %436 = vector.broadcast %435 : vector<1x128xf32> to vector<26x128xf32>
    %437 = arith.mulf %434, %436 : vector<26x128xf32>
    %c4128 = arith.constant 4128 : index
    %c0_177 = arith.constant 0 : index
    %438 = vector.load %arg2[%c4128, %c0_177] : memref<9232x128xf32, #tpu.memory_space<vmem>>, vector<1x128xf32>
    %439 = vector.broadcast %438 : vector<1x128xf32> to vector<26x128xf32>
    %440 = arith.addf %437, %439 : vector<26x128xf32>
    %441 = arith.addf %440, %346 : vector<26x128xf32>
    %cst_178 = arith.constant 0.000000e+00 : f32
    %442 = vector.broadcast %cst_178 : f32 to vector<26x128xf32>
    %443 = arith.maximumf %441, %442 : vector<26x128xf32>
    %c4280 = arith.constant 4280 : index
    %c0_179 = arith.constant 0 : index
    %444 = vector.load %arg2[%c4280, %c0_179] : memref<9232x128xf32, #tpu.memory_space<vmem>>, vector<26x128xf32>
    %445 = arith.addf %443, %444 : vector<26x128xf32>
    %c4312 = arith.constant 4312 : index
    %c0_180 = arith.constant 0 : index
    %446 = vector.load %arg2[%c4312, %c0_180] : memref<9232x128xf32, #tpu.memory_space<vmem>>, vector<128x128xf32>
    %cst_181 = arith.constant dense<0.000000e+00> : vector<26x128xf32>
    %447 = tpu.matmul %445, %446, %cst_181 {dimension_numbers = #tpu.dot_dimension_numbers<[1], [0], [0], [1], [0, 0, 1, 1], [], []>} : vector<26x128xf32>, vector<128x128xf32>, vector<26x128xf32> -> vector<26x128xf32>
    %c4440 = arith.constant 4440 : index
    %c0_182 = arith.constant 0 : index
    %448 = vector.load %arg2[%c4440, %c0_182] : memref<9232x128xf32, #tpu.memory_space<vmem>>, vector<1x128xf32>
    %449 = vector.broadcast %448 : vector<1x128xf32> to vector<26x128xf32>
    %450 = arith.addf %447, %449 : vector<26x128xf32>
    %c4448 = arith.constant 4448 : index
    %c0_183 = arith.constant 0 : index
    %451 = vector.load %arg2[%c4448, %c0_183] : memref<9232x128xf32, #tpu.memory_space<vmem>>, vector<128x128xf32>
    %cst_184 = arith.constant dense<0.000000e+00> : vector<26x128xf32>
    %452 = tpu.matmul %445, %451, %cst_184 {dimension_numbers = #tpu.dot_dimension_numbers<[1], [0], [0], [1], [0, 0, 1, 1], [], []>} : vector<26x128xf32>, vector<128x128xf32>, vector<26x128xf32> -> vector<26x128xf32>
    %c4576 = arith.constant 4576 : index
    %c0_185 = arith.constant 0 : index
    %453 = vector.load %arg2[%c4576, %c0_185] : memref<9232x128xf32, #tpu.memory_space<vmem>>, vector<1x128xf32>
    %454 = vector.broadcast %453 : vector<1x128xf32> to vector<26x128xf32>
    %455 = arith.addf %452, %454 : vector<26x128xf32>
    %c4584 = arith.constant 4584 : index
    %c0_186 = arith.constant 0 : index
    %456 = vector.load %arg2[%c4584, %c0_186] : memref<9232x128xf32, #tpu.memory_space<vmem>>, vector<128x128xf32>
    %cst_187 = arith.constant dense<0.000000e+00> : vector<26x128xf32>
    %457 = tpu.matmul %445, %456, %cst_187 {dimension_numbers = #tpu.dot_dimension_numbers<[1], [0], [0], [1], [0, 0, 1, 1], [], []>} : vector<26x128xf32>, vector<128x128xf32>, vector<26x128xf32> -> vector<26x128xf32>
    %c4712 = arith.constant 4712 : index
    %c0_188 = arith.constant 0 : index
    %458 = vector.load %arg2[%c4712, %c0_188] : memref<9232x128xf32, #tpu.memory_space<vmem>>, vector<1x128xf32>
    %459 = vector.broadcast %458 : vector<1x128xf32> to vector<26x128xf32>
    %460 = arith.addf %457, %459 : vector<26x128xf32>
    %cst_189 = arith.constant dense<0.000000e+00> : vector<26x26xf32>
    %461 = tpu.matmul %450, %455, %cst_189 {dimension_numbers = #tpu.dot_dimension_numbers<[1], [1], [0], [0], [0, 0, 1, 0], [], []>} : vector<26x128xf32>, vector<26x128xf32>, vector<26x26xf32> -> vector<26x26xf32>
    %cst_190 = arith.constant 0.117851131 : f32
    %462 = vector.broadcast %cst_190 : f32 to vector<26x26xf32>
    %463 = arith.mulf %461, %462 : vector<26x26xf32>
    %cst_191 = arith.constant dense<0xFF800000> : vector<26xf32>
    %464 = vector.multi_reduction <maximumf>, %463, %cst_191 [1] : vector<26x26xf32> to vector<26xf32>
    %465 = vector.shape_cast %464 : vector<26xf32> to vector<26x1xf32>
    %466 = vector.broadcast %465 : vector<26x1xf32> to vector<26x26xf32>
    %467 = arith.subf %463, %466 : vector<26x26xf32>
    %468 = math.exp %467 : vector<26x26xf32>
    %cst_192 = arith.constant dense<0.000000e+00> : vector<26xf32>
    %469 = vector.multi_reduction <add>, %468, %cst_192 [1] : vector<26x26xf32> to vector<26xf32>
    %470 = vector.shape_cast %469 : vector<26xf32> to vector<26x1xf32>
    %471 = tpu.reciprocal %470 {approx = true} : vector<26x1xf32> -> vector<26x1xf32>
    %472 = vector.broadcast %471 : vector<26x1xf32> to vector<26x26xf32>
    %473 = arith.mulf %468, %472 : vector<26x26xf32>
    %cst_193 = arith.constant dense<0.000000e+00> : vector<26x128xf32>
    %474 = tpu.matmul %473, %460, %cst_193 {dimension_numbers = #tpu.dot_dimension_numbers<[1], [0], [0], [1], [0, 0, 1, 1], [], []>} : vector<26x26xf32>, vector<26x128xf32>, vector<26x128xf32> -> vector<26x128xf32>
    %c4720 = arith.constant 4720 : index
    %c0_194 = arith.constant 0 : index
    %475 = vector.load %arg2[%c4720, %c0_194] : memref<9232x128xf32, #tpu.memory_space<vmem>>, vector<128x128xf32>
    %cst_195 = arith.constant dense<0.000000e+00> : vector<26x128xf32>
    %476 = tpu.matmul %474, %475, %cst_195 {dimension_numbers = #tpu.dot_dimension_numbers<[1], [0], [0], [1], [0, 0, 1, 1], [], []>} : vector<26x128xf32>, vector<128x128xf32>, vector<26x128xf32> -> vector<26x128xf32>
    %c4848 = arith.constant 4848 : index
    %c0_196 = arith.constant 0 : index
    %477 = vector.load %arg2[%c4848, %c0_196] : memref<9232x128xf32, #tpu.memory_space<vmem>>, vector<1x128xf32>
    %478 = vector.broadcast %477 : vector<1x128xf32> to vector<26x128xf32>
    %479 = arith.addf %476, %478 : vector<26x128xf32>
    %cst_197 = arith.constant 0.000000e+00 : f32
    %480 = vector.broadcast %cst_197 : f32 to vector<26x128xf32>
    %c4856 = arith.constant 4856 : index
    %c0_198 = arith.constant 0 : index
    %481 = vector.load %arg2[%c4856, %c0_198] : memref<9232x128xf32, #tpu.memory_space<vmem>>, vector<128x128xf32>
    %cst_199 = arith.constant dense<0.000000e+00> : vector<26x128xf32>
    %482 = tpu.matmul %479, %481, %cst_199 {dimension_numbers = #tpu.dot_dimension_numbers<[1], [0], [0], [1], [0, 0, 1, 1], [], []>} : vector<26x128xf32>, vector<128x128xf32>, vector<26x128xf32> -> vector<26x128xf32>
    %483 = tpu.iota {dimensions = array<i32: 0>} : vector<26x26xi32>
    %484 = tpu.iota {dimensions = array<i32: 1>} : vector<26x26xi32>
    %c1_i32_200 = arith.constant 1 : i32
    %485 = vector.broadcast %c1_i32_200 : i32 to vector<26x26xi32>
    %486 = arith.muli %485, %483 : vector<26x26xi32>
    %c-1_i32_201 = arith.constant -1 : i32
    %487 = vector.broadcast %c-1_i32_201 : i32 to vector<26x26xi32>
    %488 = arith.addi %486, %487 : vector<26x26xi32>
    %489 = arith.cmpi eq, %484, %488 : vector<26x26xi32>
    %490 = arith.extui %489 : vector<26x26xi1> to vector<26x26xi32>
    %491 = arith.sitofp %490 : vector<26x26xi32> to vector<26x26xf32>
    %cst_202 = arith.constant dense<0.000000e+00> : vector<26x128xf32>
    %492 = tpu.matmul %491, %482, %cst_202 {dimension_numbers = #tpu.dot_dimension_numbers<[1], [0], [0], [1], [0, 0, 1, 1], [], []>} : vector<26x26xf32>, vector<26x128xf32>, vector<26x128xf32> -> vector<26x128xf32>
    %493 = arith.addf %480, %492 : vector<26x128xf32>
    %c4984 = arith.constant 4984 : index
    %c0_203 = arith.constant 0 : index
    %494 = vector.load %arg2[%c4984, %c0_203] : memref<9232x128xf32, #tpu.memory_space<vmem>>, vector<128x128xf32>
    %cst_204 = arith.constant dense<0.000000e+00> : vector<26x128xf32>
    %495 = tpu.matmul %479, %494, %cst_204 {dimension_numbers = #tpu.dot_dimension_numbers<[1], [0], [0], [1], [0, 0, 1, 1], [], []>} : vector<26x128xf32>, vector<128x128xf32>, vector<26x128xf32> -> vector<26x128xf32>
    %496 = tpu.iota {dimensions = array<i32: 0>} : vector<26x26xi32>
    %497 = tpu.iota {dimensions = array<i32: 1>} : vector<26x26xi32>
    %c1_i32_205 = arith.constant 1 : i32
    %498 = vector.broadcast %c1_i32_205 : i32 to vector<26x26xi32>
    %499 = arith.muli %498, %496 : vector<26x26xi32>
    %c0_i32_206 = arith.constant 0 : i32
    %500 = vector.broadcast %c0_i32_206 : i32 to vector<26x26xi32>
    %501 = arith.addi %499, %500 : vector<26x26xi32>
    %502 = arith.cmpi eq, %497, %501 : vector<26x26xi32>
    %503 = arith.extui %502 : vector<26x26xi1> to vector<26x26xi32>
    %504 = arith.sitofp %503 : vector<26x26xi32> to vector<26x26xf32>
    %cst_207 = arith.constant dense<0.000000e+00> : vector<26x128xf32>
    %505 = tpu.matmul %504, %495, %cst_207 {dimension_numbers = #tpu.dot_dimension_numbers<[1], [0], [0], [1], [0, 0, 1, 1], [], []>} : vector<26x26xf32>, vector<26x128xf32>, vector<26x128xf32> -> vector<26x128xf32>
    %506 = arith.addf %493, %505 : vector<26x128xf32>
    %c5112 = arith.constant 5112 : index
    %c0_208 = arith.constant 0 : index
    %507 = vector.load %arg2[%c5112, %c0_208] : memref<9232x128xf32, #tpu.memory_space<vmem>>, vector<128x128xf32>
    %cst_209 = arith.constant dense<0.000000e+00> : vector<26x128xf32>
    %508 = tpu.matmul %479, %507, %cst_209 {dimension_numbers = #tpu.dot_dimension_numbers<[1], [0], [0], [1], [0, 0, 1, 1], [], []>} : vector<26x128xf32>, vector<128x128xf32>, vector<26x128xf32> -> vector<26x128xf32>
    %509 = tpu.iota {dimensions = array<i32: 0>} : vector<26x26xi32>
    %510 = tpu.iota {dimensions = array<i32: 1>} : vector<26x26xi32>
    %c1_i32_210 = arith.constant 1 : i32
    %511 = vector.broadcast %c1_i32_210 : i32 to vector<26x26xi32>
    %512 = arith.muli %511, %509 : vector<26x26xi32>
    %c1_i32_211 = arith.constant 1 : i32
    %513 = vector.broadcast %c1_i32_211 : i32 to vector<26x26xi32>
    %514 = arith.addi %512, %513 : vector<26x26xi32>
    %515 = arith.cmpi eq, %510, %514 : vector<26x26xi32>
    %516 = arith.extui %515 : vector<26x26xi1> to vector<26x26xi32>
    %517 = arith.sitofp %516 : vector<26x26xi32> to vector<26x26xf32>
    %cst_212 = arith.constant dense<0.000000e+00> : vector<26x128xf32>
    %518 = tpu.matmul %517, %508, %cst_212 {dimension_numbers = #tpu.dot_dimension_numbers<[1], [0], [0], [1], [0, 0, 1, 1], [], []>} : vector<26x26xf32>, vector<26x128xf32>, vector<26x128xf32> -> vector<26x128xf32>
    %519 = arith.addf %506, %518 : vector<26x128xf32>
    %c5240 = arith.constant 5240 : index
    %c0_213 = arith.constant 0 : index
    %520 = vector.load %arg2[%c5240, %c0_213] : memref<9232x128xf32, #tpu.memory_space<vmem>>, vector<1x128xf32>
    %521 = vector.broadcast %520 : vector<1x128xf32> to vector<26x128xf32>
    %522 = arith.mulf %519, %521 : vector<26x128xf32>
    %c5248 = arith.constant 5248 : index
    %c0_214 = arith.constant 0 : index
    %523 = vector.load %arg2[%c5248, %c0_214] : memref<9232x128xf32, #tpu.memory_space<vmem>>, vector<1x128xf32>
    %524 = vector.broadcast %523 : vector<1x128xf32> to vector<26x128xf32>
    %525 = arith.addf %522, %524 : vector<26x128xf32>
    %cst_215 = arith.constant 0.000000e+00 : f32
    %526 = vector.broadcast %cst_215 : f32 to vector<26x128xf32>
    %527 = arith.maximumf %525, %526 : vector<26x128xf32>
    %cst_216 = arith.constant 0.000000e+00 : f32
    %528 = vector.broadcast %cst_216 : f32 to vector<26x128xf32>
    %c5256 = arith.constant 5256 : index
    %c0_217 = arith.constant 0 : index
    %529 = vector.load %arg2[%c5256, %c0_217] : memref<9232x128xf32, #tpu.memory_space<vmem>>, vector<128x128xf32>
    %cst_218 = arith.constant dense<0.000000e+00> : vector<26x128xf32>
    %530 = tpu.matmul %527, %529, %cst_218 {dimension_numbers = #tpu.dot_dimension_numbers<[1], [0], [0], [1], [0, 0, 1, 1], [], []>} : vector<26x128xf32>, vector<128x128xf32>, vector<26x128xf32> -> vector<26x128xf32>
    %531 = tpu.iota {dimensions = array<i32: 0>} : vector<26x26xi32>
    %532 = tpu.iota {dimensions = array<i32: 1>} : vector<26x26xi32>
    %c1_i32_219 = arith.constant 1 : i32
    %533 = vector.broadcast %c1_i32_219 : i32 to vector<26x26xi32>
    %534 = arith.muli %533, %531 : vector<26x26xi32>
    %c-1_i32_220 = arith.constant -1 : i32
    %535 = vector.broadcast %c-1_i32_220 : i32 to vector<26x26xi32>
    %536 = arith.addi %534, %535 : vector<26x26xi32>
    %537 = arith.cmpi eq, %532, %536 : vector<26x26xi32>
    %538 = arith.extui %537 : vector<26x26xi1> to vector<26x26xi32>
    %539 = arith.sitofp %538 : vector<26x26xi32> to vector<26x26xf32>
    %cst_221 = arith.constant dense<0.000000e+00> : vector<26x128xf32>
    %540 = tpu.matmul %539, %530, %cst_221 {dimension_numbers = #tpu.dot_dimension_numbers<[1], [0], [0], [1], [0, 0, 1, 1], [], []>} : vector<26x26xf32>, vector<26x128xf32>, vector<26x128xf32> -> vector<26x128xf32>
    %541 = arith.addf %528, %540 : vector<26x128xf32>
    %c5384 = arith.constant 5384 : index
    %c0_222 = arith.constant 0 : index
    %542 = vector.load %arg2[%c5384, %c0_222] : memref<9232x128xf32, #tpu.memory_space<vmem>>, vector<128x128xf32>
    %cst_223 = arith.constant dense<0.000000e+00> : vector<26x128xf32>
    %543 = tpu.matmul %527, %542, %cst_223 {dimension_numbers = #tpu.dot_dimension_numbers<[1], [0], [0], [1], [0, 0, 1, 1], [], []>} : vector<26x128xf32>, vector<128x128xf32>, vector<26x128xf32> -> vector<26x128xf32>
    %544 = tpu.iota {dimensions = array<i32: 0>} : vector<26x26xi32>
    %545 = tpu.iota {dimensions = array<i32: 1>} : vector<26x26xi32>
    %c1_i32_224 = arith.constant 1 : i32
    %546 = vector.broadcast %c1_i32_224 : i32 to vector<26x26xi32>
    %547 = arith.muli %546, %544 : vector<26x26xi32>
    %c0_i32_225 = arith.constant 0 : i32
    %548 = vector.broadcast %c0_i32_225 : i32 to vector<26x26xi32>
    %549 = arith.addi %547, %548 : vector<26x26xi32>
    %550 = arith.cmpi eq, %545, %549 : vector<26x26xi32>
    %551 = arith.extui %550 : vector<26x26xi1> to vector<26x26xi32>
    %552 = arith.sitofp %551 : vector<26x26xi32> to vector<26x26xf32>
    %cst_226 = arith.constant dense<0.000000e+00> : vector<26x128xf32>
    %553 = tpu.matmul %552, %543, %cst_226 {dimension_numbers = #tpu.dot_dimension_numbers<[1], [0], [0], [1], [0, 0, 1, 1], [], []>} : vector<26x26xf32>, vector<26x128xf32>, vector<26x128xf32> -> vector<26x128xf32>
    %554 = arith.addf %541, %553 : vector<26x128xf32>
    %c5512 = arith.constant 5512 : index
    %c0_227 = arith.constant 0 : index
    %555 = vector.load %arg2[%c5512, %c0_227] : memref<9232x128xf32, #tpu.memory_space<vmem>>, vector<128x128xf32>
    %cst_228 = arith.constant dense<0.000000e+00> : vector<26x128xf32>
    %556 = tpu.matmul %527, %555, %cst_228 {dimension_numbers = #tpu.dot_dimension_numbers<[1], [0], [0], [1], [0, 0, 1, 1], [], []>} : vector<26x128xf32>, vector<128x128xf32>, vector<26x128xf32> -> vector<26x128xf32>
    %557 = tpu.iota {dimensions = array<i32: 0>} : vector<26x26xi32>
    %558 = tpu.iota {dimensions = array<i32: 1>} : vector<26x26xi32>
    %c1_i32_229 = arith.constant 1 : i32
    %559 = vector.broadcast %c1_i32_229 : i32 to vector<26x26xi32>
    %560 = arith.muli %559, %557 : vector<26x26xi32>
    %c1_i32_230 = arith.constant 1 : i32
    %561 = vector.broadcast %c1_i32_230 : i32 to vector<26x26xi32>
    %562 = arith.addi %560, %561 : vector<26x26xi32>
    %563 = arith.cmpi eq, %558, %562 : vector<26x26xi32>
    %564 = arith.extui %563 : vector<26x26xi1> to vector<26x26xi32>
    %565 = arith.sitofp %564 : vector<26x26xi32> to vector<26x26xf32>
    %cst_231 = arith.constant dense<0.000000e+00> : vector<26x128xf32>
    %566 = tpu.matmul %565, %556, %cst_231 {dimension_numbers = #tpu.dot_dimension_numbers<[1], [0], [0], [1], [0, 0, 1, 1], [], []>} : vector<26x26xf32>, vector<26x128xf32>, vector<26x128xf32> -> vector<26x128xf32>
    %567 = arith.addf %554, %566 : vector<26x128xf32>
    %c5640 = arith.constant 5640 : index
    %c0_232 = arith.constant 0 : index
    %568 = vector.load %arg2[%c5640, %c0_232] : memref<9232x128xf32, #tpu.memory_space<vmem>>, vector<1x128xf32>
    %569 = vector.broadcast %568 : vector<1x128xf32> to vector<26x128xf32>
    %570 = arith.mulf %567, %569 : vector<26x128xf32>
    %c5648 = arith.constant 5648 : index
    %c0_233 = arith.constant 0 : index
    %571 = vector.load %arg2[%c5648, %c0_233] : memref<9232x128xf32, #tpu.memory_space<vmem>>, vector<1x128xf32>
    %572 = vector.broadcast %571 : vector<1x128xf32> to vector<26x128xf32>
    %573 = arith.addf %570, %572 : vector<26x128xf32>
    %574 = arith.addf %573, %479 : vector<26x128xf32>
    %cst_234 = arith.constant 0.000000e+00 : f32
    %575 = vector.broadcast %cst_234 : f32 to vector<26x128xf32>
    %576 = arith.maximumf %574, %575 : vector<26x128xf32>
    %c5656 = arith.constant 5656 : index
    %c0_235 = arith.constant 0 : index
    %577 = vector.load %arg2[%c5656, %c0_235] : memref<9232x128xf32, #tpu.memory_space<vmem>>, vector<26x128xf32>
    %578 = arith.addf %576, %577 : vector<26x128xf32>
    %c5688 = arith.constant 5688 : index
    %c0_236 = arith.constant 0 : index
    %579 = vector.load %arg2[%c5688, %c0_236] : memref<9232x128xf32, #tpu.memory_space<vmem>>, vector<128x128xf32>
    %cst_237 = arith.constant dense<0.000000e+00> : vector<26x128xf32>
    %580 = tpu.matmul %578, %579, %cst_237 {dimension_numbers = #tpu.dot_dimension_numbers<[1], [0], [0], [1], [0, 0, 1, 1], [], []>} : vector<26x128xf32>, vector<128x128xf32>, vector<26x128xf32> -> vector<26x128xf32>
    %c5816 = arith.constant 5816 : index
    %c0_238 = arith.constant 0 : index
    %581 = vector.load %arg2[%c5816, %c0_238] : memref<9232x128xf32, #tpu.memory_space<vmem>>, vector<1x128xf32>
    %582 = vector.broadcast %581 : vector<1x128xf32> to vector<26x128xf32>
    %583 = arith.addf %580, %582 : vector<26x128xf32>
    %c5824 = arith.constant 5824 : index
    %c0_239 = arith.constant 0 : index
    %584 = vector.load %arg2[%c5824, %c0_239] : memref<9232x128xf32, #tpu.memory_space<vmem>>, vector<128x128xf32>
    %cst_240 = arith.constant dense<0.000000e+00> : vector<26x128xf32>
    %585 = tpu.matmul %578, %584, %cst_240 {dimension_numbers = #tpu.dot_dimension_numbers<[1], [0], [0], [1], [0, 0, 1, 1], [], []>} : vector<26x128xf32>, vector<128x128xf32>, vector<26x128xf32> -> vector<26x128xf32>
    %c5952 = arith.constant 5952 : index
    %c0_241 = arith.constant 0 : index
    %586 = vector.load %arg2[%c5952, %c0_241] : memref<9232x128xf32, #tpu.memory_space<vmem>>, vector<1x128xf32>
    %587 = vector.broadcast %586 : vector<1x128xf32> to vector<26x128xf32>
    %588 = arith.addf %585, %587 : vector<26x128xf32>
    %c5960 = arith.constant 5960 : index
    %c0_242 = arith.constant 0 : index
    %589 = vector.load %arg2[%c5960, %c0_242] : memref<9232x128xf32, #tpu.memory_space<vmem>>, vector<128x128xf32>
    %cst_243 = arith.constant dense<0.000000e+00> : vector<26x128xf32>
    %590 = tpu.matmul %578, %589, %cst_243 {dimension_numbers = #tpu.dot_dimension_numbers<[1], [0], [0], [1], [0, 0, 1, 1], [], []>} : vector<26x128xf32>, vector<128x128xf32>, vector<26x128xf32> -> vector<26x128xf32>
    %c6088 = arith.constant 6088 : index
    %c0_244 = arith.constant 0 : index
    %591 = vector.load %arg2[%c6088, %c0_244] : memref<9232x128xf32, #tpu.memory_space<vmem>>, vector<1x128xf32>
    %592 = vector.broadcast %591 : vector<1x128xf32> to vector<26x128xf32>
    %593 = arith.addf %590, %592 : vector<26x128xf32>
    %cst_245 = arith.constant dense<0.000000e+00> : vector<26x26xf32>
    %594 = tpu.matmul %583, %588, %cst_245 {dimension_numbers = #tpu.dot_dimension_numbers<[1], [1], [0], [0], [0, 0, 1, 0], [], []>} : vector<26x128xf32>, vector<26x128xf32>, vector<26x26xf32> -> vector<26x26xf32>
    %cst_246 = arith.constant 0.117851131 : f32
    %595 = vector.broadcast %cst_246 : f32 to vector<26x26xf32>
    %596 = arith.mulf %594, %595 : vector<26x26xf32>
    %cst_247 = arith.constant dense<0xFF800000> : vector<26xf32>
    %597 = vector.multi_reduction <maximumf>, %596, %cst_247 [1] : vector<26x26xf32> to vector<26xf32>
    %598 = vector.shape_cast %597 : vector<26xf32> to vector<26x1xf32>
    %599 = vector.broadcast %598 : vector<26x1xf32> to vector<26x26xf32>
    %600 = arith.subf %596, %599 : vector<26x26xf32>
    %601 = math.exp %600 : vector<26x26xf32>
    %cst_248 = arith.constant dense<0.000000e+00> : vector<26xf32>
    %602 = vector.multi_reduction <add>, %601, %cst_248 [1] : vector<26x26xf32> to vector<26xf32>
    %603 = vector.shape_cast %602 : vector<26xf32> to vector<26x1xf32>
    %604 = tpu.reciprocal %603 {approx = true} : vector<26x1xf32> -> vector<26x1xf32>
    %605 = vector.broadcast %604 : vector<26x1xf32> to vector<26x26xf32>
    %606 = arith.mulf %601, %605 : vector<26x26xf32>
    %cst_249 = arith.constant dense<0.000000e+00> : vector<26x128xf32>
    %607 = tpu.matmul %606, %593, %cst_249 {dimension_numbers = #tpu.dot_dimension_numbers<[1], [0], [0], [1], [0, 0, 1, 1], [], []>} : vector<26x26xf32>, vector<26x128xf32>, vector<26x128xf32> -> vector<26x128xf32>
    %c6096 = arith.constant 6096 : index
    %c0_250 = arith.constant 0 : index
    %608 = vector.load %arg2[%c6096, %c0_250] : memref<9232x128xf32, #tpu.memory_space<vmem>>, vector<128x128xf32>
    %cst_251 = arith.constant dense<0.000000e+00> : vector<26x128xf32>
    %609 = tpu.matmul %607, %608, %cst_251 {dimension_numbers = #tpu.dot_dimension_numbers<[1], [0], [0], [1], [0, 0, 1, 1], [], []>} : vector<26x128xf32>, vector<128x128xf32>, vector<26x128xf32> -> vector<26x128xf32>
    %c6224 = arith.constant 6224 : index
    %c0_252 = arith.constant 0 : index
    %610 = vector.load %arg2[%c6224, %c0_252] : memref<9232x128xf32, #tpu.memory_space<vmem>>, vector<1x128xf32>
    %611 = vector.broadcast %610 : vector<1x128xf32> to vector<26x128xf32>
    %612 = arith.addf %609, %611 : vector<26x128xf32>
    %613 = tpu.iota {dimensions = array<i32: 0>} : vector<13x26xi32>
    %614 = tpu.iota {dimensions = array<i32: 1>} : vector<13x26xi32>
    %c2_i32_253 = arith.constant 2 : i32
    %615 = vector.broadcast %c2_i32_253 : i32 to vector<13x26xi32>
    %616 = arith.muli %615, %613 : vector<13x26xi32>
    %c0_i32_254 = arith.constant 0 : i32
    %617 = vector.broadcast %c0_i32_254 : i32 to vector<13x26xi32>
    %618 = arith.addi %616, %617 : vector<13x26xi32>
    %619 = arith.cmpi eq, %614, %618 : vector<13x26xi32>
    %620 = arith.extui %619 : vector<13x26xi1> to vector<13x26xi32>
    %621 = arith.sitofp %620 : vector<13x26xi32> to vector<13x26xf32>
    %cst_255 = arith.constant dense<0.000000e+00> : vector<13x128xf32>
    %622 = tpu.matmul %621, %612, %cst_255 {dimension_numbers = #tpu.dot_dimension_numbers<[1], [0], [0], [1], [0, 0, 1, 1], [], []>} : vector<13x26xf32>, vector<26x128xf32>, vector<13x128xf32> -> vector<13x128xf32>
    %c7032 = arith.constant 7032 : index
    %c0_256 = arith.constant 0 : index
    %623 = vector.load %arg2[%c7032, %c0_256] : memref<9232x128xf32, #tpu.memory_space<vmem>>, vector<128x128xf32>
    %cst_257 = arith.constant dense<0.000000e+00> : vector<13x128xf32>
    %624 = tpu.matmul %622, %623, %cst_257 {dimension_numbers = #tpu.dot_dimension_numbers<[1], [0], [0], [1], [0, 0, 1, 1], [], []>} : vector<13x128xf32>, vector<128x128xf32>, vector<13x128xf32> -> vector<13x128xf32>
    %c7160 = arith.constant 7160 : index
    %c0_258 = arith.constant 0 : index
    %625 = vector.load %arg2[%c7160, %c0_258] : memref<9232x128xf32, #tpu.memory_space<vmem>>, vector<1x128xf32>
    %626 = vector.broadcast %625 : vector<1x128xf32> to vector<13x128xf32>
    %627 = arith.mulf %624, %626 : vector<13x128xf32>
    %c7168 = arith.constant 7168 : index
    %c0_259 = arith.constant 0 : index
    %628 = vector.load %arg2[%c7168, %c0_259] : memref<9232x128xf32, #tpu.memory_space<vmem>>, vector<1x128xf32>
    %629 = vector.broadcast %628 : vector<1x128xf32> to vector<13x128xf32>
    %630 = arith.addf %627, %629 : vector<13x128xf32>
    %cst_260 = arith.constant 0.000000e+00 : f32
    %631 = vector.broadcast %cst_260 : f32 to vector<13x128xf32>
    %c6232 = arith.constant 6232 : index
    %c0_261 = arith.constant 0 : index
    %632 = vector.load %arg2[%c6232, %c0_261] : memref<9232x128xf32, #tpu.memory_space<vmem>>, vector<128x128xf32>
    %cst_262 = arith.constant dense<0.000000e+00> : vector<26x128xf32>
    %633 = tpu.matmul %612, %632, %cst_262 {dimension_numbers = #tpu.dot_dimension_numbers<[1], [0], [0], [1], [0, 0, 1, 1], [], []>} : vector<26x128xf32>, vector<128x128xf32>, vector<26x128xf32> -> vector<26x128xf32>
    %634 = tpu.iota {dimensions = array<i32: 0>} : vector<13x26xi32>
    %635 = tpu.iota {dimensions = array<i32: 1>} : vector<13x26xi32>
    %c2_i32_263 = arith.constant 2 : i32
    %636 = vector.broadcast %c2_i32_263 : i32 to vector<13x26xi32>
    %637 = arith.muli %636, %634 : vector<13x26xi32>
    %c-1_i32_264 = arith.constant -1 : i32
    %638 = vector.broadcast %c-1_i32_264 : i32 to vector<13x26xi32>
    %639 = arith.addi %637, %638 : vector<13x26xi32>
    %640 = arith.cmpi eq, %635, %639 : vector<13x26xi32>
    %641 = arith.extui %640 : vector<13x26xi1> to vector<13x26xi32>
    %642 = arith.sitofp %641 : vector<13x26xi32> to vector<13x26xf32>
    %cst_265 = arith.constant dense<0.000000e+00> : vector<13x128xf32>
    %643 = tpu.matmul %642, %633, %cst_265 {dimension_numbers = #tpu.dot_dimension_numbers<[1], [0], [0], [1], [0, 0, 1, 1], [], []>} : vector<13x26xf32>, vector<26x128xf32>, vector<13x128xf32> -> vector<13x128xf32>
    %644 = arith.addf %631, %643 : vector<13x128xf32>
    %c6360 = arith.constant 6360 : index
    %c0_266 = arith.constant 0 : index
    %645 = vector.load %arg2[%c6360, %c0_266] : memref<9232x128xf32, #tpu.memory_space<vmem>>, vector<128x128xf32>
    %cst_267 = arith.constant dense<0.000000e+00> : vector<26x128xf32>
    %646 = tpu.matmul %612, %645, %cst_267 {dimension_numbers = #tpu.dot_dimension_numbers<[1], [0], [0], [1], [0, 0, 1, 1], [], []>} : vector<26x128xf32>, vector<128x128xf32>, vector<26x128xf32> -> vector<26x128xf32>
    %647 = tpu.iota {dimensions = array<i32: 0>} : vector<13x26xi32>
    %648 = tpu.iota {dimensions = array<i32: 1>} : vector<13x26xi32>
    %c2_i32_268 = arith.constant 2 : i32
    %649 = vector.broadcast %c2_i32_268 : i32 to vector<13x26xi32>
    %650 = arith.muli %649, %647 : vector<13x26xi32>
    %c0_i32_269 = arith.constant 0 : i32
    %651 = vector.broadcast %c0_i32_269 : i32 to vector<13x26xi32>
    %652 = arith.addi %650, %651 : vector<13x26xi32>
    %653 = arith.cmpi eq, %648, %652 : vector<13x26xi32>
    %654 = arith.extui %653 : vector<13x26xi1> to vector<13x26xi32>
    %655 = arith.sitofp %654 : vector<13x26xi32> to vector<13x26xf32>
    %cst_270 = arith.constant dense<0.000000e+00> : vector<13x128xf32>
    %656 = tpu.matmul %655, %646, %cst_270 {dimension_numbers = #tpu.dot_dimension_numbers<[1], [0], [0], [1], [0, 0, 1, 1], [], []>} : vector<13x26xf32>, vector<26x128xf32>, vector<13x128xf32> -> vector<13x128xf32>
    %657 = arith.addf %644, %656 : vector<13x128xf32>
    %c6488 = arith.constant 6488 : index
    %c0_271 = arith.constant 0 : index
    %658 = vector.load %arg2[%c6488, %c0_271] : memref<9232x128xf32, #tpu.memory_space<vmem>>, vector<128x128xf32>
    %cst_272 = arith.constant dense<0.000000e+00> : vector<26x128xf32>
    %659 = tpu.matmul %612, %658, %cst_272 {dimension_numbers = #tpu.dot_dimension_numbers<[1], [0], [0], [1], [0, 0, 1, 1], [], []>} : vector<26x128xf32>, vector<128x128xf32>, vector<26x128xf32> -> vector<26x128xf32>
    %660 = tpu.iota {dimensions = array<i32: 0>} : vector<13x26xi32>
    %661 = tpu.iota {dimensions = array<i32: 1>} : vector<13x26xi32>
    %c2_i32_273 = arith.constant 2 : i32
    %662 = vector.broadcast %c2_i32_273 : i32 to vector<13x26xi32>
    %663 = arith.muli %662, %660 : vector<13x26xi32>
    %c1_i32_274 = arith.constant 1 : i32
    %664 = vector.broadcast %c1_i32_274 : i32 to vector<13x26xi32>
    %665 = arith.addi %663, %664 : vector<13x26xi32>
    %666 = arith.cmpi eq, %661, %665 : vector<13x26xi32>
    %667 = arith.extui %666 : vector<13x26xi1> to vector<13x26xi32>
    %668 = arith.sitofp %667 : vector<13x26xi32> to vector<13x26xf32>
    %cst_275 = arith.constant dense<0.000000e+00> : vector<13x128xf32>
    %669 = tpu.matmul %668, %659, %cst_275 {dimension_numbers = #tpu.dot_dimension_numbers<[1], [0], [0], [1], [0, 0, 1, 1], [], []>} : vector<13x26xf32>, vector<26x128xf32>, vector<13x128xf32> -> vector<13x128xf32>
    %670 = arith.addf %657, %669 : vector<13x128xf32>
    %c6616 = arith.constant 6616 : index
    %c0_276 = arith.constant 0 : index
    %671 = vector.load %arg2[%c6616, %c0_276] : memref<9232x128xf32, #tpu.memory_space<vmem>>, vector<1x128xf32>
    %672 = vector.broadcast %671 : vector<1x128xf32> to vector<13x128xf32>
    %673 = arith.mulf %670, %672 : vector<13x128xf32>
    %c6624 = arith.constant 6624 : index
    %c0_277 = arith.constant 0 : index
    %674 = vector.load %arg2[%c6624, %c0_277] : memref<9232x128xf32, #tpu.memory_space<vmem>>, vector<1x128xf32>
    %675 = vector.broadcast %674 : vector<1x128xf32> to vector<13x128xf32>
    %676 = arith.addf %673, %675 : vector<13x128xf32>
    %cst_278 = arith.constant 0.000000e+00 : f32
    %677 = vector.broadcast %cst_278 : f32 to vector<13x128xf32>
    %678 = arith.maximumf %676, %677 : vector<13x128xf32>
    %cst_279 = arith.constant 0.000000e+00 : f32
    %679 = vector.broadcast %cst_279 : f32 to vector<13x128xf32>
    %c6632 = arith.constant 6632 : index
    %c0_280 = arith.constant 0 : index
    %680 = vector.load %arg2[%c6632, %c0_280] : memref<9232x128xf32, #tpu.memory_space<vmem>>, vector<128x128xf32>
    %cst_281 = arith.constant dense<0.000000e+00> : vector<13x128xf32>
    %681 = tpu.matmul %678, %680, %cst_281 {dimension_numbers = #tpu.dot_dimension_numbers<[1], [0], [0], [1], [0, 0, 1, 1], [], []>} : vector<13x128xf32>, vector<128x128xf32>, vector<13x128xf32> -> vector<13x128xf32>
    %682 = tpu.iota {dimensions = array<i32: 0>} : vector<13x13xi32>
    %683 = tpu.iota {dimensions = array<i32: 1>} : vector<13x13xi32>
    %c1_i32_282 = arith.constant 1 : i32
    %684 = vector.broadcast %c1_i32_282 : i32 to vector<13x13xi32>
    %685 = arith.muli %684, %682 : vector<13x13xi32>
    %c-1_i32_283 = arith.constant -1 : i32
    %686 = vector.broadcast %c-1_i32_283 : i32 to vector<13x13xi32>
    %687 = arith.addi %685, %686 : vector<13x13xi32>
    %688 = arith.cmpi eq, %683, %687 : vector<13x13xi32>
    %689 = arith.extui %688 : vector<13x13xi1> to vector<13x13xi32>
    %690 = arith.sitofp %689 : vector<13x13xi32> to vector<13x13xf32>
    %cst_284 = arith.constant dense<0.000000e+00> : vector<13x128xf32>
    %691 = tpu.matmul %690, %681, %cst_284 {dimension_numbers = #tpu.dot_dimension_numbers<[1], [0], [0], [1], [0, 0, 1, 1], [], []>} : vector<13x13xf32>, vector<13x128xf32>, vector<13x128xf32> -> vector<13x128xf32>
    %692 = arith.addf %679, %691 : vector<13x128xf32>
    %c6760 = arith.constant 6760 : index
    %c0_285 = arith.constant 0 : index
    %693 = vector.load %arg2[%c6760, %c0_285] : memref<9232x128xf32, #tpu.memory_space<vmem>>, vector<128x128xf32>
    %cst_286 = arith.constant dense<0.000000e+00> : vector<13x128xf32>
    %694 = tpu.matmul %678, %693, %cst_286 {dimension_numbers = #tpu.dot_dimension_numbers<[1], [0], [0], [1], [0, 0, 1, 1], [], []>} : vector<13x128xf32>, vector<128x128xf32>, vector<13x128xf32> -> vector<13x128xf32>
    %695 = tpu.iota {dimensions = array<i32: 0>} : vector<13x13xi32>
    %696 = tpu.iota {dimensions = array<i32: 1>} : vector<13x13xi32>
    %c1_i32_287 = arith.constant 1 : i32
    %697 = vector.broadcast %c1_i32_287 : i32 to vector<13x13xi32>
    %698 = arith.muli %697, %695 : vector<13x13xi32>
    %c0_i32_288 = arith.constant 0 : i32
    %699 = vector.broadcast %c0_i32_288 : i32 to vector<13x13xi32>
    %700 = arith.addi %698, %699 : vector<13x13xi32>
    %701 = arith.cmpi eq, %696, %700 : vector<13x13xi32>
    %702 = arith.extui %701 : vector<13x13xi1> to vector<13x13xi32>
    %703 = arith.sitofp %702 : vector<13x13xi32> to vector<13x13xf32>
    %cst_289 = arith.constant dense<0.000000e+00> : vector<13x128xf32>
    %704 = tpu.matmul %703, %694, %cst_289 {dimension_numbers = #tpu.dot_dimension_numbers<[1], [0], [0], [1], [0, 0, 1, 1], [], []>} : vector<13x13xf32>, vector<13x128xf32>, vector<13x128xf32> -> vector<13x128xf32>
    %705 = arith.addf %692, %704 : vector<13x128xf32>
    %c6888 = arith.constant 6888 : index
    %c0_290 = arith.constant 0 : index
    %706 = vector.load %arg2[%c6888, %c0_290] : memref<9232x128xf32, #tpu.memory_space<vmem>>, vector<128x128xf32>
    %cst_291 = arith.constant dense<0.000000e+00> : vector<13x128xf32>
    %707 = tpu.matmul %678, %706, %cst_291 {dimension_numbers = #tpu.dot_dimension_numbers<[1], [0], [0], [1], [0, 0, 1, 1], [], []>} : vector<13x128xf32>, vector<128x128xf32>, vector<13x128xf32> -> vector<13x128xf32>
    %708 = tpu.iota {dimensions = array<i32: 0>} : vector<13x13xi32>
    %709 = tpu.iota {dimensions = array<i32: 1>} : vector<13x13xi32>
    %c1_i32_292 = arith.constant 1 : i32
    %710 = vector.broadcast %c1_i32_292 : i32 to vector<13x13xi32>
    %711 = arith.muli %710, %708 : vector<13x13xi32>
    %c1_i32_293 = arith.constant 1 : i32
    %712 = vector.broadcast %c1_i32_293 : i32 to vector<13x13xi32>
    %713 = arith.addi %711, %712 : vector<13x13xi32>
    %714 = arith.cmpi eq, %709, %713 : vector<13x13xi32>
    %715 = arith.extui %714 : vector<13x13xi1> to vector<13x13xi32>
    %716 = arith.sitofp %715 : vector<13x13xi32> to vector<13x13xf32>
    %cst_294 = arith.constant dense<0.000000e+00> : vector<13x128xf32>
    %717 = tpu.matmul %716, %707, %cst_294 {dimension_numbers = #tpu.dot_dimension_numbers<[1], [0], [0], [1], [0, 0, 1, 1], [], []>} : vector<13x13xf32>, vector<13x128xf32>, vector<13x128xf32> -> vector<13x128xf32>
    %718 = arith.addf %705, %717 : vector<13x128xf32>
    %c7016 = arith.constant 7016 : index
    %c0_295 = arith.constant 0 : index
    %719 = vector.load %arg2[%c7016, %c0_295] : memref<9232x128xf32, #tpu.memory_space<vmem>>, vector<1x128xf32>
    %720 = vector.broadcast %719 : vector<1x128xf32> to vector<13x128xf32>
    %721 = arith.mulf %718, %720 : vector<13x128xf32>
    %c7024 = arith.constant 7024 : index
    %c0_296 = arith.constant 0 : index
    %722 = vector.load %arg2[%c7024, %c0_296] : memref<9232x128xf32, #tpu.memory_space<vmem>>, vector<1x128xf32>
    %723 = vector.broadcast %722 : vector<1x128xf32> to vector<13x128xf32>
    %724 = arith.addf %721, %723 : vector<13x128xf32>
    %725 = arith.addf %724, %630 : vector<13x128xf32>
    %cst_297 = arith.constant 0.000000e+00 : f32
    %726 = vector.broadcast %cst_297 : f32 to vector<13x128xf32>
    %727 = arith.maximumf %725, %726 : vector<13x128xf32>
    %c7176 = arith.constant 7176 : index
    %c0_298 = arith.constant 0 : index
    %728 = vector.load %arg2[%c7176, %c0_298] : memref<9232x128xf32, #tpu.memory_space<vmem>>, vector<13x128xf32>
    %729 = arith.addf %727, %728 : vector<13x128xf32>
    %c7192 = arith.constant 7192 : index
    %c0_299 = arith.constant 0 : index
    %730 = vector.load %arg2[%c7192, %c0_299] : memref<9232x128xf32, #tpu.memory_space<vmem>>, vector<128x128xf32>
    %cst_300 = arith.constant dense<0.000000e+00> : vector<13x128xf32>
    %731 = tpu.matmul %729, %730, %cst_300 {dimension_numbers = #tpu.dot_dimension_numbers<[1], [0], [0], [1], [0, 0, 1, 1], [], []>} : vector<13x128xf32>, vector<128x128xf32>, vector<13x128xf32> -> vector<13x128xf32>
    %c7320 = arith.constant 7320 : index
    %c0_301 = arith.constant 0 : index
    %732 = vector.load %arg2[%c7320, %c0_301] : memref<9232x128xf32, #tpu.memory_space<vmem>>, vector<1x128xf32>
    %733 = vector.broadcast %732 : vector<1x128xf32> to vector<13x128xf32>
    %734 = arith.addf %731, %733 : vector<13x128xf32>
    %c7328 = arith.constant 7328 : index
    %c0_302 = arith.constant 0 : index
    %735 = vector.load %arg2[%c7328, %c0_302] : memref<9232x128xf32, #tpu.memory_space<vmem>>, vector<128x128xf32>
    %cst_303 = arith.constant dense<0.000000e+00> : vector<13x128xf32>
    %736 = tpu.matmul %729, %735, %cst_303 {dimension_numbers = #tpu.dot_dimension_numbers<[1], [0], [0], [1], [0, 0, 1, 1], [], []>} : vector<13x128xf32>, vector<128x128xf32>, vector<13x128xf32> -> vector<13x128xf32>
    %c7456 = arith.constant 7456 : index
    %c0_304 = arith.constant 0 : index
    %737 = vector.load %arg2[%c7456, %c0_304] : memref<9232x128xf32, #tpu.memory_space<vmem>>, vector<1x128xf32>
    %738 = vector.broadcast %737 : vector<1x128xf32> to vector<13x128xf32>
    %739 = arith.addf %736, %738 : vector<13x128xf32>
    %c7464 = arith.constant 7464 : index
    %c0_305 = arith.constant 0 : index
    %740 = vector.load %arg2[%c7464, %c0_305] : memref<9232x128xf32, #tpu.memory_space<vmem>>, vector<128x128xf32>
    %cst_306 = arith.constant dense<0.000000e+00> : vector<13x128xf32>
    %741 = tpu.matmul %729, %740, %cst_306 {dimension_numbers = #tpu.dot_dimension_numbers<[1], [0], [0], [1], [0, 0, 1, 1], [], []>} : vector<13x128xf32>, vector<128x128xf32>, vector<13x128xf32> -> vector<13x128xf32>
    %c7592 = arith.constant 7592 : index
    %c0_307 = arith.constant 0 : index
    %742 = vector.load %arg2[%c7592, %c0_307] : memref<9232x128xf32, #tpu.memory_space<vmem>>, vector<1x128xf32>
    %743 = vector.broadcast %742 : vector<1x128xf32> to vector<13x128xf32>
    %744 = arith.addf %741, %743 : vector<13x128xf32>
    %cst_308 = arith.constant dense<0.000000e+00> : vector<13x13xf32>
    %745 = tpu.matmul %734, %739, %cst_308 {dimension_numbers = #tpu.dot_dimension_numbers<[1], [1], [0], [0], [0, 0, 1, 0], [], []>} : vector<13x128xf32>, vector<13x128xf32>, vector<13x13xf32> -> vector<13x13xf32>
    %cst_309 = arith.constant 0.109108947 : f32
    %746 = vector.broadcast %cst_309 : f32 to vector<13x13xf32>
    %747 = arith.mulf %745, %746 : vector<13x13xf32>
    %cst_310 = arith.constant dense<0xFF800000> : vector<13xf32>
    %748 = vector.multi_reduction <maximumf>, %747, %cst_310 [1] : vector<13x13xf32> to vector<13xf32>
    %749 = vector.shape_cast %748 : vector<13xf32> to vector<13x1xf32>
    %750 = vector.broadcast %749 : vector<13x1xf32> to vector<13x13xf32>
    %751 = arith.subf %747, %750 : vector<13x13xf32>
    %752 = math.exp %751 : vector<13x13xf32>
    %cst_311 = arith.constant dense<0.000000e+00> : vector<13xf32>
    %753 = vector.multi_reduction <add>, %752, %cst_311 [1] : vector<13x13xf32> to vector<13xf32>
    %754 = vector.shape_cast %753 : vector<13xf32> to vector<13x1xf32>
    %755 = tpu.reciprocal %754 {approx = true} : vector<13x1xf32> -> vector<13x1xf32>
    %756 = vector.broadcast %755 : vector<13x1xf32> to vector<13x13xf32>
    %757 = arith.mulf %752, %756 : vector<13x13xf32>
    %cst_312 = arith.constant dense<0.000000e+00> : vector<13x128xf32>
    %758 = tpu.matmul %757, %744, %cst_312 {dimension_numbers = #tpu.dot_dimension_numbers<[1], [0], [0], [1], [0, 0, 1, 1], [], []>} : vector<13x13xf32>, vector<13x128xf32>, vector<13x128xf32> -> vector<13x128xf32>
    %c7600 = arith.constant 7600 : index
    %c0_313 = arith.constant 0 : index
    %759 = vector.load %arg2[%c7600, %c0_313] : memref<9232x128xf32, #tpu.memory_space<vmem>>, vector<128x128xf32>
    %cst_314 = arith.constant dense<0.000000e+00> : vector<13x128xf32>
    %760 = tpu.matmul %758, %759, %cst_314 {dimension_numbers = #tpu.dot_dimension_numbers<[1], [0], [0], [1], [0, 0, 1, 1], [], []>} : vector<13x128xf32>, vector<128x128xf32>, vector<13x128xf32> -> vector<13x128xf32>
    %c7728 = arith.constant 7728 : index
    %c0_315 = arith.constant 0 : index
    %761 = vector.load %arg2[%c7728, %c0_315] : memref<9232x128xf32, #tpu.memory_space<vmem>>, vector<1x128xf32>
    %762 = vector.broadcast %761 : vector<1x128xf32> to vector<13x128xf32>
    %763 = arith.addf %760, %762 : vector<13x128xf32>
    %cst_316 = arith.constant 0.000000e+00 : f32
    %764 = vector.broadcast %cst_316 : f32 to vector<13x128xf32>
    %c7736 = arith.constant 7736 : index
    %c0_317 = arith.constant 0 : index
    %765 = vector.load %arg2[%c7736, %c0_317] : memref<9232x128xf32, #tpu.memory_space<vmem>>, vector<128x128xf32>
    %cst_318 = arith.constant dense<0.000000e+00> : vector<13x128xf32>
    %766 = tpu.matmul %763, %765, %cst_318 {dimension_numbers = #tpu.dot_dimension_numbers<[1], [0], [0], [1], [0, 0, 1, 1], [], []>} : vector<13x128xf32>, vector<128x128xf32>, vector<13x128xf32> -> vector<13x128xf32>
    %767 = tpu.iota {dimensions = array<i32: 0>} : vector<13x13xi32>
    %768 = tpu.iota {dimensions = array<i32: 1>} : vector<13x13xi32>
    %c1_i32_319 = arith.constant 1 : i32
    %769 = vector.broadcast %c1_i32_319 : i32 to vector<13x13xi32>
    %770 = arith.muli %769, %767 : vector<13x13xi32>
    %c-1_i32_320 = arith.constant -1 : i32
    %771 = vector.broadcast %c-1_i32_320 : i32 to vector<13x13xi32>
    %772 = arith.addi %770, %771 : vector<13x13xi32>
    %773 = arith.cmpi eq, %768, %772 : vector<13x13xi32>
    %774 = arith.extui %773 : vector<13x13xi1> to vector<13x13xi32>
    %775 = arith.sitofp %774 : vector<13x13xi32> to vector<13x13xf32>
    %cst_321 = arith.constant dense<0.000000e+00> : vector<13x128xf32>
    %776 = tpu.matmul %775, %766, %cst_321 {dimension_numbers = #tpu.dot_dimension_numbers<[1], [0], [0], [1], [0, 0, 1, 1], [], []>} : vector<13x13xf32>, vector<13x128xf32>, vector<13x128xf32> -> vector<13x128xf32>
    %777 = arith.addf %764, %776 : vector<13x128xf32>
    %c7864 = arith.constant 7864 : index
    %c0_322 = arith.constant 0 : index
    %778 = vector.load %arg2[%c7864, %c0_322] : memref<9232x128xf32, #tpu.memory_space<vmem>>, vector<128x128xf32>
    %cst_323 = arith.constant dense<0.000000e+00> : vector<13x128xf32>
    %779 = tpu.matmul %763, %778, %cst_323 {dimension_numbers = #tpu.dot_dimension_numbers<[1], [0], [0], [1], [0, 0, 1, 1], [], []>} : vector<13x128xf32>, vector<128x128xf32>, vector<13x128xf32> -> vector<13x128xf32>
    %780 = tpu.iota {dimensions = array<i32: 0>} : vector<13x13xi32>
    %781 = tpu.iota {dimensions = array<i32: 1>} : vector<13x13xi32>
    %c1_i32_324 = arith.constant 1 : i32
    %782 = vector.broadcast %c1_i32_324 : i32 to vector<13x13xi32>
    %783 = arith.muli %782, %780 : vector<13x13xi32>
    %c0_i32_325 = arith.constant 0 : i32
    %784 = vector.broadcast %c0_i32_325 : i32 to vector<13x13xi32>
    %785 = arith.addi %783, %784 : vector<13x13xi32>
    %786 = arith.cmpi eq, %781, %785 : vector<13x13xi32>
    %787 = arith.extui %786 : vector<13x13xi1> to vector<13x13xi32>
    %788 = arith.sitofp %787 : vector<13x13xi32> to vector<13x13xf32>
    %cst_326 = arith.constant dense<0.000000e+00> : vector<13x128xf32>
    %789 = tpu.matmul %788, %779, %cst_326 {dimension_numbers = #tpu.dot_dimension_numbers<[1], [0], [0], [1], [0, 0, 1, 1], [], []>} : vector<13x13xf32>, vector<13x128xf32>, vector<13x128xf32> -> vector<13x128xf32>
    %790 = arith.addf %777, %789 : vector<13x128xf32>
    %c7992 = arith.constant 7992 : index
    %c0_327 = arith.constant 0 : index
    %791 = vector.load %arg2[%c7992, %c0_327] : memref<9232x128xf32, #tpu.memory_space<vmem>>, vector<128x128xf32>
    %cst_328 = arith.constant dense<0.000000e+00> : vector<13x128xf32>
    %792 = tpu.matmul %763, %791, %cst_328 {dimension_numbers = #tpu.dot_dimension_numbers<[1], [0], [0], [1], [0, 0, 1, 1], [], []>} : vector<13x128xf32>, vector<128x128xf32>, vector<13x128xf32> -> vector<13x128xf32>
    %793 = tpu.iota {dimensions = array<i32: 0>} : vector<13x13xi32>
    %794 = tpu.iota {dimensions = array<i32: 1>} : vector<13x13xi32>
    %c1_i32_329 = arith.constant 1 : i32
    %795 = vector.broadcast %c1_i32_329 : i32 to vector<13x13xi32>
    %796 = arith.muli %795, %793 : vector<13x13xi32>
    %c1_i32_330 = arith.constant 1 : i32
    %797 = vector.broadcast %c1_i32_330 : i32 to vector<13x13xi32>
    %798 = arith.addi %796, %797 : vector<13x13xi32>
    %799 = arith.cmpi eq, %794, %798 : vector<13x13xi32>
    %800 = arith.extui %799 : vector<13x13xi1> to vector<13x13xi32>
    %801 = arith.sitofp %800 : vector<13x13xi32> to vector<13x13xf32>
    %cst_331 = arith.constant dense<0.000000e+00> : vector<13x128xf32>
    %802 = tpu.matmul %801, %792, %cst_331 {dimension_numbers = #tpu.dot_dimension_numbers<[1], [0], [0], [1], [0, 0, 1, 1], [], []>} : vector<13x13xf32>, vector<13x128xf32>, vector<13x128xf32> -> vector<13x128xf32>
    %803 = arith.addf %790, %802 : vector<13x128xf32>
    %c8120 = arith.constant 8120 : index
    %c0_332 = arith.constant 0 : index
    %804 = vector.load %arg2[%c8120, %c0_332] : memref<9232x128xf32, #tpu.memory_space<vmem>>, vector<1x128xf32>
    %805 = vector.broadcast %804 : vector<1x128xf32> to vector<13x128xf32>
    %806 = arith.mulf %803, %805 : vector<13x128xf32>
    %c8128 = arith.constant 8128 : index
    %c0_333 = arith.constant 0 : index
    %807 = vector.load %arg2[%c8128, %c0_333] : memref<9232x128xf32, #tpu.memory_space<vmem>>, vector<1x128xf32>
    %808 = vector.broadcast %807 : vector<1x128xf32> to vector<13x128xf32>
    %809 = arith.addf %806, %808 : vector<13x128xf32>
    %cst_334 = arith.constant 0.000000e+00 : f32
    %810 = vector.broadcast %cst_334 : f32 to vector<13x128xf32>
    %811 = arith.maximumf %809, %810 : vector<13x128xf32>
    %cst_335 = arith.constant 0.000000e+00 : f32
    %812 = vector.broadcast %cst_335 : f32 to vector<13x128xf32>
    %c8136 = arith.constant 8136 : index
    %c0_336 = arith.constant 0 : index
    %813 = vector.load %arg2[%c8136, %c0_336] : memref<9232x128xf32, #tpu.memory_space<vmem>>, vector<128x128xf32>
    %cst_337 = arith.constant dense<0.000000e+00> : vector<13x128xf32>
    %814 = tpu.matmul %811, %813, %cst_337 {dimension_numbers = #tpu.dot_dimension_numbers<[1], [0], [0], [1], [0, 0, 1, 1], [], []>} : vector<13x128xf32>, vector<128x128xf32>, vector<13x128xf32> -> vector<13x128xf32>
    %815 = tpu.iota {dimensions = array<i32: 0>} : vector<13x13xi32>
    %816 = tpu.iota {dimensions = array<i32: 1>} : vector<13x13xi32>
    %c1_i32_338 = arith.constant 1 : i32
    %817 = vector.broadcast %c1_i32_338 : i32 to vector<13x13xi32>
    %818 = arith.muli %817, %815 : vector<13x13xi32>
    %c-1_i32_339 = arith.constant -1 : i32
    %819 = vector.broadcast %c-1_i32_339 : i32 to vector<13x13xi32>
    %820 = arith.addi %818, %819 : vector<13x13xi32>
    %821 = arith.cmpi eq, %816, %820 : vector<13x13xi32>
    %822 = arith.extui %821 : vector<13x13xi1> to vector<13x13xi32>
    %823 = arith.sitofp %822 : vector<13x13xi32> to vector<13x13xf32>
    %cst_340 = arith.constant dense<0.000000e+00> : vector<13x128xf32>
    %824 = tpu.matmul %823, %814, %cst_340 {dimension_numbers = #tpu.dot_dimension_numbers<[1], [0], [0], [1], [0, 0, 1, 1], [], []>} : vector<13x13xf32>, vector<13x128xf32>, vector<13x128xf32> -> vector<13x128xf32>
    %825 = arith.addf %812, %824 : vector<13x128xf32>
    %c8264 = arith.constant 8264 : index
    %c0_341 = arith.constant 0 : index
    %826 = vector.load %arg2[%c8264, %c0_341] : memref<9232x128xf32, #tpu.memory_space<vmem>>, vector<128x128xf32>
    %cst_342 = arith.constant dense<0.000000e+00> : vector<13x128xf32>
    %827 = tpu.matmul %811, %826, %cst_342 {dimension_numbers = #tpu.dot_dimension_numbers<[1], [0], [0], [1], [0, 0, 1, 1], [], []>} : vector<13x128xf32>, vector<128x128xf32>, vector<13x128xf32> -> vector<13x128xf32>
    %828 = tpu.iota {dimensions = array<i32: 0>} : vector<13x13xi32>
    %829 = tpu.iota {dimensions = array<i32: 1>} : vector<13x13xi32>
    %c1_i32_343 = arith.constant 1 : i32
    %830 = vector.broadcast %c1_i32_343 : i32 to vector<13x13xi32>
    %831 = arith.muli %830, %828 : vector<13x13xi32>
    %c0_i32_344 = arith.constant 0 : i32
    %832 = vector.broadcast %c0_i32_344 : i32 to vector<13x13xi32>
    %833 = arith.addi %831, %832 : vector<13x13xi32>
    %834 = arith.cmpi eq, %829, %833 : vector<13x13xi32>
    %835 = arith.extui %834 : vector<13x13xi1> to vector<13x13xi32>
    %836 = arith.sitofp %835 : vector<13x13xi32> to vector<13x13xf32>
    %cst_345 = arith.constant dense<0.000000e+00> : vector<13x128xf32>
    %837 = tpu.matmul %836, %827, %cst_345 {dimension_numbers = #tpu.dot_dimension_numbers<[1], [0], [0], [1], [0, 0, 1, 1], [], []>} : vector<13x13xf32>, vector<13x128xf32>, vector<13x128xf32> -> vector<13x128xf32>
    %838 = arith.addf %825, %837 : vector<13x128xf32>
    %c8392 = arith.constant 8392 : index
    %c0_346 = arith.constant 0 : index
    %839 = vector.load %arg2[%c8392, %c0_346] : memref<9232x128xf32, #tpu.memory_space<vmem>>, vector<128x128xf32>
    %cst_347 = arith.constant dense<0.000000e+00> : vector<13x128xf32>
    %840 = tpu.matmul %811, %839, %cst_347 {dimension_numbers = #tpu.dot_dimension_numbers<[1], [0], [0], [1], [0, 0, 1, 1], [], []>} : vector<13x128xf32>, vector<128x128xf32>, vector<13x128xf32> -> vector<13x128xf32>
    %841 = tpu.iota {dimensions = array<i32: 0>} : vector<13x13xi32>
    %842 = tpu.iota {dimensions = array<i32: 1>} : vector<13x13xi32>
    %c1_i32_348 = arith.constant 1 : i32
    %843 = vector.broadcast %c1_i32_348 : i32 to vector<13x13xi32>
    %844 = arith.muli %843, %841 : vector<13x13xi32>
    %c1_i32_349 = arith.constant 1 : i32
    %845 = vector.broadcast %c1_i32_349 : i32 to vector<13x13xi32>
    %846 = arith.addi %844, %845 : vector<13x13xi32>
    %847 = arith.cmpi eq, %842, %846 : vector<13x13xi32>
    %848 = arith.extui %847 : vector<13x13xi1> to vector<13x13xi32>
    %849 = arith.sitofp %848 : vector<13x13xi32> to vector<13x13xf32>
    %cst_350 = arith.constant dense<0.000000e+00> : vector<13x128xf32>
    %850 = tpu.matmul %849, %840, %cst_350 {dimension_numbers = #tpu.dot_dimension_numbers<[1], [0], [0], [1], [0, 0, 1, 1], [], []>} : vector<13x13xf32>, vector<13x128xf32>, vector<13x128xf32> -> vector<13x128xf32>
    %851 = arith.addf %838, %850 : vector<13x128xf32>
    %c8520 = arith.constant 8520 : index
    %c0_351 = arith.constant 0 : index
    %852 = vector.load %arg2[%c8520, %c0_351] : memref<9232x128xf32, #tpu.memory_space<vmem>>, vector<1x128xf32>
    %853 = vector.broadcast %852 : vector<1x128xf32> to vector<13x128xf32>
    %854 = arith.mulf %851, %853 : vector<13x128xf32>
    %c8528 = arith.constant 8528 : index
    %c0_352 = arith.constant 0 : index
    %855 = vector.load %arg2[%c8528, %c0_352] : memref<9232x128xf32, #tpu.memory_space<vmem>>, vector<1x128xf32>
    %856 = vector.broadcast %855 : vector<1x128xf32> to vector<13x128xf32>
    %857 = arith.addf %854, %856 : vector<13x128xf32>
    %858 = arith.addf %857, %763 : vector<13x128xf32>
    %cst_353 = arith.constant 0.000000e+00 : f32
    %859 = vector.broadcast %cst_353 : f32 to vector<13x128xf32>
    %860 = arith.maximumf %858, %859 : vector<13x128xf32>
    %c8536 = arith.constant 8536 : index
    %c0_354 = arith.constant 0 : index
    %861 = vector.load %arg2[%c8536, %c0_354] : memref<9232x128xf32, #tpu.memory_space<vmem>>, vector<13x128xf32>
    %862 = arith.addf %860, %861 : vector<13x128xf32>
    %c8552 = arith.constant 8552 : index
    %c0_355 = arith.constant 0 : index
    %863 = vector.load %arg2[%c8552, %c0_355] : memref<9232x128xf32, #tpu.memory_space<vmem>>, vector<128x128xf32>
    %cst_356 = arith.constant dense<0.000000e+00> : vector<13x128xf32>
    %864 = tpu.matmul %862, %863, %cst_356 {dimension_numbers = #tpu.dot_dimension_numbers<[1], [0], [0], [1], [0, 0, 1, 1], [], []>} : vector<13x128xf32>, vector<128x128xf32>, vector<13x128xf32> -> vector<13x128xf32>
    %c8680 = arith.constant 8680 : index
    %c0_357 = arith.constant 0 : index
    %865 = vector.load %arg2[%c8680, %c0_357] : memref<9232x128xf32, #tpu.memory_space<vmem>>, vector<1x128xf32>
    %866 = vector.broadcast %865 : vector<1x128xf32> to vector<13x128xf32>
    %867 = arith.addf %864, %866 : vector<13x128xf32>
    %c8688 = arith.constant 8688 : index
    %c0_358 = arith.constant 0 : index
    %868 = vector.load %arg2[%c8688, %c0_358] : memref<9232x128xf32, #tpu.memory_space<vmem>>, vector<128x128xf32>
    %cst_359 = arith.constant dense<0.000000e+00> : vector<13x128xf32>
    %869 = tpu.matmul %862, %868, %cst_359 {dimension_numbers = #tpu.dot_dimension_numbers<[1], [0], [0], [1], [0, 0, 1, 1], [], []>} : vector<13x128xf32>, vector<128x128xf32>, vector<13x128xf32> -> vector<13x128xf32>
    %c8816 = arith.constant 8816 : index
    %c0_360 = arith.constant 0 : index
    %870 = vector.load %arg2[%c8816, %c0_360] : memref<9232x128xf32, #tpu.memory_space<vmem>>, vector<1x128xf32>
    %871 = vector.broadcast %870 : vector<1x128xf32> to vector<13x128xf32>
    %872 = arith.addf %869, %871 : vector<13x128xf32>
    %c8824 = arith.constant 8824 : index
    %c0_361 = arith.constant 0 : index
    %873 = vector.load %arg2[%c8824, %c0_361] : memref<9232x128xf32, #tpu.memory_space<vmem>>, vector<128x128xf32>
    %cst_362 = arith.constant dense<0.000000e+00> : vector<13x128xf32>
    %874 = tpu.matmul %862, %873, %cst_362 {dimension_numbers = #tpu.dot_dimension_numbers<[1], [0], [0], [1], [0, 0, 1, 1], [], []>} : vector<13x128xf32>, vector<128x128xf32>, vector<13x128xf32> -> vector<13x128xf32>
    %c8952 = arith.constant 8952 : index
    %c0_363 = arith.constant 0 : index
    %875 = vector.load %arg2[%c8952, %c0_363] : memref<9232x128xf32, #tpu.memory_space<vmem>>, vector<1x128xf32>
    %876 = vector.broadcast %875 : vector<1x128xf32> to vector<13x128xf32>
    %877 = arith.addf %874, %876 : vector<13x128xf32>
    %cst_364 = arith.constant dense<0.000000e+00> : vector<13x13xf32>
    %878 = tpu.matmul %867, %872, %cst_364 {dimension_numbers = #tpu.dot_dimension_numbers<[1], [1], [0], [0], [0, 0, 1, 0], [], []>} : vector<13x128xf32>, vector<13x128xf32>, vector<13x13xf32> -> vector<13x13xf32>
    %cst_365 = arith.constant 0.109108947 : f32
    %879 = vector.broadcast %cst_365 : f32 to vector<13x13xf32>
    %880 = arith.mulf %878, %879 : vector<13x13xf32>
    %cst_366 = arith.constant dense<0xFF800000> : vector<13xf32>
    %881 = vector.multi_reduction <maximumf>, %880, %cst_366 [1] : vector<13x13xf32> to vector<13xf32>
    %882 = vector.shape_cast %881 : vector<13xf32> to vector<13x1xf32>
    %883 = vector.broadcast %882 : vector<13x1xf32> to vector<13x13xf32>
    %884 = arith.subf %880, %883 : vector<13x13xf32>
    %885 = math.exp %884 : vector<13x13xf32>
    %cst_367 = arith.constant dense<0.000000e+00> : vector<13xf32>
    %886 = vector.multi_reduction <add>, %885, %cst_367 [1] : vector<13x13xf32> to vector<13xf32>
    %887 = vector.shape_cast %886 : vector<13xf32> to vector<13x1xf32>
    %888 = tpu.reciprocal %887 {approx = true} : vector<13x1xf32> -> vector<13x1xf32>
    %889 = vector.broadcast %888 : vector<13x1xf32> to vector<13x13xf32>
    %890 = arith.mulf %885, %889 : vector<13x13xf32>
    %cst_368 = arith.constant dense<0.000000e+00> : vector<13x128xf32>
    %891 = tpu.matmul %890, %877, %cst_368 {dimension_numbers = #tpu.dot_dimension_numbers<[1], [0], [0], [1], [0, 0, 1, 1], [], []>} : vector<13x13xf32>, vector<13x128xf32>, vector<13x128xf32> -> vector<13x128xf32>
    %c8960 = arith.constant 8960 : index
    %c0_369 = arith.constant 0 : index
    %892 = vector.load %arg2[%c8960, %c0_369] : memref<9232x128xf32, #tpu.memory_space<vmem>>, vector<128x128xf32>
    %cst_370 = arith.constant dense<0.000000e+00> : vector<13x128xf32>
    %893 = tpu.matmul %891, %892, %cst_370 {dimension_numbers = #tpu.dot_dimension_numbers<[1], [0], [0], [1], [0, 0, 1, 1], [], []>} : vector<13x128xf32>, vector<128x128xf32>, vector<13x128xf32> -> vector<13x128xf32>
    %c9088 = arith.constant 9088 : index
    %c0_371 = arith.constant 0 : index
    %894 = vector.load %arg2[%c9088, %c0_371] : memref<9232x128xf32, #tpu.memory_space<vmem>>, vector<1x128xf32>
    %895 = vector.broadcast %894 : vector<1x128xf32> to vector<13x128xf32>
    %896 = arith.addf %893, %895 : vector<13x128xf32>
    %cst_372 = arith.constant dense<0.000000e+00> : vector<128xf32>
    %897 = vector.multi_reduction <add>, %896, %cst_372 [0] : vector<13x128xf32> to vector<128xf32>
    %898 = vector.shape_cast %897 : vector<128xf32> to vector<1x128xf32>
    %cst_373 = arith.constant 1.300000e+01 : f32
    %899 = vector.broadcast %cst_373 : f32 to vector<1x128xf32>
    %900 = arith.divf %898, %899 : vector<1x128xf32>
    %c9096 = arith.constant 9096 : index
    %c0_374 = arith.constant 0 : index
    %901 = vector.load %arg2[%c9096, %c0_374] : memref<9232x128xf32, #tpu.memory_space<vmem>>, vector<128x128xf32>
    %cst_375 = arith.constant dense<0.000000e+00> : vector<1x128xf32>
    %902 = tpu.matmul %900, %901, %cst_375 {dimension_numbers = #tpu.dot_dimension_numbers<[1], [0], [0], [1], [0, 0, 1, 1], [], []>} : vector<1x128xf32>, vector<128x128xf32>, vector<1x128xf32> -> vector<1x128xf32>
    %c9224 = arith.constant 9224 : index
    %c0_376 = arith.constant 0 : index
    %903 = vector.load %arg2[%c9224, %c0_376] : memref<9232x128xf32, #tpu.memory_space<vmem>>, vector<1x128xf32>
    %904 = arith.addf %902, %903 : vector<1x128xf32>
    %c0_377 = arith.constant 0 : index
    %c0_378 = arith.constant 0 : index
    %c0_379 = arith.constant 0 : index
    %905 = vector.load %arg3[%c0_377, %c0_378, %c0_379] : memref<1x1x128xf32, #tpu.memory_space<vmem>>, vector<1x1x128xf32>
    %906 = vector.shape_cast %905 : vector<1x1x128xf32> to vector<1x128xf32>
    %907 = vector.shape_cast %904 : vector<1x128xf32> to vector<1x1x128xf32>
    tpu.vector_store %arg3[%c0_377, %c0_378, %c0_379], %907 {strides = array<i32>} : memref<1x1x128xf32, #tpu.memory_space<vmem>>, vector<1x1x128xf32>,
    return
  }
  func.func @transform_0(%arg0: i32) -> (i32, i32, i32) {
    %c0_i32 = arith.constant 0 : i32
    %c0_i32_0 = arith.constant 0 : i32
    %c0_i32_1 = arith.constant 0 : i32
    return %arg0, %c0_i32, %c0_i32_0 : i32, i32, i32
  }
  func.func @transform_1(%arg0: i32) -> (i32, i32) {
    %c0_i32 = arith.constant 0 : i32
    %c0_i32_0 = arith.constant 0 : i32
    %c0_i32_1 = arith.constant 0 : i32
    return %c0_i32, %c0_i32_0 : i32, i32
  }
  func.func @transform_2(%arg0: i32) -> (i32, i32, i32) {
    %c0_i32 = arith.constant 0 : i32
    %c0_i32_0 = arith.constant 0 : i32
    %c0_i32_1 = arith.constant 0 : i32
    return %arg0, %c0_i32, %c0_i32_0 : i32, i32, i32
  }
}

</mosaic_0001>

<llo_original>
// kernel: forward.1
$region0: #{forward.1}
  #allocation0 [shape = 'u32[]', space=smem, size = 0x4, offset = 0x4, fixed_abs, tag = 'smem constant byte address 0x4 - core index']
  #allocation1 [shape = 'u32[72,128]{1,0:T(1,128)}', space=vmem, size = 0x9000, scoped, tag = 'internal scratch']
  %s0 = inlined_call_operand.vmem [shape: f32[2,101,128], index: 0, kind: input, shape index: {}]
  %s1 = inlined_call_operand.hbm [shape: f32[9232,128], index: 1, kind: input, shape index: {}]
  %s2 = inlined_call_operand.hbm [shape: f32[2,1,128], index: 2, kind: output, shape index: {}]
  %s3 = sld [smem:[#allocation0]]
  $region45: #{forward.1} parent=0
    _
  %s5 = ssub.s32 1, %s3
  %s6 = scalar_select 0, %s5, %s3
  $region1: #{forward.1} parent=0
    #allocation2 [shape = 'u8[4726784]{0}', space=vmem, size = 0x482000, scoped, tag = 'input window, operand 1, single buffered']
    #allocation3 [shape = 's32[2]{0}', space=sflag, size = 0x8, scoped, tag = 'scoped memory for forward.1']
    #allocation4 [shape = 's32[2]{0}', space=sflag, size = 0x8, scoped, tag = 'scoped memory for forward.1']
    #allocation5 [shape = 'u8[1024]{0}', space=vmem, size = 0x400, scoped, tag = 'output window, operand 0']
    %7 = vsyncpa [#allocation3], 0
    %8 = vsyncpa [#allocation4], 0
    %s9 = scalar_lea.sflag [#allocation4], 1
    %10 = vsyncpa %s9, 0
    loop: start=0, step=1, limit=4
    $region2: #{forward.1} parent=1 // loop_pre_header
      _
    $region3: #{forward.1} parent=1 // loop_header
      %s12 = sphi 0, %s16
      %p13 = scmp.ge.s32.totalorder %s12, 4
      %s22 = sphi 0, %s24
      %s25 = sphi 0, %s22
      %s26 = sphi 0, %s25
      %s42 = sphi 0, %s26
      %s46 = sphi 0, %s46
      %s48 = sphi 0, %s46
      %s49 = sphi 0, %s48
      %s63 = sphi 0, %s49
      %s69 = sphi 0, %s71
      %s72 = sphi 0, %s69
      %s73 = sphi 0, %s72
      %s89 = sphi 0, %s73
    $region4: #{forward.1} parent=1 // loop_header_branch
      %15 = sbr.rel (%p13) target = $region8
    $region5: #{forward.1} parent=1 // loop_body
      %s17 = ssub.s32 %s12, 1
      %s18 = ssub.s32 %s12, 2
      %s19 = sadd.s32 %s12, 1
      %s20 = ssub.s32 %s12, %s19
      %p21 = scmp.eq.s32.totalorder %s20, 0
      %s23 = sadd.s32 %s22, 1
      %s24 = scalar_select %p21, %s22, %s23
      %p27 = pneg %p21
      %p28 = scmp.eq.s32.totalorder %s12, 1
      %p29 = por %p27, %p28
      %p30 = scmp.ne.s32.totalorder %s22, %s25
      %p31 = scmp.eq.s32.totalorder %s12, 0
      %p32 = por %p30, %p31
      %p33 = scmp.ne.s32.totalorder %s22, %s25
      %p34 = scmp.eq.s32.totalorder %s17, 1
      %p35 = por %p33, %p34
      %p36 = scmp.ne.s32.totalorder %s25, %s26
      %p37 = scmp.eq.s32.totalorder %s17, 0
      %p38 = por %p36, %p37
      %p39 = scmp.ne.s32.totalorder %s25, %s26
      %p40 = scmp.eq.s32.totalorder %s18, 1
      %p41 = por %p39, %p40
      %p43 = scmp.ne.s32.totalorder %s26, %s42
      %p44 = scmp.eq.s32.totalorder %s18, 0
      %p45 = por %p43, %p44
      %s47 = sadd.s32 %s46, 1
      %p50 = scmp.eq.s32.totalorder %s12, 1
      %p51 = scmp.ne.s32.totalorder %s46, %s48
      %p52 = scmp.eq.s32.totalorder %s12, 0
      %p53 = por %p51, %p52
      %p54 = scmp.ne.s32.totalorder %s46, %s48
      %p55 = scmp.eq.s32.totalorder %s17, 1
      %p56 = por %p54, %p55
      %p57 = scmp.ne.s32.totalorder %s48, %s49
      %p58 = scmp.eq.s32.totalorder %s17, 0
      %p59 = por %p57, %p58
      %p60 = scmp.ne.s32.totalorder %s48, %s49
      %p61 = scmp.eq.s32.totalorder %s18, 1
      %p62 = por %p60, %p61
      %p64 = scmp.ne.s32.totalorder %s49, %s63
      %p65 = scmp.eq.s32.totalorder %s18, 0
      %p66 = por %p64, %p65
      %s67 = ssub.s32 %s12, %s19
      %p68 = scmp.eq.s32.totalorder %s67, 0
      %s70 = sadd.s32 %s69, 1
      %s71 = scalar_select %p68, %s69, %s70
      %p74 = pneg %p68
      %p75 = scmp.eq.s32.totalorder %s12, 1
      %p76 = por %p74, %p75
      %p77 = scmp.ne.s32.totalorder %s69, %s72
      %p78 = scmp.eq.s32.totalorder %s12, 0
      %p79 = por %p77, %p78
      %p80 = scmp.ne.s32.totalorder %s69, %s72
      %p81 = scmp.eq.s32.totalorder %s17, 1
      %p82 = por %p80, %p81
      %p83 = scmp.ne.s32.totalorder %s72, %s73
      %p84 = scmp.eq.s32.totalorder %s17, 0
      %p85 = por %p83, %p84
      %p86 = scmp.ne.s32.totalorder %s72, %s73
      %p87 = scmp.eq.s32.totalorder %s18, 1
      %p88 = por %p86, %p87
      %p90 = scmp.ne.s32.totalorder %s73, %s89
      %p91 = scmp.eq.s32.totalorder %s18, 0
      %p92 = por %p90, %p91
      %p93 = scmp.le.s32.totalorder 1, %s12
      %p94 = scmp.lt.s32.totalorder %s12, 3
      %p95 = pnand %p93, %p94
      %p96 = pneg %p95
      // Predicated region
      $region9: #{forward.1} parent=5 // pred_check
        _
      $region10: #{forward.1} parent=5 // pred_check_branch
        %98 = sbr.rel (%p95) target = $region12
      $region11: #{forward.1} parent=5 // pred_region
        %s99 = ssub.s32 %s12, 1
        // Predicated region
        $region13: #{forward.1} parent=11 // pred_check
          %p100 = pneg %p59
        $region14: #{forward.1} parent=11 // pred_check_branch
          %102 = sbr.rel (%p100) target = $region16
        $region15: #{forward.1} parent=11 // pred_region
          %104 = vsyncadd [#allocation3], 0
          %s105 = sshll.u32 %s1, 4
          %s106 = int_to_ptr.hbm [resolvable:$true] %s105
          %s107 = sshll.u32 [#allocation2], 4
          %s108 = int_to_ptr.vmem [resolvable:$true] %s107
          %113 = dma.hbm_to_vmem [thread:$0]  %s106, 147712, %s108, [#allocation3], 128, 128, 8
        $region16: #{forward.1} parent=11 // pred_fallthru
          _
      $region12: #{forward.1} parent=5 // pred_fallthru
        _
      %p114 = scmp.lt.s32.totalorder %s12, 2
      // Predicated region
      $region17: #{forward.1} parent=5 // pred_check
        %p115 = pneg %p114
      $region18: #{forward.1} parent=5 // pred_check_branch
        %117 = sbr.rel (%p115) target = $region20
      $region19: #{forward.1} parent=5 // pred_region
        // Predicated region
        $region21: #{forward.1} parent=19 // pred_check
          %p118 = pneg %p32
        $region22: #{forward.1} parent=19 // pred_check_branch
          %120 = sbr.rel (%p118) target = $region24
        $region23: #{forward.1} parent=19 // pred_region
          %p121 = scmp.lt.s32.totalorder %s12, 1
          %s122 = scalar_select %p121, %s12, 1
          %s123 = smul.addr %s122, 13
          %s124 = smul.addr %s123, 8
          %s125 = scalar_lea.vmem %s0, %s124
        $region24: #{forward.1} parent=19 // pred_fallthru
          _
      $region20: #{forward.1} parent=5 // pred_fallthru
        _
      %p126 = scmp.le.s32.totalorder 1, %s12
      %p127 = scmp.lt.s32.totalorder %s12, 3
      %p128 = pnand %p126, %p127
      %p129 = pneg %p128
      // Predicated region
      $region25: #{forward.1} parent=5 // pred_check
        _
      $region26: #{forward.1} parent=5 // pred_check_branch
        %131 = sbr.rel (%p128) target = $region28
      $region27: #{forward.1} parent=5 // pred_region
        %s132 = ssub.s32 %s12, 1
        // Predicated region
        $region29: #{forward.1} parent=27 // pred_check
          %p133 = pneg %p59
        $region30: #{forward.1} parent=27 // pred_check_branch
          %135 = sbr.rel (%p133) target = $region32
        $region31: #{forward.1} parent=27 // pred_region
          %137 = dma.done [#allocation3], 147712
        $region32: #{forward.1} parent=27 // pred_fallthru
          _
        %p138 = scmp.lt.s32.totalorder %s17, 1
        %s139 = scalar_select %p138, %s17, 1
        %s140 = smul.addr %s139, 13
        %s141 = smul.addr %s140, 8
        %s142 = scalar_lea.vmem %s0, %s141
        %p143 = pneg %p38
        %p144 = pneg %p35
        %p145 = pneg %p59
        %p146 = pneg %p56
        %p147 = pneg %p85
        %p148 = pneg %p82
        %s149 = sand.u32 %s72, 1
        %s150 = scalar_lea.sflag [#allocation4], %s149
        %s151 = sand.u32 %s72, 1
        %s152 = scalar_lea.vmem [#allocation5], %s151
        %p153 = scmp.lt.s32.totalorder %s17, 1
        %s154 = scalar_select %p153, %s17, 1
        %s155 = smul.addr %s154, 13
        %s156 = smul.addr %s155, 8
        %s157 = scalar_lea.vmem %s0, %s156
        %v158 = vld [vmem:[%s157] sm:$0xff]
        %v159 = vld [vmem:[%s157 + $0x8] sm:$0xff]
        %v160 = vld [vmem:[%s157 + $0x10] sm:$0xff]
        %v161 = vld [vmem:[%s157 + $0x18] sm:$0xff]
        %v162 = vld [vmem:[%s157 + $0x20] sm:$0xff]
        %v163 = vld [vmem:[%s157 + $0x28] sm:$0xff]
        %v164 = vld [vmem:[%s157 + $0x30] sm:$0xff]
        %v165 = vld [vmem:[%s157 + $0x38] sm:$0xff]
        %v166 = vld [vmem:[%s157 + $0x40] sm:$0xff]
        %v167 = vld [vmem:[%s157 + $0x48] sm:$0xff]
        %v168 = vld [vmem:[%s157 + $0x50] sm:$0xff]
        %v169 = vld [vmem:[%s157 + $0x58] sm:$0xff]
        %v170 = vld [vmem:[%s157 + $0x60] sm:$0x1f]
        %v171 = vld [vmem:[#allocation2] sm:$0xff]
        %v172 = vld [vmem:[#allocation2 + $0x8] sm:$0xff]
        %v173 = vld [vmem:[#allocation2 + $0x10] sm:$0xff]
        %v174 = vld [vmem:[#allocation2 + $0x18] sm:$0xff]
        %v175 = vld [vmem:[#allocation2 + $0x20] sm:$0xff]
        %v176 = vld [vmem:[#allocation2 + $0x28] sm:$0xff]
        %v177 = vld [vmem:[#allocation2 + $0x30] sm:$0xff]
        %v178 = vld [vmem:[#allocation2 + $0x38] sm:$0xff]
        %v179 = vld [vmem:[#allocation2 + $0x40] sm:$0xff]
        %v180 = vld [vmem:[#allocation2 + $0x48] sm:$0xff]
        %v181 = vld [vmem:[#allocation2 + $0x50] sm:$0xff]
        %v182 = vld [vmem:[#allocation2 + $0x58] sm:$0xff]
        %v183 = vld [vmem:[#allocation2 + $0x60] sm:$0xff]
        %v184 = vld [vmem:[#allocation2 + $0x68] sm:$0xff]
        %v185 = vld [vmem:[#allocation2 + $0x70] sm:$0xff]
        %v186 = vld [vmem:[#allocation2 + $0x78] sm:$0xff]
        %187 = vmatpush.msra.mxu0 %v186
        %188 = vmatpush.msra.mxu0 %v185
        %189 = vmatpush.msra.mxu0 %v184
        %190 = vmatpush.msra.mxu0 %v183
        %191 = vmatpush.msra.mxu0 %v182
        %192 = vmatpush.msra.mxu0 %v181
        %193 = vmatpush.msra.mxu0 %v180
        %194 = vmatpush.msra.mxu0 %v179
        %195 = vmatpush.msra.mxu0 %v178
        %196 = vmatpush.msra.mxu0 %v177
        %197 = vmatpush.msra.mxu0 %v176
        %198 = vmatpush.msra.mxu0 %v175
        %199 = vmatpush.msra.mxu0 %v174
        %200 = vmatpush.msra.mxu0 %v173
        %201 = vmatpush.msra.mxu0 %v172
        %202 = vmatpush.msra.mxu0 %v171
        %203 = vmatmul.f32.gmra.mxu0 %v158
        %v204 = vpop.f32.mrf.mxu0
        %v205 = vadd.f32 0.0, %v204
        %206 = vmatmul.f32.gmra.mxu0 %v159
        %v207 = vpop.f32.mrf.mxu0
        %v208 = vadd.f32 0.0, %v207
        %209 = vmatmul.f32.gmra.mxu0 %v160
        %v210 = vpop.f32.mrf.mxu0
        %v211 = vadd.f32 0.0, %v210
        %212 = vmatmul.f32.gmra.mxu0 %v161
        %v213 = vpop.f32.mrf.mxu0
        %v214 = vadd.f32 0.0, %v213
        %215 = vmatmul.f32.gmra.mxu0 %v162
        %v216 = vpop.f32.mrf.mxu0
        %v217 = vadd.f32 0.0, %v216
        %218 = vmatmul.f32.gmra.mxu0 %v163
        %v219 = vpop.f32.mrf.mxu0
        %v220 = vadd.f32 0.0, %v219
        %221 = vmatmul.f32.gmra.mxu0 %v164
        %v222 = vpop.f32.mrf.mxu0
        %v223 = vadd.f32 0.0, %v222
        %224 = vmatmul.f32.gmra.mxu0 %v165
        %v225 = vpop.f32.mrf.mxu0
        %v226 = vadd.f32 0.0, %v225
        %227 = vmatmul.f32.gmra.mxu0 %v166
        %v228 = vpop.f32.mrf.mxu0
        %v229 = vadd.f32 0.0, %v228
        %230 = vmatmul.f32.gmra.mxu0 %v167
        %v231 = vpop.f32.mrf.mxu0
        %v232 = vadd.f32 0.0, %v231
        %233 = vmatmul.f32.gmra.mxu0 %v168
        %v234 = vpop.f32.mrf.mxu0
        %v235 = vadd.f32 0.0, %v234
        %236 = vmatmul.f32.gmra.mxu0 %v169
        %v237 = vpop.f32.mrf.mxu0
        %v238 = vadd.f32 0.0, %v237
        %239 = vmatmul.f32.gmra.mxu0 %v170
        %v240 = vpop.f32.mrf.mxu0
        %v241 = vadd.f32 0.0, %v240
        %242 = vdwg.mxu0
        %v243 = vlaneseq
        %v244 = vshrl.u32 %v243, 7
        %v245 = vadd.s32 %v244, 8
        %v246 = vadd.s32 %v244, 16
        %v247 = vadd.s32 %v244, 24
        %v248 = vadd.s32 %v244, 32
        %v249 = vadd.s32 %v244, 40
        %v250 = vadd.s32 %v244, 48
        %v251 = vadd.s32 %v244, 56
        %v252 = vadd.s32 %v244, 64
        %v253 = vadd.s32 %v244, 72
        %v254 = vadd.s32 %v244, 80
        %v255 = vadd.s32 %v244, 88
        %v256 = vadd.s32 %v244, 96
        %v257 = vlaneseq
        %v258 = vand.u32 %v257, 127
        %v259 = vadd.s32 %v244, 4294967295
        %v260 = vadd.s32 %v245, 4294967295
        %v261 = vadd.s32 %v246, 4294967295
        %v262 = vadd.s32 %v247, 4294967295
        %v263 = vadd.s32 %v248, 4294967295
        %v264 = vadd.s32 %v249, 4294967295
        %v265 = vadd.s32 %v250, 4294967295
        %v266 = vadd.s32 %v251, 4294967295
        %v267 = vadd.s32 %v252, 4294967295
        %v268 = vadd.s32 %v253, 4294967295
        %v269 = vadd.s32 %v254, 4294967295
        %v270 = vadd.s32 %v255, 4294967295
        %v271 = vadd.s32 %v256, 4294967295
        %vm272 = vcmp.eq.s32.totalorder %v258, %v259
        %vm273 = vcmp.eq.s32.totalorder %v258, %v260
        %vm274 = vcmp.eq.s32.totalorder %v258, %v261
        %vm275 = vcmp.eq.s32.totalorder %v258, %v262
        %vm276 = vcmp.eq.s32.totalorder %v258, %v263
        %vm277 = vcmp.eq.s32.totalorder %v258, %v264
        %vm278 = vcmp.eq.s32.totalorder %v258, %v265
        %vm279 = vcmp.eq.s32.totalorder %v258, %v266
        %vm280 = vcmp.eq.s32.totalorder %v258, %v267
        %vm281 = vcmp.eq.s32.totalorder %v258, %v268
        %vm282 = vcmp.eq.s32.totalorder %v258, %v269
        %vm283 = vcmp.eq.s32.totalorder %v258, %v270
        %vm284 = vcmp.eq.s32.totalorder %v258, %v271
        %v285 = vsel %vm272, 1, 0
        %v286 = vsel %vm273, 1, 0
        %v287 = vsel %vm274, 1, 0
        %v288 = vsel %vm275, 1, 0
        %v289 = vsel %vm276, 1, 0
        %v290 = vsel %vm277, 1, 0
        %v291 = vsel %vm278, 1, 0
        %v292 = vsel %vm279, 1, 0
        %v293 = vsel %vm280, 1, 0
        %v294 = vsel %vm281, 1, 0
        %v295 = vsel %vm282, 1, 0
        %v296 = vsel %vm283, 1, 0
        %v297 = vsel %vm284, 1, 0
        %v298 = vcvt.s32.f32 %v285
        %v299 = vcvt.s32.f32 %v286
        %v300 = vcvt.s32.f32 %v287
        %v301 = vcvt.s32.f32 %v288
        %v302 = vcvt.s32.f32 %v289
        %v303 = vcvt.s32.f32 %v290
        %v304 = vcvt.s32.f32 %v291
        %v305 = vcvt.s32.f32 %v292
        %v306 = vcvt.s32.f32 %v293
        %v307 = vcvt.s32.f32 %v294
        %v308 = vcvt.s32.f32 %v295
        %v309 = vcvt.s32.f32 %v296
        %v310 = vcvt.s32.f32 %v297
        %v311 = vld [vmem:[#allocation2 + $0x80] sm:$0xff]
        %v312 = vld [vmem:[#allocation2 + $0x88] sm:$0xff]
        %v313 = vld [vmem:[#allocation2 + $0x90] sm:$0xff]
        %v314 = vld [vmem:[#allocation2 + $0x98] sm:$0xff]
        %v315 = vld [vmem:[#allocation2 + $0xa0] sm:$0xff]
        %v316 = vld [vmem:[#allocation2 + $0xa8] sm:$0xff]
        %v317 = vld [vmem:[#allocation2 + $0xb0] sm:$0xff]
        %v318 = vld [vmem:[#allocation2 + $0xb8] sm:$0xff]
        %v319 = vld [vmem:[#allocation2 + $0xc0] sm:$0xff]
        %v320 = vld [vmem:[#allocation2 + $0xc8] sm:$0xff]
        %v321 = vld [vmem:[#allocation2 + $0xd0] sm:$0xff]
        %v322 = vld [vmem:[#allocation2 + $0xd8] sm:$0xff]
        %v323 = vld [vmem:[#allocation2 + $0xe0] sm:$0xff]
        %v324 = vld [vmem:[#allocation2 + $0xe8] sm:$0xff]
        %v325 = vld [vmem:[#allocation2 + $0xf0] sm:$0xff]
        %v326 = vld [vmem:[#allocation2 + $0xf8] sm:$0xff]
        %327 = vmatpush.msra.mxu0 %v326
        %328 = vmatpush.msra.mxu0 %v325
        %329 = vmatpush.msra.mxu0 %v324
        %330 = vmatpush.msra.mxu0 %v323
        %331 = vmatpush.msra.mxu0 %v322
        %332 = vmatpush.msra.mxu0 %v321
        %333 = vmatpush.msra.mxu0 %v320
        %334 = vmatpush.msra.mxu0 %v319
        %335 = vmatpush.msra.mxu0 %v318
        %336 = vmatpush.msra.mxu0 %v317
        %337 = vmatpush.msra.mxu0 %v316
        %338 = vmatpush.msra.mxu0 %v315
        %339 = vmatpush.msra.mxu0 %v314
        %340 = vmatpush.msra.mxu0 %v313
        %341 = vmatpush.msra.mxu0 %v312
        %342 = vmatpush.msra.mxu0 %v311
        %343 = vmatmul.f32.gmra.mxu0 %v158
        %v344 = vpop.f32.mrf.mxu0
        %v345 = vadd.f32 0.0, %v344
        %346 = vmatmul.f32.gmra.mxu0 %v159
        %v347 = vpop.f32.mrf.mxu0
        %v348 = vadd.f32 0.0, %v347
        %349 = vmatmul.f32.gmra.mxu0 %v160
        %v350 = vpop.f32.mrf.mxu0
        %v351 = vadd.f32 0.0, %v350
        %352 = vmatmul.f32.gmra.mxu0 %v161
        %v353 = vpop.f32.mrf.mxu0
        %v354 = vadd.f32 0.0, %v353
        %355 = vmatmul.f32.gmra.mxu0 %v162
        %v356 = vpop.f32.mrf.mxu0
        %v357 = vadd.f32 0.0, %v356
        %358 = vmatmul.f32.gmra.mxu0 %v163
        %v359 = vpop.f32.mrf.mxu0
        %v360 = vadd.f32 0.0, %v359
        %361 = vmatmul.f32.gmra.mxu0 %v164
        %v362 = vpop.f32.mrf.mxu0
        %v363 = vadd.f32 0.0, %v362
        %364 = vmatmul.f32.gmra.mxu0 %v165
        %v365 = vpop.f32.mrf.mxu0
        %v366 = vadd.f32 0.0, %v365
        %367 = vmatmul.f32.gmra.mxu0 %v166
        %v368 = vpop.f32.mrf.mxu0
        %v369 = vadd.f32 0.0, %v368
        %370 = vmatmul.f32.gmra.mxu0 %v167
        %v371 = vpop.f32.mrf.mxu0
        %v372 = vadd.f32 0.0, %v371
        %373 = vmatmul.f32.gmra.mxu0 %v168
        %v374 = vpop.f32.mrf.mxu0
        %v375 = vadd.f32 0.0, %v374
        %376 = vmatmul.f32.gmra.mxu0 %v169
        %v377 = vpop.f32.mrf.mxu0
        %v378 = vadd.f32 0.0, %v377
        %379 = vmatmul.f32.gmra.mxu0 %v170
        %v380 = vpop.f32.mrf.mxu0
        %v381 = vadd.f32 0.0, %v380
        %382 = vdwg.mxu0
        %vm383 = vcmp.eq.s32.totalorder %v258, %v244
        %vm384 = vcmp.eq.s32.totalorder %v258, %v245
        %vm385 = vcmp.eq.s32.totalorder %v258, %v246
        %vm386 = vcmp.eq.s32.totalorder %v258, %v247
        %vm387 = vcmp.eq.s32.totalorder %v258, %v248
        %vm388 = vcmp.eq.s32.totalorder %v258, %v249
        %vm389 = vcmp.eq.s32.totalorder %v258, %v250
        %vm390 = vcmp.eq.s32.totalorder %v258, %v251
        %vm391 = vcmp.eq.s32.totalorder %v258, %v252
        %vm392 = vcmp.eq.s32.totalorder %v258, %v253
        %vm393 = vcmp.eq.s32.totalorder %v258, %v254
        %vm394 = vcmp.eq.s32.totalorder %v258, %v255
        %vm395 = vcmp.eq.s32.totalorder %v258, %v256
        %v396 = vsel %vm383, 1, 0
        %v397 = vsel %vm384, 1, 0
        %v398 = vsel %vm385, 1, 0
        %v399 = vsel %vm386, 1, 0
        %v400 = vsel %vm387, 1, 0
        %v401 = vsel %vm388, 1, 0
        %v402 = vsel %vm389, 1, 0
        %v403 = vsel %vm390, 1, 0
        %v404 = vsel %vm391, 1, 0
        %v405 = vsel %vm392, 1, 0
        %v406 = vsel %vm393, 1, 0
        %v407 = vsel %vm394, 1, 0
        %v408 = vsel %vm395, 1, 0
        %v409 = vcvt.s32.f32 %v396
        %v410 = vcvt.s32.f32 %v397
        %v411 = vcvt.s32.f32 %v398
        %v412 = vcvt.s32.f32 %v399
        %v413 = vcvt.s32.f32 %v400
        %v414 = vcvt.s32.f32 %v401
        %v415 = vcvt.s32.f32 %v402
        %v416 = vcvt.s32.f32 %v403
        %v417 = vcvt.s32.f32 %v404
        %v418 = vcvt.s32.f32 %v405
        %v419 = vcvt.s32.f32 %v406
        %v420 = vcvt.s32.f32 %v407
        %v421 = vcvt.s32.f32 %v408
        %vm422 = vcmask 826368
        %v424 = vsel %vm422, %v409, 0
        %v427 = vsel %vm422, %v410, 0
        %v430 = vsel %vm422, %v411, 0
        %v433 = vsel %vm422, %v412, 0
        %v436 = vsel %vm422, %v413, 0
        %v439 = vsel %vm422, %v414, 0
        %v442 = vsel %vm422, %v415, 0
        %v445 = vsel %vm422, %v416, 0
        %v448 = vsel %vm422, %v417, 0
        %v451 = vsel %vm422, %v418, 0
        %v454 = vsel %vm422, %v419, 0
        %v457 = vsel %vm422, %v420, 0
        %v460 = vsel %vm422, %v421, 0
        %vm462 = vcmask 1044480
        %v464 = vsel %vm462, %v381, 0
        %466 = vmatpush.msra.mxu0 0.0
        %467 = vmatpush.msra.mxu0 0.0
        %468 = vmatpush.msra.mxu0 0.0
        %469 = vmatpush.msra.mxu0 %v464
        %470 = vmatpush.msra.mxu0 %v378
        %471 = vmatpush.msra.mxu0 %v375
        %472 = vmatpush.msra.mxu0 %v372
        %473 = vmatpush.msra.mxu0 %v369
        %474 = vmatpush.msra.mxu0 %v366
        %475 = vmatpush.msra.mxu0 %v363
        %476 = vmatpush.msra.mxu0 %v360
        %477 = vmatpush.msra.mxu0 %v357
        %478 = vmatpush.msra.mxu0 %v354
        %479 = vmatpush.msra.mxu0 %v351
        %480 = vmatpush.msra.mxu0 %v348
        %481 = vmatpush.msra.mxu0 %v345
        %482 = vmatmul.f32.gmra.mxu0 %v424
        %v483 = vpop.f32.mrf.mxu0
        %v484 = vadd.f32 0.0, %v483
        %485 = vmatmul.f32.gmra.mxu0 %v427
        %v486 = vpop.f32.mrf.mxu0
        %v487 = vadd.f32 0.0, %v486
        %488 = vmatmul.f32.gmra.mxu0 %v430
        %v489 = vpop.f32.mrf.mxu0
        %v490 = vadd.f32 0.0, %v489
        %491 = vmatmul.f32.gmra.mxu0 %v433
        %v492 = vpop.f32.mrf.mxu0
        %v493 = vadd.f32 0.0, %v492
        %494 = vmatmul.f32.gmra.mxu0 %v436
        %v495 = vpop.f32.mrf.mxu0
        %v496 = vadd.f32 0.0, %v495
        %497 = vmatmul.f32.gmra.mxu0 %v439
        %v498 = vpop.f32.mrf.mxu0
        %v499 = vadd.f32 0.0, %v498
        %500 = vmatmul.f32.gmra.mxu0 %v442
        %v501 = vpop.f32.mrf.mxu0
        %v502 = vadd.f32 0.0, %v501
        %503 = vmatmul.f32.gmra.mxu0 %v445
        %v504 = vpop.f32.mrf.mxu0
        %v505 = vadd.f32 0.0, %v504
        %506 = vmatmul.f32.gmra.mxu0 %v448
        %v507 = vpop.f32.mrf.mxu0
        %v508 = vadd.f32 0.0, %v507
        %509 = vmatmul.f32.gmra.mxu0 %v451
        %v510 = vpop.f32.mrf.mxu0
        %v511 = vadd.f32 0.0, %v510
        %512 = vmatmul.f32.gmra.mxu0 %v454
        %v513 = vpop.f32.mrf.mxu0
        %v514 = vadd.f32 0.0, %v513
        %515 = vmatmul.f32.gmra.mxu0 %v457
        %v516 = vpop.f32.mrf.mxu0
        %v517 = vadd.f32 0.0, %v516
        %518 = vmatmul.f32.gmra.mxu0 %v460
        %v519 = vpop.f32.mrf.mxu0
        %v520 = vadd.f32 0.0, %v519
        %521 = vdwg.mxu0
        %v523 = vsel %vm422, %v298, 0
        %v526 = vsel %vm422, %v299, 0
        %v529 = vsel %vm422, %v300, 0
        %v532 = vsel %vm422, %v301, 0
        %v535 = vsel %vm422, %v302, 0
        %v538 = vsel %vm422, %v303, 0
        %v541 = vsel %vm422, %v304, 0
        %v544 = vsel %vm422, %v305, 0
        %v547 = vsel %vm422, %v306, 0
        %v550 = vsel %vm422, %v307, 0
        %v553 = vsel %vm422, %v308, 0
        %v556 = vsel %vm422, %v309, 0
        %v559 = vsel %vm422, %v310, 0
        %v562 = vsel %vm462, %v241, 0
        %564 = vmatpush.msra.mxu0 0.0
        %565 = vmatpush.msra.mxu0 0.0
        %566 = vmatpush.msra.mxu0 0.0
        %567 = vmatpush.msra.mxu0 %v562
        %568 = vmatpush.msra.mxu0 %v238
        %569 = vmatpush.msra.mxu0 %v235
        %570 = vmatpush.msra.mxu0 %v232
        %571 = vmatpush.msra.mxu0 %v229
        %572 = vmatpush.msra.mxu0 %v226
        %573 = vmatpush.msra.mxu0 %v223
        %574 = vmatpush.msra.mxu0 %v220
        %575 = vmatpush.msra.mxu0 %v217
        %576 = vmatpush.msra.mxu0 %v214
        %577 = vmatpush.msra.mxu0 %v211
        %578 = vmatpush.msra.mxu0 %v208
        %579 = vmatpush.msra.mxu0 %v205
        %580 = vmatmul.f32.gmra.mxu0 %v523
        %v581 = vpop.f32.mrf.mxu0
        %v582 = vadd.f32 %v484, %v581
        %583 = vmatmul.f32.gmra.mxu0 %v526
        %v584 = vpop.f32.mrf.mxu0
        %v585 = vadd.f32 %v487, %v584
        %586 = vmatmul.f32.gmra.mxu0 %v529
        %v587 = vpop.f32.mrf.mxu0
        %v588 = vadd.f32 %v490, %v587
        %589 = vmatmul.f32.gmra.mxu0 %v532
        %v590 = vpop.f32.mrf.mxu0
        %v591 = vadd.f32 %v493, %v590
        %592 = vmatmul.f32.gmra.mxu0 %v535
        %v593 = vpop.f32.mrf.mxu0
        %v594 = vadd.f32 %v496, %v593
        %595 = vmatmul.f32.gmra.mxu0 %v538
        %v596 = vpop.f32.mrf.mxu0
        %v597 = vadd.f32 %v499, %v596
        %598 = vmatmul.f32.gmra.mxu0 %v541
        %v599 = vpop.f32.mrf.mxu0
        %v600 = vadd.f32 %v502, %v599
        %601 = vmatmul.f32.gmra.mxu0 %v544
        %v602 = vpop.f32.mrf.mxu0
        %v603 = vadd.f32 %v505, %v602
        %604 = vmatmul.f32.gmra.mxu0 %v547
        %v605 = vpop.f32.mrf.mxu0
        %v606 = vadd.f32 %v508, %v605
        %607 = vmatmul.f32.gmra.mxu0 %v550
        %v608 = vpop.f32.mrf.mxu0
        %v609 = vadd.f32 %v511, %v608
        %610 = vmatmul.f32.gmra.mxu0 %v553
        %v611 = vpop.f32.mrf.mxu0
        %v612 = vadd.f32 %v514, %v611
        %613 = vmatmul.f32.gmra.mxu0 %v556
        %v614 = vpop.f32.mrf.mxu0
        %v615 = vadd.f32 %v517, %v614
        %616 = vmatmul.f32.gmra.mxu0 %v559
        %v617 = vpop.f32.mrf.mxu0
        %v618 = vadd.f32 %v520, %v617
        %619 = vdwg.mxu0
        %v620 = vld [vmem:[#allocation2 + $0x100] sm:$0xff]
        %v621 = vld [vmem:[#allocation2 + $0x108] sm:$0xff]
        %v622 = vld [vmem:[#allocation2 + $0x110] sm:$0xff]
        %v623 = vld [vmem:[#allocation2 + $0x118] sm:$0xff]
        %v624 = vld [vmem:[#allocation2 + $0x120] sm:$0xff]
        %v625 = vld [vmem:[#allocation2 + $0x128] sm:$0xff]
        %v626 = vld [vmem:[#allocation2 + $0x130] sm:$0xff]
        %v627 = vld [vmem:[#allocation2 + $0x138] sm:$0xff]
        %v628 = vld [vmem:[#allocation2 + $0x140] sm:$0xff]
        %v629 = vld [vmem:[#allocation2 + $0x148] sm:$0xff]
        %v630 = vld [vmem:[#allocation2 + $0x150] sm:$0xff]
        %v631 = vld [vmem:[#allocation2 + $0x158] sm:$0xff]
        %v632 = vld [vmem:[#allocation2 + $0x160] sm:$0xff]
        %v633 = vld [vmem:[#allocation2 + $0x168] sm:$0xff]
        %v634 = vld [vmem:[#allocation2 + $0x170] sm:$0xff]
        %v635 = vld [vmem:[#allocation2 + $0x178] sm:$0xff]
        %636 = vmatpush.msra.mxu0 %v635
        %637 = vmatpush.msra.mxu0 %v634
        %638 = vmatpush.msra.mxu0 %v633
        %639 = vmatpush.msra.mxu0 %v632
        %640 = vmatpush.msra.mxu0 %v631
        %641 = vmatpush.msra.mxu0 %v630
        %642 = vmatpush.msra.mxu0 %v629
        %643 = vmatpush.msra.mxu0 %v628
        %644 = vmatpush.msra.mxu0 %v627
        %645 = vmatpush.msra.mxu0 %v626
        %646 = vmatpush.msra.mxu0 %v625
        %647 = vmatpush.msra.mxu0 %v624
        %648 = vmatpush.msra.mxu0 %v623
        %649 = vmatpush.msra.mxu0 %v622
        %650 = vmatpush.msra.mxu0 %v621
        %651 = vmatpush.msra.mxu0 %v620
        %652 = vmatmul.f32.gmra.mxu0 %v158
        %v653 = vpop.f32.mrf.mxu0
        %v654 = vadd.f32 0.0, %v653
        %655 = vmatmul.f32.gmra.mxu0 %v159
        %v656 = vpop.f32.mrf.mxu0
        %v657 = vadd.f32 0.0, %v656
        %658 = vmatmul.f32.gmra.mxu0 %v160
        %v659 = vpop.f32.mrf.mxu0
        %v660 = vadd.f32 0.0, %v659
        %661 = vmatmul.f32.gmra.mxu0 %v161
        %v662 = vpop.f32.mrf.mxu0
        %v663 = vadd.f32 0.0, %v662
        %664 = vmatmul.f32.gmra.mxu0 %v162
        %v665 = vpop.f32.mrf.mxu0
        %v666 = vadd.f32 0.0, %v665
        %667 = vmatmul.f32.gmra.mxu0 %v163
        %v668 = vpop.f32.mrf.mxu0
        %v669 = vadd.f32 0.0, %v668
        %670 = vmatmul.f32.gmra.mxu0 %v164
        %v671 = vpop.f32.mrf.mxu0
        %v672 = vadd.f32 0.0, %v671
        %673 = vmatmul.f32.gmra.mxu0 %v165
        %v674 = vpop.f32.mrf.mxu0
        %v675 = vadd.f32 0.0, %v674
        %676 = vmatmul.f32.gmra.mxu0 %v166
        %v677 = vpop.f32.mrf.mxu0
        %v678 = vadd.f32 0.0, %v677
        %679 = vmatmul.f32.gmra.mxu0 %v167
        %v680 = vpop.f32.mrf.mxu0
        %v681 = vadd.f32 0.0, %v680
        %682 = vmatmul.f32.gmra.mxu0 %v168
        %v683 = vpop.f32.mrf.mxu0
        %v684 = vadd.f32 0.0, %v683
        %685 = vmatmul.f32.gmra.mxu0 %v169
        %v686 = vpop.f32.mrf.mxu0
        %v687 = vadd.f32 0.0, %v686
        %688 = vmatmul.f32.gmra.mxu0 %v170
        %v689 = vpop.f32.mrf.mxu0
        %v690 = vadd.f32 0.0, %v689
        %691 = vdwg.mxu0
        %v692 = vadd.s32 %v244, 1
        %v693 = vadd.s32 %v245, 1
        %v694 = vadd.s32 %v246, 1
        %v695 = vadd.s32 %v247, 1
        %v696 = vadd.s32 %v248, 1
        %v697 = vadd.s32 %v249, 1
        %v698 = vadd.s32 %v250, 1
        %v699 = vadd.s32 %v251, 1
        %v700 = vadd.s32 %v252, 1
        %v701 = vadd.s32 %v253, 1
        %v702 = vadd.s32 %v254, 1
        %v703 = vadd.s32 %v255, 1
        %v704 = vadd.s32 %v256, 1
        %vm705 = vcmp.eq.s32.totalorder %v258, %v692
        %vm706 = vcmp.eq.s32.totalorder %v258, %v693
        %vm707 = vcmp.eq.s32.totalorder %v258, %v694
        %vm708 = vcmp.eq.s32.totalorder %v258, %v695
        %vm709 = vcmp.eq.s32.totalorder %v258, %v696
        %vm710 = vcmp.eq.s32.totalorder %v258, %v697
        %vm711 = vcmp.eq.s32.totalorder %v258, %v698
        %vm712 = vcmp.eq.s32.totalorder %v258, %v699
        %vm713 = vcmp.eq.s32.totalorder %v258, %v700
        %vm714 = vcmp.eq.s32.totalorder %v258, %v701
        %vm715 = vcmp.eq.s32.totalorder %v258, %v702
        %vm716 = vcmp.eq.s32.totalorder %v258, %v703
        %vm717 = vcmp.eq.s32.totalorder %v258, %v704
        %v718 = vsel %vm705, 1, 0
        %v719 = vsel %vm706, 1, 0
        %v720 = vsel %vm707, 1, 0
        %v721 = vsel %vm708, 1, 0
        %v722 = vsel %vm709, 1, 0
        %v723 = vsel %vm710, 1, 0
        %v724 = vsel %vm711, 1, 0
        %v725 = vsel %vm712, 1, 0
        %v726 = vsel %vm713, 1, 0
        %v727 = vsel %vm714, 1, 0
        %v728 = vsel %vm715, 1, 0
        %v729 = vsel %vm716, 1, 0
        %v730 = vsel %vm717, 1, 0
        %v731 = vcvt.s32.f32 %v718
        %v732 = vcvt.s32.f32 %v719
        %v733 = vcvt.s32.f32 %v720
        %v734 = vcvt.s32.f32 %v721
        %v735 = vcvt.s32.f32 %v722
        %v736 = vcvt.s32.f32 %v723
        %v737 = vcvt.s32.f32 %v724
        %v738 = vcvt.s32.f32 %v725
        %v739 = vcvt.s32.f32 %v726
        %v740 = vcvt.s32.f32 %v727
        %v741 = vcvt.s32.f32 %v728
        %v742 = vcvt.s32.f32 %v729
        %v743 = vcvt.s32.f32 %v730
        %v745 = vsel %vm422, %v731, 0
        %v748 = vsel %vm422, %v732, 0
        %v751 = vsel %vm422, %v733, 0
        %v754 = vsel %vm422, %v734, 0
        %v757 = vsel %vm422, %v735, 0
        %v760 = vsel %vm422, %v736, 0
        %v763 = vsel %vm422, %v737, 0
        %v766 = vsel %vm422, %v738, 0
        %v769 = vsel %vm422, %v739, 0
        %v772 = vsel %vm422, %v740, 0
        %v775 = vsel %vm422, %v741, 0
        %v778 = vsel %vm422, %v742, 0
        %v781 = vsel %vm422, %v743, 0
        %v784 = vsel %vm462, %v690, 0
        %786 = vmatpush.msra.mxu0 0.0
        %787 = vmatpush.msra.mxu0 0.0
        %788 = vmatpush.msra.mxu0 0.0
        %789 = vmatpush.msra.mxu0 %v784
        %790 = vmatpush.msra.mxu0 %v687
        %791 = vmatpush.msra.mxu0 %v684
        %792 = vmatpush.msra.mxu0 %v681
        %793 = vmatpush.msra.mxu0 %v678
        %794 = vmatpush.msra.mxu0 %v675
        %795 = vmatpush.msra.mxu0 %v672
        %796 = vmatpush.msra.mxu0 %v669
        %797 = vmatpush.msra.mxu0 %v666
        %798 = vmatpush.msra.mxu0 %v663
        %799 = vmatpush.msra.mxu0 %v660
        %800 = vmatpush.msra.mxu0 %v657
        %801 = vmatpush.msra.mxu0 %v654
        %802 = vmatmul.f32.gmra.mxu0 %v745
        %v803 = vpop.f32.mrf.mxu0
        %v804 = vadd.f32 0.0, %v803
        %805 = vmatmul.f32.gmra.mxu0 %v748
        %v806 = vpop.f32.mrf.mxu0
        %v807 = vadd.f32 0.0, %v806
        %808 = vmatmul.f32.gmra.mxu0 %v751
        %v809 = vpop.f32.mrf.mxu0
        %v810 = vadd.f32 0.0, %v809
        %811 = vmatmul.f32.gmra.mxu0 %v754
        %v812 = vpop.f32.mrf.mxu0
        %v813 = vadd.f32 0.0, %v812
        %814 = vmatmul.f32.gmra.mxu0 %v757
        %v815 = vpop.f32.mrf.mxu0
        %v816 = vadd.f32 0.0, %v815
        %817 = vmatmul.f32.gmra.mxu0 %v760
        %v818 = vpop.f32.mrf.mxu0
        %v819 = vadd.f32 0.0, %v818
        %820 = vmatmul.f32.gmra.mxu0 %v763
        %v821 = vpop.f32.mrf.mxu0
        %v822 = vadd.f32 0.0, %v821
        %823 = vmatmul.f32.gmra.mxu0 %v766
        %v824 = vpop.f32.mrf.mxu0
        %v825 = vadd.f32 0.0, %v824
        %826 = vmatmul.f32.gmra.mxu0 %v769
        %v827 = vpop.f32.mrf.mxu0
        %v828 = vadd.f32 0.0, %v827
        %829 = vmatmul.f32.gmra.mxu0 %v772
        %v830 = vpop.f32.mrf.mxu0
        %v831 = vadd.f32 0.0, %v830
        %832 = vmatmul.f32.gmra.mxu0 %v775
        %v833 = vpop.f32.mrf.mxu0
        %v834 = vadd.f32 0.0, %v833
        %835 = vmatmul.f32.gmra.mxu0 %v778
        %v836 = vpop.f32.mrf.mxu0
        %v837 = vadd.f32 0.0, %v836
        %838 = vmatmul.f32.gmra.mxu0 %v781
        %v839 = vpop.f32.mrf.mxu0
        %v840 = vadd.f32 0.0, %v839
        %841 = vdwg.mxu0
        %v842 = vadd.f32 %v582, %v804
        %v843 = vadd.f32 %v585, %v807
        %v844 = vadd.f32 %v588, %v810
        %v845 = vadd.f32 %v591, %v813
        %v846 = vadd.f32 %v594, %v816
        %v847 = vadd.f32 %v597, %v819
        %v848 = vadd.f32 %v600, %v822
        %v849 = vadd.f32 %v603, %v825
        %v850 = vadd.f32 %v606, %v828
        %v851 = vadd.f32 %v609, %v831
        %v852 = vadd.f32 %v612, %v834
        %v853 = vadd.f32 %v615, %v837
        %v854 = vadd.f32 %v618, %v840
        %v855 = vld [vmem:[#allocation2 + $0x180] sm:$0x1]
        %v856 = vperm.slane %v855, 0
        %v857 = vadd.f32 %v842, %v856
        %v858 = vadd.f32 %v843, %v856
        %v859 = vadd.f32 %v844, %v856
        %v860 = vadd.f32 %v845, %v856
        %v861 = vadd.f32 %v846, %v856
        %v862 = vadd.f32 %v847, %v856
        %v863 = vadd.f32 %v848, %v856
        %v864 = vadd.f32 %v849, %v856
        %v865 = vadd.f32 %v850, %v856
        %v866 = vadd.f32 %v851, %v856
        %v867 = vadd.f32 %v852, %v856
        %v868 = vadd.f32 %v853, %v856
        %v869 = vadd.f32 %v854, %v856
        %v870 = vmul.u32 %v244, 2
        %v871 = vmul.u32 %v245, 2
        %v872 = vmul.u32 %v246, 2
        %v873 = vmul.u32 %v247, 2
        %v874 = vmul.u32 %v248, 2
        %v875 = vmul.u32 %v249, 2
        %v876 = vmul.u32 %v250, 2
        %vm877 = vcmp.eq.s32.totalorder %v258, %v870
        %vm878 = vcmp.eq.s32.totalorder %v258, %v871
        %vm879 = vcmp.eq.s32.totalorder %v258, %v872
        %vm880 = vcmp.eq.s32.totalorder %v258, %v873
        %vm881 = vcmp.eq.s32.totalorder %v258, %v874
        %vm882 = vcmp.eq.s32.totalorder %v258, %v875
        %vm883 = vcmp.eq.s32.totalorder %v258, %v876
        %v884 = vsel %vm877, 1, 0
        %v885 = vsel %vm878, 1, 0
        %v886 = vsel %vm879, 1, 0
        %v887 = vsel %vm880, 1, 0
        %v888 = vsel %vm881, 1, 0
        %v889 = vsel %vm882, 1, 0
        %v890 = vsel %vm883, 1, 0
        %v891 = vcvt.s32.f32 %v884
        %v892 = vcvt.s32.f32 %v885
        %v893 = vcvt.s32.f32 %v886
        %v894 = vcvt.s32.f32 %v887
        %v895 = vcvt.s32.f32 %v888
        %v896 = vcvt.s32.f32 %v889
        %v897 = vcvt.s32.f32 %v890
        %v899 = vsel %vm422, %v891, 0
        %v902 = vsel %vm422, %v892, 0
        %v905 = vsel %vm422, %v893, 0
        %v908 = vsel %vm422, %v894, 0
        %v911 = vsel %vm422, %v895, 0
        %v914 = vsel %vm422, %v896, 0
        %v917 = vsel %vm422, %v897, 0
        %v920 = vsel %vm462, %v869, 0
        %922 = vmatpush.msra.mxu0 0.0
        %923 = vmatpush.msra.mxu0 0.0
        %924 = vmatpush.msra.mxu0 0.0
        %925 = vmatpush.msra.mxu0 %v920
        %926 = vmatpush.msra.mxu0 %v868
        %927 = vmatpush.msra.mxu0 %v867
        %928 = vmatpush.msra.mxu0 %v866
        %929 = vmatpush.msra.mxu0 %v865
        %930 = vmatpush.msra.mxu0 %v864
        %931 = vmatpush.msra.mxu0 %v863
        %932 = vmatpush.msra.mxu0 %v862
        %933 = vmatpush.msra.mxu0 %v861
        %934 = vmatpush.msra.mxu0 %v860
        %935 = vmatpush.msra.mxu0 %v859
        %936 = vmatpush.msra.mxu0 %v858
        %937 = vmatpush.msra.mxu0 %v857
        %938 = vmatmul.f32.gmra.mxu0 %v899
        %v939 = vpop.f32.mrf.mxu0
        %v940 = vadd.f32 0.0, %v939
        %941 = vmatmul.f32.gmra.mxu0 %v902
        %v942 = vpop.f32.mrf.mxu0
        %v943 = vadd.f32 0.0, %v942
        %944 = vmatmul.f32.gmra.mxu0 %v905
        %v945 = vpop.f32.mrf.mxu0
        %v946 = vadd.f32 0.0, %v945
        %947 = vmatmul.f32.gmra.mxu0 %v908
        %v948 = vpop.f32.mrf.mxu0
        %v949 = vadd.f32 0.0, %v948
        %950 = vmatmul.f32.gmra.mxu0 %v911
        %v951 = vpop.f32.mrf.mxu0
        %v952 = vadd.f32 0.0, %v951
        %953 = vmatmul.f32.gmra.mxu0 %v914
        %v954 = vpop.f32.mrf.mxu0
        %v955 = vadd.f32 0.0, %v954
        %956 = vmatmul.f32.gmra.mxu0 %v917
        %v957 = vpop.f32.mrf.mxu0
        %v958 = vadd.f32 0.0, %v957
        %959 = vdwg.mxu0
        %v960 = vld [vmem:[#allocation2 + $0x4a8] sm:$0xff]
        %v961 = vld [vmem:[#allocation2 + $0x4b0] sm:$0xff]
        %v962 = vld [vmem:[#allocation2 + $0x4b8] sm:$0xff]
        %v963 = vld [vmem:[#allocation2 + $0x4c0] sm:$0xff]
        %v964 = vld [vmem:[#allocation2 + $0x4c8] sm:$0xff]
        %v965 = vld [vmem:[#allocation2 + $0x4d0] sm:$0xff]
        %v966 = vld [vmem:[#allocation2 + $0x4d8] sm:$0xff]
        %v967 = vld [vmem:[#allocation2 + $0x4e0] sm:$0xff]
        %v968 = vld [vmem:[#allocation2 + $0x4e8] sm:$0xff]
        %v969 = vld [vmem:[#allocation2 + $0x4f0] sm:$0xff]
        %v970 = vld [vmem:[#allocation2 + $0x4f8] sm:$0xff]
        %v971 = vld [vmem:[#allocation2 + $0x500] sm:$0xff]
        %v972 = vld [vmem:[#allocation2 + $0x508] sm:$0xff]
        %v973 = vld [vmem:[#allocation2 + $0x510] sm:$0xff]
        %v974 = vld [vmem:[#allocation2 + $0x518] sm:$0xff]
        %v975 = vld [vmem:[#allocation2 + $0x520] sm:$0xff]
        %976 = vmatpush.msra.mxu0 %v975
        %977 = vmatpush.msra.mxu0 %v974
        %978 = vmatpush.msra.mxu0 %v973
        %979 = vmatpush.msra.mxu0 %v972
        %980 = vmatpush.msra.mxu0 %v971
        %981 = vmatpush.msra.mxu0 %v970
        %982 = vmatpush.msra.mxu0 %v969
        %983 = vmatpush.msra.mxu0 %v968
        %984 = vmatpush.msra.mxu0 %v967
        %985 = vmatpush.msra.mxu0 %v966
        %986 = vmatpush.msra.mxu0 %v965
        %987 = vmatpush.msra.mxu0 %v964
        %988 = vmatpush.msra.mxu0 %v963
        %989 = vmatpush.msra.mxu0 %v962
        %990 = vmatpush.msra.mxu0 %v961
        %991 = vmatpush.msra.mxu0 %v960
        %992 = vmatmul.f32.gmra.mxu0 %v940
        %v993 = vpop.f32.mrf.mxu0
        %v994 = vadd.f32 0.0, %v993
        %995 = vmatmul.f32.gmra.mxu0 %v943
        %v996 = vpop.f32.mrf.mxu0
        %v997 = vadd.f32 0.0, %v996
        %998 = vmatmul.f32.gmra.mxu0 %v946
        %v999 = vpop.f32.mrf.mxu0
        %v1000 = vadd.f32 0.0, %v999
        %1001 = vmatmul.f32.gmra.mxu0 %v949
        %v1002 = vpop.f32.mrf.mxu0
        %v1003 = vadd.f32 0.0, %v1002
        %1004 = vmatmul.f32.gmra.mxu0 %v952
        %v1005 = vpop.f32.mrf.mxu0
        %v1006 = vadd.f32 0.0, %v1005
        %1007 = vmatmul.f32.gmra.mxu0 %v955
        %v1008 = vpop.f32.mrf.mxu0
        %v1009 = vadd.f32 0.0, %v1008
        %1010 = vmatmul.f32.gmra.mxu0 %v958
        %v1011 = vpop.f32.mrf.mxu0
        %v1012 = vadd.f32 0.0, %v1011
        %1013 = vdwg.mxu0
        %v1014 = vld [vmem:[#allocation2 + $0x528] sm:$0x1]
        %v1015 = vperm.slane %v1014, 0
        %v1016 = vmul.f32 %v994, %v1015
        %v1017 = vmul.f32 %v997, %v1015
        %v1018 = vmul.f32 %v1000, %v1015
        %v1019 = vmul.f32 %v1003, %v1015
        %v1020 = vmul.f32 %v1006, %v1015
        %v1021 = vmul.f32 %v1009, %v1015
        %v1022 = vmul.f32 %v1012, %v1015
        %v1023 = vld [vmem:[#allocation2 + $0x530] sm:$0x1]
        %v1024 = vperm.slane %v1023, 0
        %v1025 = vadd.f32 %v1016, %v1024
        %v1026 = vadd.f32 %v1017, %v1024
        %v1027 = vadd.f32 %v1018, %v1024
        %v1028 = vadd.f32 %v1019, %v1024
        %v1029 = vadd.f32 %v1020, %v1024
        %v1030 = vadd.f32 %v1021, %v1024
        %v1031 = vadd.f32 %v1022, %v1024
        %v1032 = vld [vmem:[#allocation2 + $0x188] sm:$0xff]
        %v1033 = vld [vmem:[#allocation2 + $0x190] sm:$0xff]
        %v1034 = vld [vmem:[#allocation2 + $0x198] sm:$0xff]
        %v1035 = vld [vmem:[#allocation2 + $0x1a0] sm:$0xff]
        %v1036 = vld [vmem:[#allocation2 + $0x1a8] sm:$0xff]
        %v1037 = vld [vmem:[#allocation2 + $0x1b0] sm:$0xff]
        %v1038 = vld [vmem:[#allocation2 + $0x1b8] sm:$0xff]
        %v1039 = vld [vmem:[#allocation2 + $0x1c0] sm:$0xff]
        %v1040 = vld [vmem:[#allocation2 + $0x1c8] sm:$0xff]
        %v1041 = vld [vmem:[#allocation2 + $0x1d0] sm:$0xff]
        %v1042 = vld [vmem:[#allocation2 + $0x1d8] sm:$0xff]
        %v1043 = vld [vmem:[#allocation2 + $0x1e0] sm:$0xff]
        %v1044 = vld [vmem:[#allocation2 + $0x1e8] sm:$0xff]
        %v1045 = vld [vmem:[#allocation2 + $0x1f0] sm:$0xff]
        %v1046 = vld [vmem:[#allocation2 + $0x1f8] sm:$0xff]
        %v1047 = vld [vmem:[#allocation2 + $0x200] sm:$0xff]
        %1048 = vmatpush.msra.mxu0 %v1047
        %1049 = vmatpush.msra.mxu0 %v1046
        %1050 = vmatpush.msra.mxu0 %v1045
        %1051 = vmatpush.msra.mxu0 %v1044
        %1052 = vmatpush.msra.mxu0 %v1043
        %1053 = vmatpush.msra.mxu0 %v1042
        %1054 = vmatpush.msra.mxu0 %v1041
        %1055 = vmatpush.msra.mxu0 %v1040
        %1056 = vmatpush.msra.mxu0 %v1039
        %1057 = vmatpush.msra.mxu0 %v1038
        %1058 = vmatpush.msra.mxu0 %v1037
        %1059 = vmatpush.msra.mxu0 %v1036
        %1060 = vmatpush.msra.mxu0 %v1035
        %1061 = vmatpush.msra.mxu0 %v1034
        %1062 = vmatpush.msra.mxu0 %v1033
        %1063 = vmatpush.msra.mxu0 %v1032
        %1064 = vmatmul.f32.gmra.mxu0 %v857
        %v1065 = vpop.f32.mrf.mxu0
        %v1066 = vadd.f32 0.0, %v1065
        %1067 = vmatmul.f32.gmra.mxu0 %v858
        %v1068 = vpop.f32.mrf.mxu0
        %v1069 = vadd.f32 0.0, %v1068
        %1070 = vmatmul.f32.gmra.mxu0 %v859
        %v1071 = vpop.f32.mrf.mxu0
        %v1072 = vadd.f32 0.0, %v1071
        %1073 = vmatmul.f32.gmra.mxu0 %v860
        %v1074 = vpop.f32.mrf.mxu0
        %v1075 = vadd.f32 0.0, %v1074
        %1076 = vmatmul.f32.gmra.mxu0 %v861
        %v1077 = vpop.f32.mrf.mxu0
        %v1078 = vadd.f32 0.0, %v1077
        %1079 = vmatmul.f32.gmra.mxu0 %v862
        %v1080 = vpop.f32.mrf.mxu0
        %v1081 = vadd.f32 0.0, %v1080
        %1082 = vmatmul.f32.gmra.mxu0 %v863
        %v1083 = vpop.f32.mrf.mxu0
        %v1084 = vadd.f32 0.0, %v1083
        %1085 = vmatmul.f32.gmra.mxu0 %v864
        %v1086 = vpop.f32.mrf.mxu0
        %v1087 = vadd.f32 0.0, %v1086
        %1088 = vmatmul.f32.gmra.mxu0 %v865
        %v1089 = vpop.f32.mrf.mxu0
        %v1090 = vadd.f32 0.0, %v1089
        %1091 = vmatmul.f32.gmra.mxu0 %v866
        %v1092 = vpop.f32.mrf.mxu0
        %v1093 = vadd.f32 0.0, %v1092
        %1094 = vmatmul.f32.gmra.mxu0 %v867
        %v1095 = vpop.f32.mrf.mxu0
        %v1096 = vadd.f32 0.0, %v1095
        %1097 = vmatmul.f32.gmra.mxu0 %v868
        %v1098 = vpop.f32.mrf.mxu0
        %v1099 = vadd.f32 0.0, %v1098
        %1100 = vmatmul.f32.gmra.mxu0 %v869
        %v1101 = vpop.f32.mrf.mxu0
        %v1102 = vadd.f32 0.0, %v1101
        %1103 = vdwg.mxu0
        %v1104 = vadd.s32 %v870, 4294967295
        %v1105 = vadd.s32 %v871, 4294967295
        %v1106 = vadd.s32 %v872, 4294967295
        %v1107 = vadd.s32 %v873, 4294967295
        %v1108 = vadd.s32 %v874, 4294967295
        %v1109 = vadd.s32 %v875, 4294967295
        %v1110 = vadd.s32 %v876, 4294967295
        %vm1111 = vcmp.eq.s32.totalorder %v258, %v1104
        %vm1112 = vcmp.eq.s32.totalorder %v258, %v1105
        %vm1113 = vcmp.eq.s32.totalorder %v258, %v1106
        %vm1114 = vcmp.eq.s32.totalorder %v258, %v1107
        %vm1115 = vcmp.eq.s32.totalorder %v258, %v1108
        %vm1116 = vcmp.eq.s32.totalorder %v258, %v1109
        %vm1117 = vcmp.eq.s32.totalorder %v258, %v1110
        %v1118 = vsel %vm1111, 1, 0
        %v1119 = vsel %vm1112, 1, 0
        %v1120 = vsel %vm1113, 1, 0
        %v1121 = vsel %vm1114, 1, 0
        %v1122 = vsel %vm1115, 1, 0
        %v1123 = vsel %vm1116, 1, 0
        %v1124 = vsel %vm1117, 1, 0
        %v1125 = vcvt.s32.f32 %v1118
        %v1126 = vcvt.s32.f32 %v1119
        %v1127 = vcvt.s32.f32 %v1120
        %v1128 = vcvt.s32.f32 %v1121
        %v1129 = vcvt.s32.f32 %v1122
        %v1130 = vcvt.s32.f32 %v1123
        %v1131 = vcvt.s32.f32 %v1124
        %v1132 = vld [vmem:[#allocation2 + $0x208] sm:$0xff]
        %v1133 = vld [vmem:[#allocation2 + $0x210] sm:$0xff]
        %v1134 = vld [vmem:[#allocation2 + $0x218] sm:$0xff]
        %v1135 = vld [vmem:[#allocation2 + $0x220] sm:$0xff]
        %v1136 = vld [vmem:[#allocation2 + $0x228] sm:$0xff]
        %v1137 = vld [vmem:[#allocation2 + $0x230] sm:$0xff]
        %v1138 = vld [vmem:[#allocation2 + $0x238] sm:$0xff]
        %v1139 = vld [vmem:[#allocation2 + $0x240] sm:$0xff]
        %v1140 = vld [vmem:[#allocation2 + $0x248] sm:$0xff]
        %v1141 = vld [vmem:[#allocation2 + $0x250] sm:$0xff]
        %v1142 = vld [vmem:[#allocation2 + $0x258] sm:$0xff]
        %v1143 = vld [vmem:[#allocation2 + $0x260] sm:$0xff]
        %v1144 = vld [vmem:[#allocation2 + $0x268] sm:$0xff]
        %v1145 = vld [vmem:[#allocation2 + $0x270] sm:$0xff]
        %v1146 = vld [vmem:[#allocation2 + $0x278] sm:$0xff]
        %v1147 = vld [vmem:[#allocation2 + $0x280] sm:$0xff]
        %1148 = vmatpush.msra.mxu0 %v1147
        %1149 = vmatpush.msra.mxu0 %v1146
        %1150 = vmatpush.msra.mxu0 %v1145
        %1151 = vmatpush.msra.mxu0 %v1144
        %1152 = vmatpush.msra.mxu0 %v1143
        %1153 = vmatpush.msra.mxu0 %v1142
        %1154 = vmatpush.msra.mxu0 %v1141
        %1155 = vmatpush.msra.mxu0 %v1140
        %1156 = vmatpush.msra.mxu0 %v1139
        %1157 = vmatpush.msra.mxu0 %v1138
        %1158 = vmatpush.msra.mxu0 %v1137
        %1159 = vmatpush.msra.mxu0 %v1136
        %1160 = vmatpush.msra.mxu0 %v1135
        %1161 = vmatpush.msra.mxu0 %v1134
        %1162 = vmatpush.msra.mxu0 %v1133
        %1163 = vmatpush.msra.mxu0 %v1132
        %1164 = vmatmul.f32.gmra.mxu0 %v857
        %v1165 = vpop.f32.mrf.mxu0
        %v1166 = vadd.f32 0.0, %v1165
        %1167 = vmatmul.f32.gmra.mxu0 %v858
        %v1168 = vpop.f32.mrf.mxu0
        %v1169 = vadd.f32 0.0, %v1168
        %1170 = vmatmul.f32.gmra.mxu0 %v859
        %v1171 = vpop.f32.mrf.mxu0
        %v1172 = vadd.f32 0.0, %v1171
        %1173 = vmatmul.f32.gmra.mxu0 %v860
        %v1174 = vpop.f32.mrf.mxu0
        %v1175 = vadd.f32 0.0, %v1174
        %1176 = vmatmul.f32.gmra.mxu0 %v861
        %v1177 = vpop.f32.mrf.mxu0
        %v1178 = vadd.f32 0.0, %v1177
        %1179 = vmatmul.f32.gmra.mxu0 %v862
        %v1180 = vpop.f32.mrf.mxu0
        %v1181 = vadd.f32 0.0, %v1180
        %1182 = vmatmul.f32.gmra.mxu0 %v863
        %v1183 = vpop.f32.mrf.mxu0
        %v1184 = vadd.f32 0.0, %v1183
        %1185 = vmatmul.f32.gmra.mxu0 %v864
        %v1186 = vpop.f32.mrf.mxu0
        %v1187 = vadd.f32 0.0, %v1186
        %1188 = vmatmul.f32.gmra.mxu0 %v865
        %v1189 = vpop.f32.mrf.mxu0
        %v1190 = vadd.f32 0.0, %v1189
        %1191 = vmatmul.f32.gmra.mxu0 %v866
        %v1192 = vpop.f32.mrf.mxu0
        %v1193 = vadd.f32 0.0, %v1192
        %1194 = vmatmul.f32.gmra.mxu0 %v867
        %v1195 = vpop.f32.mrf.mxu0
        %v1196 = vadd.f32 0.0, %v1195
        %1197 = vmatmul.f32.gmra.mxu0 %v868
        %v1198 = vpop.f32.mrf.mxu0
        %v1199 = vadd.f32 0.0, %v1198
        %1200 = vmatmul.f32.gmra.mxu0 %v869
        %v1201 = vpop.f32.mrf.mxu0
        %v1202 = vadd.f32 0.0, %v1201
        %1203 = vdwg.mxu0
        %v1205 = vsel %vm462, %v1202, 0
        %1207 = vmatpush.msra.mxu0 0.0
        %1208 = vmatpush.msra.mxu0 0.0
        %1209 = vmatpush.msra.mxu0 0.0
        %1210 = vmatpush.msra.mxu0 %v1205
        %1211 = vmatpush.msra.mxu0 %v1199
        %1212 = vmatpush.msra.mxu0 %v1196
        %1213 = vmatpush.msra.mxu0 %v1193
        %1214 = vmatpush.msra.mxu0 %v1190
        %1215 = vmatpush.msra.mxu0 %v1187
        %1216 = vmatpush.msra.mxu0 %v1184
        %1217 = vmatpush.msra.mxu0 %v1181
        %1218 = vmatpush.msra.mxu0 %v1178
        %1219 = vmatpush.msra.mxu0 %v1175
        %1220 = vmatpush.msra.mxu0 %v1172
        %1221 = vmatpush.msra.mxu0 %v1169
        %1222 = vmatpush.msra.mxu0 %v1166
        %1223 = vmatmul.f32.gmra.mxu0 %v899
        %v1224 = vpop.f32.mrf.mxu0
        %v1225 = vadd.f32 0.0, %v1224
        %1226 = vmatmul.f32.gmra.mxu0 %v902
        %v1227 = vpop.f32.mrf.mxu0
        %v1228 = vadd.f32 0.0, %v1227
        %1229 = vmatmul.f32.gmra.mxu0 %v905
        %v1230 = vpop.f32.mrf.mxu0
        %v1231 = vadd.f32 0.0, %v1230
        %1232 = vmatmul.f32.gmra.mxu0 %v908
        %v1233 = vpop.f32.mrf.mxu0
        %v1234 = vadd.f32 0.0, %v1233
        %1235 = vmatmul.f32.gmra.mxu0 %v911
        %v1236 = vpop.f32.mrf.mxu0
        %v1237 = vadd.f32 0.0, %v1236
        %1238 = vmatmul.f32.gmra.mxu0 %v914
        %v1239 = vpop.f32.mrf.mxu0
        %v1240 = vadd.f32 0.0, %v1239
        %1241 = vmatmul.f32.gmra.mxu0 %v917
        %v1242 = vpop.f32.mrf.mxu0
        %v1243 = vadd.f32 0.0, %v1242
        %1244 = vdwg.mxu0
        %v1246 = vsel %vm422, %v1125, 0
        %v1249 = vsel %vm422, %v1126, 0
        %v1252 = vsel %vm422, %v1127, 0
        %v1255 = vsel %vm422, %v1128, 0
        %v1258 = vsel %vm422, %v1129, 0
        %v1261 = vsel %vm422, %v1130, 0
        %v1264 = vsel %vm422, %v1131, 0
        %v1267 = vsel %vm462, %v1102, 0
        %1269 = vmatpush.msra.mxu0 0.0
        %1270 = vmatpush.msra.mxu0 0.0
        %1271 = vmatpush.msra.mxu0 0.0
        %1272 = vmatpush.msra.mxu0 %v1267
        %1273 = vmatpush.msra.mxu0 %v1099
        %1274 = vmatpush.msra.mxu0 %v1096
        %1275 = vmatpush.msra.mxu0 %v1093
        %1276 = vmatpush.msra.mxu0 %v1090
        %1277 = vmatpush.msra.mxu0 %v1087
        %1278 = vmatpush.msra.mxu0 %v1084
        %1279 = vmatpush.msra.mxu0 %v1081
        %1280 = vmatpush.msra.mxu0 %v1078
        %1281 = vmatpush.msra.mxu0 %v1075
        %1282 = vmatpush.msra.mxu0 %v1072
        %1283 = vmatpush.msra.mxu0 %v1069
        %1284 = vmatpush.msra.mxu0 %v1066
        %1285 = vmatmul.f32.gmra.mxu0 %v1246
        %v1286 = vpop.f32.mrf.mxu0
        %v1287 = vadd.f32 %v1225, %v1286
        %1288 = vmatmul.f32.gmra.mxu0 %v1249
        %v1289 = vpop.f32.mrf.mxu0
        %v1290 = vadd.f32 %v1228, %v1289
        %1291 = vmatmul.f32.gmra.mxu0 %v1252
        %v1292 = vpop.f32.mrf.mxu0
        %v1293 = vadd.f32 %v1231, %v1292
        %1294 = vmatmul.f32.gmra.mxu0 %v1255
        %v1295 = vpop.f32.mrf.mxu0
        %v1296 = vadd.f32 %v1234, %v1295
        %1297 = vmatmul.f32.gmra.mxu0 %v1258
        %v1298 = vpop.f32.mrf.mxu0
        %v1299 = vadd.f32 %v1237, %v1298
        %1300 = vmatmul.f32.gmra.mxu0 %v1261
        %v1301 = vpop.f32.mrf.mxu0
        %v1302 = vadd.f32 %v1240, %v1301
        %1303 = vmatmul.f32.gmra.mxu0 %v1264
        %v1304 = vpop.f32.mrf.mxu0
        %v1305 = vadd.f32 %v1243, %v1304
        %1306 = vdwg.mxu0
        %v1307 = vld [vmem:[#allocation2 + $0x288] sm:$0xff]
        %v1308 = vld [vmem:[#allocation2 + $0x290] sm:$0xff]
        %v1309 = vld [vmem:[#allocation2 + $0x298] sm:$0xff]
        %v1310 = vld [vmem:[#allocation2 + $0x2a0] sm:$0xff]
        %v1311 = vld [vmem:[#allocation2 + $0x2a8] sm:$0xff]
        %v1312 = vld [vmem:[#allocation2 + $0x2b0] sm:$0xff]
        %v1313 = vld [vmem:[#allocation2 + $0x2b8] sm:$0xff]
        %v1314 = vld [vmem:[#allocation2 + $0x2c0] sm:$0xff]
        %v1315 = vld [vmem:[#allocation2 + $0x2c8] sm:$0xff]
        %v1316 = vld [vmem:[#allocation2 + $0x2d0] sm:$0xff]
        %v1317 = vld [vmem:[#allocation2 + $0x2d8] sm:$0xff]
        %v1318 = vld [vmem:[#allocation2 + $0x2e0] sm:$0xff]
        %v1319 = vld [vmem:[#allocation2 + $0x2e8] sm:$0xff]
        %v1320 = vld [vmem:[#allocation2 + $0x2f0] sm:$0xff]
        %v1321 = vld [vmem:[#allocation2 + $0x2f8] sm:$0xff]
        %v1322 = vld [vmem:[#allocation2 + $0x300] sm:$0xff]
        %1323 = vmatpush.msra.mxu0 %v1322
        %1324 = vmatpush.msra.mxu0 %v1321
        %1325 = vmatpush.msra.mxu0 %v1320
        %1326 = vmatpush.msra.mxu0 %v1319
        %1327 = vmatpush.msra.mxu0 %v1318
        %1328 = vmatpush.msra.mxu0 %v1317
        %1329 = vmatpush.msra.mxu0 %v1316
        %1330 = vmatpush.msra.mxu0 %v1315
        %1331 = vmatpush.msra.mxu0 %v1314
        %1332 = vmatpush.msra.mxu0 %v1313
        %1333 = vmatpush.msra.mxu0 %v1312
        %1334 = vmatpush.msra.mxu0 %v1311
        %1335 = vmatpush.msra.mxu0 %v1310
        %1336 = vmatpush.msra.mxu0 %v1309
        %1337 = vmatpush.msra.mxu0 %v1308
        %1338 = vmatpush.msra.mxu0 %v1307
        %1339 = vmatmul.f32.gmra.mxu0 %v857
        %v1340 = vpop.f32.mrf.mxu0
        %v1341 = vadd.f32 0.0, %v1340
        %1342 = vmatmul.f32.gmra.mxu0 %v858
        %v1343 = vpop.f32.mrf.mxu0
        %v1344 = vadd.f32 0.0, %v1343
        %1345 = vmatmul.f32.gmra.mxu0 %v859
        %v1346 = vpop.f32.mrf.mxu0
        %v1347 = vadd.f32 0.0, %v1346
        %1348 = vmatmul.f32.gmra.mxu0 %v860
        %v1349 = vpop.f32.mrf.mxu0
        %v1350 = vadd.f32 0.0, %v1349
        %1351 = vmatmul.f32.gmra.mxu0 %v861
        %v1352 = vpop.f32.mrf.mxu0
        %v1353 = vadd.f32 0.0, %v1352
        %1354 = vmatmul.f32.gmra.mxu0 %v862
        %v1355 = vpop.f32.mrf.mxu0
        %v1356 = vadd.f32 0.0, %v1355
        %1357 = vmatmul.f32.gmra.mxu0 %v863
        %v1358 = vpop.f32.mrf.mxu0
        %v1359 = vadd.f32 0.0, %v1358
        %1360 = vmatmul.f32.gmra.mxu0 %v864
        %v1361 = vpop.f32.mrf.mxu0
        %v1362 = vadd.f32 0.0, %v1361
        %1363 = vmatmul.f32.gmra.mxu0 %v865
        %v1364 = vpop.f32.mrf.mxu0
        %v1365 = vadd.f32 0.0, %v1364
        %1366 = vmatmul.f32.gmra.mxu0 %v866
        %v1367 = vpop.f32.mrf.mxu0
        %v1368 = vadd.f32 0.0, %v1367
        %1369 = vmatmul.f32.gmra.mxu0 %v867
        %v1370 = vpop.f32.mrf.mxu0
        %v1371 = vadd.f32 0.0, %v1370
        %1372 = vmatmul.f32.gmra.mxu0 %v868
        %v1373 = vpop.f32.mrf.mxu0
        %v1374 = vadd.f32 0.0, %v1373
        %1375 = vmatmul.f32.gmra.mxu0 %v869
        %v1376 = vpop.f32.mrf.mxu0
        %v1377 = vadd.f32 0.0, %v1376
        %1378 = vdwg.mxu0
        %v1379 = vadd.s32 %v870, 1
        %v1380 = vadd.s32 %v871, 1
        %v1381 = vadd.s32 %v872, 1
        %v1382 = vadd.s32 %v873, 1
        %v1383 = vadd.s32 %v874, 1
        %v1384 = vadd.s32 %v875, 1
        %v1385 = vadd.s32 %v876, 1
        %vm1386 = vcmp.eq.s32.totalorder %v258, %v1379
        %vm1387 = vcmp.eq.s32.totalorder %v258, %v1380
        %vm1388 = vcmp.eq.s32.totalorder %v258, %v1381
        %vm1389 = vcmp.eq.s32.totalorder %v258, %v1382
        %vm1390 = vcmp.eq.s32.totalorder %v258, %v1383
        %vm1391 = vcmp.eq.s32.totalorder %v258, %v1384
        %vm1392 = vcmp.eq.s32.totalorder %v258, %v1385
        %v1393 = vsel %vm1386, 1, 0
        %v1394 = vsel %vm1387, 1, 0
        %v1395 = vsel %vm1388, 1, 0
        %v1396 = vsel %vm1389, 1, 0
        %v1397 = vsel %vm1390, 1, 0
        %v1398 = vsel %vm1391, 1, 0
        %v1399 = vsel %vm1392, 1, 0
        %v1400 = vcvt.s32.f32 %v1393
        %v1401 = vcvt.s32.f32 %v1394
        %v1402 = vcvt.s32.f32 %v1395
        %v1403 = vcvt.s32.f32 %v1396
        %v1404 = vcvt.s32.f32 %v1397
        %v1405 = vcvt.s32.f32 %v1398
        %v1406 = vcvt.s32.f32 %v1399
        %v1408 = vsel %vm422, %v1400, 0
        %v1411 = vsel %vm422, %v1401, 0
        %v1414 = vsel %vm422, %v1402, 0
        %v1417 = vsel %vm422, %v1403, 0
        %v1420 = vsel %vm422, %v1404, 0
        %v1423 = vsel %vm422, %v1405, 0
        %v1426 = vsel %vm422, %v1406, 0
        %v1429 = vsel %vm462, %v1377, 0
        %1431 = vmatpush.msra.mxu0 0.0
        %1432 = vmatpush.msra.mxu0 0.0
        %1433 = vmatpush.msra.mxu0 0.0
        %1434 = vmatpush.msra.mxu0 %v1429
        %1435 = vmatpush.msra.mxu0 %v1374
        %1436 = vmatpush.msra.mxu0 %v1371
        %1437 = vmatpush.msra.mxu0 %v1368
        %1438 = vmatpush.msra.mxu0 %v1365
        %1439 = vmatpush.msra.mxu0 %v1362
        %1440 = vmatpush.msra.mxu0 %v1359
        %1441 = vmatpush.msra.mxu0 %v1356
        %1442 = vmatpush.msra.mxu0 %v1353
        %1443 = vmatpush.msra.mxu0 %v1350
        %1444 = vmatpush.msra.mxu0 %v1347
        %1445 = vmatpush.msra.mxu0 %v1344
        %1446 = vmatpush.msra.mxu0 %v1341
        %1447 = vmatmul.f32.gmra.mxu0 %v1408
        %v1448 = vpop.f32.mrf.mxu0
        %v1449 = vadd.f32 0.0, %v1448
        %1450 = vmatmul.f32.gmra.mxu0 %v1411
        %v1451 = vpop.f32.mrf.mxu0
        %v1452 = vadd.f32 0.0, %v1451
        %1453 = vmatmul.f32.gmra.mxu0 %v1414
        %v1454 = vpop.f32.mrf.mxu0
        %v1455 = vadd.f32 0.0, %v1454
        %1456 = vmatmul.f32.gmra.mxu0 %v1417
        %v1457 = vpop.f32.mrf.mxu0
        %v1458 = vadd.f32 0.0, %v1457
        %1459 = vmatmul.f32.gmra.mxu0 %v1420
        %v1460 = vpop.f32.mrf.mxu0
        %v1461 = vadd.f32 0.0, %v1460
        %1462 = vmatmul.f32.gmra.mxu0 %v1423
        %v1463 = vpop.f32.mrf.mxu0
        %v1464 = vadd.f32 0.0, %v1463
        %1465 = vmatmul.f32.gmra.mxu0 %v1426
        %v1466 = vpop.f32.mrf.mxu0
        %v1467 = vadd.f32 0.0, %v1466
        %1468 = vdwg.mxu0
        %v1469 = vadd.f32 %v1287, %v1449
        %v1470 = vadd.f32 %v1290, %v1452
        %v1471 = vadd.f32 %v1293, %v1455
        %v1472 = vadd.f32 %v1296, %v1458
        %v1473 = vadd.f32 %v1299, %v1461
        %v1474 = vadd.f32 %v1302, %v1464
        %v1475 = vadd.f32 %v1305, %v1467
        %v1476 = vld [vmem:[#allocation2 + $0x308] sm:$0x1]
        %v1477 = vperm.slane %v1476, 0
        %v1478 = vmul.f32 %v1469, %v1477
        %v1479 = vmul.f32 %v1470, %v1477
        %v1480 = vmul.f32 %v1471, %v1477
        %v1481 = vmul.f32 %v1472, %v1477
        %v1482 = vmul.f32 %v1473, %v1477
        %v1483 = vmul.f32 %v1474, %v1477
        %v1484 = vmul.f32 %v1475, %v1477
        %v1485 = vld [vmem:[#allocation2 + $0x310] sm:$0x1]
        %v1486 = vperm.slane %v1485, 0
        %v1487 = vadd.f32 %v1478, %v1486
        %v1488 = vadd.f32 %v1479, %v1486
        %v1489 = vadd.f32 %v1480, %v1486
        %v1490 = vadd.f32 %v1481, %v1486
        %v1491 = vadd.f32 %v1482, %v1486
        %v1492 = vadd.f32 %v1483, %v1486
        %v1493 = vadd.f32 %v1484, %v1486
        %v1494 = vmax.f32 %v1487, 0.0
        %v1495 = vmax.f32 %v1488, 0.0
        %v1496 = vmax.f32 %v1489, 0.0
        %v1497 = vmax.f32 %v1490, 0.0
        %v1498 = vmax.f32 %v1491, 0.0
        %v1499 = vmax.f32 %v1492, 0.0
        %v1500 = vmax.f32 %v1493, 0.0
        %v1501 = vld [vmem:[#allocation2 + $0x318] sm:$0xff]
        %v1502 = vld [vmem:[#allocation2 + $0x320] sm:$0xff]
        %v1503 = vld [vmem:[#allocation2 + $0x328] sm:$0xff]
        %v1504 = vld [vmem:[#allocation2 + $0x330] sm:$0xff]
        %v1505 = vld [vmem:[#allocation2 + $0x338] sm:$0xff]
        %v1506 = vld [vmem:[#allocation2 + $0x340] sm:$0xff]
        %v1507 = vld [vmem:[#allocation2 + $0x348] sm:$0xff]
        %v1508 = vld [vmem:[#allocation2 + $0x350] sm:$0xff]
        %v1509 = vld [vmem:[#allocation2 + $0x358] sm:$0xff]
        %v1510 = vld [vmem:[#allocation2 + $0x360] sm:$0xff]
        %v1511 = vld [vmem:[#allocation2 + $0x368] sm:$0xff]
        %v1512 = vld [vmem:[#allocation2 + $0x370] sm:$0xff]
        %v1513 = vld [vmem:[#allocation2 + $0x378] sm:$0xff]
        %v1514 = vld [vmem:[#allocation2 + $0x380] sm:$0xff]
        %v1515 = vld [vmem:[#allocation2 + $0x388] sm:$0xff]
        %v1516 = vld [vmem:[#allocation2 + $0x390] sm:$0xff]
        %1517 = vmatpush.msra.mxu0 %v1516
        %1518 = vmatpush.msra.mxu0 %v1515
        %1519 = vmatpush.msra.mxu0 %v1514
        %1520 = vmatpush.msra.mxu0 %v1513
        %1521 = vmatpush.msra.mxu0 %v1512
        %1522 = vmatpush.msra.mxu0 %v1511
        %1523 = vmatpush.msra.mxu0 %v1510
        %1524 = vmatpush.msra.mxu0 %v1509
        %1525 = vmatpush.msra.mxu0 %v1508
        %1526 = vmatpush.msra.mxu0 %v1507
        %1527 = vmatpush.msra.mxu0 %v1506
        %1528 = vmatpush.msra.mxu0 %v1505
        %1529 = vmatpush.msra.mxu0 %v1504
        %1530 = vmatpush.msra.mxu0 %v1503
        %1531 = vmatpush.msra.mxu0 %v1502
        %1532 = vmatpush.msra.mxu0 %v1501
        %1533 = vmatmul.f32.gmra.mxu0 %v1494
        %v1534 = vpop.f32.mrf.mxu0
        %v1535 = vadd.f32 0.0, %v1534
        %1536 = vmatmul.f32.gmra.mxu0 %v1495
        %v1537 = vpop.f32.mrf.mxu0
        %v1538 = vadd.f32 0.0, %v1537
        %1539 = vmatmul.f32.gmra.mxu0 %v1496
        %v1540 = vpop.f32.mrf.mxu0
        %v1541 = vadd.f32 0.0, %v1540
        %1542 = vmatmul.f32.gmra.mxu0 %v1497
        %v1543 = vpop.f32.mrf.mxu0
        %v1544 = vadd.f32 0.0, %v1543
        %1545 = vmatmul.f32.gmra.mxu0 %v1498
        %v1546 = vpop.f32.mrf.mxu0
        %v1547 = vadd.f32 0.0, %v1546
        %1548 = vmatmul.f32.gmra.mxu0 %v1499
        %v1549 = vpop.f32.mrf.mxu0
        %v1550 = vadd.f32 0.0, %v1549
        %1551 = vmatmul.f32.gmra.mxu0 %v1500
        %v1552 = vpop.f32.mrf.mxu0
        %v1553 = vadd.f32 0.0, %v1552
        %1554 = vdwg.mxu0
        %v1555 = vld [vmem:[#allocation2 + $0x398] sm:$0xff]
        %v1556 = vld [vmem:[#allocation2 + $0x3a0] sm:$0xff]
        %v1557 = vld [vmem:[#allocation2 + $0x3a8] sm:$0xff]
        %v1558 = vld [vmem:[#allocation2 + $0x3b0] sm:$0xff]
        %v1559 = vld [vmem:[#allocation2 + $0x3b8] sm:$0xff]
        %v1560 = vld [vmem:[#allocation2 + $0x3c0] sm:$0xff]
        %v1561 = vld [vmem:[#allocation2 + $0x3c8] sm:$0xff]
        %v1562 = vld [vmem:[#allocation2 + $0x3d0] sm:$0xff]
        %v1563 = vld [vmem:[#allocation2 + $0x3d8] sm:$0xff]
        %v1564 = vld [vmem:[#allocation2 + $0x3e0] sm:$0xff]
        %v1565 = vld [vmem:[#allocation2 + $0x3e8] sm:$0xff]
        %v1566 = vld [vmem:[#allocation2 + $0x3f0] sm:$0xff]
        %v1567 = vld [vmem:[#allocation2 + $0x3f8] sm:$0xff]
        %v1568 = vld [vmem:[#allocation2 + $0x400] sm:$0xff]
        %v1569 = vld [vmem:[#allocation2 + $0x408] sm:$0xff]
        %v1570 = vld [vmem:[#allocation2 + $0x410] sm:$0xff]
        %1571 = vmatpush.msra.mxu0 %v1570
        %1572 = vmatpush.msra.mxu0 %v1569
        %1573 = vmatpush.msra.mxu0 %v1568
        %1574 = vmatpush.msra.mxu0 %v1567
        %1575 = vmatpush.msra.mxu0 %v1566
        %1576 = vmatpush.msra.mxu0 %v1565
        %1577 = vmatpush.msra.mxu0 %v1564
        %1578 = vmatpush.msra.mxu0 %v1563
        %1579 = vmatpush.msra.mxu0 %v1562
        %1580 = vmatpush.msra.mxu0 %v1561
        %1581 = vmatpush.msra.mxu0 %v1560
        %1582 = vmatpush.msra.mxu0 %v1559
        %1583 = vmatpush.msra.mxu0 %v1558
        %1584 = vmatpush.msra.mxu0 %v1557
        %1585 = vmatpush.msra.mxu0 %v1556
        %1586 = vmatpush.msra.mxu0 %v1555
        %1587 = vmatmul.f32.gmra.mxu0 %v1494
        %v1588 = vpop.f32.mrf.mxu0
        %v1589 = vadd.f32 0.0, %v1588
        %1590 = vmatmul.f32.gmra.mxu0 %v1495
        %v1591 = vpop.f32.mrf.mxu0
        %v1592 = vadd.f32 0.0, %v1591
        %1593 = vmatmul.f32.gmra.mxu0 %v1496
        %v1594 = vpop.f32.mrf.mxu0
        %v1595 = vadd.f32 0.0, %v1594
        %1596 = vmatmul.f32.gmra.mxu0 %v1497
        %v1597 = vpop.f32.mrf.mxu0
        %v1598 = vadd.f32 0.0, %v1597
        %1599 = vmatmul.f32.gmra.mxu0 %v1498
        %v1600 = vpop.f32.mrf.mxu0
        %v1601 = vadd.f32 0.0, %v1600
        %1602 = vmatmul.f32.gmra.mxu0 %v1499
        %v1603 = vpop.f32.mrf.mxu0
        %v1604 = vadd.f32 0.0, %v1603
        %1605 = vmatmul.f32.gmra.mxu0 %v1500
        %v1606 = vpop.f32.mrf.mxu0
        %v1607 = vadd.f32 0.0, %v1606
        %1608 = vdwg.mxu0
        %vm1609 = vcmask 416768
        %v1610 = vsel %vm1609, %v409, 0
        %v1612 = vsel %vm1609, %v410, 0
        %v1614 = vsel %vm1609, %v411, 0
        %v1616 = vsel %vm1609, %v412, 0
        %v1618 = vsel %vm1609, %v413, 0
        %v1620 = vsel %vm1609, %v414, 0
        %v1622 = vsel %vm1609, %v415, 0
        %vm1624 = vcmask 1042432
        %v1626 = vsel %vm1624, %v1607, 0
        %1628 = vmatpush.msra.mxu0 0.0
        %1629 = vmatpush.msra.mxu0 0.0
        %1630 = vmatpush.msra.mxu0 0.0
        %1631 = vmatpush.msra.mxu0 0.0
        %1632 = vmatpush.msra.mxu0 0.0
        %1633 = vmatpush.msra.mxu0 0.0
        %1634 = vmatpush.msra.mxu0 0.0
        %1635 = vmatpush.msra.mxu0 0.0
        %1636 = vmatpush.msra.mxu0 0.0
        %1637 = vmatpush.msra.mxu0 %v1626
        %1638 = vmatpush.msra.mxu0 %v1604
        %1639 = vmatpush.msra.mxu0 %v1601
        %1640 = vmatpush.msra.mxu0 %v1598
        %1641 = vmatpush.msra.mxu0 %v1595
        %1642 = vmatpush.msra.mxu0 %v1592
        %1643 = vmatpush.msra.mxu0 %v1589
        %1644 = vmatmul.f32.gmra.mxu0 %v1610
        %v1645 = vpop.f32.mrf.mxu0
        %v1646 = vadd.f32 0.0, %v1645
        %1647 = vmatmul.f32.gmra.mxu0 %v1612
        %v1648 = vpop.f32.mrf.mxu0
        %v1649 = vadd.f32 0.0, %v1648
        %1650 = vmatmul.f32.gmra.mxu0 %v1614
        %v1651 = vpop.f32.mrf.mxu0
        %v1652 = vadd.f32 0.0, %v1651
        %1653 = vmatmul.f32.gmra.mxu0 %v1616
        %v1654 = vpop.f32.mrf.mxu0
        %v1655 = vadd.f32 0.0, %v1654
        %1656 = vmatmul.f32.gmra.mxu0 %v1618
        %v1657 = vpop.f32.mrf.mxu0
        %v1658 = vadd.f32 0.0, %v1657
        %1659 = vmatmul.f32.gmra.mxu0 %v1620
        %v1660 = vpop.f32.mrf.mxu0
        %v1661 = vadd.f32 0.0, %v1660
        %1662 = vmatmul.f32.gmra.mxu0 %v1622
        %v1663 = vpop.f32.mrf.mxu0
        %v1664 = vadd.f32 0.0, %v1663
        %1665 = vdwg.mxu0
        %v1666 = vsel %vm1609, %v298, 0
        %v1668 = vsel %vm1609, %v299, 0
        %v1670 = vsel %vm1609, %v300, 0
        %v1672 = vsel %vm1609, %v301, 0
        %v1674 = vsel %vm1609, %v302, 0
        %v1676 = vsel %vm1609, %v303, 0
        %v1678 = vsel %vm1609, %v304, 0
        %v1681 = vsel %vm1624, %v1553, 0
        %1683 = vmatpush.msra.mxu0 0.0
        %1684 = vmatpush.msra.mxu0 0.0
        %1685 = vmatpush.msra.mxu0 0.0
        %1686 = vmatpush.msra.mxu0 0.0
        %1687 = vmatpush.msra.mxu0 0.0
        %1688 = vmatpush.msra.mxu0 0.0
        %1689 = vmatpush.msra.mxu0 0.0
        %1690 = vmatpush.msra.mxu0 0.0
        %1691 = vmatpush.msra.mxu0 0.0
        %1692 = vmatpush.msra.mxu0 %v1681
        %1693 = vmatpush.msra.mxu0 %v1550
        %1694 = vmatpush.msra.mxu0 %v1547
        %1695 = vmatpush.msra.mxu0 %v1544
        %1696 = vmatpush.msra.mxu0 %v1541
        %1697 = vmatpush.msra.mxu0 %v1538
        %1698 = vmatpush.msra.mxu0 %v1535
        %1699 = vmatmul.f32.gmra.mxu0 %v1666
        %v1700 = vpop.f32.mrf.mxu0
        %v1701 = vadd.f32 %v1646, %v1700
        %1702 = vmatmul.f32.gmra.mxu0 %v1668
        %v1703 = vpop.f32.mrf.mxu0
        %v1704 = vadd.f32 %v1649, %v1703
        %1705 = vmatmul.f32.gmra.mxu0 %v1670
        %v1706 = vpop.f32.mrf.mxu0
        %v1707 = vadd.f32 %v1652, %v1706
        %1708 = vmatmul.f32.gmra.mxu0 %v1672
        %v1709 = vpop.f32.mrf.mxu0
        %v1710 = vadd.f32 %v1655, %v1709
        %1711 = vmatmul.f32.gmra.mxu0 %v1674
        %v1712 = vpop.f32.mrf.mxu0
        %v1713 = vadd.f32 %v1658, %v1712
        %1714 = vmatmul.f32.gmra.mxu0 %v1676
        %v1715 = vpop.f32.mrf.mxu0
        %v1716 = vadd.f32 %v1661, %v1715
        %1717 = vmatmul.f32.gmra.mxu0 %v1678
        %v1718 = vpop.f32.mrf.mxu0
        %v1719 = vadd.f32 %v1664, %v1718
        %1720 = vdwg.mxu0
        %v1721 = vld [vmem:[#allocation2 + $0x418] sm:$0xff]
        %v1722 = vld [vmem:[#allocation2 + $0x420] sm:$0xff]
        %v1723 = vld [vmem:[#allocation2 + $0x428] sm:$0xff]
        %v1724 = vld [vmem:[#allocation2 + $0x430] sm:$0xff]
        %v1725 = vld [vmem:[#allocation2 + $0x438] sm:$0xff]
        %v1726 = vld [vmem:[#allocation2 + $0x440] sm:$0xff]
        %v1727 = vld [vmem:[#allocation2 + $0x448] sm:$0xff]
        %v1728 = vld [vmem:[#allocation2 + $0x450] sm:$0xff]
        %v1729 = vld [vmem:[#allocation2 + $0x458] sm:$0xff]
        %v1730 = vld [vmem:[#allocation2 + $0x460] sm:$0xff]
        %v1731 = vld [vmem:[#allocation2 + $0x468] sm:$0xff]
        %v1732 = vld [vmem:[#allocation2 + $0x470] sm:$0xff]
        %v1733 = vld [vmem:[#allocation2 + $0x478] sm:$0xff]
        %v1734 = vld [vmem:[#allocation2 + $0x480] sm:$0xff]
        %v1735 = vld [vmem:[#allocation2 + $0x488] sm:$0xff]
        %v1736 = vld [vmem:[#allocation2 + $0x490] sm:$0xff]
        %1737 = vmatpush.msra.mxu0 %v1736
        %1738 = vmatpush.msra.mxu0 %v1735
        %1739 = vmatpush.msra.mxu0 %v1734
        %1740 = vmatpush.msra.mxu0 %v1733
        %1741 = vmatpush.msra.mxu0 %v1732
        %1742 = vmatpush.msra.mxu0 %v1731
        %1743 = vmatpush.msra.mxu0 %v1730
        %1744 = vmatpush.msra.mxu0 %v1729
        %1745 = vmatpush.msra.mxu0 %v1728
        %1746 = vmatpush.msra.mxu0 %v1727
        %1747 = vmatpush.msra.mxu0 %v1726
        %1748 = vmatpush.msra.mxu0 %v1725
        %1749 = vmatpush.msra.mxu0 %v1724
        %1750 = vmatpush.msra.mxu0 %v1723
        %1751 = vmatpush.msra.mxu0 %v1722
        %1752 = vmatpush.msra.mxu0 %v1721
        %1753 = vmatmul.f32.gmra.mxu0 %v1494
        %v1754 = vpop.f32.mrf.mxu0
        %v1755 = vadd.f32 0.0, %v1754
        %1756 = vmatmul.f32.gmra.mxu0 %v1495
        %v1757 = vpop.f32.mrf.mxu0
        %v1758 = vadd.f32 0.0, %v1757
        %1759 = vmatmul.f32.gmra.mxu0 %v1496
        %v1760 = vpop.f32.mrf.mxu0
        %v1761 = vadd.f32 0.0, %v1760
        %1762 = vmatmul.f32.gmra.mxu0 %v1497
        %v1763 = vpop.f32.mrf.mxu0
        %v1764 = vadd.f32 0.0, %v1763
        %1765 = vmatmul.f32.gmra.mxu0 %v1498
        %v1766 = vpop.f32.mrf.mxu0
        %v1767 = vadd.f32 0.0, %v1766
        %1768 = vmatmul.f32.gmra.mxu0 %v1499
        %v1769 = vpop.f32.mrf.mxu0
        %v1770 = vadd.f32 0.0, %v1769
        %1771 = vmatmul.f32.gmra.mxu0 %v1500
        %v1772 = vpop.f32.mrf.mxu0
        %v1773 = vadd.f32 0.0, %v1772
        %1774 = vdwg.mxu0
        %v1775 = vsel %vm1609, %v731, 0
        %v1777 = vsel %vm1609, %v732, 0
        %v1779 = vsel %vm1609, %v733, 0
        %v1781 = vsel %vm1609, %v734, 0
        %v1783 = vsel %vm1609, %v735, 0
        %v1785 = vsel %vm1609, %v736, 0
        %v1787 = vsel %vm1609, %v737, 0
        %v1790 = vsel %vm1624, %v1773, 0
        %1792 = vmatpush.msra.mxu0 0.0
        %1793 = vmatpush.msra.mxu0 0.0
        %1794 = vmatpush.msra.mxu0 0.0
        %1795 = vmatpush.msra.mxu0 0.0
        %1796 = vmatpush.msra.mxu0 0.0
        %1797 = vmatpush.msra.mxu0 0.0
        %1798 = vmatpush.msra.mxu0 0.0
        %1799 = vmatpush.msra.mxu0 0.0
        %1800 = vmatpush.msra.mxu0 0.0
        %1801 = vmatpush.msra.mxu0 %v1790
        %1802 = vmatpush.msra.mxu0 %v1770
        %1803 = vmatpush.msra.mxu0 %v1767
        %1804 = vmatpush.msra.mxu0 %v1764
        %1805 = vmatpush.msra.mxu0 %v1761
        %1806 = vmatpush.msra.mxu0 %v1758
        %1807 = vmatpush.msra.mxu0 %v1755
        %1808 = vmatmul.f32.gmra.mxu0 %v1775
        %v1809 = vpop.f32.mrf.mxu0
        %v1810 = vadd.f32 0.0, %v1809
        %1811 = vmatmul.f32.gmra.mxu0 %v1777
        %v1812 = vpop.f32.mrf.mxu0
        %v1813 = vadd.f32 0.0, %v1812
        %1814 = vmatmul.f32.gmra.mxu0 %v1779
        %v1815 = vpop.f32.mrf.mxu0
        %v1816 = vadd.f32 0.0, %v1815
        %1817 = vmatmul.f32.gmra.mxu0 %v1781
        %v1818 = vpop.f32.mrf.mxu0
        %v1819 = vadd.f32 0.0, %v1818
        %1820 = vmatmul.f32.gmra.mxu0 %v1783
        %v1821 = vpop.f32.mrf.mxu0
        %v1822 = vadd.f32 0.0, %v1821
        %1823 = vmatmul.f32.gmra.mxu0 %v1785
        %v1824 = vpop.f32.mrf.mxu0
        %v1825 = vadd.f32 0.0, %v1824
        %1826 = vmatmul.f32.gmra.mxu0 %v1787
        %v1827 = vpop.f32.mrf.mxu0
        %v1828 = vadd.f32 0.0, %v1827
        %1829 = vdwg.mxu0
        %v1830 = vadd.f32 %v1701, %v1810
        %v1831 = vadd.f32 %v1704, %v1813
        %v1832 = vadd.f32 %v1707, %v1816
        %v1833 = vadd.f32 %v1710, %v1819
        %v1834 = vadd.f32 %v1713, %v1822
        %v1835 = vadd.f32 %v1716, %v1825
        %v1836 = vadd.f32 %v1719, %v1828
        %v1837 = vld [vmem:[#allocation2 + $0x498] sm:$0x1]
        %v1838 = vperm.slane %v1837, 0
        %v1839 = vmul.f32 %v1830, %v1838
        %v1840 = vmul.f32 %v1831, %v1838
        %v1841 = vmul.f32 %v1832, %v1838
        %v1842 = vmul.f32 %v1833, %v1838
        %v1843 = vmul.f32 %v1834, %v1838
        %v1844 = vmul.f32 %v1835, %v1838
        %v1845 = vmul.f32 %v1836, %v1838
        %v1846 = vld [vmem:[#allocation2 + $0x4a0] sm:$0x1]
        %v1847 = vperm.slane %v1846, 0
        %v1848 = vadd.f32 %v1839, %v1847
        %v1849 = vadd.f32 %v1840, %v1847
        %v1850 = vadd.f32 %v1841, %v1847
        %v1851 = vadd.f32 %v1842, %v1847
        %v1852 = vadd.f32 %v1843, %v1847
        %v1853 = vadd.f32 %v1844, %v1847
        %v1854 = vadd.f32 %v1845, %v1847
        %v1855 = vadd.f32 %v1848, %v1025
        %v1856 = vadd.f32 %v1849, %v1026
        %v1857 = vadd.f32 %v1850, %v1027
        %v1858 = vadd.f32 %v1851, %v1028
        %v1859 = vadd.f32 %v1852, %v1029
        %v1860 = vadd.f32 %v1853, %v1030
        %v1861 = vadd.f32 %v1854, %v1031
        %v1862 = vmax.f32 %v1855, 0.0
        %v1863 = vmax.f32 %v1856, 0.0
        %v1864 = vmax.f32 %v1857, 0.0
        %v1865 = vmax.f32 %v1858, 0.0
        %v1866 = vmax.f32 %v1859, 0.0
        %v1867 = vmax.f32 %v1860, 0.0
        %v1868 = vmax.f32 %v1861, 0.0
        %v1869 = vld [vmem:[#allocation2 + $0x538] sm:$0xff]
        %v1870 = vld [vmem:[#allocation2 + $0x540] sm:$0xff]
        %v1871 = vld [vmem:[#allocation2 + $0x548] sm:$0xff]
        %v1872 = vld [vmem:[#allocation2 + $0x550] sm:$0xff]
        %v1873 = vld [vmem:[#allocation2 + $0x558] sm:$0xff]
        %v1874 = vld [vmem:[#allocation2 + $0x560] sm:$0xff]
        %v1875 = vld [vmem:[#allocation2 + $0x568] sm:$0x7]
        %v1876 = vadd.f32 %v1862, %v1869
        %v1877 = vadd.f32 %v1863, %v1870
        %v1878 = vadd.f32 %v1864, %v1871
        %v1879 = vadd.f32 %v1865, %v1872
        %v1880 = vadd.f32 %v1866, %v1873
        %v1881 = vadd.f32 %v1867, %v1874
        %v1882 = vadd.f32 %v1868, %v1875
        %v1883 = vld [vmem:[#allocation2 + $0x570] sm:$0xff]
        %v1884 = vld [vmem:[#allocation2 + $0x578] sm:$0xff]
        %v1885 = vld [vmem:[#allocation2 + $0x580] sm:$0xff]
        %v1886 = vld [vmem:[#allocation2 + $0x588] sm:$0xff]
        %v1887 = vld [vmem:[#allocation2 + $0x590] sm:$0xff]
        %v1888 = vld [vmem:[#allocation2 + $0x598] sm:$0xff]
        %v1889 = vld [vmem:[#allocation2 + $0x5a0] sm:$0xff]
        %v1890 = vld [vmem:[#allocation2 + $0x5a8] sm:$0xff]
        %v1891 = vld [vmem:[#allocation2 + $0x5b0] sm:$0xff]
        %v1892 = vld [vmem:[#allocation2 + $0x5b8] sm:$0xff]
        %v1893 = vld [vmem:[#allocation2 + $0x5c0] sm:$0xff]
        %v1894 = vld [vmem:[#allocation2 + $0x5c8] sm:$0xff]
        %v1895 = vld [vmem:[#allocation2 + $0x5d0] sm:$0xff]
        %v1896 = vld [vmem:[#allocation2 + $0x5d8] sm:$0xff]
        %v1897 = vld [vmem:[#allocation2 + $0x5e0] sm:$0xff]
        %v1898 = vld [vmem:[#allocation2 + $0x5e8] sm:$0xff]
        %v1899 = vld [vmem:[#allocation2 + $0x5f0] sm:$0x1]
        %v1900 = vperm.slane %v1899, 0
        %1901 = vmatpush.msra.mxu0 %v1898
        %1902 = vmatpush.msra.mxu0 %v1897
        %1903 = vmatpush.msra.mxu0 %v1896
        %1904 = vmatpush.msra.mxu0 %v1895
        %1905 = vmatpush.msra.mxu0 %v1894
        %1906 = vmatpush.msra.mxu0 %v1893
        %1907 = vmatpush.msra.mxu0 %v1892
        %1908 = vmatpush.msra.mxu0 %v1891
        %1909 = vmatpush.msra.mxu0 %v1890
        %1910 = vmatpush.msra.mxu0 %v1889
        %1911 = vmatpush.msra.mxu0 %v1888
        %1912 = vmatpush.msra.mxu0 %v1887
        %1913 = vmatpush.msra.mxu0 %v1886
        %1914 = vmatpush.msra.mxu0 %v1885
        %1915 = vmatpush.msra.mxu0 %v1884
        %1916 = vmatpush.msra.mxu0 %v1883
        %1917 = vmatmul.f32.gmra.mxu0 %v1876
        %v1918 = vpop.f32.mrf.mxu0
        %v1919 = vadd.f32 %v1900, %v1918
        %1920 = vmatmul.f32.gmra.mxu0 %v1877
        %v1921 = vpop.f32.mrf.mxu0
        %v1922 = vadd.f32 %v1900, %v1921
        %1923 = vmatmul.f32.gmra.mxu0 %v1878
        %v1924 = vpop.f32.mrf.mxu0
        %v1925 = vadd.f32 %v1900, %v1924
        %1926 = vmatmul.f32.gmra.mxu0 %v1879
        %v1927 = vpop.f32.mrf.mxu0
        %v1928 = vadd.f32 %v1900, %v1927
        %1929 = vmatmul.f32.gmra.mxu0 %v1880
        %v1930 = vpop.f32.mrf.mxu0
        %v1931 = vadd.f32 %v1900, %v1930
        %1932 = vmatmul.f32.gmra.mxu0 %v1881
        %v1933 = vpop.f32.mrf.mxu0
        %v1934 = vadd.f32 %v1900, %v1933
        %1935 = vmatmul.f32.gmra.mxu0 %v1882
        %v1936 = vpop.f32.mrf.mxu0
        %v1937 = vadd.f32 %v1900, %v1936
        %1938 = vdwg.mxu0
        %v1939 = vld [vmem:[#allocation2 + $0x5f8] sm:$0xff]
        %v1940 = vld [vmem:[#allocation2 + $0x600] sm:$0xff]
        %v1941 = vld [vmem:[#allocation2 + $0x608] sm:$0xff]
        %v1942 = vld [vmem:[#allocation2 + $0x610] sm:$0xff]
        %v1943 = vld [vmem:[#allocation2 + $0x618] sm:$0xff]
        %v1944 = vld [vmem:[#allocation2 + $0x620] sm:$0xff]
        %v1945 = vld [vmem:[#allocation2 + $0x628] sm:$0xff]
        %v1946 = vld [vmem:[#allocation2 + $0x630] sm:$0xff]
        %v1947 = vld [vmem:[#allocation2 + $0x638] sm:$0xff]
        %v1948 = vld [vmem:[#allocation2 + $0x640] sm:$0xff]
        %v1949 = vld [vmem:[#allocation2 + $0x648] sm:$0xff]
        %v1950 = vld [vmem:[#allocation2 + $0x650] sm:$0xff]
        %v1951 = vld [vmem:[#allocation2 + $0x658] sm:$0xff]
        %v1952 = vld [vmem:[#allocation2 + $0x660] sm:$0xff]
        %v1953 = vld [vmem:[#allocation2 + $0x668] sm:$0xff]
        %v1954 = vld [vmem:[#allocation2 + $0x670] sm:$0xff]
        %v1955 = vld [vmem:[#allocation2 + $0x678] sm:$0x1]
        %v1956 = vperm.slane %v1955, 0
        %1957 = vmatpush.msra.mxu0 %v1954
        %1958 = vmatpush.msra.mxu0 %v1953
        %1959 = vmatpush.msra.mxu0 %v1952
        %1960 = vmatpush.msra.mxu0 %v1951
        %1961 = vmatpush.msra.mxu0 %v1950
        %1962 = vmatpush.msra.mxu0 %v1949
        %1963 = vmatpush.msra.mxu0 %v1948
        %1964 = vmatpush.msra.mxu0 %v1947
        %1965 = vmatpush.msra.mxu0 %v1946
        %1966 = vmatpush.msra.mxu0 %v1945
        %1967 = vmatpush.msra.mxu0 %v1944
        %1968 = vmatpush.msra.mxu0 %v1943
        %1969 = vmatpush.msra.mxu0 %v1942
        %1970 = vmatpush.msra.mxu0 %v1941
        %1971 = vmatpush.msra.mxu0 %v1940
        %1972 = vmatpush.msra.mxu0 %v1939
        %1973 = vmatmul.f32.gmra.mxu0 %v1876
        %v1974 = vpop.f32.mrf.mxu0
        %v1975 = vadd.f32 %v1956, %v1974
        %1976 = vmatmul.f32.gmra.mxu0 %v1877
        %v1977 = vpop.f32.mrf.mxu0
        %v1978 = vadd.f32 %v1956, %v1977
        %1979 = vmatmul.f32.gmra.mxu0 %v1878
        %v1980 = vpop.f32.mrf.mxu0
        %v1981 = vadd.f32 %v1956, %v1980
        %1982 = vmatmul.f32.gmra.mxu0 %v1879
        %v1983 = vpop.f32.mrf.mxu0
        %v1984 = vadd.f32 %v1956, %v1983
        %1985 = vmatmul.f32.gmra.mxu0 %v1880
        %v1986 = vpop.f32.mrf.mxu0
        %v1987 = vadd.f32 %v1956, %v1986
        %1988 = vmatmul.f32.gmra.mxu0 %v1881
        %v1989 = vpop.f32.mrf.mxu0
        %v1990 = vadd.f32 %v1956, %v1989
        %1991 = vmatmul.f32.gmra.mxu0 %v1882
        %v1992 = vpop.f32.mrf.mxu0
        %v1993 = vadd.f32 %v1956, %v1992
        %1994 = vdwg.mxu0
        %v1995 = vld [vmem:[#allocation2 + $0x680] sm:$0xff]
        %v1996 = vld [vmem:[#allocation2 + $0x688] sm:$0xff]
        %v1997 = vld [vmem:[#allocation2 + $0x690] sm:$0xff]
        %v1998 = vld [vmem:[#allocation2 + $0x698] sm:$0xff]
        %v1999 = vld [vmem:[#allocation2 + $0x6a0] sm:$0xff]
        %v2000 = vld [vmem:[#allocation2 + $0x6a8] sm:$0xff]
        %v2001 = vld [vmem:[#allocation2 + $0x6b0] sm:$0xff]
        %v2002 = vld [vmem:[#allocation2 + $0x6b8] sm:$0xff]
        %v2003 = vld [vmem:[#allocation2 + $0x6c0] sm:$0xff]
        %v2004 = vld [vmem:[#allocation2 + $0x6c8] sm:$0xff]
        %v2005 = vld [vmem:[#allocation2 + $0x6d0] sm:$0xff]
        %v2006 = vld [vmem:[#allocation2 + $0x6d8] sm:$0xff]
        %v2007 = vld [vmem:[#allocation2 + $0x6e0] sm:$0xff]
        %v2008 = vld [vmem:[#allocation2 + $0x6e8] sm:$0xff]
        %v2009 = vld [vmem:[#allocation2 + $0x6f0] sm:$0xff]
        %v2010 = vld [vmem:[#allocation2 + $0x6f8] sm:$0xff]
        %v2011 = vld [vmem:[#allocation2 + $0x700] sm:$0x1]
        %v2012 = vperm.slane %v2011, 0
        %2013 = vmatpush.msra.mxu0 %v2010
        %2014 = vmatpush.msra.mxu0 %v2009
        %2015 = vmatpush.msra.mxu0 %v2008
        %2016 = vmatpush.msra.mxu0 %v2007
        %2017 = vmatpush.msra.mxu0 %v2006
        %2018 = vmatpush.msra.mxu0 %v2005
        %2019 = vmatpush.msra.mxu0 %v2004
        %2020 = vmatpush.msra.mxu0 %v2003
        %2021 = vmatpush.msra.mxu0 %v2002
        %2022 = vmatpush.msra.mxu0 %v2001
        %2023 = vmatpush.msra.mxu0 %v2000
        %2024 = vmatpush.msra.mxu0 %v1999
        %2025 = vmatpush.msra.mxu0 %v1998
        %2026 = vmatpush.msra.mxu0 %v1997
        %2027 = vmatpush.msra.mxu0 %v1996
        %2028 = vmatpush.msra.mxu0 %v1995
        %2029 = vmatmul.f32.gmra.mxu0 %v1876
        %v2030 = vpop.f32.mrf.mxu0
        %v2031 = vadd.f32 %v2012, %v2030
        %2032 = vmatmul.f32.gmra.mxu0 %v1877
        %v2033 = vpop.f32.mrf.mxu0
        %v2034 = vadd.f32 %v2012, %v2033
        %2035 = vmatmul.f32.gmra.mxu0 %v1878
        %v2036 = vpop.f32.mrf.mxu0
        %v2037 = vadd.f32 %v2012, %v2036
        %2038 = vmatmul.f32.gmra.mxu0 %v1879
        %v2039 = vpop.f32.mrf.mxu0
        %v2040 = vadd.f32 %v2012, %v2039
        %2041 = vmatmul.f32.gmra.mxu0 %v1880
        %v2042 = vpop.f32.mrf.mxu0
        %v2043 = vadd.f32 %v2012, %v2042
        %2044 = vmatmul.f32.gmra.mxu0 %v1881
        %v2045 = vpop.f32.mrf.mxu0
        %v2046 = vadd.f32 %v2012, %v2045
        %2047 = vmatmul.f32.gmra.mxu0 %v1882
        %v2048 = vpop.f32.mrf.mxu0
        %v2049 = vadd.f32 %v2012, %v2048
        %2050 = vdwg.mxu0
        %2051 = vmatpush.xpose.msra.mxu0 0.0
        %2052 = vmatpush.xpose.msra.mxu0 0.0
        %2053 = vmatpush.xpose.msra.mxu0 0.0
        %2054 = vmatpush.xpose.msra.mxu0 0.0
        %2055 = vmatpush.xpose.msra.mxu0 0.0
        %2056 = vmatpush.xpose.msra.mxu0 0.0
        %2057 = vmatpush.xpose.msra.mxu0 0.0
        %2058 = vmatpush.xpose.msra.mxu0 0.0
        %2059 = vmatpush.xpose.msra.mxu0 0.0
        %2060 = vmatpush.xpose.msra.mxu0 %v1993
        %2061 = vmatpush.xpose.msra.mxu0 %v1990
        %2062 = vmatpush.xpose.msra.mxu0 %v1987
        %2063 = vmatpush.xpose.msra.mxu0 %v1984
        %2064 = vmatpush.xpose.msra.mxu0 %v1981
        %2065 = vmatpush.xpose.msra.mxu0 %v1978
        %2066 = vmatpush.xpose.msra.mxu0 %v1975
        %2067 = vmatmul.f32.gmra.mxu0 %v1919
        %v2068 = vpop.f32.mrf.mxu0
        %v2069 = vadd.f32 0.0, %v2068
        %2070 = vmatmul.f32.gmra.mxu0 %v1922
        %v2071 = vpop.f32.mrf.mxu0
        %v2072 = vadd.f32 0.0, %v2071
        %2073 = vmatmul.f32.gmra.mxu0 %v1925
        %v2074 = vpop.f32.mrf.mxu0
        %v2075 = vadd.f32 0.0, %v2074
        %2076 = vmatmul.f32.gmra.mxu0 %v1928
        %v2077 = vpop.f32.mrf.mxu0
        %v2078 = vadd.f32 0.0, %v2077
        %2079 = vmatmul.f32.gmra.mxu0 %v1931
        %v2080 = vpop.f32.mrf.mxu0
        %v2081 = vadd.f32 0.0, %v2080
        %2082 = vmatmul.f32.gmra.mxu0 %v1934
        %v2083 = vpop.f32.mrf.mxu0
        %v2084 = vadd.f32 0.0, %v2083
        %2085 = vmatmul.f32.gmra.mxu0 %v1937
        %v2086 = vpop.f32.mrf.mxu0
        %v2087 = vadd.f32 0.0, %v2086
        %2088 = vdwg.mxu0
        %v2089 = vmul.f32 %v2069, 0.14433756
        %v2090 = vmul.f32 %v2072, 0.14433756
        %v2091 = vmul.f32 %v2075, 0.14433756
        %v2092 = vmul.f32 %v2078, 0.14433756
        %v2093 = vmul.f32 %v2081, 0.14433756
        %v2094 = vmul.f32 %v2084, 0.14433756
        %v2095 = vmul.f32 %v2087, 0.14433756
        %v2096 = vsel %vm1609, %v2089, -inf
        %2097 = vmax.xlane.f32.xlu0 %v2096
        %v2098 = vpop.xlane.xlu0 %2097
        %v2099 = vsel %vm1609, %v2090, -inf
        %2100 = vmax.xlane.f32.xlu0 %v2099
        %v2101 = vpop.xlane.xlu0 %2100
        %v2102 = vsel %vm1609, %v2091, -inf
        %2103 = vmax.xlane.f32.xlu0 %v2102
        %v2104 = vpop.xlane.xlu0 %2103
        %v2105 = vsel %vm1609, %v2092, -inf
        %2106 = vmax.xlane.f32.xlu0 %v2105
        %v2107 = vpop.xlane.xlu0 %2106
        %v2108 = vsel %vm1609, %v2093, -inf
        %2109 = vmax.xlane.f32.xlu0 %v2108
        %v2110 = vpop.xlane.xlu0 %2109
        %v2111 = vsel %vm1609, %v2094, -inf
        %2112 = vmax.xlane.f32.xlu0 %v2111
        %v2113 = vpop.xlane.xlu0 %2112
        %vm2114 = vcmask 411648
        %v2115 = vsel %vm2114, %v2095, -inf
        %2116 = vmax.xlane.f32.xlu0 %v2115
        %v2117 = vpop.xlane.xlu0 %2116
        %v2118 = vsub.f32 %v2089, %v2098
        %v2119 = vsub.f32 %v2090, %v2101
        %v2120 = vsub.f32 %v2091, %v2104
        %v2121 = vsub.f32 %v2092, %v2107
        %v2122 = vsub.f32 %v2093, %v2110
        %v2123 = vsub.f32 %v2094, %v2113
        %v2124 = vsub.f32 %v2095, %v2117
        %v2125 = vmul.f32 %v2118, 1.442695
        %v2126 = vpow.pop %v2125
        %v2127 = vmul.f32 %v2119, 1.442695
        %v2128 = vpow.pop %v2127
        %v2129 = vmul.f32 %v2120, 1.442695
        %v2130 = vpow.pop %v2129
        %v2131 = vmul.f32 %v2121, 1.442695
        %v2132 = vpow.pop %v2131
        %v2133 = vmul.f32 %v2122, 1.442695
        %v2134 = vpow.pop %v2133
        %v2135 = vmul.f32 %v2123, 1.442695
        %v2136 = vpow.pop %v2135
        %v2137 = vmul.f32 %v2124, 1.442695
        %v2138 = vpow.pop %v2137
        %v2139 = vsel %vm1609, %v2126, 0.0
        %2140 = vadd.xlane.f32.xlu0 %v2139
        %v2141 = vpop.xlane.xlu0 %2140
        %v2142 = vsel %vm1609, %v2128, 0.0
        %2143 = vadd.xlane.f32.xlu0 %v2142
        %v2144 = vpop.xlane.xlu0 %2143
        %v2145 = vsel %vm1609, %v2130, 0.0
        %2146 = vadd.xlane.f32.xlu0 %v2145
        %v2147 = vpop.xlane.xlu0 %2146
        %v2148 = vsel %vm1609, %v2132, 0.0
        %2149 = vadd.xlane.f32.xlu0 %v2148
        %v2150 = vpop.xlane.xlu0 %2149
        %v2151 = vsel %vm1609, %v2134, 0.0
        %2152 = vadd.xlane.f32.xlu0 %v2151
        %v2153 = vpop.xlane.xlu0 %2152
        %v2154 = vsel %vm1609, %v2136, 0.0
        %2155 = vadd.xlane.f32.xlu0 %v2154
        %v2156 = vpop.xlane.xlu0 %2155
        %v2157 = vsel %vm2114, %v2138, 0.0
        %2158 = vadd.xlane.f32.xlu0 %v2157
        %v2159 = vpop.xlane.xlu0 %2158
        %v2160 = vrcp.pop %v2141
        %v2161 = vrcp.pop %v2144
        %v2162 = vrcp.pop %v2147
        %v2163 = vrcp.pop %v2150
        %v2164 = vrcp.pop %v2153
        %v2165 = vrcp.pop %v2156
        %v2166 = vrcp.pop %v2159
        %v2167 = vmul.f32 %v2126, %v2160
        %v2168 = vmul.f32 %v2128, %v2161
        %v2169 = vmul.f32 %v2130, %v2162
        %v2170 = vmul.f32 %v2132, %v2163
        %v2171 = vmul.f32 %v2134, %v2164
        %v2172 = vmul.f32 %v2136, %v2165
        %v2173 = vmul.f32 %v2138, %v2166
        %v2175 = vsel %vm1609, %v2167, 0
        %v2178 = vsel %vm1609, %v2168, 0
        %v2181 = vsel %vm1609, %v2169, 0
        %v2184 = vsel %vm1609, %v2170, 0
        %v2187 = vsel %vm1609, %v2171, 0
        %v2190 = vsel %vm1609, %v2172, 0
        %v2193 = vsel %vm1609, %v2173, 0
        %v2196 = vsel %vm1624, %v2049, 0
        %2198 = vmatpush.msra.mxu0 0.0
        %2199 = vmatpush.msra.mxu0 0.0
        %2200 = vmatpush.msra.mxu0 0.0
        %2201 = vmatpush.msra.mxu0 0.0
        %2202 = vmatpush.msra.mxu0 0.0
        %2203 = vmatpush.msra.mxu0 0.0
        %2204 = vmatpush.msra.mxu0 0.0
        %2205 = vmatpush.msra.mxu0 0.0
        %2206 = vmatpush.msra.mxu0 0.0
        %2207 = vmatpush.msra.mxu0 %v2196
        %2208 = vmatpush.msra.mxu0 %v2046
        %2209 = vmatpush.msra.mxu0 %v2043
        %2210 = vmatpush.msra.mxu0 %v2040
        %2211 = vmatpush.msra.mxu0 %v2037
        %2212 = vmatpush.msra.mxu0 %v2034
        %2213 = vmatpush.msra.mxu0 %v2031
        %2214 = vmatmul.f32.gmra.mxu0 %v2175
        %v2215 = vpop.f32.mrf.mxu0
        %v2216 = vadd.f32 0.0, %v2215
        %2217 = vmatmul.f32.gmra.mxu0 %v2178
        %v2218 = vpop.f32.mrf.mxu0
        %v2219 = vadd.f32 0.0, %v2218
        %2220 = vmatmul.f32.gmra.mxu0 %v2181
        %v2221 = vpop.f32.mrf.mxu0
        %v2222 = vadd.f32 0.0, %v2221
        %2223 = vmatmul.f32.gmra.mxu0 %v2184
        %v2224 = vpop.f32.mrf.mxu0
        %v2225 = vadd.f32 0.0, %v2224
        %2226 = vmatmul.f32.gmra.mxu0 %v2187
        %v2227 = vpop.f32.mrf.mxu0
        %v2228 = vadd.f32 0.0, %v2227
        %2229 = vmatmul.f32.gmra.mxu0 %v2190
        %v2230 = vpop.f32.mrf.mxu0
        %v2231 = vadd.f32 0.0, %v2230
        %2232 = vmatmul.f32.gmra.mxu0 %v2193
        %v2233 = vpop.f32.mrf.mxu0
        %v2234 = vadd.f32 0.0, %v2233
        %2235 = vdwg.mxu0
        %v2236 = vld [vmem:[#allocation2 + $0x708] sm:$0xff]
        %v2237 = vld [vmem:[#allocation2 + $0x710] sm:$0xff]
        %v2238 = vld [vmem:[#allocation2 + $0x718] sm:$0xff]
        %v2239 = vld [vmem:[#allocation2 + $0x720] sm:$0xff]
        %v2240 = vld [vmem:[#allocation2 + $0x728] sm:$0xff]
        %v2241 = vld [vmem:[#allocation2 + $0x730] sm:$0xff]
        %v2242 = vld [vmem:[#allocation2 + $0x738] sm:$0xff]
        %v2243 = vld [vmem:[#allocation2 + $0x740] sm:$0xff]
        %v2244 = vld [vmem:[#allocation2 + $0x748] sm:$0xff]
        %v2245 = vld [vmem:[#allocation2 + $0x750] sm:$0xff]
        %v2246 = vld [vmem:[#allocation2 + $0x758] sm:$0xff]
        %v2247 = vld [vmem:[#allocation2 + $0x760] sm:$0xff]
        %v2248 = vld [vmem:[#allocation2 + $0x768] sm:$0xff]
        %v2249 = vld [vmem:[#allocation2 + $0x770] sm:$0xff]
        %v2250 = vld [vmem:[#allocation2 + $0x778] sm:$0xff]
        %v2251 = vld [vmem:[#allocation2 + $0x780] sm:$0xff]
        %v2252 = vld [vmem:[#allocation2 + $0x788] sm:$0x1]
        %v2253 = vperm.slane %v2252, 0
        %2254 = vmatpush.msra.mxu0 %v2251
        %2255 = vmatpush.msra.mxu0 %v2250
        %2256 = vmatpush.msra.mxu0 %v2249
        %2257 = vmatpush.msra.mxu0 %v2248
        %2258 = vmatpush.msra.mxu0 %v2247
        %2259 = vmatpush.msra.mxu0 %v2246
        %2260 = vmatpush.msra.mxu0 %v2245
        %2261 = vmatpush.msra.mxu0 %v2244
        %2262 = vmatpush.msra.mxu0 %v2243
        %2263 = vmatpush.msra.mxu0 %v2242
        %2264 = vmatpush.msra.mxu0 %v2241
        %2265 = vmatpush.msra.mxu0 %v2240
        %2266 = vmatpush.msra.mxu0 %v2239
        %2267 = vmatpush.msra.mxu0 %v2238
        %2268 = vmatpush.msra.mxu0 %v2237
        %2269 = vmatpush.msra.mxu0 %v2236
        %2270 = vmatmul.f32.gmra.mxu0 %v2216
        %v2271 = vpop.f32.mrf.mxu0
        %v2272 = vadd.f32 %v2253, %v2271
        %2273 = vmatmul.f32.gmra.mxu0 %v2219
        %v2274 = vpop.f32.mrf.mxu0
        %v2275 = vadd.f32 %v2253, %v2274
        %2276 = vmatmul.f32.gmra.mxu0 %v2222
        %v2277 = vpop.f32.mrf.mxu0
        %v2278 = vadd.f32 %v2253, %v2277
        %2279 = vmatmul.f32.gmra.mxu0 %v2225
        %v2280 = vpop.f32.mrf.mxu0
        %v2281 = vadd.f32 %v2253, %v2280
        %2282 = vmatmul.f32.gmra.mxu0 %v2228
        %v2283 = vpop.f32.mrf.mxu0
        %v2284 = vadd.f32 %v2253, %v2283
        %2285 = vmatmul.f32.gmra.mxu0 %v2231
        %v2286 = vpop.f32.mrf.mxu0
        %v2287 = vadd.f32 %v2253, %v2286
        %2288 = vmatmul.f32.gmra.mxu0 %v2234
        %v2289 = vpop.f32.mrf.mxu0
        %v2290 = vadd.f32 %v2253, %v2289
        %2291 = vdwg.mxu0
        %v2292 = vld [vmem:[#allocation2 + $0x790] sm:$0xff]
        %v2293 = vld [vmem:[#allocation2 + $0x798] sm:$0xff]
        %v2294 = vld [vmem:[#allocation2 + $0x7a0] sm:$0xff]
        %v2295 = vld [vmem:[#allocation2 + $0x7a8] sm:$0xff]
        %v2296 = vld [vmem:[#allocation2 + $0x7b0] sm:$0xff]
        %v2297 = vld [vmem:[#allocation2 + $0x7b8] sm:$0xff]
        %v2298 = vld [vmem:[#allocation2 + $0x7c0] sm:$0xff]
        %v2299 = vld [vmem:[#allocation2 + $0x7c8] sm:$0xff]
        %v2300 = vld [vmem:[#allocation2 + $0x7d0] sm:$0xff]
        %v2301 = vld [vmem:[#allocation2 + $0x7d8] sm:$0xff]
        %v2302 = vld [vmem:[#allocation2 + $0x7e0] sm:$0xff]
        %v2303 = vld [vmem:[#allocation2 + $0x7e8] sm:$0xff]
        %v2304 = vld [vmem:[#allocation2 + $0x7f0] sm:$0xff]
        %v2305 = vld [vmem:[#allocation2 + $0x7f8] sm:$0xff]
        %v2306 = vld [vmem:[#allocation2 + $0x800] sm:$0xff]
        %v2307 = vld [vmem:[#allocation2 + $0x808] sm:$0xff]
        %2308 = vmatpush.msra.mxu0 %v2307
        %2309 = vmatpush.msra.mxu0 %v2306
        %2310 = vmatpush.msra.mxu0 %v2305
        %2311 = vmatpush.msra.mxu0 %v2304
        %2312 = vmatpush.msra.mxu0 %v2303
        %2313 = vmatpush.msra.mxu0 %v2302
        %2314 = vmatpush.msra.mxu0 %v2301
        %2315 = vmatpush.msra.mxu0 %v2300
        %2316 = vmatpush.msra.mxu0 %v2299
        %2317 = vmatpush.msra.mxu0 %v2298
        %2318 = vmatpush.msra.mxu0 %v2297
        %2319 = vmatpush.msra.mxu0 %v2296
        %2320 = vmatpush.msra.mxu0 %v2295
        %2321 = vmatpush.msra.mxu0 %v2294
        %2322 = vmatpush.msra.mxu0 %v2293
        %2323 = vmatpush.msra.mxu0 %v2292
        %2324 = vmatmul.f32.gmra.mxu0 %v2272
        %v2325 = vpop.f32.mrf.mxu0
        %v2326 = vadd.f32 0.0, %v2325
        %2327 = vmatmul.f32.gmra.mxu0 %v2275
        %v2328 = vpop.f32.mrf.mxu0
        %v2329 = vadd.f32 0.0, %v2328
        %2330 = vmatmul.f32.gmra.mxu0 %v2278
        %v2331 = vpop.f32.mrf.mxu0
        %v2332 = vadd.f32 0.0, %v2331
        %2333 = vmatmul.f32.gmra.mxu0 %v2281
        %v2334 = vpop.f32.mrf.mxu0
        %v2335 = vadd.f32 0.0, %v2334
        %2336 = vmatmul.f32.gmra.mxu0 %v2284
        %v2337 = vpop.f32.mrf.mxu0
        %v2338 = vadd.f32 0.0, %v2337
        %2339 = vmatmul.f32.gmra.mxu0 %v2287
        %v2340 = vpop.f32.mrf.mxu0
        %v2341 = vadd.f32 0.0, %v2340
        %2342 = vmatmul.f32.gmra.mxu0 %v2290
        %v2343 = vpop.f32.mrf.mxu0
        %v2344 = vadd.f32 0.0, %v2343
        %2345 = vdwg.mxu0
        %v2346 = vld [vmem:[#allocation2 + $0x810] sm:$0xff]
        %v2347 = vld [vmem:[#allocation2 + $0x818] sm:$0xff]
        %v2348 = vld [vmem:[#allocation2 + $0x820] sm:$0xff]
        %v2349 = vld [vmem:[#allocation2 + $0x828] sm:$0xff]
        %v2350 = vld [vmem:[#allocation2 + $0x830] sm:$0xff]
        %v2351 = vld [vmem:[#allocation2 + $0x838] sm:$0xff]
        %v2352 = vld [vmem:[#allocation2 + $0x840] sm:$0xff]
        %v2353 = vld [vmem:[#allocation2 + $0x848] sm:$0xff]
        %v2354 = vld [vmem:[#allocation2 + $0x850] sm:$0xff]
        %v2355 = vld [vmem:[#allocation2 + $0x858] sm:$0xff]
        %v2356 = vld [vmem:[#allocation2 + $0x860] sm:$0xff]
        %v2357 = vld [vmem:[#allocation2 + $0x868] sm:$0xff]
        %v2358 = vld [vmem:[#allocation2 + $0x870] sm:$0xff]
        %v2359 = vld [vmem:[#allocation2 + $0x878] sm:$0xff]
        %v2360 = vld [vmem:[#allocation2 + $0x880] sm:$0xff]
        %v2361 = vld [vmem:[#allocation2 + $0x888] sm:$0xff]
        %2362 = vmatpush.msra.mxu0 %v2361
        %2363 = vmatpush.msra.mxu0 %v2360
        %2364 = vmatpush.msra.mxu0 %v2359
        %2365 = vmatpush.msra.mxu0 %v2358
        %2366 = vmatpush.msra.mxu0 %v2357
        %2367 = vmatpush.msra.mxu0 %v2356
        %2368 = vmatpush.msra.mxu0 %v2355
        %2369 = vmatpush.msra.mxu0 %v2354
        %2370 = vmatpush.msra.mxu0 %v2353
        %2371 = vmatpush.msra.mxu0 %v2352
        %2372 = vmatpush.msra.mxu0 %v2351
        %2373 = vmatpush.msra.mxu0 %v2350
        %2374 = vmatpush.msra.mxu0 %v2349
        %2375 = vmatpush.msra.mxu0 %v2348
        %2376 = vmatpush.msra.mxu0 %v2347
        %2377 = vmatpush.msra.mxu0 %v2346
        %2378 = vmatmul.f32.gmra.mxu0 %v2272
        %v2379 = vpop.f32.mrf.mxu0
        %v2380 = vadd.f32 0.0, %v2379
        %2381 = vmatmul.f32.gmra.mxu0 %v2275
        %v2382 = vpop.f32.mrf.mxu0
        %v2383 = vadd.f32 0.0, %v2382
        %2384 = vmatmul.f32.gmra.mxu0 %v2278
        %v2385 = vpop.f32.mrf.mxu0
        %v2386 = vadd.f32 0.0, %v2385
        %2387 = vmatmul.f32.gmra.mxu0 %v2281
        %v2388 = vpop.f32.mrf.mxu0
        %v2389 = vadd.f32 0.0, %v2388
        %2390 = vmatmul.f32.gmra.mxu0 %v2284
        %v2391 = vpop.f32.mrf.mxu0
        %v2392 = vadd.f32 0.0, %v2391
        %2393 = vmatmul.f32.gmra.mxu0 %v2287
        %v2394 = vpop.f32.mrf.mxu0
        %v2395 = vadd.f32 0.0, %v2394
        %2396 = vmatmul.f32.gmra.mxu0 %v2290
        %v2397 = vpop.f32.mrf.mxu0
        %v2398 = vadd.f32 0.0, %v2397
        %2399 = vdwg.mxu0
        %v2401 = vsel %vm1624, %v2398, 0
        %2403 = vmatpush.msra.mxu0 0.0
        %2404 = vmatpush.msra.mxu0 0.0
        %2405 = vmatpush.msra.mxu0 0.0
        %2406 = vmatpush.msra.mxu0 0.0
        %2407 = vmatpush.msra.mxu0 0.0
        %2408 = vmatpush.msra.mxu0 0.0
        %2409 = vmatpush.msra.mxu0 0.0
        %2410 = vmatpush.msra.mxu0 0.0
        %2411 = vmatpush.msra.mxu0 0.0
        %2412 = vmatpush.msra.mxu0 %v2401
        %2413 = vmatpush.msra.mxu0 %v2395
        %2414 = vmatpush.msra.mxu0 %v2392
        %2415 = vmatpush.msra.mxu0 %v2389
        %2416 = vmatpush.msra.mxu0 %v2386
        %2417 = vmatpush.msra.mxu0 %v2383
        %2418 = vmatpush.msra.mxu0 %v2380
        %2419 = vmatmul.f32.gmra.mxu0 %v1610
        %v2420 = vpop.f32.mrf.mxu0
        %v2421 = vadd.f32 0.0, %v2420
        %2422 = vmatmul.f32.gmra.mxu0 %v1612
        %v2423 = vpop.f32.mrf.mxu0
        %v2424 = vadd.f32 0.0, %v2423
        %2425 = vmatmul.f32.gmra.mxu0 %v1614
        %v2426 = vpop.f32.mrf.mxu0
        %v2427 = vadd.f32 0.0, %v2426
        %2428 = vmatmul.f32.gmra.mxu0 %v1616
        %v2429 = vpop.f32.mrf.mxu0
        %v2430 = vadd.f32 0.0, %v2429
        %2431 = vmatmul.f32.gmra.mxu0 %v1618
        %v2432 = vpop.f32.mrf.mxu0
        %v2433 = vadd.f32 0.0, %v2432
        %2434 = vmatmul.f32.gmra.mxu0 %v1620
        %v2435 = vpop.f32.mrf.mxu0
        %v2436 = vadd.f32 0.0, %v2435
        %2437 = vmatmul.f32.gmra.mxu0 %v1622
        %v2438 = vpop.f32.mrf.mxu0
        %v2439 = vadd.f32 0.0, %v2438
        %2440 = vdwg.mxu0
        %v2442 = vsel %vm1624, %v2344, 0
        %2444 = vmatpush.msra.mxu0 0.0
        %2445 = vmatpush.msra.mxu0 0.0
        %2446 = vmatpush.msra.mxu0 0.0
        %2447 = vmatpush.msra.mxu0 0.0
        %2448 = vmatpush.msra.mxu0 0.0
        %2449 = vmatpush.msra.mxu0 0.0
        %2450 = vmatpush.msra.mxu0 0.0
        %2451 = vmatpush.msra.mxu0 0.0
        %2452 = vmatpush.msra.mxu0 0.0
        %2453 = vmatpush.msra.mxu0 %v2442
        %2454 = vmatpush.msra.mxu0 %v2341
        %2455 = vmatpush.msra.mxu0 %v2338
        %2456 = vmatpush.msra.mxu0 %v2335
        %2457 = vmatpush.msra.mxu0 %v2332
        %2458 = vmatpush.msra.mxu0 %v2329
        %2459 = vmatpush.msra.mxu0 %v2326
        %2460 = vmatmul.f32.gmra.mxu0 %v1666
        %v2461 = vpop.f32.mrf.mxu0
        %v2462 = vadd.f32 %v2421, %v2461
        %2463 = vmatmul.f32.gmra.mxu0 %v1668
        %v2464 = vpop.f32.mrf.mxu0
        %v2465 = vadd.f32 %v2424, %v2464
        %2466 = vmatmul.f32.gmra.mxu0 %v1670
        %v2467 = vpop.f32.mrf.mxu0
        %v2468 = vadd.f32 %v2427, %v2467
        %2469 = vmatmul.f32.gmra.mxu0 %v1672
        %v2470 = vpop.f32.mrf.mxu0
        %v2471 = vadd.f32 %v2430, %v2470
        %2472 = vmatmul.f32.gmra.mxu0 %v1674
        %v2473 = vpop.f32.mrf.mxu0
        %v2474 = vadd.f32 %v2433, %v2473
        %2475 = vmatmul.f32.gmra.mxu0 %v1676
        %v2476 = vpop.f32.mrf.mxu0
        %v2477 = vadd.f32 %v2436, %v2476
        %2478 = vmatmul.f32.gmra.mxu0 %v1678
        %v2479 = vpop.f32.mrf.mxu0
        %v2480 = vadd.f32 %v2439, %v2479
        %2481 = vdwg.mxu0
        %v2482 = vld [vmem:[#allocation2 + $0x890] sm:$0xff]
        %v2483 = vld [vmem:[#allocation2 + $0x898] sm:$0xff]
        %v2484 = vld [vmem:[#allocation2 + $0x8a0] sm:$0xff]
        %v2485 = vld [vmem:[#allocation2 + $0x8a8] sm:$0xff]
        %v2486 = vld [vmem:[#allocation2 + $0x8b0] sm:$0xff]
        %v2487 = vld [vmem:[#allocation2 + $0x8b8] sm:$0xff]
        %v2488 = vld [vmem:[#allocation2 + $0x8c0] sm:$0xff]
        %v2489 = vld [vmem:[#allocation2 + $0x8c8] sm:$0xff]
        %v2490 = vld [vmem:[#allocation2 + $0x8d0] sm:$0xff]
        %v2491 = vld [vmem:[#allocation2 + $0x8d8] sm:$0xff]
        %v2492 = vld [vmem:[#allocation2 + $0x8e0] sm:$0xff]
        %v2493 = vld [vmem:[#allocation2 + $0x8e8] sm:$0xff]
        %v2494 = vld [vmem:[#allocation2 + $0x8f0] sm:$0xff]
        %v2495 = vld [vmem:[#allocation2 + $0x8f8] sm:$0xff]
        %v2496 = vld [vmem:[#allocation2 + $0x900] sm:$0xff]
        %v2497 = vld [vmem:[#allocation2 + $0x908] sm:$0xff]
        %2498 = vmatpush.msra.mxu0 %v2497
        %2499 = vmatpush.msra.mxu0 %v2496
        %2500 = vmatpush.msra.mxu0 %v2495
        %2501 = vmatpush.msra.mxu0 %v2494
        %2502 = vmatpush.msra.mxu0 %v2493
        %2503 = vmatpush.msra.mxu0 %v2492
        %2504 = vmatpush.msra.mxu0 %v2491
        %2505 = vmatpush.msra.mxu0 %v2490
        %2506 = vmatpush.msra.mxu0 %v2489
        %2507 = vmatpush.msra.mxu0 %v2488
        %2508 = vmatpush.msra.mxu0 %v2487
        %2509 = vmatpush.msra.mxu0 %v2486
        %2510 = vmatpush.msra.mxu0 %v2485
        %2511 = vmatpush.msra.mxu0 %v2484
        %2512 = vmatpush.msra.mxu0 %v2483
        %2513 = vmatpush.msra.mxu0 %v2482
        %2514 = vmatmul.f32.gmra.mxu0 %v2272
        %v2515 = vpop.f32.mrf.mxu0
        %v2516 = vadd.f32 0.0, %v2515
        %2517 = vmatmul.f32.gmra.mxu0 %v2275
        %v2518 = vpop.f32.mrf.mxu0
        %v2519 = vadd.f32 0.0, %v2518
        %2520 = vmatmul.f32.gmra.mxu0 %v2278
        %v2521 = vpop.f32.mrf.mxu0
        %v2522 = vadd.f32 0.0, %v2521
        %2523 = vmatmul.f32.gmra.mxu0 %v2281
        %v2524 = vpop.f32.mrf.mxu0
        %v2525 = vadd.f32 0.0, %v2524
        %2526 = vmatmul.f32.gmra.mxu0 %v2284
        %v2527 = vpop.f32.mrf.mxu0
        %v2528 = vadd.f32 0.0, %v2527
        %2529 = vmatmul.f32.gmra.mxu0 %v2287
        %v2530 = vpop.f32.mrf.mxu0
        %v2531 = vadd.f32 0.0, %v2530
        %2532 = vmatmul.f32.gmra.mxu0 %v2290
        %v2533 = vpop.f32.mrf.mxu0
        %v2534 = vadd.f32 0.0, %v2533
        %2535 = vdwg.mxu0
        %v2537 = vsel %vm1624, %v2534, 0
        %2539 = vmatpush.msra.mxu0 0.0
        %2540 = vmatpush.msra.mxu0 0.0
        %2541 = vmatpush.msra.mxu0 0.0
        %2542 = vmatpush.msra.mxu0 0.0
        %2543 = vmatpush.msra.mxu0 0.0
        %2544 = vmatpush.msra.mxu0 0.0
        %2545 = vmatpush.msra.mxu0 0.0
        %2546 = vmatpush.msra.mxu0 0.0
        %2547 = vmatpush.msra.mxu0 0.0
        %2548 = vmatpush.msra.mxu0 %v2537
        %2549 = vmatpush.msra.mxu0 %v2531
        %2550 = vmatpush.msra.mxu0 %v2528
        %2551 = vmatpush.msra.mxu0 %v2525
        %2552 = vmatpush.msra.mxu0 %v2522
        %2553 = vmatpush.msra.mxu0 %v2519
        %2554 = vmatpush.msra.mxu0 %v2516
        %2555 = vmatmul.f32.gmra.mxu0 %v1775
        %v2556 = vpop.f32.mrf.mxu0
        %v2557 = vadd.f32 0.0, %v2556
        %2558 = vmatmul.f32.gmra.mxu0 %v1777
        %v2559 = vpop.f32.mrf.mxu0
        %v2560 = vadd.f32 0.0, %v2559
        %2561 = vmatmul.f32.gmra.mxu0 %v1779
        %v2562 = vpop.f32.mrf.mxu0
        %v2563 = vadd.f32 0.0, %v2562
        %2564 = vmatmul.f32.gmra.mxu0 %v1781
        %v2565 = vpop.f32.mrf.mxu0
        %v2566 = vadd.f32 0.0, %v2565
        %2567 = vmatmul.f32.gmra.mxu0 %v1783
        %v2568 = vpop.f32.mrf.mxu0
        %v2569 = vadd.f32 0.0, %v2568
        %2570 = vmatmul.f32.gmra.mxu0 %v1785
        %v2571 = vpop.f32.mrf.mxu0
        %v2572 = vadd.f32 0.0, %v2571
        %2573 = vmatmul.f32.gmra.mxu0 %v1787
        %v2574 = vpop.f32.mrf.mxu0
        %v2575 = vadd.f32 0.0, %v2574
        %2576 = vdwg.mxu0
        %v2577 = vadd.f32 %v2462, %v2557
        %v2578 = vadd.f32 %v2465, %v2560
        %v2579 = vadd.f32 %v2468, %v2563
        %v2580 = vadd.f32 %v2471, %v2566
        %v2581 = vadd.f32 %v2474, %v2569
        %v2582 = vadd.f32 %v2477, %v2572
        %v2583 = vadd.f32 %v2480, %v2575
        %v2584 = vld [vmem:[#allocation2 + $0x910] sm:$0x1]
        %v2585 = vperm.slane %v2584, 0
        %v2586 = vmul.f32 %v2577, %v2585
        %v2587 = vmul.f32 %v2578, %v2585
        %v2588 = vmul.f32 %v2579, %v2585
        %v2589 = vmul.f32 %v2580, %v2585
        %v2590 = vmul.f32 %v2581, %v2585
        %v2591 = vmul.f32 %v2582, %v2585
        %v2592 = vmul.f32 %v2583, %v2585
        %v2593 = vld [vmem:[#allocation2 + $0x918] sm:$0x1]
        %v2594 = vperm.slane %v2593, 0
        %v2595 = vadd.f32 %v2586, %v2594
        %v2596 = vadd.f32 %v2587, %v2594
        %v2597 = vadd.f32 %v2588, %v2594
        %v2598 = vadd.f32 %v2589, %v2594
        %v2599 = vadd.f32 %v2590, %v2594
        %v2600 = vadd.f32 %v2591, %v2594
        %v2601 = vadd.f32 %v2592, %v2594
        %v2602 = vmax.f32 %v2595, 0.0
        %v2603 = vmax.f32 %v2596, 0.0
        %v2604 = vmax.f32 %v2597, 0.0
        %v2605 = vmax.f32 %v2598, 0.0
        %v2606 = vmax.f32 %v2599, 0.0
        %v2607 = vmax.f32 %v2600, 0.0
        %v2608 = vmax.f32 %v2601, 0.0
        %v2609 = vld [vmem:[#allocation2 + $0x920] sm:$0xff]
        %v2610 = vld [vmem:[#allocation2 + $0x928] sm:$0xff]
        %v2611 = vld [vmem:[#allocation2 + $0x930] sm:$0xff]
        %v2612 = vld [vmem:[#allocation2 + $0x938] sm:$0xff]
        %v2613 = vld [vmem:[#allocation2 + $0x940] sm:$0xff]
        %v2614 = vld [vmem:[#allocation2 + $0x948] sm:$0xff]
        %v2615 = vld [vmem:[#allocation2 + $0x950] sm:$0xff]
        %v2616 = vld [vmem:[#allocation2 + $0x958] sm:$0xff]
        %v2617 = vld [vmem:[#allocation2 + $0x960] sm:$0xff]
        %v2618 = vld [vmem:[#allocation2 + $0x968] sm:$0xff]
        %v2619 = vld [vmem:[#allocation2 + $0x970] sm:$0xff]
        %v2620 = vld [vmem:[#allocation2 + $0x978] sm:$0xff]
        %v2621 = vld [vmem:[#allocation2 + $0x980] sm:$0xff]
        %v2622 = vld [vmem:[#allocation2 + $0x988] sm:$0xff]
        %v2623 = vld [vmem:[#allocation2 + $0x990] sm:$0xff]
        %v2624 = vld [vmem:[#allocation2 + $0x998] sm:$0xff]
        %2625 = vmatpush.msra.mxu0 %v2624
        %2626 = vmatpush.msra.mxu0 %v2623
        %2627 = vmatpush.msra.mxu0 %v2622
        %2628 = vmatpush.msra.mxu0 %v2621
        %2629 = vmatpush.msra.mxu0 %v2620
        %2630 = vmatpush.msra.mxu0 %v2619
        %2631 = vmatpush.msra.mxu0 %v2618
        %2632 = vmatpush.msra.mxu0 %v2617
        %2633 = vmatpush.msra.mxu0 %v2616
        %2634 = vmatpush.msra.mxu0 %v2615
        %2635 = vmatpush.msra.mxu0 %v2614
        %2636 = vmatpush.msra.mxu0 %v2613
        %2637 = vmatpush.msra.mxu0 %v2612
        %2638 = vmatpush.msra.mxu0 %v2611
        %2639 = vmatpush.msra.mxu0 %v2610
        %2640 = vmatpush.msra.mxu0 %v2609
        %2641 = vmatmul.f32.gmra.mxu0 %v2602
        %v2642 = vpop.f32.mrf.mxu0
        %v2643 = vadd.f32 0.0, %v2642
        %2644 = vmatmul.f32.gmra.mxu0 %v2603
        %v2645 = vpop.f32.mrf.mxu0
        %v2646 = vadd.f32 0.0, %v2645
        %2647 = vmatmul.f32.gmra.mxu0 %v2604
        %v2648 = vpop.f32.mrf.mxu0
        %v2649 = vadd.f32 0.0, %v2648
        %2650 = vmatmul.f32.gmra.mxu0 %v2605
        %v2651 = vpop.f32.mrf.mxu0
        %v2652 = vadd.f32 0.0, %v2651
        %2653 = vmatmul.f32.gmra.mxu0 %v2606
        %v2654 = vpop.f32.mrf.mxu0
        %v2655 = vadd.f32 0.0, %v2654
        %2656 = vmatmul.f32.gmra.mxu0 %v2607
        %v2657 = vpop.f32.mrf.mxu0
        %v2658 = vadd.f32 0.0, %v2657
        %2659 = vmatmul.f32.gmra.mxu0 %v2608
        %v2660 = vpop.f32.mrf.mxu0
        %v2661 = vadd.f32 0.0, %v2660
        %2662 = vdwg.mxu0
        %v2663 = vld [vmem:[#allocation2 + $0x9a0] sm:$0xff]
        %v2664 = vld [vmem:[#allocation2 + $0x9a8] sm:$0xff]
        %v2665 = vld [vmem:[#allocation2 + $0x9b0] sm:$0xff]
        %v2666 = vld [vmem:[#allocation2 + $0x9b8] sm:$0xff]
        %v2667 = vld [vmem:[#allocation2 + $0x9c0] sm:$0xff]
        %v2668 = vld [vmem:[#allocation2 + $0x9c8] sm:$0xff]
        %v2669 = vld [vmem:[#allocation2 + $0x9d0] sm:$0xff]
        %v2670 = vld [vmem:[#allocation2 + $0x9d8] sm:$0xff]
        %v2671 = vld [vmem:[#allocation2 + $0x9e0] sm:$0xff]
        %v2672 = vld [vmem:[#allocation2 + $0x9e8] sm:$0xff]
        %v2673 = vld [vmem:[#allocation2 + $0x9f0] sm:$0xff]
        %v2674 = vld [vmem:[#allocation2 + $0x9f8] sm:$0xff]
        %v2675 = vld [vmem:[#allocation2 + $0xa00] sm:$0xff]
        %v2676 = vld [vmem:[#allocation2 + $0xa08] sm:$0xff]
        %v2677 = vld [vmem:[#allocation2 + $0xa10] sm:$0xff]
        %v2678 = vld [vmem:[#allocation2 + $0xa18] sm:$0xff]
        %2679 = vmatpush.msra.mxu0 %v2678
        %2680 = vmatpush.msra.mxu0 %v2677
        %2681 = vmatpush.msra.mxu0 %v2676
        %2682 = vmatpush.msra.mxu0 %v2675
        %2683 = vmatpush.msra.mxu0 %v2674
        %2684 = vmatpush.msra.mxu0 %v2673
        %2685 = vmatpush.msra.mxu0 %v2672
        %2686 = vmatpush.msra.mxu0 %v2671
        %2687 = vmatpush.msra.mxu0 %v2670
        %2688 = vmatpush.msra.mxu0 %v2669
        %2689 = vmatpush.msra.mxu0 %v2668
        %2690 = vmatpush.msra.mxu0 %v2667
        %2691 = vmatpush.msra.mxu0 %v2666
        %2692 = vmatpush.msra.mxu0 %v2665
        %2693 = vmatpush.msra.mxu0 %v2664
        %2694 = vmatpush.msra.mxu0 %v2663
        %2695 = vmatmul.f32.gmra.mxu0 %v2602
        %v2696 = vpop.f32.mrf.mxu0
        %v2697 = vadd.f32 0.0, %v2696
        %2698 = vmatmul.f32.gmra.mxu0 %v2603
        %v2699 = vpop.f32.mrf.mxu0
        %v2700 = vadd.f32 0.0, %v2699
        %2701 = vmatmul.f32.gmra.mxu0 %v2604
        %v2702 = vpop.f32.mrf.mxu0
        %v2703 = vadd.f32 0.0, %v2702
        %2704 = vmatmul.f32.gmra.mxu0 %v2605
        %v2705 = vpop.f32.mrf.mxu0
        %v2706 = vadd.f32 0.0, %v2705
        %2707 = vmatmul.f32.gmra.mxu0 %v2606
        %v2708 = vpop.f32.mrf.mxu0
        %v2709 = vadd.f32 0.0, %v2708
        %2710 = vmatmul.f32.gmra.mxu0 %v2607
        %v2711 = vpop.f32.mrf.mxu0
        %v2712 = vadd.f32 0.0, %v2711
        %2713 = vmatmul.f32.gmra.mxu0 %v2608
        %v2714 = vpop.f32.mrf.mxu0
        %v2715 = vadd.f32 0.0, %v2714
        %2716 = vdwg.mxu0
        %v2718 = vsel %vm1624, %v2715, 0
        %2720 = vmatpush.msra.mxu0 0.0
        %2721 = vmatpush.msra.mxu0 0.0
        %2722 = vmatpush.msra.mxu0 0.0
        %2723 = vmatpush.msra.mxu0 0.0
        %2724 = vmatpush.msra.mxu0 0.0
        %2725 = vmatpush.msra.mxu0 0.0
        %2726 = vmatpush.msra.mxu0 0.0
        %2727 = vmatpush.msra.mxu0 0.0
        %2728 = vmatpush.msra.mxu0 0.0
        %2729 = vmatpush.msra.mxu0 %v2718
        %2730 = vmatpush.msra.mxu0 %v2712
        %2731 = vmatpush.msra.mxu0 %v2709
        %2732 = vmatpush.msra.mxu0 %v2706
        %2733 = vmatpush.msra.mxu0 %v2703
        %2734 = vmatpush.msra.mxu0 %v2700
        %2735 = vmatpush.msra.mxu0 %v2697
        %2736 = vmatmul.f32.gmra.mxu0 %v1610
        %v2737 = vpop.f32.mrf.mxu0
        %v2738 = vadd.f32 0.0, %v2737
        %2739 = vmatmul.f32.gmra.mxu0 %v1612
        %v2740 = vpop.f32.mrf.mxu0
        %v2741 = vadd.f32 0.0, %v2740
        %2742 = vmatmul.f32.gmra.mxu0 %v1614
        %v2743 = vpop.f32.mrf.mxu0
        %v2744 = vadd.f32 0.0, %v2743
        %2745 = vmatmul.f32.gmra.mxu0 %v1616
        %v2746 = vpop.f32.mrf.mxu0
        %v2747 = vadd.f32 0.0, %v2746
        %2748 = vmatmul.f32.gmra.mxu0 %v1618
        %v2749 = vpop.f32.mrf.mxu0
        %v2750 = vadd.f32 0.0, %v2749
        %2751 = vmatmul.f32.gmra.mxu0 %v1620
        %v2752 = vpop.f32.mrf.mxu0
        %v2753 = vadd.f32 0.0, %v2752
        %2754 = vmatmul.f32.gmra.mxu0 %v1622
        %v2755 = vpop.f32.mrf.mxu0
        %v2756 = vadd.f32 0.0, %v2755
        %2757 = vdwg.mxu0
        %v2759 = vsel %vm1624, %v2661, 0
        %2761 = vmatpush.msra.mxu0 0.0
        %2762 = vmatpush.msra.mxu0 0.0
        %2763 = vmatpush.msra.mxu0 0.0
        %2764 = vmatpush.msra.mxu0 0.0
        %2765 = vmatpush.msra.mxu0 0.0
        %2766 = vmatpush.msra.mxu0 0.0
        %2767 = vmatpush.msra.mxu0 0.0
        %2768 = vmatpush.msra.mxu0 0.0
        %2769 = vmatpush.msra.mxu0 0.0
        %2770 = vmatpush.msra.mxu0 %v2759
        %2771 = vmatpush.msra.mxu0 %v2658
        %2772 = vmatpush.msra.mxu0 %v2655
        %2773 = vmatpush.msra.mxu0 %v2652
        %2774 = vmatpush.msra.mxu0 %v2649
        %2775 = vmatpush.msra.mxu0 %v2646
        %2776 = vmatpush.msra.mxu0 %v2643
        %2777 = vmatmul.f32.gmra.mxu0 %v1666
        %v2778 = vpop.f32.mrf.mxu0
        %v2779 = vadd.f32 %v2738, %v2778
        %2780 = vmatmul.f32.gmra.mxu0 %v1668
        %v2781 = vpop.f32.mrf.mxu0
        %v2782 = vadd.f32 %v2741, %v2781
        %2783 = vmatmul.f32.gmra.mxu0 %v1670
        %v2784 = vpop.f32.mrf.mxu0
        %v2785 = vadd.f32 %v2744, %v2784
        %2786 = vmatmul.f32.gmra.mxu0 %v1672
        %v2787 = vpop.f32.mrf.mxu0
        %v2788 = vadd.f32 %v2747, %v2787
        %2789 = vmatmul.f32.gmra.mxu0 %v1674
        %v2790 = vpop.f32.mrf.mxu0
        %v2791 = vadd.f32 %v2750, %v2790
        %2792 = vmatmul.f32.gmra.mxu0 %v1676
        %v2793 = vpop.f32.mrf.mxu0
        %v2794 = vadd.f32 %v2753, %v2793
        %2795 = vmatmul.f32.gmra.mxu0 %v1678
        %v2796 = vpop.f32.mrf.mxu0
        %v2797 = vadd.f32 %v2756, %v2796
        %2798 = vdwg.mxu0
        %v2799 = vld [vmem:[#allocation2 + $0xa20] sm:$0xff]
        %v2800 = vld [vmem:[#allocation2 + $0xa28] sm:$0xff]
        %v2801 = vld [vmem:[#allocation2 + $0xa30] sm:$0xff]
        %v2802 = vld [vmem:[#allocation2 + $0xa38] sm:$0xff]
        %v2803 = vld [vmem:[#allocation2 + $0xa40] sm:$0xff]
        %v2804 = vld [vmem:[#allocation2 + $0xa48] sm:$0xff]
        %v2805 = vld [vmem:[#allocation2 + $0xa50] sm:$0xff]
        %v2806 = vld [vmem:[#allocation2 + $0xa58] sm:$0xff]
        %v2807 = vld [vmem:[#allocation2 + $0xa60] sm:$0xff]
        %v2808 = vld [vmem:[#allocation2 + $0xa68] sm:$0xff]
        %v2809 = vld [vmem:[#allocation2 + $0xa70] sm:$0xff]
        %v2810 = vld [vmem:[#allocation2 + $0xa78] sm:$0xff]
        %v2811 = vld [vmem:[#allocation2 + $0xa80] sm:$0xff]
        %v2812 = vld [vmem:[#allocation2 + $0xa88] sm:$0xff]
        %v2813 = vld [vmem:[#allocation2 + $0xa90] sm:$0xff]
        %v2814 = vld [vmem:[#allocation2 + $0xa98] sm:$0xff]
        %2815 = vmatpush.msra.mxu0 %v2814
        %2816 = vmatpush.msra.mxu0 %v2813
        %2817 = vmatpush.msra.mxu0 %v2812
        %2818 = vmatpush.msra.mxu0 %v2811
        %2819 = vmatpush.msra.mxu0 %v2810
        %2820 = vmatpush.msra.mxu0 %v2809
        %2821 = vmatpush.msra.mxu0 %v2808
        %2822 = vmatpush.msra.mxu0 %v2807
        %2823 = vmatpush.msra.mxu0 %v2806
        %2824 = vmatpush.msra.mxu0 %v2805
        %2825 = vmatpush.msra.mxu0 %v2804
        %2826 = vmatpush.msra.mxu0 %v2803
        %2827 = vmatpush.msra.mxu0 %v2802
        %2828 = vmatpush.msra.mxu0 %v2801
        %2829 = vmatpush.msra.mxu0 %v2800
        %2830 = vmatpush.msra.mxu0 %v2799
        %2831 = vmatmul.f32.gmra.mxu0 %v2602
        %v2832 = vpop.f32.mrf.mxu0
        %v2833 = vadd.f32 0.0, %v2832
        %2834 = vmatmul.f32.gmra.mxu0 %v2603
        %v2835 = vpop.f32.mrf.mxu0
        %v2836 = vadd.f32 0.0, %v2835
        %2837 = vmatmul.f32.gmra.mxu0 %v2604
        %v2838 = vpop.f32.mrf.mxu0
        %v2839 = vadd.f32 0.0, %v2838
        %2840 = vmatmul.f32.gmra.mxu0 %v2605
        %v2841 = vpop.f32.mrf.mxu0
        %v2842 = vadd.f32 0.0, %v2841
        %2843 = vmatmul.f32.gmra.mxu0 %v2606
        %v2844 = vpop.f32.mrf.mxu0
        %v2845 = vadd.f32 0.0, %v2844
        %2846 = vmatmul.f32.gmra.mxu0 %v2607
        %v2847 = vpop.f32.mrf.mxu0
        %v2848 = vadd.f32 0.0, %v2847
        %2849 = vmatmul.f32.gmra.mxu0 %v2608
        %v2850 = vpop.f32.mrf.mxu0
        %v2851 = vadd.f32 0.0, %v2850
        %2852 = vdwg.mxu0
        %v2854 = vsel %vm1624, %v2851, 0
        %2856 = vmatpush.msra.mxu0 0.0
        %2857 = vmatpush.msra.mxu0 0.0
        %2858 = vmatpush.msra.mxu0 0.0
        %2859 = vmatpush.msra.mxu0 0.0
        %2860 = vmatpush.msra.mxu0 0.0
        %2861 = vmatpush.msra.mxu0 0.0
        %2862 = vmatpush.msra.mxu0 0.0
        %2863 = vmatpush.msra.mxu0 0.0
        %2864 = vmatpush.msra.mxu0 0.0
        %2865 = vmatpush.msra.mxu0 %v2854
        %2866 = vmatpush.msra.mxu0 %v2848
        %2867 = vmatpush.msra.mxu0 %v2845
        %2868 = vmatpush.msra.mxu0 %v2842
        %2869 = vmatpush.msra.mxu0 %v2839
        %2870 = vmatpush.msra.mxu0 %v2836
        %2871 = vmatpush.msra.mxu0 %v2833
        %2872 = vmatmul.f32.gmra.mxu0 %v1775
        %v2873 = vpop.f32.mrf.mxu0
        %v2874 = vadd.f32 0.0, %v2873
        %2875 = vmatmul.f32.gmra.mxu0 %v1777
        %v2876 = vpop.f32.mrf.mxu0
        %v2877 = vadd.f32 0.0, %v2876
        %2878 = vmatmul.f32.gmra.mxu0 %v1779
        %v2879 = vpop.f32.mrf.mxu0
        %v2880 = vadd.f32 0.0, %v2879
        %2881 = vmatmul.f32.gmra.mxu0 %v1781
        %v2882 = vpop.f32.mrf.mxu0
        %v2883 = vadd.f32 0.0, %v2882
        %2884 = vmatmul.f32.gmra.mxu0 %v1783
        %v2885 = vpop.f32.mrf.mxu0
        %v2886 = vadd.f32 0.0, %v2885
        %2887 = vmatmul.f32.gmra.mxu0 %v1785
        %v2888 = vpop.f32.mrf.mxu0
        %v2889 = vadd.f32 0.0, %v2888
        %2890 = vmatmul.f32.gmra.mxu0 %v1787
        %v2891 = vpop.f32.mrf.mxu0
        %v2892 = vadd.f32 0.0, %v2891
        %2893 = vdwg.mxu0
        %v2894 = vadd.f32 %v2779, %v2874
        %v2895 = vadd.f32 %v2782, %v2877
        %v2896 = vadd.f32 %v2785, %v2880
        %v2897 = vadd.f32 %v2788, %v2883
        %v2898 = vadd.f32 %v2791, %v2886
        %v2899 = vadd.f32 %v2794, %v2889
        %v2900 = vadd.f32 %v2797, %v2892
        %v2901 = vld [vmem:[#allocation2 + $0xaa0] sm:$0x1]
        %v2902 = vperm.slane %v2901, 0
        %v2903 = vmul.f32 %v2894, %v2902
        %v2904 = vmul.f32 %v2895, %v2902
        %v2905 = vmul.f32 %v2896, %v2902
        %v2906 = vmul.f32 %v2897, %v2902
        %v2907 = vmul.f32 %v2898, %v2902
        %v2908 = vmul.f32 %v2899, %v2902
        %v2909 = vmul.f32 %v2900, %v2902
        %v2910 = vld [vmem:[#allocation2 + $0xaa8] sm:$0x1]
        %v2911 = vperm.slane %v2910, 0
        %v2912 = vadd.f32 %v2903, %v2911
        %v2913 = vadd.f32 %v2904, %v2911
        %v2914 = vadd.f32 %v2905, %v2911
        %v2915 = vadd.f32 %v2906, %v2911
        %v2916 = vadd.f32 %v2907, %v2911
        %v2917 = vadd.f32 %v2908, %v2911
        %v2918 = vadd.f32 %v2909, %v2911
        %v2919 = vadd.f32 %v2912, %v2272
        %v2920 = vadd.f32 %v2913, %v2275
        %v2921 = vadd.f32 %v2914, %v2278
        %v2922 = vadd.f32 %v2915, %v2281
        %v2923 = vadd.f32 %v2916, %v2284
        %v2924 = vadd.f32 %v2917, %v2287
        %v2925 = vadd.f32 %v2918, %v2290
        %v2926 = vmax.f32 %v2919, 0.0
        %v2927 = vmax.f32 %v2920, 0.0
        %v2928 = vmax.f32 %v2921, 0.0
        %v2929 = vmax.f32 %v2922, 0.0
        %v2930 = vmax.f32 %v2923, 0.0
        %v2931 = vmax.f32 %v2924, 0.0
        %v2932 = vmax.f32 %v2925, 0.0
        %v2933 = vld [vmem:[#allocation2 + $0xab0] sm:$0xff]
        %v2934 = vld [vmem:[#allocation2 + $0xab8] sm:$0xff]
        %v2935 = vld [vmem:[#allocation2 + $0xac0] sm:$0xff]
        %v2936 = vld [vmem:[#allocation2 + $0xac8] sm:$0xff]
        %v2937 = vld [vmem:[#allocation2 + $0xad0] sm:$0xff]
        %v2938 = vld [vmem:[#allocation2 + $0xad8] sm:$0xff]
        %v2939 = vld [vmem:[#allocation2 + $0xae0] sm:$0x7]
        %v2940 = vadd.f32 %v2926, %v2933
        %v2941 = vadd.f32 %v2927, %v2934
        %v2942 = vadd.f32 %v2928, %v2935
        %v2943 = vadd.f32 %v2929, %v2936
        %v2944 = vadd.f32 %v2930, %v2937
        %v2945 = vadd.f32 %v2931, %v2938
        %v2946 = vadd.f32 %v2932, %v2939
        %v2947 = vld [vmem:[#allocation2 + $0xae8] sm:$0xff]
        %v2948 = vld [vmem:[#allocation2 + $0xaf0] sm:$0xff]
        %v2949 = vld [vmem:[#allocation2 + $0xaf8] sm:$0xff]
        %v2950 = vld [vmem:[#allocation2 + $0xb00] sm:$0xff]
        %v2951 = vld [vmem:[#allocation2 + $0xb08] sm:$0xff]
        %v2952 = vld [vmem:[#allocation2 + $0xb10] sm:$0xff]
        %v2953 = vld [vmem:[#allocation2 + $0xb18] sm:$0xff]
        %v2954 = vld [vmem:[#allocation2 + $0xb20] sm:$0xff]
        %v2955 = vld [vmem:[#allocation2 + $0xb28] sm:$0xff]
        %v2956 = vld [vmem:[#allocation2 + $0xb30] sm:$0xff]
        %v2957 = vld [vmem:[#allocation2 + $0xb38] sm:$0xff]
        %v2958 = vld [vmem:[#allocation2 + $0xb40] sm:$0xff]
        %v2959 = vld [vmem:[#allocation2 + $0xb48] sm:$0xff]
        %v2960 = vld [vmem:[#allocation2 + $0xb50] sm:$0xff]
        %v2961 = vld [vmem:[#allocation2 + $0xb58] sm:$0xff]
        %v2962 = vld [vmem:[#allocation2 + $0xb60] sm:$0xff]
        %v2963 = vld [vmem:[#allocation2 + $0xb68] sm:$0x1]
        %v2964 = vperm.slane %v2963, 0
        %2965 = vmatpush.msra.mxu0 %v2962
        %2966 = vmatpush.msra.mxu0 %v2961
        %2967 = vmatpush.msra.mxu0 %v2960
        %2968 = vmatpush.msra.mxu0 %v2959
        %2969 = vmatpush.msra.mxu0 %v2958
        %2970 = vmatpush.msra.mxu0 %v2957
        %2971 = vmatpush.msra.mxu0 %v2956
        %2972 = vmatpush.msra.mxu0 %v2955
        %2973 = vmatpush.msra.mxu0 %v2954
        %2974 = vmatpush.msra.mxu0 %v2953
        %2975 = vmatpush.msra.mxu0 %v2952
        %2976 = vmatpush.msra.mxu0 %v2951
        %2977 = vmatpush.msra.mxu0 %v2950
        %2978 = vmatpush.msra.mxu0 %v2949
        %2979 = vmatpush.msra.mxu0 %v2948
        %2980 = vmatpush.msra.mxu0 %v2947
        %2981 = vmatmul.f32.gmra.mxu0 %v2940
        %v2982 = vpop.f32.mrf.mxu0
        %v2983 = vadd.f32 %v2964, %v2982
        %2984 = vmatmul.f32.gmra.mxu0 %v2941
        %v2985 = vpop.f32.mrf.mxu0
        %v2986 = vadd.f32 %v2964, %v2985
        %2987 = vmatmul.f32.gmra.mxu0 %v2942
        %v2988 = vpop.f32.mrf.mxu0
        %v2989 = vadd.f32 %v2964, %v2988
        %2990 = vmatmul.f32.gmra.mxu0 %v2943
        %v2991 = vpop.f32.mrf.mxu0
        %v2992 = vadd.f32 %v2964, %v2991
        %2993 = vmatmul.f32.gmra.mxu0 %v2944
        %v2994 = vpop.f32.mrf.mxu0
        %v2995 = vadd.f32 %v2964, %v2994
        %2996 = vmatmul.f32.gmra.mxu0 %v2945
        %v2997 = vpop.f32.mrf.mxu0
        %v2998 = vadd.f32 %v2964, %v2997
        %2999 = vmatmul.f32.gmra.mxu0 %v2946
        %v3000 = vpop.f32.mrf.mxu0
        %v3001 = vadd.f32 %v2964, %v3000
        %3002 = vdwg.mxu0
        %v3003 = vld [vmem:[#allocation2 + $0xb70] sm:$0xff]
        %v3004 = vld [vmem:[#allocation2 + $0xb78] sm:$0xff]
        %v3005 = vld [vmem:[#allocation2 + $0xb80] sm:$0xff]
        %v3006 = vld [vmem:[#allocation2 + $0xb88] sm:$0xff]
        %v3007 = vld [vmem:[#allocation2 + $0xb90] sm:$0xff]
        %v3008 = vld [vmem:[#allocation2 + $0xb98] sm:$0xff]
        %v3009 = vld [vmem:[#allocation2 + $0xba0] sm:$0xff]
        %v3010 = vld [vmem:[#allocation2 + $0xba8] sm:$0xff]
        %v3011 = vld [vmem:[#allocation2 + $0xbb0] sm:$0xff]
        %v3012 = vld [vmem:[#allocation2 + $0xbb8] sm:$0xff]
        %v3013 = vld [vmem:[#allocation2 + $0xbc0] sm:$0xff]
        %v3014 = vld [vmem:[#allocation2 + $0xbc8] sm:$0xff]
        %v3015 = vld [vmem:[#allocation2 + $0xbd0] sm:$0xff]
        %v3016 = vld [vmem:[#allocation2 + $0xbd8] sm:$0xff]
        %v3017 = vld [vmem:[#allocation2 + $0xbe0] sm:$0xff]
        %v3018 = vld [vmem:[#allocation2 + $0xbe8] sm:$0xff]
        %v3019 = vld [vmem:[#allocation2 + $0xbf0] sm:$0x1]
        %v3020 = vperm.slane %v3019, 0
        %3021 = vmatpush.msra.mxu0 %v3018
        %3022 = vmatpush.msra.mxu0 %v3017
        %3023 = vmatpush.msra.mxu0 %v3016
        %3024 = vmatpush.msra.mxu0 %v3015
        %3025 = vmatpush.msra.mxu0 %v3014
        %3026 = vmatpush.msra.mxu0 %v3013
        %3027 = vmatpush.msra.mxu0 %v3012
        %3028 = vmatpush.msra.mxu0 %v3011
        %3029 = vmatpush.msra.mxu0 %v3010
        %3030 = vmatpush.msra.mxu0 %v3009
        %3031 = vmatpush.msra.mxu0 %v3008
        %3032 = vmatpush.msra.mxu0 %v3007
        %3033 = vmatpush.msra.mxu0 %v3006
        %3034 = vmatpush.msra.mxu0 %v3005
        %3035 = vmatpush.msra.mxu0 %v3004
        %3036 = vmatpush.msra.mxu0 %v3003
        %3037 = vmatmul.f32.gmra.mxu0 %v2940
        %v3038 = vpop.f32.mrf.mxu0
        %v3039 = vadd.f32 %v3020, %v3038
        %3040 = vmatmul.f32.gmra.mxu0 %v2941
        %v3041 = vpop.f32.mrf.mxu0
        %v3042 = vadd.f32 %v3020, %v3041
        %3043 = vmatmul.f32.gmra.mxu0 %v2942
        %v3044 = vpop.f32.mrf.mxu0
        %v3045 = vadd.f32 %v3020, %v3044
        %3046 = vmatmul.f32.gmra.mxu0 %v2943
        %v3047 = vpop.f32.mrf.mxu0
        %v3048 = vadd.f32 %v3020, %v3047
        %3049 = vmatmul.f32.gmra.mxu0 %v2944
        %v3050 = vpop.f32.mrf.mxu0
        %v3051 = vadd.f32 %v3020, %v3050
        %3052 = vmatmul.f32.gmra.mxu0 %v2945
        %v3053 = vpop.f32.mrf.mxu0
        %v3054 = vadd.f32 %v3020, %v3053
        %3055 = vmatmul.f32.gmra.mxu0 %v2946
        %v3056 = vpop.f32.mrf.mxu0
        %v3057 = vadd.f32 %v3020, %v3056
        %3058 = vdwg.mxu0
        %v3059 = vld [vmem:[#allocation2 + $0xbf8] sm:$0xff]
        %v3060 = vld [vmem:[#allocation2 + $0xc00] sm:$0xff]
        %v3061 = vld [vmem:[#allocation2 + $0xc08] sm:$0xff]
        %v3062 = vld [vmem:[#allocation2 + $0xc10] sm:$0xff]
        %v3063 = vld [vmem:[#allocation2 + $0xc18] sm:$0xff]
        %v3064 = vld [vmem:[#allocation2 + $0xc20] sm:$0xff]
        %v3065 = vld [vmem:[#allocation2 + $0xc28] sm:$0xff]
        %v3066 = vld [vmem:[#allocation2 + $0xc30] sm:$0xff]
        %v3067 = vld [vmem:[#allocation2 + $0xc38] sm:$0xff]
        %v3068 = vld [vmem:[#allocation2 + $0xc40] sm:$0xff]
        %v3069 = vld [vmem:[#allocation2 + $0xc48] sm:$0xff]
        %v3070 = vld [vmem:[#allocation2 + $0xc50] sm:$0xff]
        %v3071 = vld [vmem:[#allocation2 + $0xc58] sm:$0xff]
        %v3072 = vld [vmem:[#allocation2 + $0xc60] sm:$0xff]
        %v3073 = vld [vmem:[#allocation2 + $0xc68] sm:$0xff]
        %v3074 = vld [vmem:[#allocation2 + $0xc70] sm:$0xff]
        %v3075 = vld [vmem:[#allocation2 + $0xc78] sm:$0x1]
        %v3076 = vperm.slane %v3075, 0
        %3077 = vmatpush.msra.mxu0 %v3074
        %3078 = vmatpush.msra.mxu0 %v3073
        %3079 = vmatpush.msra.mxu0 %v3072
        %3080 = vmatpush.msra.mxu0 %v3071
        %3081 = vmatpush.msra.mxu0 %v3070
        %3082 = vmatpush.msra.mxu0 %v3069
        %3083 = vmatpush.msra.mxu0 %v3068
        %3084 = vmatpush.msra.mxu0 %v3067
        %3085 = vmatpush.msra.mxu0 %v3066
        %3086 = vmatpush.msra.mxu0 %v3065
        %3087 = vmatpush.msra.mxu0 %v3064
        %3088 = vmatpush.msra.mxu0 %v3063
        %3089 = vmatpush.msra.mxu0 %v3062
        %3090 = vmatpush.msra.mxu0 %v3061
        %3091 = vmatpush.msra.mxu0 %v3060
        %3092 = vmatpush.msra.mxu0 %v3059
        %3093 = vmatmul.f32.gmra.mxu0 %v2940
        %v3094 = vpop.f32.mrf.mxu0
        %v3095 = vadd.f32 %v3076, %v3094
        %3096 = vmatmul.f32.gmra.mxu0 %v2941
        %v3097 = vpop.f32.mrf.mxu0
        %v3098 = vadd.f32 %v3076, %v3097
        %3099 = vmatmul.f32.gmra.mxu0 %v2942
        %v3100 = vpop.f32.mrf.mxu0
        %v3101 = vadd.f32 %v3076, %v3100
        %3102 = vmatmul.f32.gmra.mxu0 %v2943
        %v3103 = vpop.f32.mrf.mxu0
        %v3104 = vadd.f32 %v3076, %v3103
        %3105 = vmatmul.f32.gmra.mxu0 %v2944
        %v3106 = vpop.f32.mrf.mxu0
        %v3107 = vadd.f32 %v3076, %v3106
        %3108 = vmatmul.f32.gmra.mxu0 %v2945
        %v3109 = vpop.f32.mrf.mxu0
        %v3110 = vadd.f32 %v3076, %v3109
        %3111 = vmatmul.f32.gmra.mxu0 %v2946
        %v3112 = vpop.f32.mrf.mxu0
        %v3113 = vadd.f32 %v3076, %v3112
        %3114 = vdwg.mxu0
        %3115 = vmatpush.xpose.msra.mxu0 0.0
        %3116 = vmatpush.xpose.msra.mxu0 0.0
        %3117 = vmatpush.xpose.msra.mxu0 0.0
        %3118 = vmatpush.xpose.msra.mxu0 0.0
        %3119 = vmatpush.xpose.msra.mxu0 0.0
        %3120 = vmatpush.xpose.msra.mxu0 0.0
        %3121 = vmatpush.xpose.msra.mxu0 0.0
        %3122 = vmatpush.xpose.msra.mxu0 0.0
        %3123 = vmatpush.xpose.msra.mxu0 0.0
        %3124 = vmatpush.xpose.msra.mxu0 %v3057
        %3125 = vmatpush.xpose.msra.mxu0 %v3054
        %3126 = vmatpush.xpose.msra.mxu0 %v3051
        %3127 = vmatpush.xpose.msra.mxu0 %v3048
        %3128 = vmatpush.xpose.msra.mxu0 %v3045
        %3129 = vmatpush.xpose.msra.mxu0 %v3042
        %3130 = vmatpush.xpose.msra.mxu0 %v3039
        %3131 = vmatmul.f32.gmra.mxu0 %v2983
        %v3132 = vpop.f32.mrf.mxu0
        %v3133 = vadd.f32 0.0, %v3132
        %3134 = vmatmul.f32.gmra.mxu0 %v2986
        %v3135 = vpop.f32.mrf.mxu0
        %v3136 = vadd.f32 0.0, %v3135
        %3137 = vmatmul.f32.gmra.mxu0 %v2989
        %v3138 = vpop.f32.mrf.mxu0
        %v3139 = vadd.f32 0.0, %v3138
        %3140 = vmatmul.f32.gmra.mxu0 %v2992
        %v3141 = vpop.f32.mrf.mxu0
        %v3142 = vadd.f32 0.0, %v3141
        %3143 = vmatmul.f32.gmra.mxu0 %v2995
        %v3144 = vpop.f32.mrf.mxu0
        %v3145 = vadd.f32 0.0, %v3144
        %3146 = vmatmul.f32.gmra.mxu0 %v2998
        %v3147 = vpop.f32.mrf.mxu0
        %v3148 = vadd.f32 0.0, %v3147
        %3149 = vmatmul.f32.gmra.mxu0 %v3001
        %v3150 = vpop.f32.mrf.mxu0
        %v3151 = vadd.f32 0.0, %v3150
        %3152 = vdwg.mxu0
        %v3153 = vmul.f32 %v3133, 0.14433756
        %v3154 = vmul.f32 %v3136, 0.14433756
        %v3155 = vmul.f32 %v3139, 0.14433756
        %v3156 = vmul.f32 %v3142, 0.14433756
        %v3157 = vmul.f32 %v3145, 0.14433756
        %v3158 = vmul.f32 %v3148, 0.14433756
        %v3159 = vmul.f32 %v3151, 0.14433756
        %v3160 = vsel %vm1609, %v3153, -inf
        %3161 = vmax.xlane.f32.xlu0 %v3160
        %v3162 = vpop.xlane.xlu0 %3161
        %v3163 = vsel %vm1609, %v3154, -inf
        %3164 = vmax.xlane.f32.xlu0 %v3163
        %v3165 = vpop.xlane.xlu0 %3164
        %v3166 = vsel %vm1609, %v3155, -inf
        %3167 = vmax.xlane.f32.xlu0 %v3166
        %v3168 = vpop.xlane.xlu0 %3167
        %v3169 = vsel %vm1609, %v3156, -inf
        %3170 = vmax.xlane.f32.xlu0 %v3169
        %v3171 = vpop.xlane.xlu0 %3170
        %v3172 = vsel %vm1609, %v3157, -inf
        %3173 = vmax.xlane.f32.xlu0 %v3172
        %v3174 = vpop.xlane.xlu0 %3173
        %v3175 = vsel %vm1609, %v3158, -inf
        %3176 = vmax.xlane.f32.xlu0 %v3175
        %v3177 = vpop.xlane.xlu0 %3176
        %v3178 = vsel %vm2114, %v3159, -inf
        %3179 = vmax.xlane.f32.xlu0 %v3178
        %v3180 = vpop.xlane.xlu0 %3179
        %v3181 = vsub.f32 %v3153, %v3162
        %v3182 = vsub.f32 %v3154, %v3165
        %v3183 = vsub.f32 %v3155, %v3168
        %v3184 = vsub.f32 %v3156, %v3171
        %v3185 = vsub.f32 %v3157, %v3174
        %v3186 = vsub.f32 %v3158, %v3177
        %v3187 = vsub.f32 %v3159, %v3180
        %v3188 = vmul.f32 %v3181, 1.442695
        %v3189 = vpow.pop %v3188
        %v3190 = vmul.f32 %v3182, 1.442695
        %v3191 = vpow.pop %v3190
        %v3192 = vmul.f32 %v3183, 1.442695
        %v3193 = vpow.pop %v3192
        %v3194 = vmul.f32 %v3184, 1.442695
        %v3195 = vpow.pop %v3194
        %v3196 = vmul.f32 %v3185, 1.442695
        %v3197 = vpow.pop %v3196
        %v3198 = vmul.f32 %v3186, 1.442695
        %v3199 = vpow.pop %v3198
        %v3200 = vmul.f32 %v3187, 1.442695
        %v3201 = vpow.pop %v3200
        %v3202 = vsel %vm1609, %v3189, 0.0
        %3203 = vadd.xlane.f32.xlu0 %v3202
        %v3204 = vpop.xlane.xlu0 %3203
        %v3205 = vsel %vm1609, %v3191, 0.0
        %3206 = vadd.xlane.f32.xlu0 %v3205
        %v3207 = vpop.xlane.xlu0 %3206
        %v3208 = vsel %vm1609, %v3193, 0.0
        %3209 = vadd.xlane.f32.xlu0 %v3208
        %v3210 = vpop.xlane.xlu0 %3209
        %v3211 = vsel %vm1609, %v3195, 0.0
        %3212 = vadd.xlane.f32.xlu0 %v3211
        %v3213 = vpop.xlane.xlu0 %3212
        %v3214 = vsel %vm1609, %v3197, 0.0
        %3215 = vadd.xlane.f32.xlu0 %v3214
        %v3216 = vpop.xlane.xlu0 %3215
        %v3217 = vsel %vm1609, %v3199, 0.0
        %3218 = vadd.xlane.f32.xlu0 %v3217
        %v3219 = vpop.xlane.xlu0 %3218
        %v3220 = vsel %vm2114, %v3201, 0.0
        %3221 = vadd.xlane.f32.xlu0 %v3220
        %v3222 = vpop.xlane.xlu0 %3221
        %v3223 = vrcp.pop %v3204
        %v3224 = vrcp.pop %v3207
        %v3225 = vrcp.pop %v3210
        %v3226 = vrcp.pop %v3213
        %v3227 = vrcp.pop %v3216
        %v3228 = vrcp.pop %v3219
        %v3229 = vrcp.pop %v3222
        %v3230 = vmul.f32 %v3189, %v3223
        %v3231 = vmul.f32 %v3191, %v3224
        %v3232 = vmul.f32 %v3193, %v3225
        %v3233 = vmul.f32 %v3195, %v3226
        %v3234 = vmul.f32 %v3197, %v3227
        %v3235 = vmul.f32 %v3199, %v3228
        %v3236 = vmul.f32 %v3201, %v3229
        %v3238 = vsel %vm1609, %v3230, 0
        %v3241 = vsel %vm1609, %v3231, 0
        %v3244 = vsel %vm1609, %v3232, 0
        %v3247 = vsel %vm1609, %v3233, 0
        %v3250 = vsel %vm1609, %v3234, 0
        %v3253 = vsel %vm1609, %v3235, 0
        %v3256 = vsel %vm1609, %v3236, 0
        %v3259 = vsel %vm1624, %v3113, 0
        %3261 = vmatpush.msra.mxu0 0.0
        %3262 = vmatpush.msra.mxu0 0.0
        %3263 = vmatpush.msra.mxu0 0.0
        %3264 = vmatpush.msra.mxu0 0.0
        %3265 = vmatpush.msra.mxu0 0.0
        %3266 = vmatpush.msra.mxu0 0.0
        %3267 = vmatpush.msra.mxu0 0.0
        %3268 = vmatpush.msra.mxu0 0.0
        %3269 = vmatpush.msra.mxu0 0.0
        %3270 = vmatpush.msra.mxu0 %v3259
        %3271 = vmatpush.msra.mxu0 %v3110
        %3272 = vmatpush.msra.mxu0 %v3107
        %3273 = vmatpush.msra.mxu0 %v3104
        %3274 = vmatpush.msra.mxu0 %v3101
        %3275 = vmatpush.msra.mxu0 %v3098
        %3276 = vmatpush.msra.mxu0 %v3095
        %3277 = vmatmul.f32.gmra.mxu0 %v3238
        %v3278 = vpop.f32.mrf.mxu0
        %v3279 = vadd.f32 0.0, %v3278
        %3280 = vmatmul.f32.gmra.mxu0 %v3241
        %v3281 = vpop.f32.mrf.mxu0
        %v3282 = vadd.f32 0.0, %v3281
        %3283 = vmatmul.f32.gmra.mxu0 %v3244
        %v3284 = vpop.f32.mrf.mxu0
        %v3285 = vadd.f32 0.0, %v3284
        %3286 = vmatmul.f32.gmra.mxu0 %v3247
        %v3287 = vpop.f32.mrf.mxu0
        %v3288 = vadd.f32 0.0, %v3287
        %3289 = vmatmul.f32.gmra.mxu0 %v3250
        %v3290 = vpop.f32.mrf.mxu0
        %v3291 = vadd.f32 0.0, %v3290
        %3292 = vmatmul.f32.gmra.mxu0 %v3253
        %v3293 = vpop.f32.mrf.mxu0
        %v3294 = vadd.f32 0.0, %v3293
        %3295 = vmatmul.f32.gmra.mxu0 %v3256
        %v3296 = vpop.f32.mrf.mxu0
        %v3297 = vadd.f32 0.0, %v3296
        %3298 = vdwg.mxu0
        %v3299 = vld [vmem:[#allocation2 + $0xc80] sm:$0xff]
        %v3300 = vld [vmem:[#allocation2 + $0xc88] sm:$0xff]
        %v3301 = vld [vmem:[#allocation2 + $0xc90] sm:$0xff]
        %v3302 = vld [vmem:[#allocation2 + $0xc98] sm:$0xff]
        %v3303 = vld [vmem:[#allocation2 + $0xca0] sm:$0xff]
        %v3304 = vld [vmem:[#allocation2 + $0xca8] sm:$0xff]
        %v3305 = vld [vmem:[#allocation2 + $0xcb0] sm:$0xff]
        %v3306 = vld [vmem:[#allocation2 + $0xcb8] sm:$0xff]
        %v3307 = vld [vmem:[#allocation2 + $0xcc0] sm:$0xff]
        %v3308 = vld [vmem:[#allocation2 + $0xcc8] sm:$0xff]
        %v3309 = vld [vmem:[#allocation2 + $0xcd0] sm:$0xff]
        %v3310 = vld [vmem:[#allocation2 + $0xcd8] sm:$0xff]
        %v3311 = vld [vmem:[#allocation2 + $0xce0] sm:$0xff]
        %v3312 = vld [vmem:[#allocation2 + $0xce8] sm:$0xff]
        %v3313 = vld [vmem:[#allocation2 + $0xcf0] sm:$0xff]
        %v3314 = vld [vmem:[#allocation2 + $0xcf8] sm:$0xff]
        %v3315 = vld [vmem:[#allocation2 + $0xd00] sm:$0x1]
        %v3316 = vperm.slane %v3315, 0
        %3317 = vmatpush.msra.mxu0 %v3314
        %3318 = vmatpush.msra.mxu0 %v3313
        %3319 = vmatpush.msra.mxu0 %v3312
        %3320 = vmatpush.msra.mxu0 %v3311
        %3321 = vmatpush.msra.mxu0 %v3310
        %3322 = vmatpush.msra.mxu0 %v3309
        %3323 = vmatpush.msra.mxu0 %v3308
        %3324 = vmatpush.msra.mxu0 %v3307
        %3325 = vmatpush.msra.mxu0 %v3306
        %3326 = vmatpush.msra.mxu0 %v3305
        %3327 = vmatpush.msra.mxu0 %v3304
        %3328 = vmatpush.msra.mxu0 %v3303
        %3329 = vmatpush.msra.mxu0 %v3302
        %3330 = vmatpush.msra.mxu0 %v3301
        %3331 = vmatpush.msra.mxu0 %v3300
        %3332 = vmatpush.msra.mxu0 %v3299
        %3333 = vmatmul.f32.gmra.mxu0 %v3279
        %v3334 = vpop.f32.mrf.mxu0
        %v3335 = vadd.f32 %v3316, %v3334
        %3336 = vmatmul.f32.gmra.mxu0 %v3282
        %v3337 = vpop.f32.mrf.mxu0
        %v3338 = vadd.f32 %v3316, %v3337
        %3339 = vmatmul.f32.gmra.mxu0 %v3285
        %v3340 = vpop.f32.mrf.mxu0
        %v3341 = vadd.f32 %v3316, %v3340
        %3342 = vmatmul.f32.gmra.mxu0 %v3288
        %v3343 = vpop.f32.mrf.mxu0
        %v3344 = vadd.f32 %v3316, %v3343
        %3345 = vmatmul.f32.gmra.mxu0 %v3291
        %v3346 = vpop.f32.mrf.mxu0
        %v3347 = vadd.f32 %v3316, %v3346
        %3348 = vmatmul.f32.gmra.mxu0 %v3294
        %v3349 = vpop.f32.mrf.mxu0
        %v3350 = vadd.f32 %v3316, %v3349
        %3351 = vmatmul.f32.gmra.mxu0 %v3297
        %v3352 = vpop.f32.mrf.mxu0
        %v3353 = vadd.f32 %v3316, %v3352
        %3354 = vdwg.mxu0
        %v3355 = vsel %vm1609, %v891, 0
        %v3357 = vsel %vm1609, %v892, 0
        %v3359 = vsel %vm1609, %v893, 0
        %v3361 = vsel %vm1609, %v894, 0
        %v3364 = vsel %vm1624, %v3353, 0
        %3366 = vmatpush.msra.mxu0 0.0
        %3367 = vmatpush.msra.mxu0 0.0
        %3368 = vmatpush.msra.mxu0 0.0
        %3369 = vmatpush.msra.mxu0 0.0
        %3370 = vmatpush.msra.mxu0 0.0
        %3371 = vmatpush.msra.mxu0 0.0
        %3372 = vmatpush.msra.mxu0 0.0
        %3373 = vmatpush.msra.mxu0 0.0
        %3374 = vmatpush.msra.mxu0 0.0
        %3375 = vmatpush.msra.mxu0 %v3364
        %3376 = vmatpush.msra.mxu0 %v3350
        %3377 = vmatpush.msra.mxu0 %v3347
        %3378 = vmatpush.msra.mxu0 %v3344
        %3379 = vmatpush.msra.mxu0 %v3341
        %3380 = vmatpush.msra.mxu0 %v3338
        %3381 = vmatpush.msra.mxu0 %v3335
        %3382 = vmatmul.f32.gmra.mxu0 %v3355
        %v3383 = vpop.f32.mrf.mxu0
        %v3384 = vadd.f32 0.0, %v3383
        %3385 = vmatmul.f32.gmra.mxu0 %v3357
        %v3386 = vpop.f32.mrf.mxu0
        %v3387 = vadd.f32 0.0, %v3386
        %3388 = vmatmul.f32.gmra.mxu0 %v3359
        %v3389 = vpop.f32.mrf.mxu0
        %v3390 = vadd.f32 0.0, %v3389
        %3391 = vmatmul.f32.gmra.mxu0 %v3361
        %v3392 = vpop.f32.mrf.mxu0
        %v3393 = vadd.f32 0.0, %v3392
        %3394 = vdwg.mxu0
        %v3395 = vld [vmem:[#allocation2 + $0x1028] sm:$0xff]
        %v3396 = vld [vmem:[#allocation2 + $0x1030] sm:$0xff]
        %v3397 = vld [vmem:[#allocation2 + $0x1038] sm:$0xff]
        %v3398 = vld [vmem:[#allocation2 + $0x1040] sm:$0xff]
        %v3399 = vld [vmem:[#allocation2 + $0x1048] sm:$0xff]
        %v3400 = vld [vmem:[#allocation2 + $0x1050] sm:$0xff]
        %v3401 = vld [vmem:[#allocation2 + $0x1058] sm:$0xff]
        %v3402 = vld [vmem:[#allocation2 + $0x1060] sm:$0xff]
        %v3403 = vld [vmem:[#allocation2 + $0x1068] sm:$0xff]
        %v3404 = vld [vmem:[#allocation2 + $0x1070] sm:$0xff]
        %v3405 = vld [vmem:[#allocation2 + $0x1078] sm:$0xff]
        %v3406 = vld [vmem:[#allocation2 + $0x1080] sm:$0xff]
        %v3407 = vld [vmem:[#allocation2 + $0x1088] sm:$0xff]
        %v3408 = vld [vmem:[#allocation2 + $0x1090] sm:$0xff]
        %v3409 = vld [vmem:[#allocation2 + $0x1098] sm:$0xff]
        %v3410 = vld [vmem:[#allocation2 + $0x10a0] sm:$0xff]
        %3411 = vmatpush.msra.mxu0 %v3410
        %3412 = vmatpush.msra.mxu0 %v3409
        %3413 = vmatpush.msra.mxu0 %v3408
        %3414 = vmatpush.msra.mxu0 %v3407
        %3415 = vmatpush.msra.mxu0 %v3406
        %3416 = vmatpush.msra.mxu0 %v3405
        %3417 = vmatpush.msra.mxu0 %v3404
        %3418 = vmatpush.msra.mxu0 %v3403
        %3419 = vmatpush.msra.mxu0 %v3402
        %3420 = vmatpush.msra.mxu0 %v3401
        %3421 = vmatpush.msra.mxu0 %v3400
        %3422 = vmatpush.msra.mxu0 %v3399
        %3423 = vmatpush.msra.mxu0 %v3398
        %3424 = vmatpush.msra.mxu0 %v3397
        %3425 = vmatpush.msra.mxu0 %v3396
        %3426 = vmatpush.msra.mxu0 %v3395
        %3427 = vmatmul.f32.gmra.mxu0 %v3384
        %v3428 = vpop.f32.mrf.mxu0
        %v3429 = vadd.f32 0.0, %v3428
        %3430 = vmatmul.f32.gmra.mxu0 %v3387
        %v3431 = vpop.f32.mrf.mxu0
        %v3432 = vadd.f32 0.0, %v3431
        %3433 = vmatmul.f32.gmra.mxu0 %v3390
        %v3434 = vpop.f32.mrf.mxu0
        %v3435 = vadd.f32 0.0, %v3434
        %3436 = vmatmul.f32.gmra.mxu0 %v3393
        %v3437 = vpop.f32.mrf.mxu0
        %v3438 = vadd.f32 0.0, %v3437
        %3439 = vdwg.mxu0
        %v3440 = vld [vmem:[#allocation2 + $0x10a8] sm:$0x1]
        %v3441 = vperm.slane %v3440, 0
        %v3442 = vmul.f32 %v3429, %v3441
        %v3443 = vmul.f32 %v3432, %v3441
        %v3444 = vmul.f32 %v3435, %v3441
        %v3445 = vmul.f32 %v3438, %v3441
        %v3446 = vld [vmem:[#allocation2 + $0x10b0] sm:$0x1]
        %v3447 = vperm.slane %v3446, 0
        %v3448 = vadd.f32 %v3442, %v3447
        %v3449 = vadd.f32 %v3443, %v3447
        %v3450 = vadd.f32 %v3444, %v3447
        %v3451 = vadd.f32 %v3445, %v3447
        %v3452 = vld [vmem:[#allocation2 + $0xd08] sm:$0xff]
        %v3453 = vld [vmem:[#allocation2 + $0xd10] sm:$0xff]
        %v3454 = vld [vmem:[#allocation2 + $0xd18] sm:$0xff]
        %v3455 = vld [vmem:[#allocation2 + $0xd20] sm:$0xff]
        %v3456 = vld [vmem:[#allocation2 + $0xd28] sm:$0xff]
        %v3457 = vld [vmem:[#allocation2 + $0xd30] sm:$0xff]
        %v3458 = vld [vmem:[#allocation2 + $0xd38] sm:$0xff]
        %v3459 = vld [vmem:[#allocation2 + $0xd40] sm:$0xff]
        %v3460 = vld [vmem:[#allocation2 + $0xd48] sm:$0xff]
        %v3461 = vld [vmem:[#allocation2 + $0xd50] sm:$0xff]
        %v3462 = vld [vmem:[#allocation2 + $0xd58] sm:$0xff]
        %v3463 = vld [vmem:[#allocation2 + $0xd60] sm:$0xff]
        %v3464 = vld [vmem:[#allocation2 + $0xd68] sm:$0xff]
        %v3465 = vld [vmem:[#allocation2 + $0xd70] sm:$0xff]
        %v3466 = vld [vmem:[#allocation2 + $0xd78] sm:$0xff]
        %v3467 = vld [vmem:[#allocation2 + $0xd80] sm:$0xff]
        %3468 = vmatpush.msra.mxu0 %v3467
        %3469 = vmatpush.msra.mxu0 %v3466
        %3470 = vmatpush.msra.mxu0 %v3465
        %3471 = vmatpush.msra.mxu0 %v3464
        %3472 = vmatpush.msra.mxu0 %v3463
        %3473 = vmatpush.msra.mxu0 %v3462
        %3474 = vmatpush.msra.mxu0 %v3461
        %3475 = vmatpush.msra.mxu0 %v3460
        %3476 = vmatpush.msra.mxu0 %v3459
        %3477 = vmatpush.msra.mxu0 %v3458
        %3478 = vmatpush.msra.mxu0 %v3457
        %3479 = vmatpush.msra.mxu0 %v3456
        %3480 = vmatpush.msra.mxu0 %v3455
        %3481 = vmatpush.msra.mxu0 %v3454
        %3482 = vmatpush.msra.mxu0 %v3453
        %3483 = vmatpush.msra.mxu0 %v3452
        %3484 = vmatmul.f32.gmra.mxu0 %v3335
        %v3485 = vpop.f32.mrf.mxu0
        %v3486 = vadd.f32 0.0, %v3485
        %3487 = vmatmul.f32.gmra.mxu0 %v3338
        %v3488 = vpop.f32.mrf.mxu0
        %v3489 = vadd.f32 0.0, %v3488
        %3490 = vmatmul.f32.gmra.mxu0 %v3341
        %v3491 = vpop.f32.mrf.mxu0
        %v3492 = vadd.f32 0.0, %v3491
        %3493 = vmatmul.f32.gmra.mxu0 %v3344
        %v3494 = vpop.f32.mrf.mxu0
        %v3495 = vadd.f32 0.0, %v3494
        %3496 = vmatmul.f32.gmra.mxu0 %v3347
        %v3497 = vpop.f32.mrf.mxu0
        %v3498 = vadd.f32 0.0, %v3497
        %3499 = vmatmul.f32.gmra.mxu0 %v3350
        %v3500 = vpop.f32.mrf.mxu0
        %v3501 = vadd.f32 0.0, %v3500
        %3502 = vmatmul.f32.gmra.mxu0 %v3353
        %v3503 = vpop.f32.mrf.mxu0
        %v3504 = vadd.f32 0.0, %v3503
        %3505 = vdwg.mxu0
        %v3506 = vld [vmem:[#allocation2 + $0xd88] sm:$0xff]
        %v3507 = vld [vmem:[#allocation2 + $0xd90] sm:$0xff]
        %v3508 = vld [vmem:[#allocation2 + $0xd98] sm:$0xff]
        %v3509 = vld [vmem:[#allocation2 + $0xda0] sm:$0xff]
        %v3510 = vld [vmem:[#allocation2 + $0xda8] sm:$0xff]
        %v3511 = vld [vmem:[#allocation2 + $0xdb0] sm:$0xff]
        %v3512 = vld [vmem:[#allocation2 + $0xdb8] sm:$0xff]
        %v3513 = vld [vmem:[#allocation2 + $0xdc0] sm:$0xff]
        %v3514 = vld [vmem:[#allocation2 + $0xdc8] sm:$0xff]
        %v3515 = vld [vmem:[#allocation2 + $0xdd0] sm:$0xff]
        %v3516 = vld [vmem:[#allocation2 + $0xdd8] sm:$0xff]
        %v3517 = vld [vmem:[#allocation2 + $0xde0] sm:$0xff]
        %v3518 = vld [vmem:[#allocation2 + $0xde8] sm:$0xff]
        %v3519 = vld [vmem:[#allocation2 + $0xdf0] sm:$0xff]
        %v3520 = vld [vmem:[#allocation2 + $0xdf8] sm:$0xff]
        %v3521 = vld [vmem:[#allocation2 + $0xe00] sm:$0xff]
        %3522 = vmatpush.msra.mxu0 %v3521
        %3523 = vmatpush.msra.mxu0 %v3520
        %3524 = vmatpush.msra.mxu0 %v3519
        %3525 = vmatpush.msra.mxu0 %v3518
        %3526 = vmatpush.msra.mxu0 %v3517
        %3527 = vmatpush.msra.mxu0 %v3516
        %3528 = vmatpush.msra.mxu0 %v3515
        %3529 = vmatpush.msra.mxu0 %v3514
        %3530 = vmatpush.msra.mxu0 %v3513
        %3531 = vmatpush.msra.mxu0 %v3512
        %3532 = vmatpush.msra.mxu0 %v3511
        %3533 = vmatpush.msra.mxu0 %v3510
        %3534 = vmatpush.msra.mxu0 %v3509
        %3535 = vmatpush.msra.mxu0 %v3508
        %3536 = vmatpush.msra.mxu0 %v3507
        %3537 = vmatpush.msra.mxu0 %v3506
        %3538 = vmatmul.f32.gmra.mxu0 %v3335
        %v3539 = vpop.f32.mrf.mxu0
        %v3540 = vadd.f32 0.0, %v3539
        %3541 = vmatmul.f32.gmra.mxu0 %v3338
        %v3542 = vpop.f32.mrf.mxu0
        %v3543 = vadd.f32 0.0, %v3542
        %3544 = vmatmul.f32.gmra.mxu0 %v3341
        %v3545 = vpop.f32.mrf.mxu0
        %v3546 = vadd.f32 0.0, %v3545
        %3547 = vmatmul.f32.gmra.mxu0 %v3344
        %v3548 = vpop.f32.mrf.mxu0
        %v3549 = vadd.f32 0.0, %v3548
        %3550 = vmatmul.f32.gmra.mxu0 %v3347
        %v3551 = vpop.f32.mrf.mxu0
        %v3552 = vadd.f32 0.0, %v3551
        %3553 = vmatmul.f32.gmra.mxu0 %v3350
        %v3554 = vpop.f32.mrf.mxu0
        %v3555 = vadd.f32 0.0, %v3554
        %3556 = vmatmul.f32.gmra.mxu0 %v3353
        %v3557 = vpop.f32.mrf.mxu0
        %v3558 = vadd.f32 0.0, %v3557
        %3559 = vdwg.mxu0
        %v3561 = vsel %vm1624, %v3558, 0
        %3563 = vmatpush.msra.mxu0 0.0
        %3564 = vmatpush.msra.mxu0 0.0
        %3565 = vmatpush.msra.mxu0 0.0
        %3566 = vmatpush.msra.mxu0 0.0
        %3567 = vmatpush.msra.mxu0 0.0
        %3568 = vmatpush.msra.mxu0 0.0
        %3569 = vmatpush.msra.mxu0 0.0
        %3570 = vmatpush.msra.mxu0 0.0
        %3571 = vmatpush.msra.mxu0 0.0
        %3572 = vmatpush.msra.mxu0 %v3561
        %3573 = vmatpush.msra.mxu0 %v3555
        %3574 = vmatpush.msra.mxu0 %v3552
        %3575 = vmatpush.msra.mxu0 %v3549
        %3576 = vmatpush.msra.mxu0 %v3546
        %3577 = vmatpush.msra.mxu0 %v3543
        %3578 = vmatpush.msra.mxu0 %v3540
        %3579 = vmatmul.f32.gmra.mxu0 %v3355
        %v3580 = vpop.f32.mrf.mxu0
        %v3581 = vadd.f32 0.0, %v3580
        %3582 = vmatmul.f32.gmra.mxu0 %v3357
        %v3583 = vpop.f32.mrf.mxu0
        %v3584 = vadd.f32 0.0, %v3583
        %3585 = vmatmul.f32.gmra.mxu0 %v3359
        %v3586 = vpop.f32.mrf.mxu0
        %v3587 = vadd.f32 0.0, %v3586
        %3588 = vmatmul.f32.gmra.mxu0 %v3361
        %v3589 = vpop.f32.mrf.mxu0
        %v3590 = vadd.f32 0.0, %v3589
        %3591 = vdwg.mxu0
        %v3592 = vsel %vm1609, %v1125, 0
        %v3594 = vsel %vm1609, %v1126, 0
        %v3596 = vsel %vm1609, %v1127, 0
        %v3598 = vsel %vm1609, %v1128, 0
        %v3601 = vsel %vm1624, %v3504, 0
        %3603 = vmatpush.msra.mxu0 0.0
        %3604 = vmatpush.msra.mxu0 0.0
        %3605 = vmatpush.msra.mxu0 0.0
        %3606 = vmatpush.msra.mxu0 0.0
        %3607 = vmatpush.msra.mxu0 0.0
        %3608 = vmatpush.msra.mxu0 0.0
        %3609 = vmatpush.msra.mxu0 0.0
        %3610 = vmatpush.msra.mxu0 0.0
        %3611 = vmatpush.msra.mxu0 0.0
        %3612 = vmatpush.msra.mxu0 %v3601
        %3613 = vmatpush.msra.mxu0 %v3501
        %3614 = vmatpush.msra.mxu0 %v3498
        %3615 = vmatpush.msra.mxu0 %v3495
        %3616 = vmatpush.msra.mxu0 %v3492
        %3617 = vmatpush.msra.mxu0 %v3489
        %3618 = vmatpush.msra.mxu0 %v3486
        %3619 = vmatmul.f32.gmra.mxu0 %v3592
        %v3620 = vpop.f32.mrf.mxu0
        %v3621 = vadd.f32 %v3581, %v3620
        %3622 = vmatmul.f32.gmra.mxu0 %v3594
        %v3623 = vpop.f32.mrf.mxu0
        %v3624 = vadd.f32 %v3584, %v3623
        %3625 = vmatmul.f32.gmra.mxu0 %v3596
        %v3626 = vpop.f32.mrf.mxu0
        %v3627 = vadd.f32 %v3587, %v3626
        %3628 = vmatmul.f32.gmra.mxu0 %v3598
        %v3629 = vpop.f32.mrf.mxu0
        %v3630 = vadd.f32 %v3590, %v3629
        %3631 = vdwg.mxu0
        %v3632 = vld [vmem:[#allocation2 + $0xe08] sm:$0xff]
        %v3633 = vld [vmem:[#allocation2 + $0xe10] sm:$0xff]
        %v3634 = vld [vmem:[#allocation2 + $0xe18] sm:$0xff]
        %v3635 = vld [vmem:[#allocation2 + $0xe20] sm:$0xff]
        %v3636 = vld [vmem:[#allocation2 + $0xe28] sm:$0xff]
        %v3637 = vld [vmem:[#allocation2 + $0xe30] sm:$0xff]
        %v3638 = vld [vmem:[#allocation2 + $0xe38] sm:$0xff]
        %v3639 = vld [vmem:[#allocation2 + $0xe40] sm:$0xff]
        %v3640 = vld [vmem:[#allocation2 + $0xe48] sm:$0xff]
        %v3641 = vld [vmem:[#allocation2 + $0xe50] sm:$0xff]
        %v3642 = vld [vmem:[#allocation2 + $0xe58] sm:$0xff]
        %v3643 = vld [vmem:[#allocation2 + $0xe60] sm:$0xff]
        %v3644 = vld [vmem:[#allocation2 + $0xe68] sm:$0xff]
        %v3645 = vld [vmem:[#allocation2 + $0xe70] sm:$0xff]
        %v3646 = vld [vmem:[#allocation2 + $0xe78] sm:$0xff]
        %v3647 = vld [vmem:[#allocation2 + $0xe80] sm:$0xff]
        %3648 = vmatpush.msra.mxu0 %v3647
        %3649 = vmatpush.msra.mxu0 %v3646
        %3650 = vmatpush.msra.mxu0 %v3645
        %3651 = vmatpush.msra.mxu0 %v3644
        %3652 = vmatpush.msra.mxu0 %v3643
        %3653 = vmatpush.msra.mxu0 %v3642
        %3654 = vmatpush.msra.mxu0 %v3641
        %3655 = vmatpush.msra.mxu0 %v3640
        %3656 = vmatpush.msra.mxu0 %v3639
        %3657 = vmatpush.msra.mxu0 %v3638
        %3658 = vmatpush.msra.mxu0 %v3637
        %3659 = vmatpush.msra.mxu0 %v3636
        %3660 = vmatpush.msra.mxu0 %v3635
        %3661 = vmatpush.msra.mxu0 %v3634
        %3662 = vmatpush.msra.mxu0 %v3633
        %3663 = vmatpush.msra.mxu0 %v3632
        %3664 = vmatmul.f32.gmra.mxu0 %v3335
        %v3665 = vpop.f32.mrf.mxu0
        %v3666 = vadd.f32 0.0, %v3665
        %3667 = vmatmul.f32.gmra.mxu0 %v3338
        %v3668 = vpop.f32.mrf.mxu0
        %v3669 = vadd.f32 0.0, %v3668
        %3670 = vmatmul.f32.gmra.mxu0 %v3341
        %v3671 = vpop.f32.mrf.mxu0
        %v3672 = vadd.f32 0.0, %v3671
        %3673 = vmatmul.f32.gmra.mxu0 %v3344
        %v3674 = vpop.f32.mrf.mxu0
        %v3675 = vadd.f32 0.0, %v3674
        %3676 = vmatmul.f32.gmra.mxu0 %v3347
        %v3677 = vpop.f32.mrf.mxu0
        %v3678 = vadd.f32 0.0, %v3677
        %3679 = vmatmul.f32.gmra.mxu0 %v3350
        %v3680 = vpop.f32.mrf.mxu0
        %v3681 = vadd.f32 0.0, %v3680
        %3682 = vmatmul.f32.gmra.mxu0 %v3353
        %v3683 = vpop.f32.mrf.mxu0
        %v3684 = vadd.f32 0.0, %v3683
        %3685 = vdwg.mxu0
        %v3686 = vsel %vm1609, %v1400, 0
        %v3688 = vsel %vm1609, %v1401, 0
        %v3690 = vsel %vm1609, %v1402, 0
        %v3692 = vsel %vm1609, %v1403, 0
        %v3695 = vsel %vm1624, %v3684, 0
        %3697 = vmatpush.msra.mxu0 0.0
        %3698 = vmatpush.msra.mxu0 0.0
        %3699 = vmatpush.msra.mxu0 0.0
        %3700 = vmatpush.msra.mxu0 0.0
        %3701 = vmatpush.msra.mxu0 0.0
        %3702 = vmatpush.msra.mxu0 0.0
        %3703 = vmatpush.msra.mxu0 0.0
        %3704 = vmatpush.msra.mxu0 0.0
        %3705 = vmatpush.msra.mxu0 0.0
        %3706 = vmatpush.msra.mxu0 %v3695
        %3707 = vmatpush.msra.mxu0 %v3681
        %3708 = vmatpush.msra.mxu0 %v3678
        %3709 = vmatpush.msra.mxu0 %v3675
        %3710 = vmatpush.msra.mxu0 %v3672
        %3711 = vmatpush.msra.mxu0 %v3669
        %3712 = vmatpush.msra.mxu0 %v3666
        %3713 = vmatmul.f32.gmra.mxu0 %v3686
        %v3714 = vpop.f32.mrf.mxu0
        %v3715 = vadd.f32 0.0, %v3714
        %3716 = vmatmul.f32.gmra.mxu0 %v3688
        %v3717 = vpop.f32.mrf.mxu0
        %v3718 = vadd.f32 0.0, %v3717
        %3719 = vmatmul.f32.gmra.mxu0 %v3690
        %v3720 = vpop.f32.mrf.mxu0
        %v3721 = vadd.f32 0.0, %v3720
        %3722 = vmatmul.f32.gmra.mxu0 %v3692
        %v3723 = vpop.f32.mrf.mxu0
        %v3724 = vadd.f32 0.0, %v3723
        %3725 = vdwg.mxu0
        %v3726 = vadd.f32 %v3621, %v3715
        %v3727 = vadd.f32 %v3624, %v3718
        %v3728 = vadd.f32 %v3627, %v3721
        %v3729 = vadd.f32 %v3630, %v3724
        %v3730 = vld [vmem:[#allocation2 + $0xe88] sm:$0x1]
        %v3731 = vperm.slane %v3730, 0
        %v3732 = vmul.f32 %v3726, %v3731
        %v3733 = vmul.f32 %v3727, %v3731
        %v3734 = vmul.f32 %v3728, %v3731
        %v3735 = vmul.f32 %v3729, %v3731
        %v3736 = vld [vmem:[#allocation2 + $0xe90] sm:$0x1]
        %v3737 = vperm.slane %v3736, 0
        %v3738 = vadd.f32 %v3732, %v3737
        %v3739 = vadd.f32 %v3733, %v3737
        %v3740 = vadd.f32 %v3734, %v3737
        %v3741 = vadd.f32 %v3735, %v3737
        %v3742 = vmax.f32 %v3738, 0.0
        %v3743 = vmax.f32 %v3739, 0.0
        %v3744 = vmax.f32 %v3740, 0.0
        %v3745 = vmax.f32 %v3741, 0.0
        %v3746 = vld [vmem:[#allocation2 + $0xe98] sm:$0xff]
        %v3747 = vld [vmem:[#allocation2 + $0xea0] sm:$0xff]
        %v3748 = vld [vmem:[#allocation2 + $0xea8] sm:$0xff]
        %v3749 = vld [vmem:[#allocation2 + $0xeb0] sm:$0xff]
        %v3750 = vld [vmem:[#allocation2 + $0xeb8] sm:$0xff]
        %v3751 = vld [vmem:[#allocation2 + $0xec0] sm:$0xff]
        %v3752 = vld [vmem:[#allocation2 + $0xec8] sm:$0xff]
        %v3753 = vld [vmem:[#allocation2 + $0xed0] sm:$0xff]
        %v3754 = vld [vmem:[#allocation2 + $0xed8] sm:$0xff]
        %v3755 = vld [vmem:[#allocation2 + $0xee0] sm:$0xff]
        %v3756 = vld [vmem:[#allocation2 + $0xee8] sm:$0xff]
        %v3757 = vld [vmem:[#allocation2 + $0xef0] sm:$0xff]
        %v3758 = vld [vmem:[#allocation2 + $0xef8] sm:$0xff]
        %v3759 = vld [vmem:[#allocation2 + $0xf00] sm:$0xff]
        %v3760 = vld [vmem:[#allocation2 + $0xf08] sm:$0xff]
        %v3761 = vld [vmem:[#allocation2 + $0xf10] sm:$0xff]
        %3762 = vmatpush.msra.mxu0 %v3761
        %3763 = vmatpush.msra.mxu0 %v3760
        %3764 = vmatpush.msra.mxu0 %v3759
        %3765 = vmatpush.msra.mxu0 %v3758
        %3766 = vmatpush.msra.mxu0 %v3757
        %3767 = vmatpush.msra.mxu0 %v3756
        %3768 = vmatpush.msra.mxu0 %v3755
        %3769 = vmatpush.msra.mxu0 %v3754
        %3770 = vmatpush.msra.mxu0 %v3753
        %3771 = vmatpush.msra.mxu0 %v3752
        %3772 = vmatpush.msra.mxu0 %v3751
        %3773 = vmatpush.msra.mxu0 %v3750
        %3774 = vmatpush.msra.mxu0 %v3749
        %3775 = vmatpush.msra.mxu0 %v3748
        %3776 = vmatpush.msra.mxu0 %v3747
        %3777 = vmatpush.msra.mxu0 %v3746
        %3778 = vmatmul.f32.gmra.mxu0 %v3742
        %v3779 = vpop.f32.mrf.mxu0
        %v3780 = vadd.f32 0.0, %v3779
        %3781 = vmatmul.f32.gmra.mxu0 %v3743
        %v3782 = vpop.f32.mrf.mxu0
        %v3783 = vadd.f32 0.0, %v3782
        %3784 = vmatmul.f32.gmra.mxu0 %v3744
        %v3785 = vpop.f32.mrf.mxu0
        %v3786 = vadd.f32 0.0, %v3785
        %3787 = vmatmul.f32.gmra.mxu0 %v3745
        %v3788 = vpop.f32.mrf.mxu0
        %v3789 = vadd.f32 0.0, %v3788
        %3790 = vdwg.mxu0
        %v3791 = vld [vmem:[#allocation2 + $0xf18] sm:$0xff]
        %v3792 = vld [vmem:[#allocation2 + $0xf20] sm:$0xff]
        %v3793 = vld [vmem:[#allocation2 + $0xf28] sm:$0xff]
        %v3794 = vld [vmem:[#allocation2 + $0xf30] sm:$0xff]
        %v3795 = vld [vmem:[#allocation2 + $0xf38] sm:$0xff]
        %v3796 = vld [vmem:[#allocation2 + $0xf40] sm:$0xff]
        %v3797 = vld [vmem:[#allocation2 + $0xf48] sm:$0xff]
        %v3798 = vld [vmem:[#allocation2 + $0xf50] sm:$0xff]
        %v3799 = vld [vmem:[#allocation2 + $0xf58] sm:$0xff]
        %v3800 = vld [vmem:[#allocation2 + $0xf60] sm:$0xff]
        %v3801 = vld [vmem:[#allocation2 + $0xf68] sm:$0xff]
        %v3802 = vld [vmem:[#allocation2 + $0xf70] sm:$0xff]
        %v3803 = vld [vmem:[#allocation2 + $0xf78] sm:$0xff]
        %v3804 = vld [vmem:[#allocation2 + $0xf80] sm:$0xff]
        %v3805 = vld [vmem:[#allocation2 + $0xf88] sm:$0xff]
        %v3806 = vld [vmem:[#allocation2 + $0xf90] sm:$0xff]
        %3807 = vmatpush.msra.mxu0 %v3806
        %3808 = vmatpush.msra.mxu0 %v3805
        %3809 = vmatpush.msra.mxu0 %v3804
        %3810 = vmatpush.msra.mxu0 %v3803
        %3811 = vmatpush.msra.mxu0 %v3802
        %3812 = vmatpush.msra.mxu0 %v3801
        %3813 = vmatpush.msra.mxu0 %v3800
        %3814 = vmatpush.msra.mxu0 %v3799
        %3815 = vmatpush.msra.mxu0 %v3798
        %3816 = vmatpush.msra.mxu0 %v3797
        %3817 = vmatpush.msra.mxu0 %v3796
        %3818 = vmatpush.msra.mxu0 %v3795
        %3819 = vmatpush.msra.mxu0 %v3794
        %3820 = vmatpush.msra.mxu0 %v3793
        %3821 = vmatpush.msra.mxu0 %v3792
        %3822 = vmatpush.msra.mxu0 %v3791
        %3823 = vmatmul.f32.gmra.mxu0 %v3742
        %v3824 = vpop.f32.mrf.mxu0
        %v3825 = vadd.f32 0.0, %v3824
        %3826 = vmatmul.f32.gmra.mxu0 %v3743
        %v3827 = vpop.f32.mrf.mxu0
        %v3828 = vadd.f32 0.0, %v3827
        %3829 = vmatmul.f32.gmra.mxu0 %v3744
        %v3830 = vpop.f32.mrf.mxu0
        %v3831 = vadd.f32 0.0, %v3830
        %3832 = vmatmul.f32.gmra.mxu0 %v3745
        %v3833 = vpop.f32.mrf.mxu0
        %v3834 = vadd.f32 0.0, %v3833
        %3835 = vdwg.mxu0
        %vm3836 = vcmask 211968
        %v3837 = vsel %vm3836, %v409, 0
        %v3839 = vsel %vm3836, %v410, 0
        %v3841 = vsel %vm3836, %v411, 0
        %v3843 = vsel %vm3836, %v412, 0
        %vm3845 = vcmask 1041408
        %v3847 = vsel %vm3845, %v3834, 0
        %3849 = vmatpush.msra.mxu0 0.0
        %3850 = vmatpush.msra.mxu0 0.0
        %3851 = vmatpush.msra.mxu0 0.0
        %3852 = vmatpush.msra.mxu0 0.0
        %3853 = vmatpush.msra.mxu0 0.0
        %3854 = vmatpush.msra.mxu0 0.0
        %3855 = vmatpush.msra.mxu0 0.0
        %3856 = vmatpush.msra.mxu0 0.0
        %3857 = vmatpush.msra.mxu0 0.0
        %3858 = vmatpush.msra.mxu0 0.0
        %3859 = vmatpush.msra.mxu0 0.0
        %3860 = vmatpush.msra.mxu0 0.0
        %3861 = vmatpush.msra.mxu0 %v3847
        %3862 = vmatpush.msra.mxu0 %v3831
        %3863 = vmatpush.msra.mxu0 %v3828
        %3864 = vmatpush.msra.mxu0 %v3825
        %3865 = vmatmul.f32.gmra.mxu0 %v3837
        %v3866 = vpop.f32.mrf.mxu0
        %v3867 = vadd.f32 0.0, %v3866
        %3868 = vmatmul.f32.gmra.mxu0 %v3839
        %v3869 = vpop.f32.mrf.mxu0
        %v3870 = vadd.f32 0.0, %v3869
        %3871 = vmatmul.f32.gmra.mxu0 %v3841
        %v3872 = vpop.f32.mrf.mxu0
        %v3873 = vadd.f32 0.0, %v3872
        %3874 = vmatmul.f32.gmra.mxu0 %v3843
        %v3875 = vpop.f32.mrf.mxu0
        %v3876 = vadd.f32 0.0, %v3875
        %3877 = vdwg.mxu0
        %v3878 = vsel %vm3836, %v298, 0
        %v3880 = vsel %vm3836, %v299, 0
        %v3882 = vsel %vm3836, %v300, 0
        %v3884 = vsel %vm3836, %v301, 0
        %v3887 = vsel %vm3845, %v3789, 0
        %3889 = vmatpush.msra.mxu0 0.0
        %3890 = vmatpush.msra.mxu0 0.0
        %3891 = vmatpush.msra.mxu0 0.0
        %3892 = vmatpush.msra.mxu0 0.0
        %3893 = vmatpush.msra.mxu0 0.0
        %3894 = vmatpush.msra.mxu0 0.0
        %3895 = vmatpush.msra.mxu0 0.0
        %3896 = vmatpush.msra.mxu0 0.0
        %3897 = vmatpush.msra.mxu0 0.0
        %3898 = vmatpush.msra.mxu0 0.0
        %3899 = vmatpush.msra.mxu0 0.0
        %3900 = vmatpush.msra.mxu0 0.0
        %3901 = vmatpush.msra.mxu0 %v3887
        %3902 = vmatpush.msra.mxu0 %v3786
        %3903 = vmatpush.msra.mxu0 %v3783
        %3904 = vmatpush.msra.mxu0 %v3780
        %3905 = vmatmul.f32.gmra.mxu0 %v3878
        %v3906 = vpop.f32.mrf.mxu0
        %v3907 = vadd.f32 %v3867, %v3906
        %3908 = vmatmul.f32.gmra.mxu0 %v3880
        %v3909 = vpop.f32.mrf.mxu0
        %v3910 = vadd.f32 %v3870, %v3909
        %3911 = vmatmul.f32.gmra.mxu0 %v3882
        %v3912 = vpop.f32.mrf.mxu0
        %v3913 = vadd.f32 %v3873, %v3912
        %3914 = vmatmul.f32.gmra.mxu0 %v3884
        %v3915 = vpop.f32.mrf.mxu0
        %v3916 = vadd.f32 %v3876, %v3915
        %3917 = vdwg.mxu0
        %v3918 = vld [vmem:[#allocation2 + $0xf98] sm:$0xff]
        %v3919 = vld [vmem:[#allocation2 + $0xfa0] sm:$0xff]
        %v3920 = vld [vmem:[#allocation2 + $0xfa8] sm:$0xff]
        %v3921 = vld [vmem:[#allocation2 + $0xfb0] sm:$0xff]
        %v3922 = vld [vmem:[#allocation2 + $0xfb8] sm:$0xff]
        %v3923 = vld [vmem:[#allocation2 + $0xfc0] sm:$0xff]
        %v3924 = vld [vmem:[#allocation2 + $0xfc8] sm:$0xff]
        %v3925 = vld [vmem:[#allocation2 + $0xfd0] sm:$0xff]
        %v3926 = vld [vmem:[#allocation2 + $0xfd8] sm:$0xff]
        %v3927 = vld [vmem:[#allocation2 + $0xfe0] sm:$0xff]
        %v3928 = vld [vmem:[#allocation2 + $0xfe8] sm:$0xff]
        %v3929 = vld [vmem:[#allocation2 + $0xff0] sm:$0xff]
        %v3930 = vld [vmem:[#allocation2 + $0xff8] sm:$0xff]
        %v3931 = vld [vmem:[#allocation2 + $0x1000] sm:$0xff]
        %v3932 = vld [vmem:[#allocation2 + $0x1008] sm:$0xff]
        %v3933 = vld [vmem:[#allocation2 + $0x1010] sm:$0xff]
        %3934 = vmatpush.msra.mxu0 %v3933
        %3935 = vmatpush.msra.mxu0 %v3932
        %3936 = vmatpush.msra.mxu0 %v3931
        %3937 = vmatpush.msra.mxu0 %v3930
        %3938 = vmatpush.msra.mxu0 %v3929
        %3939 = vmatpush.msra.mxu0 %v3928
        %3940 = vmatpush.msra.mxu0 %v3927
        %3941 = vmatpush.msra.mxu0 %v3926
        %3942 = vmatpush.msra.mxu0 %v3925
        %3943 = vmatpush.msra.mxu0 %v3924
        %3944 = vmatpush.msra.mxu0 %v3923
        %3945 = vmatpush.msra.mxu0 %v3922
        %3946 = vmatpush.msra.mxu0 %v3921
        %3947 = vmatpush.msra.mxu0 %v3920
        %3948 = vmatpush.msra.mxu0 %v3919
        %3949 = vmatpush.msra.mxu0 %v3918
        %3950 = vmatmul.f32.gmra.mxu0 %v3742
        %v3951 = vpop.f32.mrf.mxu0
        %v3952 = vadd.f32 0.0, %v3951
        %3953 = vmatmul.f32.gmra.mxu0 %v3743
        %v3954 = vpop.f32.mrf.mxu0
        %v3955 = vadd.f32 0.0, %v3954
        %3956 = vmatmul.f32.gmra.mxu0 %v3744
        %v3957 = vpop.f32.mrf.mxu0
        %v3958 = vadd.f32 0.0, %v3957
        %3959 = vmatmul.f32.gmra.mxu0 %v3745
        %v3960 = vpop.f32.mrf.mxu0
        %v3961 = vadd.f32 0.0, %v3960
        %3962 = vdwg.mxu0
        %v3963 = vsel %vm3836, %v731, 0
        %v3965 = vsel %vm3836, %v732, 0
        %v3967 = vsel %vm3836, %v733, 0
        %v3969 = vsel %vm3836, %v734, 0
        %v3972 = vsel %vm3845, %v3961, 0
        %3974 = vmatpush.msra.mxu0 0.0
        %3975 = vmatpush.msra.mxu0 0.0
        %3976 = vmatpush.msra.mxu0 0.0
        %3977 = vmatpush.msra.mxu0 0.0
        %3978 = vmatpush.msra.mxu0 0.0
        %3979 = vmatpush.msra.mxu0 0.0
        %3980 = vmatpush.msra.mxu0 0.0
        %3981 = vmatpush.msra.mxu0 0.0
        %3982 = vmatpush.msra.mxu0 0.0
        %3983 = vmatpush.msra.mxu0 0.0
        %3984 = vmatpush.msra.mxu0 0.0
        %3985 = vmatpush.msra.mxu0 0.0
        %3986 = vmatpush.msra.mxu0 %v3972
        %3987 = vmatpush.msra.mxu0 %v3958
        %3988 = vmatpush.msra.mxu0 %v3955
        %3989 = vmatpush.msra.mxu0 %v3952
        %3990 = vmatmul.f32.gmra.mxu0 %v3963
        %v3991 = vpop.f32.mrf.mxu0
        %v3992 = vadd.f32 0.0, %v3991
        %3993 = vmatmul.f32.gmra.mxu0 %v3965
        %v3994 = vpop.f32.mrf.mxu0
        %v3995 = vadd.f32 0.0, %v3994
        %3996 = vmatmul.f32.gmra.mxu0 %v3967
        %v3997 = vpop.f32.mrf.mxu0
        %v3998 = vadd.f32 0.0, %v3997
        %3999 = vmatmul.f32.gmra.mxu0 %v3969
        %v4000 = vpop.f32.mrf.mxu0
        %v4001 = vadd.f32 0.0, %v4000
        %4002 = vdwg.mxu0
        %v4003 = vadd.f32 %v3907, %v3992
        %v4004 = vadd.f32 %v3910, %v3995
        %v4005 = vadd.f32 %v3913, %v3998
        %v4006 = vadd.f32 %v3916, %v4001
        %v4007 = vld [vmem:[#allocation2 + $0x1018] sm:$0x1]
        %v4008 = vperm.slane %v4007, 0
        %v4009 = vmul.f32 %v4003, %v4008
        %v4010 = vmul.f32 %v4004, %v4008
        %v4011 = vmul.f32 %v4005, %v4008
        %v4012 = vmul.f32 %v4006, %v4008
        %v4013 = vld [vmem:[#allocation2 + $0x1020] sm:$0x1]
        %v4014 = vperm.slane %v4013, 0
        %v4015 = vadd.f32 %v4009, %v4014
        %v4016 = vadd.f32 %v4010, %v4014
        %v4017 = vadd.f32 %v4011, %v4014
        %v4018 = vadd.f32 %v4012, %v4014
        %v4019 = vadd.f32 %v4015, %v3448
        %v4020 = vadd.f32 %v4016, %v3449
        %v4021 = vadd.f32 %v4017, %v3450
        %v4022 = vadd.f32 %v4018, %v3451
        %v4023 = vmax.f32 %v4019, 0.0
        %v4024 = vmax.f32 %v4020, 0.0
        %v4025 = vmax.f32 %v4021, 0.0
        %v4026 = vmax.f32 %v4022, 0.0
        %v4027 = vld [vmem:[#allocation2 + $0x10b8] sm:$0xff]
        %v4028 = vld [vmem:[#allocation2 + $0x10c0] sm:$0xff]
        %v4029 = vld [vmem:[#allocation2 + $0x10c8] sm:$0xff]
        %v4030 = vld [vmem:[#allocation2 + $0x10d0] sm:$0x3]
        %v4031 = vadd.f32 %v4023, %v4027
        %v4032 = vadd.f32 %v4024, %v4028
        %v4033 = vadd.f32 %v4025, %v4029
        %v4034 = vadd.f32 %v4026, %v4030
        %v4035 = vld [vmem:[#allocation2 + $0x10d8] sm:$0xff]
        %v4036 = vld [vmem:[#allocation2 + $0x10e0] sm:$0xff]
        %v4037 = vld [vmem:[#allocation2 + $0x10e8] sm:$0xff]
        %v4038 = vld [vmem:[#allocation2 + $0x10f0] sm:$0xff]
        %v4039 = vld [vmem:[#allocation2 + $0x10f8] sm:$0xff]
        %v4040 = vld [vmem:[#allocation2 + $0x1100] sm:$0xff]
        %v4041 = vld [vmem:[#allocation2 + $0x1108] sm:$0xff]
        %v4042 = vld [vmem:[#allocation2 + $0x1110] sm:$0xff]
        %v4043 = vld [vmem:[#allocation2 + $0x1118] sm:$0xff]
        %v4044 = vld [vmem:[#allocation2 + $0x1120] sm:$0xff]
        %v4045 = vld [vmem:[#allocation2 + $0x1128] sm:$0xff]
        %v4046 = vld [vmem:[#allocation2 + $0x1130] sm:$0xff]
        %v4047 = vld [vmem:[#allocation2 + $0x1138] sm:$0xff]
        %v4048 = vld [vmem:[#allocation2 + $0x1140] sm:$0xff]
        %v4049 = vld [vmem:[#allocation2 + $0x1148] sm:$0xff]
        %v4050 = vld [vmem:[#allocation2 + $0x1150] sm:$0xff]
        %v4051 = vld [vmem:[#allocation2 + $0x1158] sm:$0x1]
        %v4052 = vperm.slane %v4051, 0
        %4053 = vmatpush.msra.mxu0 %v4050
        %4054 = vmatpush.msra.mxu0 %v4049
        %4055 = vmatpush.msra.mxu0 %v4048
        %4056 = vmatpush.msra.mxu0 %v4047
        %4057 = vmatpush.msra.mxu0 %v4046
        %4058 = vmatpush.msra.mxu0 %v4045
        %4059 = vmatpush.msra.mxu0 %v4044
        %4060 = vmatpush.msra.mxu0 %v4043
        %4061 = vmatpush.msra.mxu0 %v4042
        %4062 = vmatpush.msra.mxu0 %v4041
        %4063 = vmatpush.msra.mxu0 %v4040
        %4064 = vmatpush.msra.mxu0 %v4039
        %4065 = vmatpush.msra.mxu0 %v4038
        %4066 = vmatpush.msra.mxu0 %v4037
        %4067 = vmatpush.msra.mxu0 %v4036
        %4068 = vmatpush.msra.mxu0 %v4035
        %4069 = vmatmul.f32.gmra.mxu0 %v4031
        %v4070 = vpop.f32.mrf.mxu0
        %v4071 = vadd.f32 %v4052, %v4070
        %4072 = vmatmul.f32.gmra.mxu0 %v4032
        %v4073 = vpop.f32.mrf.mxu0
        %v4074 = vadd.f32 %v4052, %v4073
        %4075 = vmatmul.f32.gmra.mxu0 %v4033
        %v4076 = vpop.f32.mrf.mxu0
        %v4077 = vadd.f32 %v4052, %v4076
        %4078 = vmatmul.f32.gmra.mxu0 %v4034
        %v4079 = vpop.f32.mrf.mxu0
        %v4080 = vadd.f32 %v4052, %v4079
        %4081 = vdwg.mxu0
        %v4082 = vld [vmem:[#allocation2 + $0x1160] sm:$0xff]
        %v4083 = vld [vmem:[#allocation2 + $0x1168] sm:$0xff]
        %v4084 = vld [vmem:[#allocation2 + $0x1170] sm:$0xff]
        %v4085 = vld [vmem:[#allocation2 + $0x1178] sm:$0xff]
        %v4086 = vld [vmem:[#allocation2 + $0x1180] sm:$0xff]
        %v4087 = vld [vmem:[#allocation2 + $0x1188] sm:$0xff]
        %v4088 = vld [vmem:[#allocation2 + $0x1190] sm:$0xff]
        %v4089 = vld [vmem:[#allocation2 + $0x1198] sm:$0xff]
        %v4090 = vld [vmem:[#allocation2 + $0x11a0] sm:$0xff]
        %v4091 = vld [vmem:[#allocation2 + $0x11a8] sm:$0xff]
        %v4092 = vld [vmem:[#allocation2 + $0x11b0] sm:$0xff]
        %v4093 = vld [vmem:[#allocation2 + $0x11b8] sm:$0xff]
        %v4094 = vld [vmem:[#allocation2 + $0x11c0] sm:$0xff]
        %v4095 = vld [vmem:[#allocation2 + $0x11c8] sm:$0xff]
        %v4096 = vld [vmem:[#allocation2 + $0x11d0] sm:$0xff]
        %v4097 = vld [vmem:[#allocation2 + $0x11d8] sm:$0xff]
        %v4098 = vld [vmem:[#allocation2 + $0x11e0] sm:$0x1]
        %v4099 = vperm.slane %v4098, 0
        %4100 = vmatpush.msra.mxu0 %v4097
        %4101 = vmatpush.msra.mxu0 %v4096
        %4102 = vmatpush.msra.mxu0 %v4095
        %4103 = vmatpush.msra.mxu0 %v4094
        %4104 = vmatpush.msra.mxu0 %v4093
        %4105 = vmatpush.msra.mxu0 %v4092
        %4106 = vmatpush.msra.mxu0 %v4091
        %4107 = vmatpush.msra.mxu0 %v4090
        %4108 = vmatpush.msra.mxu0 %v4089
        %4109 = vmatpush.msra.mxu0 %v4088
        %4110 = vmatpush.msra.mxu0 %v4087
        %4111 = vmatpush.msra.mxu0 %v4086
        %4112 = vmatpush.msra.mxu0 %v4085
        %4113 = vmatpush.msra.mxu0 %v4084
        %4114 = vmatpush.msra.mxu0 %v4083
        %4115 = vmatpush.msra.mxu0 %v4082
        %4116 = vmatmul.f32.gmra.mxu0 %v4031
        %v4117 = vpop.f32.mrf.mxu0
        %v4118 = vadd.f32 %v4099, %v4117
        %4119 = vmatmul.f32.gmra.mxu0 %v4032
        %v4120 = vpop.f32.mrf.mxu0
        %v4121 = vadd.f32 %v4099, %v4120
        %4122 = vmatmul.f32.gmra.mxu0 %v4033
        %v4123 = vpop.f32.mrf.mxu0
        %v4124 = vadd.f32 %v4099, %v4123
        %4125 = vmatmul.f32.gmra.mxu0 %v4034
        %v4126 = vpop.f32.mrf.mxu0
        %v4127 = vadd.f32 %v4099, %v4126
        %4128 = vdwg.mxu0
        %v4129 = vld [vmem:[#allocation2 + $0x11e8] sm:$0xff]
        %v4130 = vld [vmem:[#allocation2 + $0x11f0] sm:$0xff]
        %v4131 = vld [vmem:[#allocation2 + $0x11f8] sm:$0xff]
        %v4132 = vld [vmem:[#allocation2 + $0x1200] sm:$0xff]
        %v4133 = vld [vmem:[#allocation2 + $0x1208] sm:$0xff]
        %v4134 = vld [vmem:[#allocation2 + $0x1210] sm:$0xff]
        %v4135 = vld [vmem:[#allocation2 + $0x1218] sm:$0xff]
        %v4136 = vld [vmem:[#allocation2 + $0x1220] sm:$0xff]
        %v4137 = vld [vmem:[#allocation2 + $0x1228] sm:$0xff]
        %v4138 = vld [vmem:[#allocation2 + $0x1230] sm:$0xff]
        %v4139 = vld [vmem:[#allocation2 + $0x1238] sm:$0xff]
        %v4140 = vld [vmem:[#allocation2 + $0x1240] sm:$0xff]
        %v4141 = vld [vmem:[#allocation2 + $0x1248] sm:$0xff]
        %v4142 = vld [vmem:[#allocation2 + $0x1250] sm:$0xff]
        %v4143 = vld [vmem:[#allocation2 + $0x1258] sm:$0xff]
        %v4144 = vld [vmem:[#allocation2 + $0x1260] sm:$0xff]
        %v4145 = vld [vmem:[#allocation2 + $0x1268] sm:$0x1]
        %v4146 = vperm.slane %v4145, 0
        %4147 = vmatpush.msra.mxu0 %v4144
        %4148 = vmatpush.msra.mxu0 %v4143
        %4149 = vmatpush.msra.mxu0 %v4142
        %4150 = vmatpush.msra.mxu0 %v4141
        %4151 = vmatpush.msra.mxu0 %v4140
        %4152 = vmatpush.msra.mxu0 %v4139
        %4153 = vmatpush.msra.mxu0 %v4138
        %4154 = vmatpush.msra.mxu0 %v4137
        %4155 = vmatpush.msra.mxu0 %v4136
        %4156 = vmatpush.msra.mxu0 %v4135
        %4157 = vmatpush.msra.mxu0 %v4134
        %4158 = vmatpush.msra.mxu0 %v4133
        %4159 = vmatpush.msra.mxu0 %v4132
        %4160 = vmatpush.msra.mxu0 %v4131
        %4161 = vmatpush.msra.mxu0 %v4130
        %4162 = vmatpush.msra.mxu0 %v4129
        %4163 = vmatmul.f32.gmra.mxu0 %v4031
        %v4164 = vpop.f32.mrf.mxu0
        %v4165 = vadd.f32 %v4146, %v4164
        %4166 = vmatmul.f32.gmra.mxu0 %v4032
        %v4167 = vpop.f32.mrf.mxu0
        %v4168 = vadd.f32 %v4146, %v4167
        %4169 = vmatmul.f32.gmra.mxu0 %v4033
        %v4170 = vpop.f32.mrf.mxu0
        %v4171 = vadd.f32 %v4146, %v4170
        %4172 = vmatmul.f32.gmra.mxu0 %v4034
        %v4173 = vpop.f32.mrf.mxu0
        %v4174 = vadd.f32 %v4146, %v4173
        %4175 = vdwg.mxu0
        %4176 = vmatpush.xpose.msra.mxu0 0.0
        %4177 = vmatpush.xpose.msra.mxu0 0.0
        %4178 = vmatpush.xpose.msra.mxu0 0.0
        %4179 = vmatpush.xpose.msra.mxu0 0.0
        %4180 = vmatpush.xpose.msra.mxu0 0.0
        %4181 = vmatpush.xpose.msra.mxu0 0.0
        %4182 = vmatpush.xpose.msra.mxu0 0.0
        %4183 = vmatpush.xpose.msra.mxu0 0.0
        %4184 = vmatpush.xpose.msra.mxu0 0.0
        %4185 = vmatpush.xpose.msra.mxu0 0.0
        %4186 = vmatpush.xpose.msra.mxu0 0.0
        %4187 = vmatpush.xpose.msra.mxu0 0.0
        %4188 = vmatpush.xpose.msra.mxu0 %v4127
        %4189 = vmatpush.xpose.msra.mxu0 %v4124
        %4190 = vmatpush.xpose.msra.mxu0 %v4121
        %4191 = vmatpush.xpose.msra.mxu0 %v4118
        %4192 = vmatmul.f32.gmra.mxu0 %v4071
        %v4193 = vpop.f32.mrf.mxu0
        %v4194 = vadd.f32 0.0, %v4193
        %4195 = vmatmul.f32.gmra.mxu0 %v4074
        %v4196 = vpop.f32.mrf.mxu0
        %v4197 = vadd.f32 0.0, %v4196
        %4198 = vmatmul.f32.gmra.mxu0 %v4077
        %v4199 = vpop.f32.mrf.mxu0
        %v4200 = vadd.f32 0.0, %v4199
        %4201 = vmatmul.f32.gmra.mxu0 %v4080
        %v4202 = vpop.f32.mrf.mxu0
        %v4203 = vadd.f32 0.0, %v4202
        %4204 = vdwg.mxu0
        %v4205 = vmul.f32 %v4194, 0.11785113
        %v4206 = vmul.f32 %v4197, 0.11785113
        %v4207 = vmul.f32 %v4200, 0.11785113
        %v4208 = vmul.f32 %v4203, 0.11785113
        %v4209 = vsel %vm3836, %v4205, -inf
        %4210 = vmax.xlane.f32.xlu0 %v4209
        %v4211 = vpop.xlane.xlu0 %4210
        %v4212 = vsel %vm3836, %v4206, -inf
        %4213 = vmax.xlane.f32.xlu0 %v4212
        %v4214 = vpop.xlane.xlu0 %4213
        %v4215 = vsel %vm3836, %v4207, -inf
        %4216 = vmax.xlane.f32.xlu0 %v4215
        %v4217 = vpop.xlane.xlu0 %4216
        %vm4218 = vcmask 205824
        %v4219 = vsel %vm4218, %v4208, -inf
        %4220 = vmax.xlane.f32.xlu0 %v4219
        %v4221 = vpop.xlane.xlu0 %4220
        %v4222 = vsub.f32 %v4205, %v4211
        %v4223 = vsub.f32 %v4206, %v4214
        %v4224 = vsub.f32 %v4207, %v4217
        %v4225 = vsub.f32 %v4208, %v4221
        %v4226 = vmul.f32 %v4222, 1.442695
        %v4227 = vpow.pop %v4226
        %v4228 = vmul.f32 %v4223, 1.442695
        %v4229 = vpow.pop %v4228
        %v4230 = vmul.f32 %v4224, 1.442695
        %v4231 = vpow.pop %v4230
        %v4232 = vmul.f32 %v4225, 1.442695
        %v4233 = vpow.pop %v4232
        %v4234 = vsel %vm3836, %v4227, 0.0
        %4235 = vadd.xlane.f32.xlu0 %v4234
        %v4236 = vpop.xlane.xlu0 %4235
        %v4237 = vsel %vm3836, %v4229, 0.0
        %4238 = vadd.xlane.f32.xlu0 %v4237
        %v4239 = vpop.xlane.xlu0 %4238
        %v4240 = vsel %vm3836, %v4231, 0.0
        %4241 = vadd.xlane.f32.xlu0 %v4240
        %v4242 = vpop.xlane.xlu0 %4241
        %v4243 = vsel %vm4218, %v4233, 0.0
        %4244 = vadd.xlane.f32.xlu0 %v4243
        %v4245 = vpop.xlane.xlu0 %4244
        %v4246 = vrcp.pop %v4236
        %v4247 = vrcp.pop %v4239
        %v4248 = vrcp.pop %v4242
        %v4249 = vrcp.pop %v4245
        %v4250 = vmul.f32 %v4227, %v4246
        %v4251 = vmul.f32 %v4229, %v4247
        %v4252 = vmul.f32 %v4231, %v4248
        %v4253 = vmul.f32 %v4233, %v4249
        %v4255 = vsel %vm3836, %v4250, 0
        %v4258 = vsel %vm3836, %v4251, 0
        %v4261 = vsel %vm3836, %v4252, 0
        %v4264 = vsel %vm3836, %v4253, 0
        %v4267 = vsel %vm3845, %v4174, 0
        %4269 = vmatpush.msra.mxu0 0.0
        %4270 = vmatpush.msra.mxu0 0.0
        %4271 = vmatpush.msra.mxu0 0.0
        %4272 = vmatpush.msra.mxu0 0.0
        %4273 = vmatpush.msra.mxu0 0.0
        %4274 = vmatpush.msra.mxu0 0.0
        %4275 = vmatpush.msra.mxu0 0.0
        %4276 = vmatpush.msra.mxu0 0.0
        %4277 = vmatpush.msra.mxu0 0.0
        %4278 = vmatpush.msra.mxu0 0.0
        %4279 = vmatpush.msra.mxu0 0.0
        %4280 = vmatpush.msra.mxu0 0.0
        %4281 = vmatpush.msra.mxu0 %v4267
        %4282 = vmatpush.msra.mxu0 %v4171
        %4283 = vmatpush.msra.mxu0 %v4168
        %4284 = vmatpush.msra.mxu0 %v4165
        %4285 = vmatmul.f32.gmra.mxu0 %v4255
        %v4286 = vpop.f32.mrf.mxu0
        %v4287 = vadd.f32 0.0, %v4286
        %4288 = vmatmul.f32.gmra.mxu0 %v4258
        %v4289 = vpop.f32.mrf.mxu0
        %v4290 = vadd.f32 0.0, %v4289
        %4291 = vmatmul.f32.gmra.mxu0 %v4261
        %v4292 = vpop.f32.mrf.mxu0
        %v4293 = vadd.f32 0.0, %v4292
        %4294 = vmatmul.f32.gmra.mxu0 %v4264
        %v4295 = vpop.f32.mrf.mxu0
        %v4296 = vadd.f32 0.0, %v4295
        %4297 = vdwg.mxu0
        %v4298 = vld [vmem:[#allocation2 + $0x1270] sm:$0xff]
        %v4299 = vld [vmem:[#allocation2 + $0x1278] sm:$0xff]
        %v4300 = vld [vmem:[#allocation2 + $0x1280] sm:$0xff]
        %v4301 = vld [vmem:[#allocation2 + $0x1288] sm:$0xff]
        %v4302 = vld [vmem:[#allocation2 + $0x1290] sm:$0xff]
        %v4303 = vld [vmem:[#allocation2 + $0x1298] sm:$0xff]
        %v4304 = vld [vmem:[#allocation2 + $0x12a0] sm:$0xff]
        %v4305 = vld [vmem:[#allocation2 + $0x12a8] sm:$0xff]
        %v4306 = vld [vmem:[#allocation2 + $0x12b0] sm:$0xff]
        %v4307 = vld [vmem:[#allocation2 + $0x12b8] sm:$0xff]
        %v4308 = vld [vmem:[#allocation2 + $0x12c0] sm:$0xff]
        %v4309 = vld [vmem:[#allocation2 + $0x12c8] sm:$0xff]
        %v4310 = vld [vmem:[#allocation2 + $0x12d0] sm:$0xff]
        %v4311 = vld [vmem:[#allocation2 + $0x12d8] sm:$0xff]
        %v4312 = vld [vmem:[#allocation2 + $0x12e0] sm:$0xff]
        %v4313 = vld [vmem:[#allocation2 + $0x12e8] sm:$0xff]
        %v4314 = vld [vmem:[#allocation2 + $0x12f0] sm:$0x1]
        %v4315 = vperm.slane %v4314, 0
        %4316 = vmatpush.msra.mxu0 %v4313
        %4317 = vmatpush.msra.mxu0 %v4312
        %4318 = vmatpush.msra.mxu0 %v4311
        %4319 = vmatpush.msra.mxu0 %v4310
        %4320 = vmatpush.msra.mxu0 %v4309
        %4321 = vmatpush.msra.mxu0 %v4308
        %4322 = vmatpush.msra.mxu0 %v4307
        %4323 = vmatpush.msra.mxu0 %v4306
        %4324 = vmatpush.msra.mxu0 %v4305
        %4325 = vmatpush.msra.mxu0 %v4304
        %4326 = vmatpush.msra.mxu0 %v4303
        %4327 = vmatpush.msra.mxu0 %v4302
        %4328 = vmatpush.msra.mxu0 %v4301
        %4329 = vmatpush.msra.mxu0 %v4300
        %4330 = vmatpush.msra.mxu0 %v4299
        %4331 = vmatpush.msra.mxu0 %v4298
        %4332 = vmatmul.f32.gmra.mxu0 %v4287
        %v4333 = vpop.f32.mrf.mxu0
        %v4334 = vadd.f32 %v4315, %v4333
        %4335 = vmatmul.f32.gmra.mxu0 %v4290
        %v4336 = vpop.f32.mrf.mxu0
        %v4337 = vadd.f32 %v4315, %v4336
        %4338 = vmatmul.f32.gmra.mxu0 %v4293
        %v4339 = vpop.f32.mrf.mxu0
        %v4340 = vadd.f32 %v4315, %v4339
        %4341 = vmatmul.f32.gmra.mxu0 %v4296
        %v4342 = vpop.f32.mrf.mxu0
        %v4343 = vadd.f32 %v4315, %v4342
        %4344 = vdwg.mxu0
        %v4345 = vld [vmem:[#allocation2 + $0x12f8] sm:$0xff]
        %v4346 = vld [vmem:[#allocation2 + $0x1300] sm:$0xff]
        %v4347 = vld [vmem:[#allocation2 + $0x1308] sm:$0xff]
        %v4348 = vld [vmem:[#allocation2 + $0x1310] sm:$0xff]
        %v4349 = vld [vmem:[#allocation2 + $0x1318] sm:$0xff]
        %v4350 = vld [vmem:[#allocation2 + $0x1320] sm:$0xff]
        %v4351 = vld [vmem:[#allocation2 + $0x1328] sm:$0xff]
        %v4352 = vld [vmem:[#allocation2 + $0x1330] sm:$0xff]
        %v4353 = vld [vmem:[#allocation2 + $0x1338] sm:$0xff]
        %v4354 = vld [vmem:[#allocation2 + $0x1340] sm:$0xff]
        %v4355 = vld [vmem:[#allocation2 + $0x1348] sm:$0xff]
        %v4356 = vld [vmem:[#allocation2 + $0x1350] sm:$0xff]
        %v4357 = vld [vmem:[#allocation2 + $0x1358] sm:$0xff]
        %v4358 = vld [vmem:[#allocation2 + $0x1360] sm:$0xff]
        %v4359 = vld [vmem:[#allocation2 + $0x1368] sm:$0xff]
        %v4360 = vld [vmem:[#allocation2 + $0x1370] sm:$0xff]
        %4361 = vmatpush.msra.mxu0 %v4360
        %4362 = vmatpush.msra.mxu0 %v4359
        %4363 = vmatpush.msra.mxu0 %v4358
        %4364 = vmatpush.msra.mxu0 %v4357
        %4365 = vmatpush.msra.mxu0 %v4356
        %4366 = vmatpush.msra.mxu0 %v4355
        %4367 = vmatpush.msra.mxu0 %v4354
        %4368 = vmatpush.msra.mxu0 %v4353
        %4369 = vmatpush.msra.mxu0 %v4352
        %4370 = vmatpush.msra.mxu0 %v4351
        %4371 = vmatpush.msra.mxu0 %v4350
        %4372 = vmatpush.msra.mxu0 %v4349
        %4373 = vmatpush.msra.mxu0 %v4348
        %4374 = vmatpush.msra.mxu0 %v4347
        %4375 = vmatpush.msra.mxu0 %v4346
        %4376 = vmatpush.msra.mxu0 %v4345
        %4377 = vmatmul.f32.gmra.mxu0 %v4334
        %v4378 = vpop.f32.mrf.mxu0
        %v4379 = vadd.f32 0.0, %v4378
        %4380 = vmatmul.f32.gmra.mxu0 %v4337
        %v4381 = vpop.f32.mrf.mxu0
        %v4382 = vadd.f32 0.0, %v4381
        %4383 = vmatmul.f32.gmra.mxu0 %v4340
        %v4384 = vpop.f32.mrf.mxu0
        %v4385 = vadd.f32 0.0, %v4384
        %4386 = vmatmul.f32.gmra.mxu0 %v4343
        %v4387 = vpop.f32.mrf.mxu0
        %v4388 = vadd.f32 0.0, %v4387
        %4389 = vdwg.mxu0
        %v4390 = vld [vmem:[#allocation2 + $0x1378] sm:$0xff]
        %v4391 = vld [vmem:[#allocation2 + $0x1380] sm:$0xff]
        %v4392 = vld [vmem:[#allocation2 + $0x1388] sm:$0xff]
        %v4393 = vld [vmem:[#allocation2 + $0x1390] sm:$0xff]
        %v4394 = vld [vmem:[#allocation2 + $0x1398] sm:$0xff]
        %v4395 = vld [vmem:[#allocation2 + $0x13a0] sm:$0xff]
        %v4396 = vld [vmem:[#allocation2 + $0x13a8] sm:$0xff]
        %v4397 = vld [vmem:[#allocation2 + $0x13b0] sm:$0xff]
        %v4398 = vld [vmem:[#allocation2 + $0x13b8] sm:$0xff]
        %v4399 = vld [vmem:[#allocation2 + $0x13c0] sm:$0xff]
        %v4400 = vld [vmem:[#allocation2 + $0x13c8] sm:$0xff]
        %v4401 = vld [vmem:[#allocation2 + $0x13d0] sm:$0xff]
        %v4402 = vld [vmem:[#allocation2 + $0x13d8] sm:$0xff]
        %v4403 = vld [vmem:[#allocation2 + $0x13e0] sm:$0xff]
        %v4404 = vld [vmem:[#allocation2 + $0x13e8] sm:$0xff]
        %v4405 = vld [vmem:[#allocation2 + $0x13f0] sm:$0xff]
        %4406 = vmatpush.msra.mxu0 %v4405
        %4407 = vmatpush.msra.mxu0 %v4404
        %4408 = vmatpush.msra.mxu0 %v4403
        %4409 = vmatpush.msra.mxu0 %v4402
        %4410 = vmatpush.msra.mxu0 %v4401
        %4411 = vmatpush.msra.mxu0 %v4400
        %4412 = vmatpush.msra.mxu0 %v4399
        %4413 = vmatpush.msra.mxu0 %v4398
        %4414 = vmatpush.msra.mxu0 %v4397
        %4415 = vmatpush.msra.mxu0 %v4396
        %4416 = vmatpush.msra.mxu0 %v4395
        %4417 = vmatpush.msra.mxu0 %v4394
        %4418 = vmatpush.msra.mxu0 %v4393
        %4419 = vmatpush.msra.mxu0 %v4392
        %4420 = vmatpush.msra.mxu0 %v4391
        %4421 = vmatpush.msra.mxu0 %v4390
        %4422 = vmatmul.f32.gmra.mxu0 %v4334
        %v4423 = vpop.f32.mrf.mxu0
        %v4424 = vadd.f32 0.0, %v4423
        %4425 = vmatmul.f32.gmra.mxu0 %v4337
        %v4426 = vpop.f32.mrf.mxu0
        %v4427 = vadd.f32 0.0, %v4426
        %4428 = vmatmul.f32.gmra.mxu0 %v4340
        %v4429 = vpop.f32.mrf.mxu0
        %v4430 = vadd.f32 0.0, %v4429
        %4431 = vmatmul.f32.gmra.mxu0 %v4343
        %v4432 = vpop.f32.mrf.mxu0
        %v4433 = vadd.f32 0.0, %v4432
        %4434 = vdwg.mxu0
        %v4436 = vsel %vm3845, %v4433, 0
        %4438 = vmatpush.msra.mxu0 0.0
        %4439 = vmatpush.msra.mxu0 0.0
        %4440 = vmatpush.msra.mxu0 0.0
        %4441 = vmatpush.msra.mxu0 0.0
        %4442 = vmatpush.msra.mxu0 0.0
        %4443 = vmatpush.msra.mxu0 0.0
        %4444 = vmatpush.msra.mxu0 0.0
        %4445 = vmatpush.msra.mxu0 0.0
        %4446 = vmatpush.msra.mxu0 0.0
        %4447 = vmatpush.msra.mxu0 0.0
        %4448 = vmatpush.msra.mxu0 0.0
        %4449 = vmatpush.msra.mxu0 0.0
        %4450 = vmatpush.msra.mxu0 %v4436
        %4451 = vmatpush.msra.mxu0 %v4430
        %4452 = vmatpush.msra.mxu0 %v4427
        %4453 = vmatpush.msra.mxu0 %v4424
        %4454 = vmatmul.f32.gmra.mxu0 %v3837
        %v4455 = vpop.f32.mrf.mxu0
        %v4456 = vadd.f32 0.0, %v4455
        %4457 = vmatmul.f32.gmra.mxu0 %v3839
        %v4458 = vpop.f32.mrf.mxu0
        %v4459 = vadd.f32 0.0, %v4458
        %4460 = vmatmul.f32.gmra.mxu0 %v3841
        %v4461 = vpop.f32.mrf.mxu0
        %v4462 = vadd.f32 0.0, %v4461
        %4463 = vmatmul.f32.gmra.mxu0 %v3843
        %v4464 = vpop.f32.mrf.mxu0
        %v4465 = vadd.f32 0.0, %v4464
        %4466 = vdwg.mxu0
        %v4468 = vsel %vm3845, %v4388, 0
        %4470 = vmatpush.msra.mxu0 0.0
        %4471 = vmatpush.msra.mxu0 0.0
        %4472 = vmatpush.msra.mxu0 0.0
        %4473 = vmatpush.msra.mxu0 0.0
        %4474 = vmatpush.msra.mxu0 0.0
        %4475 = vmatpush.msra.mxu0 0.0
        %4476 = vmatpush.msra.mxu0 0.0
        %4477 = vmatpush.msra.mxu0 0.0
        %4478 = vmatpush.msra.mxu0 0.0
        %4479 = vmatpush.msra.mxu0 0.0
        %4480 = vmatpush.msra.mxu0 0.0
        %4481 = vmatpush.msra.mxu0 0.0
        %4482 = vmatpush.msra.mxu0 %v4468
        %4483 = vmatpush.msra.mxu0 %v4385
        %4484 = vmatpush.msra.mxu0 %v4382
        %4485 = vmatpush.msra.mxu0 %v4379
        %4486 = vmatmul.f32.gmra.mxu0 %v3878
        %v4487 = vpop.f32.mrf.mxu0
        %v4488 = vadd.f32 %v4456, %v4487
        %4489 = vmatmul.f32.gmra.mxu0 %v3880
        %v4490 = vpop.f32.mrf.mxu0
        %v4491 = vadd.f32 %v4459, %v4490
        %4492 = vmatmul.f32.gmra.mxu0 %v3882
        %v4493 = vpop.f32.mrf.mxu0
        %v4494 = vadd.f32 %v4462, %v4493
        %4495 = vmatmul.f32.gmra.mxu0 %v3884
        %v4496 = vpop.f32.mrf.mxu0
        %v4497 = vadd.f32 %v4465, %v4496
        %4498 = vdwg.mxu0
        %v4499 = vld [vmem:[#allocation2 + $0x13f8] sm:$0xff]
        %v4500 = vld [vmem:[#allocation2 + $0x1400] sm:$0xff]
        %v4501 = vld [vmem:[#allocation2 + $0x1408] sm:$0xff]
        %v4502 = vld [vmem:[#allocation2 + $0x1410] sm:$0xff]
        %v4503 = vld [vmem:[#allocation2 + $0x1418] sm:$0xff]
        %v4504 = vld [vmem:[#allocation2 + $0x1420] sm:$0xff]
        %v4505 = vld [vmem:[#allocation2 + $0x1428] sm:$0xff]
        %v4506 = vld [vmem:[#allocation2 + $0x1430] sm:$0xff]
        %v4507 = vld [vmem:[#allocation2 + $0x1438] sm:$0xff]
        %v4508 = vld [vmem:[#allocation2 + $0x1440] sm:$0xff]
        %v4509 = vld [vmem:[#allocation2 + $0x1448] sm:$0xff]
        %v4510 = vld [vmem:[#allocation2 + $0x1450] sm:$0xff]
        %v4511 = vld [vmem:[#allocation2 + $0x1458] sm:$0xff]
        %v4512 = vld [vmem:[#allocation2 + $0x1460] sm:$0xff]
        %v4513 = vld [vmem:[#allocation2 + $0x1468] sm:$0xff]
        %v4514 = vld [vmem:[#allocation2 + $0x1470] sm:$0xff]
        %4515 = vmatpush.msra.mxu0 %v4514
        %4516 = vmatpush.msra.mxu0 %v4513
        %4517 = vmatpush.msra.mxu0 %v4512
        %4518 = vmatpush.msra.mxu0 %v4511
        %4519 = vmatpush.msra.mxu0 %v4510
        %4520 = vmatpush.msra.mxu0 %v4509
        %4521 = vmatpush.msra.mxu0 %v4508
        %4522 = vmatpush.msra.mxu0 %v4507
        %4523 = vmatpush.msra.mxu0 %v4506
        %4524 = vmatpush.msra.mxu0 %v4505
        %4525 = vmatpush.msra.mxu0 %v4504
        %4526 = vmatpush.msra.mxu0 %v4503
        %4527 = vmatpush.msra.mxu0 %v4502
        %4528 = vmatpush.msra.mxu0 %v4501
        %4529 = vmatpush.msra.mxu0 %v4500
        %4530 = vmatpush.msra.mxu0 %v4499
        %4531 = vmatmul.f32.gmra.mxu0 %v4334
        %v4532 = vpop.f32.mrf.mxu0
        %v4533 = vadd.f32 0.0, %v4532
        %4534 = vmatmul.f32.gmra.mxu0 %v4337
        %v4535 = vpop.f32.mrf.mxu0
        %v4536 = vadd.f32 0.0, %v4535
        %4537 = vmatmul.f32.gmra.mxu0 %v4340
        %v4538 = vpop.f32.mrf.mxu0
        %v4539 = vadd.f32 0.0, %v4538
        %4540 = vmatmul.f32.gmra.mxu0 %v4343
        %v4541 = vpop.f32.mrf.mxu0
        %v4542 = vadd.f32 0.0, %v4541
        %4543 = vdwg.mxu0
        %v4545 = vsel %vm3845, %v4542, 0
        %4547 = vmatpush.msra.mxu0 0.0
        %4548 = vmatpush.msra.mxu0 0.0
        %4549 = vmatpush.msra.mxu0 0.0
        %4550 = vmatpush.msra.mxu0 0.0
        %4551 = vmatpush.msra.mxu0 0.0
        %4552 = vmatpush.msra.mxu0 0.0
        %4553 = vmatpush.msra.mxu0 0.0
        %4554 = vmatpush.msra.mxu0 0.0
        %4555 = vmatpush.msra.mxu0 0.0
        %4556 = vmatpush.msra.mxu0 0.0
        %4557 = vmatpush.msra.mxu0 0.0
        %4558 = vmatpush.msra.mxu0 0.0
        %4559 = vmatpush.msra.mxu0 %v4545
        %4560 = vmatpush.msra.mxu0 %v4539
        %4561 = vmatpush.msra.mxu0 %v4536
        %4562 = vmatpush.msra.mxu0 %v4533
        %4563 = vmatmul.f32.gmra.mxu0 %v3963
        %v4564 = vpop.f32.mrf.mxu0
        %v4565 = vadd.f32 0.0, %v4564
        %4566 = vmatmul.f32.gmra.mxu0 %v3965
        %v4567 = vpop.f32.mrf.mxu0
        %v4568 = vadd.f32 0.0, %v4567
        %4569 = vmatmul.f32.gmra.mxu0 %v3967
        %v4570 = vpop.f32.mrf.mxu0
        %v4571 = vadd.f32 0.0, %v4570
        %4572 = vmatmul.f32.gmra.mxu0 %v3969
        %v4573 = vpop.f32.mrf.mxu0
        %v4574 = vadd.f32 0.0, %v4573
        %4575 = vdwg.mxu0
        %v4576 = vadd.f32 %v4488, %v4565
        %v4577 = vadd.f32 %v4491, %v4568
        %v4578 = vadd.f32 %v4494, %v4571
        %v4579 = vadd.f32 %v4497, %v4574
        %v4580 = vld [vmem:[#allocation2 + $0x1478] sm:$0x1]
        %v4581 = vperm.slane %v4580, 0
        %v4582 = vmul.f32 %v4576, %v4581
        %v4583 = vmul.f32 %v4577, %v4581
        %v4584 = vmul.f32 %v4578, %v4581
        %v4585 = vmul.f32 %v4579, %v4581
        %v4586 = vld [vmem:[#allocation2 + $0x1480] sm:$0x1]
        %v4587 = vperm.slane %v4586, 0
        %v4588 = vadd.f32 %v4582, %v4587
        %v4589 = vadd.f32 %v4583, %v4587
        %v4590 = vadd.f32 %v4584, %v4587
        %v4591 = vadd.f32 %v4585, %v4587
        %v4592 = vmax.f32 %v4588, 0.0
        %v4593 = vmax.f32 %v4589, 0.0
        %v4594 = vmax.f32 %v4590, 0.0
        %v4595 = vmax.f32 %v4591, 0.0
        %v4596 = vld [vmem:[#allocation2 + $0x1488] sm:$0xff]
        %v4597 = vld [vmem:[#allocation2 + $0x1490] sm:$0xff]
        %v4598 = vld [vmem:[#allocation2 + $0x1498] sm:$0xff]
        %v4599 = vld [vmem:[#allocation2 + $0x14a0] sm:$0xff]
        %v4600 = vld [vmem:[#allocation2 + $0x14a8] sm:$0xff]
        %v4601 = vld [vmem:[#allocation2 + $0x14b0] sm:$0xff]
        %v4602 = vld [vmem:[#allocation2 + $0x14b8] sm:$0xff]
        %v4603 = vld [vmem:[#allocation2 + $0x14c0] sm:$0xff]
        %v4604 = vld [vmem:[#allocation2 + $0x14c8] sm:$0xff]
        %v4605 = vld [vmem:[#allocation2 + $0x14d0] sm:$0xff]
        %v4606 = vld [vmem:[#allocation2 + $0x14d8] sm:$0xff]
        %v4607 = vld [vmem:[#allocation2 + $0x14e0] sm:$0xff]
        %v4608 = vld [vmem:[#allocation2 + $0x14e8] sm:$0xff]
        %v4609 = vld [vmem:[#allocation2 + $0x14f0] sm:$0xff]
        %v4610 = vld [vmem:[#allocation2 + $0x14f8] sm:$0xff]
        %v4611 = vld [vmem:[#allocation2 + $0x1500] sm:$0xff]
        %4612 = vmatpush.msra.mxu0 %v4611
        %4613 = vmatpush.msra.mxu0 %v4610
        %4614 = vmatpush.msra.mxu0 %v4609
        %4615 = vmatpush.msra.mxu0 %v4608
        %4616 = vmatpush.msra.mxu0 %v4607
        %4617 = vmatpush.msra.mxu0 %v4606
        %4618 = vmatpush.msra.mxu0 %v4605
        %4619 = vmatpush.msra.mxu0 %v4604
        %4620 = vmatpush.msra.mxu0 %v4603
        %4621 = vmatpush.msra.mxu0 %v4602
        %4622 = vmatpush.msra.mxu0 %v4601
        %4623 = vmatpush.msra.mxu0 %v4600
        %4624 = vmatpush.msra.mxu0 %v4599
        %4625 = vmatpush.msra.mxu0 %v4598
        %4626 = vmatpush.msra.mxu0 %v4597
        %4627 = vmatpush.msra.mxu0 %v4596
        %4628 = vmatmul.f32.gmra.mxu0 %v4592
        %v4629 = vpop.f32.mrf.mxu0
        %v4630 = vadd.f32 0.0, %v4629
        %4631 = vmatmul.f32.gmra.mxu0 %v4593
        %v4632 = vpop.f32.mrf.mxu0
        %v4633 = vadd.f32 0.0, %v4632
        %4634 = vmatmul.f32.gmra.mxu0 %v4594
        %v4635 = vpop.f32.mrf.mxu0
        %v4636 = vadd.f32 0.0, %v4635
        %4637 = vmatmul.f32.gmra.mxu0 %v4595
        %v4638 = vpop.f32.mrf.mxu0
        %v4639 = vadd.f32 0.0, %v4638
        %4640 = vdwg.mxu0
        %v4641 = vld [vmem:[#allocation2 + $0x1508] sm:$0xff]
        %v4642 = vld [vmem:[#allocation2 + $0x1510] sm:$0xff]
        %v4643 = vld [vmem:[#allocation2 + $0x1518] sm:$0xff]
        %v4644 = vld [vmem:[#allocation2 + $0x1520] sm:$0xff]
        %v4645 = vld [vmem:[#allocation2 + $0x1528] sm:$0xff]
        %v4646 = vld [vmem:[#allocation2 + $0x1530] sm:$0xff]
        %v4647 = vld [vmem:[#allocation2 + $0x1538] sm:$0xff]
        %v4648 = vld [vmem:[#allocation2 + $0x1540] sm:$0xff]
        %v4649 = vld [vmem:[#allocation2 + $0x1548] sm:$0xff]
        %v4650 = vld [vmem:[#allocation2 + $0x1550] sm:$0xff]
        %v4651 = vld [vmem:[#allocation2 + $0x1558] sm:$0xff]
        %v4652 = vld [vmem:[#allocation2 + $0x1560] sm:$0xff]
        %v4653 = vld [vmem:[#allocation2 + $0x1568] sm:$0xff]
        %v4654 = vld [vmem:[#allocation2 + $0x1570] sm:$0xff]
        %v4655 = vld [vmem:[#allocation2 + $0x1578] sm:$0xff]
        %v4656 = vld [vmem:[#allocation2 + $0x1580] sm:$0xff]
        %4657 = vmatpush.msra.mxu0 %v4656
        %4658 = vmatpush.msra.mxu0 %v4655
        %4659 = vmatpush.msra.mxu0 %v4654
        %4660 = vmatpush.msra.mxu0 %v4653
        %4661 = vmatpush.msra.mxu0 %v4652
        %4662 = vmatpush.msra.mxu0 %v4651
        %4663 = vmatpush.msra.mxu0 %v4650
        %4664 = vmatpush.msra.mxu0 %v4649
        %4665 = vmatpush.msra.mxu0 %v4648
        %4666 = vmatpush.msra.mxu0 %v4647
        %4667 = vmatpush.msra.mxu0 %v4646
        %4668 = vmatpush.msra.mxu0 %v4645
        %4669 = vmatpush.msra.mxu0 %v4644
        %4670 = vmatpush.msra.mxu0 %v4643
        %4671 = vmatpush.msra.mxu0 %v4642
        %4672 = vmatpush.msra.mxu0 %v4641
        %4673 = vmatmul.f32.gmra.mxu0 %v4592
        %v4674 = vpop.f32.mrf.mxu0
        %v4675 = vadd.f32 0.0, %v4674
        %4676 = vmatmul.f32.gmra.mxu0 %v4593
        %v4677 = vpop.f32.mrf.mxu0
        %v4678 = vadd.f32 0.0, %v4677
        %4679 = vmatmul.f32.gmra.mxu0 %v4594
        %v4680 = vpop.f32.mrf.mxu0
        %v4681 = vadd.f32 0.0, %v4680
        %4682 = vmatmul.f32.gmra.mxu0 %v4595
        %v4683 = vpop.f32.mrf.mxu0
        %v4684 = vadd.f32 0.0, %v4683
        %4685 = vdwg.mxu0
        %v4687 = vsel %vm3845, %v4684, 0
        %4689 = vmatpush.msra.mxu0 0.0
        %4690 = vmatpush.msra.mxu0 0.0
        %4691 = vmatpush.msra.mxu0 0.0
        %4692 = vmatpush.msra.mxu0 0.0
        %4693 = vmatpush.msra.mxu0 0.0
        %4694 = vmatpush.msra.mxu0 0.0
        %4695 = vmatpush.msra.mxu0 0.0
        %4696 = vmatpush.msra.mxu0 0.0
        %4697 = vmatpush.msra.mxu0 0.0
        %4698 = vmatpush.msra.mxu0 0.0
        %4699 = vmatpush.msra.mxu0 0.0
        %4700 = vmatpush.msra.mxu0 0.0
        %4701 = vmatpush.msra.mxu0 %v4687
        %4702 = vmatpush.msra.mxu0 %v4681
        %4703 = vmatpush.msra.mxu0 %v4678
        %4704 = vmatpush.msra.mxu0 %v4675
        %4705 = vmatmul.f32.gmra.mxu0 %v3837
        %v4706 = vpop.f32.mrf.mxu0
        %v4707 = vadd.f32 0.0, %v4706
        %4708 = vmatmul.f32.gmra.mxu0 %v3839
        %v4709 = vpop.f32.mrf.mxu0
        %v4710 = vadd.f32 0.0, %v4709
        %4711 = vmatmul.f32.gmra.mxu0 %v3841
        %v4712 = vpop.f32.mrf.mxu0
        %v4713 = vadd.f32 0.0, %v4712
        %4714 = vmatmul.f32.gmra.mxu0 %v3843
        %v4715 = vpop.f32.mrf.mxu0
        %v4716 = vadd.f32 0.0, %v4715
        %4717 = vdwg.mxu0
        %v4719 = vsel %vm3845, %v4639, 0
        %4721 = vmatpush.msra.mxu0 0.0
        %4722 = vmatpush.msra.mxu0 0.0
        %4723 = vmatpush.msra.mxu0 0.0
        %4724 = vmatpush.msra.mxu0 0.0
        %4725 = vmatpush.msra.mxu0 0.0
        %4726 = vmatpush.msra.mxu0 0.0
        %4727 = vmatpush.msra.mxu0 0.0
        %4728 = vmatpush.msra.mxu0 0.0
        %4729 = vmatpush.msra.mxu0 0.0
        %4730 = vmatpush.msra.mxu0 0.0
        %4731 = vmatpush.msra.mxu0 0.0
        %4732 = vmatpush.msra.mxu0 0.0
        %4733 = vmatpush.msra.mxu0 %v4719
        %4734 = vmatpush.msra.mxu0 %v4636
        %4735 = vmatpush.msra.mxu0 %v4633
        %4736 = vmatpush.msra.mxu0 %v4630
        %4737 = vmatmul.f32.gmra.mxu0 %v3878
        %v4738 = vpop.f32.mrf.mxu0
        %v4739 = vadd.f32 %v4707, %v4738
        %4740 = vmatmul.f32.gmra.mxu0 %v3880
        %v4741 = vpop.f32.mrf.mxu0
        %v4742 = vadd.f32 %v4710, %v4741
        %4743 = vmatmul.f32.gmra.mxu0 %v3882
        %v4744 = vpop.f32.mrf.mxu0
        %v4745 = vadd.f32 %v4713, %v4744
        %4746 = vmatmul.f32.gmra.mxu0 %v3884
        %v4747 = vpop.f32.mrf.mxu0
        %v4748 = vadd.f32 %v4716, %v4747
        %4749 = vdwg.mxu0
        %v4750 = vld [vmem:[#allocation2 + $0x1588] sm:$0xff]
        %v4751 = vld [vmem:[#allocation2 + $0x1590] sm:$0xff]
        %v4752 = vld [vmem:[#allocation2 + $0x1598] sm:$0xff]
        %v4753 = vld [vmem:[#allocation2 + $0x15a0] sm:$0xff]
        %v4754 = vld [vmem:[#allocation2 + $0x15a8] sm:$0xff]
        %v4755 = vld [vmem:[#allocation2 + $0x15b0] sm:$0xff]
        %v4756 = vld [vmem:[#allocation2 + $0x15b8] sm:$0xff]
        %v4757 = vld [vmem:[#allocation2 + $0x15c0] sm:$0xff]
        %v4758 = vld [vmem:[#allocation2 + $0x15c8] sm:$0xff]
        %v4759 = vld [vmem:[#allocation2 + $0x15d0] sm:$0xff]
        %v4760 = vld [vmem:[#allocation2 + $0x15d8] sm:$0xff]
        %v4761 = vld [vmem:[#allocation2 + $0x15e0] sm:$0xff]
        %v4762 = vld [vmem:[#allocation2 + $0x15e8] sm:$0xff]
        %v4763 = vld [vmem:[#allocation2 + $0x15f0] sm:$0xff]
        %v4764 = vld [vmem:[#allocation2 + $0x15f8] sm:$0xff]
        %v4765 = vld [vmem:[#allocation2 + $0x1600] sm:$0xff]
        %4766 = vmatpush.msra.mxu0 %v4765
        %4767 = vmatpush.msra.mxu0 %v4764
        %4768 = vmatpush.msra.mxu0 %v4763
        %4769 = vmatpush.msra.mxu0 %v4762
        %4770 = vmatpush.msra.mxu0 %v4761
        %4771 = vmatpush.msra.mxu0 %v4760
        %4772 = vmatpush.msra.mxu0 %v4759
        %4773 = vmatpush.msra.mxu0 %v4758
        %4774 = vmatpush.msra.mxu0 %v4757
        %4775 = vmatpush.msra.mxu0 %v4756
        %4776 = vmatpush.msra.mxu0 %v4755
        %4777 = vmatpush.msra.mxu0 %v4754
        %4778 = vmatpush.msra.mxu0 %v4753
        %4779 = vmatpush.msra.mxu0 %v4752
        %4780 = vmatpush.msra.mxu0 %v4751
        %4781 = vmatpush.msra.mxu0 %v4750
        %4782 = vmatmul.f32.gmra.mxu0 %v4592
        %v4783 = vpop.f32.mrf.mxu0
        %v4784 = vadd.f32 0.0, %v4783
        %4785 = vmatmul.f32.gmra.mxu0 %v4593
        %v4786 = vpop.f32.mrf.mxu0
        %v4787 = vadd.f32 0.0, %v4786
        %4788 = vmatmul.f32.gmra.mxu0 %v4594
        %v4789 = vpop.f32.mrf.mxu0
        %v4790 = vadd.f32 0.0, %v4789
        %4791 = vmatmul.f32.gmra.mxu0 %v4595
        %v4792 = vpop.f32.mrf.mxu0
        %v4793 = vadd.f32 0.0, %v4792
        %4794 = vdwg.mxu0
        %v4796 = vsel %vm3845, %v4793, 0
        %4798 = vmatpush.msra.mxu0 0.0
        %4799 = vmatpush.msra.mxu0 0.0
        %4800 = vmatpush.msra.mxu0 0.0
        %4801 = vmatpush.msra.mxu0 0.0
        %4802 = vmatpush.msra.mxu0 0.0
        %4803 = vmatpush.msra.mxu0 0.0
        %4804 = vmatpush.msra.mxu0 0.0
        %4805 = vmatpush.msra.mxu0 0.0
        %4806 = vmatpush.msra.mxu0 0.0
        %4807 = vmatpush.msra.mxu0 0.0
        %4808 = vmatpush.msra.mxu0 0.0
        %4809 = vmatpush.msra.mxu0 0.0
        %4810 = vmatpush.msra.mxu0 %v4796
        %4811 = vmatpush.msra.mxu0 %v4790
        %4812 = vmatpush.msra.mxu0 %v4787
        %4813 = vmatpush.msra.mxu0 %v4784
        %4814 = vmatmul.f32.gmra.mxu0 %v3963
        %v4815 = vpop.f32.mrf.mxu0
        %v4816 = vadd.f32 0.0, %v4815
        %4817 = vmatmul.f32.gmra.mxu0 %v3965
        %v4818 = vpop.f32.mrf.mxu0
        %v4819 = vadd.f32 0.0, %v4818
        %4820 = vmatmul.f32.gmra.mxu0 %v3967
        %v4821 = vpop.f32.mrf.mxu0
        %v4822 = vadd.f32 0.0, %v4821
        %4823 = vmatmul.f32.gmra.mxu0 %v3969
        %v4824 = vpop.f32.mrf.mxu0
        %v4825 = vadd.f32 0.0, %v4824
        %4826 = vdwg.mxu0
        %v4827 = vadd.f32 %v4739, %v4816
        %v4828 = vadd.f32 %v4742, %v4819
        %v4829 = vadd.f32 %v4745, %v4822
        %v4830 = vadd.f32 %v4748, %v4825
        %v4831 = vld [vmem:[#allocation2 + $0x1608] sm:$0x1]
        %v4832 = vperm.slane %v4831, 0
        %v4833 = vmul.f32 %v4827, %v4832
        %v4834 = vmul.f32 %v4828, %v4832
        %v4835 = vmul.f32 %v4829, %v4832
        %v4836 = vmul.f32 %v4830, %v4832
        %v4837 = vld [vmem:[#allocation2 + $0x1610] sm:$0x1]
        %v4838 = vperm.slane %v4837, 0
        %v4839 = vadd.f32 %v4833, %v4838
        %v4840 = vadd.f32 %v4834, %v4838
        %v4841 = vadd.f32 %v4835, %v4838
        %v4842 = vadd.f32 %v4836, %v4838
        %v4843 = vadd.f32 %v4839, %v4334
        %v4844 = vadd.f32 %v4840, %v4337
        %v4845 = vadd.f32 %v4841, %v4340
        %v4846 = vadd.f32 %v4842, %v4343
        %v4847 = vmax.f32 %v4843, 0.0
        %v4848 = vmax.f32 %v4844, 0.0
        %v4849 = vmax.f32 %v4845, 0.0
        %v4850 = vmax.f32 %v4846, 0.0
        %v4851 = vld [vmem:[#allocation2 + $0x1618] sm:$0xff]
        %v4852 = vld [vmem:[#allocation2 + $0x1620] sm:$0xff]
        %v4853 = vld [vmem:[#allocation2 + $0x1628] sm:$0xff]
        %v4854 = vld [vmem:[#allocation2 + $0x1630] sm:$0x3]
        %v4855 = vadd.f32 %v4847, %v4851
        %v4856 = vadd.f32 %v4848, %v4852
        %v4857 = vadd.f32 %v4849, %v4853
        %v4858 = vadd.f32 %v4850, %v4854
        %v4859 = vld [vmem:[#allocation2 + $0x1638] sm:$0xff]
        %v4860 = vld [vmem:[#allocation2 + $0x1640] sm:$0xff]
        %v4861 = vld [vmem:[#allocation2 + $0x1648] sm:$0xff]
        %v4862 = vld [vmem:[#allocation2 + $0x1650] sm:$0xff]
        %v4863 = vld [vmem:[#allocation2 + $0x1658] sm:$0xff]
        %v4864 = vld [vmem:[#allocation2 + $0x1660] sm:$0xff]
        %v4865 = vld [vmem:[#allocation2 + $0x1668] sm:$0xff]
        %v4866 = vld [vmem:[#allocation2 + $0x1670] sm:$0xff]
        %v4867 = vld [vmem:[#allocation2 + $0x1678] sm:$0xff]
        %v4868 = vld [vmem:[#allocation2 + $0x1680] sm:$0xff]
        %v4869 = vld [vmem:[#allocation2 + $0x1688] sm:$0xff]
        %v4870 = vld [vmem:[#allocation2 + $0x1690] sm:$0xff]
        %v4871 = vld [vmem:[#allocation2 + $0x1698] sm:$0xff]
        %v4872 = vld [vmem:[#allocation2 + $0x16a0] sm:$0xff]
        %v4873 = vld [vmem:[#allocation2 + $0x16a8] sm:$0xff]
        %v4874 = vld [vmem:[#allocation2 + $0x16b0] sm:$0xff]
        %v4875 = vld [vmem:[#allocation2 + $0x16b8] sm:$0x1]
        %v4876 = vperm.slane %v4875, 0
        %4877 = vmatpush.msra.mxu0 %v4874
        %4878 = vmatpush.msra.mxu0 %v4873
        %4879 = vmatpush.msra.mxu0 %v4872
        %4880 = vmatpush.msra.mxu0 %v4871
        %4881 = vmatpush.msra.mxu0 %v4870
        %4882 = vmatpush.msra.mxu0 %v4869
        %4883 = vmatpush.msra.mxu0 %v4868
        %4884 = vmatpush.msra.mxu0 %v4867
        %4885 = vmatpush.msra.mxu0 %v4866
        %4886 = vmatpush.msra.mxu0 %v4865
        %4887 = vmatpush.msra.mxu0 %v4864
        %4888 = vmatpush.msra.mxu0 %v4863
        %4889 = vmatpush.msra.mxu0 %v4862
        %4890 = vmatpush.msra.mxu0 %v4861
        %4891 = vmatpush.msra.mxu0 %v4860
        %4892 = vmatpush.msra.mxu0 %v4859
        %4893 = vmatmul.f32.gmra.mxu0 %v4855
        %v4894 = vpop.f32.mrf.mxu0
        %v4895 = vadd.f32 %v4876, %v4894
        %4896 = vmatmul.f32.gmra.mxu0 %v4856
        %v4897 = vpop.f32.mrf.mxu0
        %v4898 = vadd.f32 %v4876, %v4897
        %4899 = vmatmul.f32.gmra.mxu0 %v4857
        %v4900 = vpop.f32.mrf.mxu0
        %v4901 = vadd.f32 %v4876, %v4900
        %4902 = vmatmul.f32.gmra.mxu0 %v4858
        %v4903 = vpop.f32.mrf.mxu0
        %v4904 = vadd.f32 %v4876, %v4903
        %4905 = vdwg.mxu0
        %v4906 = vld [vmem:[#allocation2 + $0x16c0] sm:$0xff]
        %v4907 = vld [vmem:[#allocation2 + $0x16c8] sm:$0xff]
        %v4908 = vld [vmem:[#allocation2 + $0x16d0] sm:$0xff]
        %v4909 = vld [vmem:[#allocation2 + $0x16d8] sm:$0xff]
        %v4910 = vld [vmem:[#allocation2 + $0x16e0] sm:$0xff]
        %v4911 = vld [vmem:[#allocation2 + $0x16e8] sm:$0xff]
        %v4912 = vld [vmem:[#allocation2 + $0x16f0] sm:$0xff]
        %v4913 = vld [vmem:[#allocation2 + $0x16f8] sm:$0xff]
        %v4914 = vld [vmem:[#allocation2 + $0x1700] sm:$0xff]
        %v4915 = vld [vmem:[#allocation2 + $0x1708] sm:$0xff]
        %v4916 = vld [vmem:[#allocation2 + $0x1710] sm:$0xff]
        %v4917 = vld [vmem:[#allocation2 + $0x1718] sm:$0xff]
        %v4918 = vld [vmem:[#allocation2 + $0x1720] sm:$0xff]
        %v4919 = vld [vmem:[#allocation2 + $0x1728] sm:$0xff]
        %v4920 = vld [vmem:[#allocation2 + $0x1730] sm:$0xff]
        %v4921 = vld [vmem:[#allocation2 + $0x1738] sm:$0xff]
        %v4922 = vld [vmem:[#allocation2 + $0x1740] sm:$0x1]
        %v4923 = vperm.slane %v4922, 0
        %4924 = vmatpush.msra.mxu0 %v4921
        %4925 = vmatpush.msra.mxu0 %v4920
        %4926 = vmatpush.msra.mxu0 %v4919
        %4927 = vmatpush.msra.mxu0 %v4918
        %4928 = vmatpush.msra.mxu0 %v4917
        %4929 = vmatpush.msra.mxu0 %v4916
        %4930 = vmatpush.msra.mxu0 %v4915
        %4931 = vmatpush.msra.mxu0 %v4914
        %4932 = vmatpush.msra.mxu0 %v4913
        %4933 = vmatpush.msra.mxu0 %v4912
        %4934 = vmatpush.msra.mxu0 %v4911
        %4935 = vmatpush.msra.mxu0 %v4910
        %4936 = vmatpush.msra.mxu0 %v4909
        %4937 = vmatpush.msra.mxu0 %v4908
        %4938 = vmatpush.msra.mxu0 %v4907
        %4939 = vmatpush.msra.mxu0 %v4906
        %4940 = vmatmul.f32.gmra.mxu0 %v4855
        %v4941 = vpop.f32.mrf.mxu0
        %v4942 = vadd.f32 %v4923, %v4941
        %4943 = vmatmul.f32.gmra.mxu0 %v4856
        %v4944 = vpop.f32.mrf.mxu0
        %v4945 = vadd.f32 %v4923, %v4944
        %4946 = vmatmul.f32.gmra.mxu0 %v4857
        %v4947 = vpop.f32.mrf.mxu0
        %v4948 = vadd.f32 %v4923, %v4947
        %4949 = vmatmul.f32.gmra.mxu0 %v4858
        %v4950 = vpop.f32.mrf.mxu0
        %v4951 = vadd.f32 %v4923, %v4950
        %4952 = vdwg.mxu0
        %v4953 = vld [vmem:[#allocation2 + $0x1748] sm:$0xff]
        %v4954 = vld [vmem:[#allocation2 + $0x1750] sm:$0xff]
        %v4955 = vld [vmem:[#allocation2 + $0x1758] sm:$0xff]
        %v4956 = vld [vmem:[#allocation2 + $0x1760] sm:$0xff]
        %v4957 = vld [vmem:[#allocation2 + $0x1768] sm:$0xff]
        %v4958 = vld [vmem:[#allocation2 + $0x1770] sm:$0xff]
        %v4959 = vld [vmem:[#allocation2 + $0x1778] sm:$0xff]
        %v4960 = vld [vmem:[#allocation2 + $0x1780] sm:$0xff]
        %v4961 = vld [vmem:[#allocation2 + $0x1788] sm:$0xff]
        %v4962 = vld [vmem:[#allocation2 + $0x1790] sm:$0xff]
        %v4963 = vld [vmem:[#allocation2 + $0x1798] sm:$0xff]
        %v4964 = vld [vmem:[#allocation2 + $0x17a0] sm:$0xff]
        %v4965 = vld [vmem:[#allocation2 + $0x17a8] sm:$0xff]
        %v4966 = vld [vmem:[#allocation2 + $0x17b0] sm:$0xff]
        %v4967 = vld [vmem:[#allocation2 + $0x17b8] sm:$0xff]
        %v4968 = vld [vmem:[#allocation2 + $0x17c0] sm:$0xff]
        %v4969 = vld [vmem:[#allocation2 + $0x17c8] sm:$0x1]
        %v4970 = vperm.slane %v4969, 0
        %4971 = vmatpush.msra.mxu0 %v4968
        %4972 = vmatpush.msra.mxu0 %v4967
        %4973 = vmatpush.msra.mxu0 %v4966
        %4974 = vmatpush.msra.mxu0 %v4965
        %4975 = vmatpush.msra.mxu0 %v4964
        %4976 = vmatpush.msra.mxu0 %v4963
        %4977 = vmatpush.msra.mxu0 %v4962
        %4978 = vmatpush.msra.mxu0 %v4961
        %4979 = vmatpush.msra.mxu0 %v4960
        %4980 = vmatpush.msra.mxu0 %v4959
        %4981 = vmatpush.msra.mxu0 %v4958
        %4982 = vmatpush.msra.mxu0 %v4957
        %4983 = vmatpush.msra.mxu0 %v4956
        %4984 = vmatpush.msra.mxu0 %v4955
        %4985 = vmatpush.msra.mxu0 %v4954
        %4986 = vmatpush.msra.mxu0 %v4953
        %4987 = vmatmul.f32.gmra.mxu0 %v4855
        %v4988 = vpop.f32.mrf.mxu0
        %v4989 = vadd.f32 %v4970, %v4988
        %4990 = vmatmul.f32.gmra.mxu0 %v4856
        %v4991 = vpop.f32.mrf.mxu0
        %v4992 = vadd.f32 %v4970, %v4991
        %4993 = vmatmul.f32.gmra.mxu0 %v4857
        %v4994 = vpop.f32.mrf.mxu0
        %v4995 = vadd.f32 %v4970, %v4994
        %4996 = vmatmul.f32.gmra.mxu0 %v4858
        %v4997 = vpop.f32.mrf.mxu0
        %v4998 = vadd.f32 %v4970, %v4997
        %4999 = vdwg.mxu0
        %5000 = vmatpush.xpose.msra.mxu0 0.0
        %5001 = vmatpush.xpose.msra.mxu0 0.0
        %5002 = vmatpush.xpose.msra.mxu0 0.0
        %5003 = vmatpush.xpose.msra.mxu0 0.0
        %5004 = vmatpush.xpose.msra.mxu0 0.0
        %5005 = vmatpush.xpose.msra.mxu0 0.0
        %5006 = vmatpush.xpose.msra.mxu0 0.0
        %5007 = vmatpush.xpose.msra.mxu0 0.0
        %5008 = vmatpush.xpose.msra.mxu0 0.0
        %5009 = vmatpush.xpose.msra.mxu0 0.0
        %5010 = vmatpush.xpose.msra.mxu0 0.0
        %5011 = vmatpush.xpose.msra.mxu0 0.0
        %5012 = vmatpush.xpose.msra.mxu0 %v4951
        %5013 = vmatpush.xpose.msra.mxu0 %v4948
        %5014 = vmatpush.xpose.msra.mxu0 %v4945
        %5015 = vmatpush.xpose.msra.mxu0 %v4942
        %5016 = vmatmul.f32.gmra.mxu0 %v4895
        %v5017 = vpop.f32.mrf.mxu0
        %v5018 = vadd.f32 0.0, %v5017
        %5019 = vmatmul.f32.gmra.mxu0 %v4898
        %v5020 = vpop.f32.mrf.mxu0
        %v5021 = vadd.f32 0.0, %v5020
        %5022 = vmatmul.f32.gmra.mxu0 %v4901
        %v5023 = vpop.f32.mrf.mxu0
        %v5024 = vadd.f32 0.0, %v5023
        %5025 = vmatmul.f32.gmra.mxu0 %v4904
        %v5026 = vpop.f32.mrf.mxu0
        %v5027 = vadd.f32 0.0, %v5026
        %5028 = vdwg.mxu0
        %v5029 = vmul.f32 %v5018, 0.11785113
        %v5030 = vmul.f32 %v5021, 0.11785113
        %v5031 = vmul.f32 %v5024, 0.11785113
        %v5032 = vmul.f32 %v5027, 0.11785113
        %v5033 = vsel %vm3836, %v5029, -inf
        %5034 = vmax.xlane.f32.xlu0 %v5033
        %v5035 = vpop.xlane.xlu0 %5034
        %v5036 = vsel %vm3836, %v5030, -inf
        %5037 = vmax.xlane.f32.xlu0 %v5036
        %v5038 = vpop.xlane.xlu0 %5037
        %v5039 = vsel %vm3836, %v5031, -inf
        %5040 = vmax.xlane.f32.xlu0 %v5039
        %v5041 = vpop.xlane.xlu0 %5040
        %v5042 = vsel %vm4218, %v5032, -inf
        %5043 = vmax.xlane.f32.xlu0 %v5042
        %v5044 = vpop.xlane.xlu0 %5043
        %v5045 = vsub.f32 %v5029, %v5035
        %v5046 = vsub.f32 %v5030, %v5038
        %v5047 = vsub.f32 %v5031, %v5041
        %v5048 = vsub.f32 %v5032, %v5044
        %v5049 = vmul.f32 %v5045, 1.442695
        %v5050 = vpow.pop %v5049
        %v5051 = vmul.f32 %v5046, 1.442695
        %v5052 = vpow.pop %v5051
        %v5053 = vmul.f32 %v5047, 1.442695
        %v5054 = vpow.pop %v5053
        %v5055 = vmul.f32 %v5048, 1.442695
        %v5056 = vpow.pop %v5055
        %v5057 = vsel %vm3836, %v5050, 0.0
        %5058 = vadd.xlane.f32.xlu0 %v5057
        %v5059 = vpop.xlane.xlu0 %5058
        %v5060 = vsel %vm3836, %v5052, 0.0
        %5061 = vadd.xlane.f32.xlu0 %v5060
        %v5062 = vpop.xlane.xlu0 %5061
        %v5063 = vsel %vm3836, %v5054, 0.0
        %5064 = vadd.xlane.f32.xlu0 %v5063
        %v5065 = vpop.xlane.xlu0 %5064
        %v5066 = vsel %vm4218, %v5056, 0.0
        %5067 = vadd.xlane.f32.xlu0 %v5066
        %v5068 = vpop.xlane.xlu0 %5067
        %v5069 = vrcp.pop %v5059
        %v5070 = vrcp.pop %v5062
        %v5071 = vrcp.pop %v5065
        %v5072 = vrcp.pop %v5068
        %v5073 = vmul.f32 %v5050, %v5069
        %v5074 = vmul.f32 %v5052, %v5070
        %v5075 = vmul.f32 %v5054, %v5071
        %v5076 = vmul.f32 %v5056, %v5072
        %v5078 = vsel %vm3836, %v5073, 0
        %v5081 = vsel %vm3836, %v5074, 0
        %v5084 = vsel %vm3836, %v5075, 0
        %v5087 = vsel %vm3836, %v5076, 0
        %v5090 = vsel %vm3845, %v4998, 0
        %5092 = vmatpush.msra.mxu0 0.0
        %5093 = vmatpush.msra.mxu0 0.0
        %5094 = vmatpush.msra.mxu0 0.0
        %5095 = vmatpush.msra.mxu0 0.0
        %5096 = vmatpush.msra.mxu0 0.0
        %5097 = vmatpush.msra.mxu0 0.0
        %5098 = vmatpush.msra.mxu0 0.0
        %5099 = vmatpush.msra.mxu0 0.0
        %5100 = vmatpush.msra.mxu0 0.0
        %5101 = vmatpush.msra.mxu0 0.0
        %5102 = vmatpush.msra.mxu0 0.0
        %5103 = vmatpush.msra.mxu0 0.0
        %5104 = vmatpush.msra.mxu0 %v5090
        %5105 = vmatpush.msra.mxu0 %v4995
        %5106 = vmatpush.msra.mxu0 %v4992
        %5107 = vmatpush.msra.mxu0 %v4989
        %5108 = vmatmul.f32.gmra.mxu0 %v5078
        %v5109 = vpop.f32.mrf.mxu0
        %v5110 = vadd.f32 0.0, %v5109
        %5111 = vmatmul.f32.gmra.mxu0 %v5081
        %v5112 = vpop.f32.mrf.mxu0
        %v5113 = vadd.f32 0.0, %v5112
        %5114 = vmatmul.f32.gmra.mxu0 %v5084
        %v5115 = vpop.f32.mrf.mxu0
        %v5116 = vadd.f32 0.0, %v5115
        %5117 = vmatmul.f32.gmra.mxu0 %v5087
        %v5118 = vpop.f32.mrf.mxu0
        %v5119 = vadd.f32 0.0, %v5118
        %5120 = vdwg.mxu0
        %v5121 = vld [vmem:[#allocation2 + $0x17d0] sm:$0xff]
        %v5122 = vld [vmem:[#allocation2 + $0x17d8] sm:$0xff]
        %v5123 = vld [vmem:[#allocation2 + $0x17e0] sm:$0xff]
        %v5124 = vld [vmem:[#allocation2 + $0x17e8] sm:$0xff]
        %v5125 = vld [vmem:[#allocation2 + $0x17f0] sm:$0xff]
        %v5126 = vld [vmem:[#allocation2 + $0x17f8] sm:$0xff]
        %v5127 = vld [vmem:[#allocation2 + $0x1800] sm:$0xff]
        %v5128 = vld [vmem:[#allocation2 + $0x1808] sm:$0xff]
        %v5129 = vld [vmem:[#allocation2 + $0x1810] sm:$0xff]
        %v5130 = vld [vmem:[#allocation2 + $0x1818] sm:$0xff]
        %v5131 = vld [vmem:[#allocation2 + $0x1820] sm:$0xff]
        %v5132 = vld [vmem:[#allocation2 + $0x1828] sm:$0xff]
        %v5133 = vld [vmem:[#allocation2 + $0x1830] sm:$0xff]
        %v5134 = vld [vmem:[#allocation2 + $0x1838] sm:$0xff]
        %v5135 = vld [vmem:[#allocation2 + $0x1840] sm:$0xff]
        %v5136 = vld [vmem:[#allocation2 + $0x1848] sm:$0xff]
        %v5137 = vld [vmem:[#allocation2 + $0x1850] sm:$0x1]
        %v5138 = vperm.slane %v5137, 0
        %5139 = vmatpush.msra.mxu0 %v5136
        %5140 = vmatpush.msra.mxu0 %v5135
        %5141 = vmatpush.msra.mxu0 %v5134
        %5142 = vmatpush.msra.mxu0 %v5133
        %5143 = vmatpush.msra.mxu0 %v5132
        %5144 = vmatpush.msra.mxu0 %v5131
        %5145 = vmatpush.msra.mxu0 %v5130
        %5146 = vmatpush.msra.mxu0 %v5129
        %5147 = vmatpush.msra.mxu0 %v5128
        %5148 = vmatpush.msra.mxu0 %v5127
        %5149 = vmatpush.msra.mxu0 %v5126
        %5150 = vmatpush.msra.mxu0 %v5125
        %5151 = vmatpush.msra.mxu0 %v5124
        %5152 = vmatpush.msra.mxu0 %v5123
        %5153 = vmatpush.msra.mxu0 %v5122
        %5154 = vmatpush.msra.mxu0 %v5121
        %5155 = vmatmul.f32.gmra.mxu0 %v5110
        %v5156 = vpop.f32.mrf.mxu0
        %v5157 = vadd.f32 %v5138, %v5156
        %5158 = vmatmul.f32.gmra.mxu0 %v5113
        %v5159 = vpop.f32.mrf.mxu0
        %v5160 = vadd.f32 %v5138, %v5159
        %5161 = vmatmul.f32.gmra.mxu0 %v5116
        %v5162 = vpop.f32.mrf.mxu0
        %v5163 = vadd.f32 %v5138, %v5162
        %5164 = vmatmul.f32.gmra.mxu0 %v5119
        %v5165 = vpop.f32.mrf.mxu0
        %v5166 = vadd.f32 %v5138, %v5165
        %5167 = vdwg.mxu0
        %v5168 = vsel %vm3836, %v891, 0
        %v5170 = vsel %vm3836, %v892, 0
        %v5173 = vsel %vm3845, %v5166, 0
        %5175 = vmatpush.msra.mxu0 0.0
        %5176 = vmatpush.msra.mxu0 0.0
        %5177 = vmatpush.msra.mxu0 0.0
        %5178 = vmatpush.msra.mxu0 0.0
        %5179 = vmatpush.msra.mxu0 0.0
        %5180 = vmatpush.msra.mxu0 0.0
        %5181 = vmatpush.msra.mxu0 0.0
        %5182 = vmatpush.msra.mxu0 0.0
        %5183 = vmatpush.msra.mxu0 0.0
        %5184 = vmatpush.msra.mxu0 0.0
        %5185 = vmatpush.msra.mxu0 0.0
        %5186 = vmatpush.msra.mxu0 0.0
        %5187 = vmatpush.msra.mxu0 %v5173
        %5188 = vmatpush.msra.mxu0 %v5163
        %5189 = vmatpush.msra.mxu0 %v5160
        %5190 = vmatpush.msra.mxu0 %v5157
        %5191 = vmatmul.f32.gmra.mxu0 %v5168
        %v5192 = vpop.f32.mrf.mxu0
        %v5193 = vadd.f32 0.0, %v5192
        %5194 = vmatmul.f32.gmra.mxu0 %v5170
        %v5195 = vpop.f32.mrf.mxu0
        %v5196 = vadd.f32 0.0, %v5195
        %5197 = vdwg.mxu0
        %v5198 = vld [vmem:[#allocation2 + $0x1b78] sm:$0xff]
        %v5199 = vld [vmem:[#allocation2 + $0x1b80] sm:$0xff]
        %v5200 = vld [vmem:[#allocation2 + $0x1b88] sm:$0xff]
        %v5201 = vld [vmem:[#allocation2 + $0x1b90] sm:$0xff]
        %v5202 = vld [vmem:[#allocation2 + $0x1b98] sm:$0xff]
        %v5203 = vld [vmem:[#allocation2 + $0x1ba0] sm:$0xff]
        %v5204 = vld [vmem:[#allocation2 + $0x1ba8] sm:$0xff]
        %v5205 = vld [vmem:[#allocation2 + $0x1bb0] sm:$0xff]
        %v5206 = vld [vmem:[#allocation2 + $0x1bb8] sm:$0xff]
        %v5207 = vld [vmem:[#allocation2 + $0x1bc0] sm:$0xff]
        %v5208 = vld [vmem:[#allocation2 + $0x1bc8] sm:$0xff]
        %v5209 = vld [vmem:[#allocation2 + $0x1bd0] sm:$0xff]
        %v5210 = vld [vmem:[#allocation2 + $0x1bd8] sm:$0xff]
        %v5211 = vld [vmem:[#allocation2 + $0x1be0] sm:$0xff]
        %v5212 = vld [vmem:[#allocation2 + $0x1be8] sm:$0xff]
        %v5213 = vld [vmem:[#allocation2 + $0x1bf0] sm:$0xff]
        %5214 = vmatpush.msra.mxu0 %v5213
        %5215 = vmatpush.msra.mxu0 %v5212
        %5216 = vmatpush.msra.mxu0 %v5211
        %5217 = vmatpush.msra.mxu0 %v5210
        %5218 = vmatpush.msra.mxu0 %v5209
        %5219 = vmatpush.msra.mxu0 %v5208
        %5220 = vmatpush.msra.mxu0 %v5207
        %5221 = vmatpush.msra.mxu0 %v5206
        %5222 = vmatpush.msra.mxu0 %v5205
        %5223 = vmatpush.msra.mxu0 %v5204
        %5224 = vmatpush.msra.mxu0 %v5203
        %5225 = vmatpush.msra.mxu0 %v5202
        %5226 = vmatpush.msra.mxu0 %v5201
        %5227 = vmatpush.msra.mxu0 %v5200
        %5228 = vmatpush.msra.mxu0 %v5199
        %5229 = vmatpush.msra.mxu0 %v5198
        %5230 = vmatmul.f32.gmra.mxu0 %v5193
        %v5231 = vpop.f32.mrf.mxu0
        %v5232 = vadd.f32 0.0, %v5231
        %5233 = vmatmul.f32.gmra.mxu0 %v5196
        %v5234 = vpop.f32.mrf.mxu0
        %v5235 = vadd.f32 0.0, %v5234
        %5236 = vdwg.mxu0
        %v5237 = vld [vmem:[#allocation2 + $0x1bf8] sm:$0x1]
        %v5238 = vperm.slane %v5237, 0
        %v5239 = vmul.f32 %v5232, %v5238
        %v5240 = vmul.f32 %v5235, %v5238
        %v5241 = vld [vmem:[#allocation2 + $0x1c00] sm:$0x1]
        %v5242 = vperm.slane %v5241, 0
        %v5243 = vadd.f32 %v5239, %v5242
        %v5244 = vadd.f32 %v5240, %v5242
        %v5245 = vld [vmem:[#allocation2 + $0x1858] sm:$0xff]
        %v5246 = vld [vmem:[#allocation2 + $0x1860] sm:$0xff]
        %v5247 = vld [vmem:[#allocation2 + $0x1868] sm:$0xff]
        %v5248 = vld [vmem:[#allocation2 + $0x1870] sm:$0xff]
        %v5249 = vld [vmem:[#allocation2 + $0x1878] sm:$0xff]
        %v5250 = vld [vmem:[#allocation2 + $0x1880] sm:$0xff]
        %v5251 = vld [vmem:[#allocation2 + $0x1888] sm:$0xff]
        %v5252 = vld [vmem:[#allocation2 + $0x1890] sm:$0xff]
        %v5253 = vld [vmem:[#allocation2 + $0x1898] sm:$0xff]
        %v5254 = vld [vmem:[#allocation2 + $0x18a0] sm:$0xff]
        %v5255 = vld [vmem:[#allocation2 + $0x18a8] sm:$0xff]
        %v5256 = vld [vmem:[#allocation2 + $0x18b0] sm:$0xff]
        %v5257 = vld [vmem:[#allocation2 + $0x18b8] sm:$0xff]
        %v5258 = vld [vmem:[#allocation2 + $0x18c0] sm:$0xff]
        %v5259 = vld [vmem:[#allocation2 + $0x18c8] sm:$0xff]
        %v5260 = vld [vmem:[#allocation2 + $0x18d0] sm:$0xff]
        %5261 = vmatpush.msra.mxu0 %v5260
        %5262 = vmatpush.msra.mxu0 %v5259
        %5263 = vmatpush.msra.mxu0 %v5258
        %5264 = vmatpush.msra.mxu0 %v5257
        %5265 = vmatpush.msra.mxu0 %v5256
        %5266 = vmatpush.msra.mxu0 %v5255
        %5267 = vmatpush.msra.mxu0 %v5254
        %5268 = vmatpush.msra.mxu0 %v5253
        %5269 = vmatpush.msra.mxu0 %v5252
        %5270 = vmatpush.msra.mxu0 %v5251
        %5271 = vmatpush.msra.mxu0 %v5250
        %5272 = vmatpush.msra.mxu0 %v5249
        %5273 = vmatpush.msra.mxu0 %v5248
        %5274 = vmatpush.msra.mxu0 %v5247
        %5275 = vmatpush.msra.mxu0 %v5246
        %5276 = vmatpush.msra.mxu0 %v5245
        %5277 = vmatmul.f32.gmra.mxu0 %v5157
        %v5278 = vpop.f32.mrf.mxu0
        %v5279 = vadd.f32 0.0, %v5278
        %5280 = vmatmul.f32.gmra.mxu0 %v5160
        %v5281 = vpop.f32.mrf.mxu0
        %v5282 = vadd.f32 0.0, %v5281
        %5283 = vmatmul.f32.gmra.mxu0 %v5163
        %v5284 = vpop.f32.mrf.mxu0
        %v5285 = vadd.f32 0.0, %v5284
        %5286 = vmatmul.f32.gmra.mxu0 %v5166
        %v5287 = vpop.f32.mrf.mxu0
        %v5288 = vadd.f32 0.0, %v5287
        %5289 = vdwg.mxu0
        %v5290 = vld [vmem:[#allocation2 + $0x18d8] sm:$0xff]
        %v5291 = vld [vmem:[#allocation2 + $0x18e0] sm:$0xff]
        %v5292 = vld [vmem:[#allocation2 + $0x18e8] sm:$0xff]
        %v5293 = vld [vmem:[#allocation2 + $0x18f0] sm:$0xff]
        %v5294 = vld [vmem:[#allocation2 + $0x18f8] sm:$0xff]
        %v5295 = vld [vmem:[#allocation2 + $0x1900] sm:$0xff]
        %v5296 = vld [vmem:[#allocation2 + $0x1908] sm:$0xff]
        %v5297 = vld [vmem:[#allocation2 + $0x1910] sm:$0xff]
        %v5298 = vld [vmem:[#allocation2 + $0x1918] sm:$0xff]
        %v5299 = vld [vmem:[#allocation2 + $0x1920] sm:$0xff]
        %v5300 = vld [vmem:[#allocation2 + $0x1928] sm:$0xff]
        %v5301 = vld [vmem:[#allocation2 + $0x1930] sm:$0xff]
        %v5302 = vld [vmem:[#allocation2 + $0x1938] sm:$0xff]
        %v5303 = vld [vmem:[#allocation2 + $0x1940] sm:$0xff]
        %v5304 = vld [vmem:[#allocation2 + $0x1948] sm:$0xff]
        %v5305 = vld [vmem:[#allocation2 + $0x1950] sm:$0xff]
        %5306 = vmatpush.msra.mxu0 %v5305
        %5307 = vmatpush.msra.mxu0 %v5304
        %5308 = vmatpush.msra.mxu0 %v5303
        %5309 = vmatpush.msra.mxu0 %v5302
        %5310 = vmatpush.msra.mxu0 %v5301
        %5311 = vmatpush.msra.mxu0 %v5300
        %5312 = vmatpush.msra.mxu0 %v5299
        %5313 = vmatpush.msra.mxu0 %v5298
        %5314 = vmatpush.msra.mxu0 %v5297
        %5315 = vmatpush.msra.mxu0 %v5296
        %5316 = vmatpush.msra.mxu0 %v5295
        %5317 = vmatpush.msra.mxu0 %v5294
        %5318 = vmatpush.msra.mxu0 %v5293
        %5319 = vmatpush.msra.mxu0 %v5292
        %5320 = vmatpush.msra.mxu0 %v5291
        %5321 = vmatpush.msra.mxu0 %v5290
        %5322 = vmatmul.f32.gmra.mxu0 %v5157
        %v5323 = vpop.f32.mrf.mxu0
        %v5324 = vadd.f32 0.0, %v5323
        %5325 = vmatmul.f32.gmra.mxu0 %v5160
        %v5326 = vpop.f32.mrf.mxu0
        %v5327 = vadd.f32 0.0, %v5326
        %5328 = vmatmul.f32.gmra.mxu0 %v5163
        %v5329 = vpop.f32.mrf.mxu0
        %v5330 = vadd.f32 0.0, %v5329
        %5331 = vmatmul.f32.gmra.mxu0 %v5166
        %v5332 = vpop.f32.mrf.mxu0
        %v5333 = vadd.f32 0.0, %v5332
        %5334 = vdwg.mxu0
        %v5336 = vsel %vm3845, %v5333, 0
        %5338 = vmatpush.msra.mxu0 0.0
        %5339 = vmatpush.msra.mxu0 0.0
        %5340 = vmatpush.msra.mxu0 0.0
        %5341 = vmatpush.msra.mxu0 0.0
        %5342 = vmatpush.msra.mxu0 0.0
        %5343 = vmatpush.msra.mxu0 0.0
        %5344 = vmatpush.msra.mxu0 0.0
        %5345 = vmatpush.msra.mxu0 0.0
        %5346 = vmatpush.msra.mxu0 0.0
        %5347 = vmatpush.msra.mxu0 0.0
        %5348 = vmatpush.msra.mxu0 0.0
        %5349 = vmatpush.msra.mxu0 0.0
        %5350 = vmatpush.msra.mxu0 %v5336
        %5351 = vmatpush.msra.mxu0 %v5330
        %5352 = vmatpush.msra.mxu0 %v5327
        %5353 = vmatpush.msra.mxu0 %v5324
        %5354 = vmatmul.f32.gmra.mxu0 %v5168
        %v5355 = vpop.f32.mrf.mxu0
        %v5356 = vadd.f32 0.0, %v5355
        %5357 = vmatmul.f32.gmra.mxu0 %v5170
        %v5358 = vpop.f32.mrf.mxu0
        %v5359 = vadd.f32 0.0, %v5358
        %5360 = vdwg.mxu0
        %v5361 = vsel %vm3836, %v1125, 0
        %v5363 = vsel %vm3836, %v1126, 0
        %v5366 = vsel %vm3845, %v5288, 0
        %5368 = vmatpush.msra.mxu0 0.0
        %5369 = vmatpush.msra.mxu0 0.0
        %5370 = vmatpush.msra.mxu0 0.0
        %5371 = vmatpush.msra.mxu0 0.0
        %5372 = vmatpush.msra.mxu0 0.0
        %5373 = vmatpush.msra.mxu0 0.0
        %5374 = vmatpush.msra.mxu0 0.0
        %5375 = vmatpush.msra.mxu0 0.0
        %5376 = vmatpush.msra.mxu0 0.0
        %5377 = vmatpush.msra.mxu0 0.0
        %5378 = vmatpush.msra.mxu0 0.0
        %5379 = vmatpush.msra.mxu0 0.0
        %5380 = vmatpush.msra.mxu0 %v5366
        %5381 = vmatpush.msra.mxu0 %v5285
        %5382 = vmatpush.msra.mxu0 %v5282
        %5383 = vmatpush.msra.mxu0 %v5279
        %5384 = vmatmul.f32.gmra.mxu0 %v5361
        %v5385 = vpop.f32.mrf.mxu0
        %v5386 = vadd.f32 %v5356, %v5385
        %5387 = vmatmul.f32.gmra.mxu0 %v5363
        %v5388 = vpop.f32.mrf.mxu0
        %v5389 = vadd.f32 %v5359, %v5388
        %5390 = vdwg.mxu0
        %v5391 = vld [vmem:[#allocation2 + $0x1958] sm:$0xff]
        %v5392 = vld [vmem:[#allocation2 + $0x1960] sm:$0xff]
        %v5393 = vld [vmem:[#allocation2 + $0x1968] sm:$0xff]
        %v5394 = vld [vmem:[#allocation2 + $0x1970] sm:$0xff]
        %v5395 = vld [vmem:[#allocation2 + $0x1978] sm:$0xff]
        %v5396 = vld [vmem:[#allocation2 + $0x1980] sm:$0xff]
        %v5397 = vld [vmem:[#allocation2 + $0x1988] sm:$0xff]
        %v5398 = vld [vmem:[#allocation2 + $0x1990] sm:$0xff]
        %v5399 = vld [vmem:[#allocation2 + $0x1998] sm:$0xff]
        %v5400 = vld [vmem:[#allocation2 + $0x19a0] sm:$0xff]
        %v5401 = vld [vmem:[#allocation2 + $0x19a8] sm:$0xff]
        %v5402 = vld [vmem:[#allocation2 + $0x19b0] sm:$0xff]
        %v5403 = vld [vmem:[#allocation2 + $0x19b8] sm:$0xff]
        %v5404 = vld [vmem:[#allocation2 + $0x19c0] sm:$0xff]
        %v5405 = vld [vmem:[#allocation2 + $0x19c8] sm:$0xff]
        %v5406 = vld [vmem:[#allocation2 + $0x19d0] sm:$0xff]
        %5407 = vmatpush.msra.mxu0 %v5406
        %5408 = vmatpush.msra.mxu0 %v5405
        %5409 = vmatpush.msra.mxu0 %v5404
        %5410 = vmatpush.msra.mxu0 %v5403
        %5411 = vmatpush.msra.mxu0 %v5402
        %5412 = vmatpush.msra.mxu0 %v5401
        %5413 = vmatpush.msra.mxu0 %v5400
        %5414 = vmatpush.msra.mxu0 %v5399
        %5415 = vmatpush.msra.mxu0 %v5398
        %5416 = vmatpush.msra.mxu0 %v5397
        %5417 = vmatpush.msra.mxu0 %v5396
        %5418 = vmatpush.msra.mxu0 %v5395
        %5419 = vmatpush.msra.mxu0 %v5394
        %5420 = vmatpush.msra.mxu0 %v5393
        %5421 = vmatpush.msra.mxu0 %v5392
        %5422 = vmatpush.msra.mxu0 %v5391
        %5423 = vmatmul.f32.gmra.mxu0 %v5157
        %v5424 = vpop.f32.mrf.mxu0
        %v5425 = vadd.f32 0.0, %v5424
        %5426 = vmatmul.f32.gmra.mxu0 %v5160
        %v5427 = vpop.f32.mrf.mxu0
        %v5428 = vadd.f32 0.0, %v5427
        %5429 = vmatmul.f32.gmra.mxu0 %v5163
        %v5430 = vpop.f32.mrf.mxu0
        %v5431 = vadd.f32 0.0, %v5430
        %5432 = vmatmul.f32.gmra.mxu0 %v5166
        %v5433 = vpop.f32.mrf.mxu0
        %v5434 = vadd.f32 0.0, %v5433
        %5435 = vdwg.mxu0
        %v5436 = vsel %vm3836, %v1400, 0
        %v5438 = vsel %vm3836, %v1401, 0
        %v5441 = vsel %vm3845, %v5434, 0
        %5443 = vmatpush.msra.mxu0 0.0
        %5444 = vmatpush.msra.mxu0 0.0
        %5445 = vmatpush.msra.mxu0 0.0
        %5446 = vmatpush.msra.mxu0 0.0
        %5447 = vmatpush.msra.mxu0 0.0
        %5448 = vmatpush.msra.mxu0 0.0
        %5449 = vmatpush.msra.mxu0 0.0
        %5450 = vmatpush.msra.mxu0 0.0
        %5451 = vmatpush.msra.mxu0 0.0
        %5452 = vmatpush.msra.mxu0 0.0
        %5453 = vmatpush.msra.mxu0 0.0
        %5454 = vmatpush.msra.mxu0 0.0
        %5455 = vmatpush.msra.mxu0 %v5441
        %5456 = vmatpush.msra.mxu0 %v5431
        %5457 = vmatpush.msra.mxu0 %v5428
        %5458 = vmatpush.msra.mxu0 %v5425
        %5459 = vmatmul.f32.gmra.mxu0 %v5436
        %v5460 = vpop.f32.mrf.mxu0
        %v5461 = vadd.f32 0.0, %v5460
        %5462 = vmatmul.f32.gmra.mxu0 %v5438
        %v5463 = vpop.f32.mrf.mxu0
        %v5464 = vadd.f32 0.0, %v5463
        %5465 = vdwg.mxu0
        %v5466 = vadd.f32 %v5386, %v5461
        %v5467 = vadd.f32 %v5389, %v5464
        %v5468 = vld [vmem:[#allocation2 + $0x19d8] sm:$0x1]
        %v5469 = vperm.slane %v5468, 0
        %v5470 = vmul.f32 %v5466, %v5469
        %v5471 = vmul.f32 %v5467, %v5469
        %v5472 = vld [vmem:[#allocation2 + $0x19e0] sm:$0x1]
        %v5473 = vperm.slane %v5472, 0
        %v5474 = vadd.f32 %v5470, %v5473
        %v5475 = vadd.f32 %v5471, %v5473
        %v5476 = vmax.f32 %v5474, 0.0
        %v5477 = vmax.f32 %v5475, 0.0
        %v5478 = vld [vmem:[#allocation2 + $0x19e8] sm:$0xff]
        %v5479 = vld [vmem:[#allocation2 + $0x19f0] sm:$0xff]
        %v5480 = vld [vmem:[#allocation2 + $0x19f8] sm:$0xff]
        %v5481 = vld [vmem:[#allocation2 + $0x1a00] sm:$0xff]
        %v5482 = vld [vmem:[#allocation2 + $0x1a08] sm:$0xff]
        %v5483 = vld [vmem:[#allocation2 + $0x1a10] sm:$0xff]
        %v5484 = vld [vmem:[#allocation2 + $0x1a18] sm:$0xff]
        %v5485 = vld [vmem:[#allocation2 + $0x1a20] sm:$0xff]
        %v5486 = vld [vmem:[#allocation2 + $0x1a28] sm:$0xff]
        %v5487 = vld [vmem:[#allocation2 + $0x1a30] sm:$0xff]
        %v5488 = vld [vmem:[#allocation2 + $0x1a38] sm:$0xff]
        %v5489 = vld [vmem:[#allocation2 + $0x1a40] sm:$0xff]
        %v5490 = vld [vmem:[#allocation2 + $0x1a48] sm:$0xff]
        %v5491 = vld [vmem:[#allocation2 + $0x1a50] sm:$0xff]
        %v5492 = vld [vmem:[#allocation2 + $0x1a58] sm:$0xff]
        %v5493 = vld [vmem:[#allocation2 + $0x1a60] sm:$0xff]
        %5494 = vmatpush.msra.mxu0 %v5493
        %5495 = vmatpush.msra.mxu0 %v5492
        %5496 = vmatpush.msra.mxu0 %v5491
        %5497 = vmatpush.msra.mxu0 %v5490
        %5498 = vmatpush.msra.mxu0 %v5489
        %5499 = vmatpush.msra.mxu0 %v5488
        %5500 = vmatpush.msra.mxu0 %v5487
        %5501 = vmatpush.msra.mxu0 %v5486
        %5502 = vmatpush.msra.mxu0 %v5485
        %5503 = vmatpush.msra.mxu0 %v5484
        %5504 = vmatpush.msra.mxu0 %v5483
        %5505 = vmatpush.msra.mxu0 %v5482
        %5506 = vmatpush.msra.mxu0 %v5481
        %5507 = vmatpush.msra.mxu0 %v5480
        %5508 = vmatpush.msra.mxu0 %v5479
        %5509 = vmatpush.msra.mxu0 %v5478
        %5510 = vmatmul.f32.gmra.mxu0 %v5476
        %v5511 = vpop.f32.mrf.mxu0
        %v5512 = vadd.f32 0.0, %v5511
        %5513 = vmatmul.f32.gmra.mxu0 %v5477
        %v5514 = vpop.f32.mrf.mxu0
        %v5515 = vadd.f32 0.0, %v5514
        %5516 = vdwg.mxu0
        %v5517 = vld [vmem:[#allocation2 + $0x1a68] sm:$0xff]
        %v5518 = vld [vmem:[#allocation2 + $0x1a70] sm:$0xff]
        %v5519 = vld [vmem:[#allocation2 + $0x1a78] sm:$0xff]
        %v5520 = vld [vmem:[#allocation2 + $0x1a80] sm:$0xff]
        %v5521 = vld [vmem:[#allocation2 + $0x1a88] sm:$0xff]
        %v5522 = vld [vmem:[#allocation2 + $0x1a90] sm:$0xff]
        %v5523 = vld [vmem:[#allocation2 + $0x1a98] sm:$0xff]
        %v5524 = vld [vmem:[#allocation2 + $0x1aa0] sm:$0xff]
        %v5525 = vld [vmem:[#allocation2 + $0x1aa8] sm:$0xff]
        %v5526 = vld [vmem:[#allocation2 + $0x1ab0] sm:$0xff]
        %v5527 = vld [vmem:[#allocation2 + $0x1ab8] sm:$0xff]
        %v5528 = vld [vmem:[#allocation2 + $0x1ac0] sm:$0xff]
        %v5529 = vld [vmem:[#allocation2 + $0x1ac8] sm:$0xff]
        %v5530 = vld [vmem:[#allocation2 + $0x1ad0] sm:$0xff]
        %v5531 = vld [vmem:[#allocation2 + $0x1ad8] sm:$0xff]
        %v5532 = vld [vmem:[#allocation2 + $0x1ae0] sm:$0xff]
        %5533 = vmatpush.msra.mxu0 %v5532
        %5534 = vmatpush.msra.mxu0 %v5531
        %5535 = vmatpush.msra.mxu0 %v5530
        %5536 = vmatpush.msra.mxu0 %v5529
        %5537 = vmatpush.msra.mxu0 %v5528
        %5538 = vmatpush.msra.mxu0 %v5527
        %5539 = vmatpush.msra.mxu0 %v5526
        %5540 = vmatpush.msra.mxu0 %v5525
        %5541 = vmatpush.msra.mxu0 %v5524
        %5542 = vmatpush.msra.mxu0 %v5523
        %5543 = vmatpush.msra.mxu0 %v5522
        %5544 = vmatpush.msra.mxu0 %v5521
        %5545 = vmatpush.msra.mxu0 %v5520
        %5546 = vmatpush.msra.mxu0 %v5519
        %5547 = vmatpush.msra.mxu0 %v5518
        %5548 = vmatpush.msra.mxu0 %v5517
        %5549 = vmatmul.f32.gmra.mxu0 %v5476
        %v5550 = vpop.f32.mrf.mxu0
        %v5551 = vadd.f32 0.0, %v5550
        %5552 = vmatmul.f32.gmra.mxu0 %v5477
        %v5553 = vpop.f32.mrf.mxu0
        %v5554 = vadd.f32 0.0, %v5553
        %5555 = vdwg.mxu0
        %vm5556 = vcmask 105472
        %v5557 = vsel %vm5556, %v409, 0
        %v5559 = vsel %vm5556, %v410, 0
        %v5562 = vsel %vm462, %v5554, 0
        %5564 = vmatpush.msra.mxu0 0.0
        %5565 = vmatpush.msra.mxu0 0.0
        %5566 = vmatpush.msra.mxu0 0.0
        %5567 = vmatpush.msra.mxu0 0.0
        %5568 = vmatpush.msra.mxu0 0.0
        %5569 = vmatpush.msra.mxu0 0.0
        %5570 = vmatpush.msra.mxu0 0.0
        %5571 = vmatpush.msra.mxu0 0.0
        %5572 = vmatpush.msra.mxu0 0.0
        %5573 = vmatpush.msra.mxu0 0.0
        %5574 = vmatpush.msra.mxu0 0.0
        %5575 = vmatpush.msra.mxu0 0.0
        %5576 = vmatpush.msra.mxu0 0.0
        %5577 = vmatpush.msra.mxu0 0.0
        %5578 = vmatpush.msra.mxu0 %v5562
        %5579 = vmatpush.msra.mxu0 %v5551
        %5580 = vmatmul.f32.gmra.mxu0 %v5557
        %v5581 = vpop.f32.mrf.mxu0
        %v5582 = vadd.f32 0.0, %v5581
        %5583 = vmatmul.f32.gmra.mxu0 %v5559
        %v5584 = vpop.f32.mrf.mxu0
        %v5585 = vadd.f32 0.0, %v5584
        %5586 = vdwg.mxu0
        %v5587 = vsel %vm5556, %v298, 0
        %v5589 = vsel %vm5556, %v299, 0
        %v5592 = vsel %vm462, %v5515, 0
        %5594 = vmatpush.msra.mxu0 0.0
        %5595 = vmatpush.msra.mxu0 0.0
        %5596 = vmatpush.msra.mxu0 0.0
        %5597 = vmatpush.msra.mxu0 0.0
        %5598 = vmatpush.msra.mxu0 0.0
        %5599 = vmatpush.msra.mxu0 0.0
        %5600 = vmatpush.msra.mxu0 0.0
        %5601 = vmatpush.msra.mxu0 0.0
        %5602 = vmatpush.msra.mxu0 0.0
        %5603 = vmatpush.msra.mxu0 0.0
        %5604 = vmatpush.msra.mxu0 0.0
        %5605 = vmatpush.msra.mxu0 0.0
        %5606 = vmatpush.msra.mxu0 0.0
        %5607 = vmatpush.msra.mxu0 0.0
        %5608 = vmatpush.msra.mxu0 %v5592
        %5609 = vmatpush.msra.mxu0 %v5512
        %5610 = vmatmul.f32.gmra.mxu0 %v5587
        %v5611 = vpop.f32.mrf.mxu0
        %v5612 = vadd.f32 %v5582, %v5611
        %5613 = vmatmul.f32.gmra.mxu0 %v5589
        %v5614 = vpop.f32.mrf.mxu0
        %v5615 = vadd.f32 %v5585, %v5614
        %5616 = vdwg.mxu0
        %v5617 = vld [vmem:[#allocation2 + $0x1ae8] sm:$0xff]
        %v5618 = vld [vmem:[#allocation2 + $0x1af0] sm:$0xff]
        %v5619 = vld [vmem:[#allocation2 + $0x1af8] sm:$0xff]
        %v5620 = vld [vmem:[#allocation2 + $0x1b00] sm:$0xff]
        %v5621 = vld [vmem:[#allocation2 + $0x1b08] sm:$0xff]
        %v5622 = vld [vmem:[#allocation2 + $0x1b10] sm:$0xff]
        %v5623 = vld [vmem:[#allocation2 + $0x1b18] sm:$0xff]
        %v5624 = vld [vmem:[#allocation2 + $0x1b20] sm:$0xff]
        %v5625 = vld [vmem:[#allocation2 + $0x1b28] sm:$0xff]
        %v5626 = vld [vmem:[#allocation2 + $0x1b30] sm:$0xff]
        %v5627 = vld [vmem:[#allocation2 + $0x1b38] sm:$0xff]
        %v5628 = vld [vmem:[#allocation2 + $0x1b40] sm:$0xff]
        %v5629 = vld [vmem:[#allocation2 + $0x1b48] sm:$0xff]
        %v5630 = vld [vmem:[#allocation2 + $0x1b50] sm:$0xff]
        %v5631 = vld [vmem:[#allocation2 + $0x1b58] sm:$0xff]
        %v5632 = vld [vmem:[#allocation2 + $0x1b60] sm:$0xff]
        %5633 = vmatpush.msra.mxu0 %v5632
        %5634 = vmatpush.msra.mxu0 %v5631
        %5635 = vmatpush.msra.mxu0 %v5630
        %5636 = vmatpush.msra.mxu0 %v5629
        %5637 = vmatpush.msra.mxu0 %v5628
        %5638 = vmatpush.msra.mxu0 %v5627
        %5639 = vmatpush.msra.mxu0 %v5626
        %5640 = vmatpush.msra.mxu0 %v5625
        %5641 = vmatpush.msra.mxu0 %v5624
        %5642 = vmatpush.msra.mxu0 %v5623
        %5643 = vmatpush.msra.mxu0 %v5622
        %5644 = vmatpush.msra.mxu0 %v5621
        %5645 = vmatpush.msra.mxu0 %v5620
        %5646 = vmatpush.msra.mxu0 %v5619
        %5647 = vmatpush.msra.mxu0 %v5618
        %5648 = vmatpush.msra.mxu0 %v5617
        %5649 = vmatmul.f32.gmra.mxu0 %v5476
        %v5650 = vpop.f32.mrf.mxu0
        %v5651 = vadd.f32 0.0, %v5650
        %5652 = vmatmul.f32.gmra.mxu0 %v5477
        %v5653 = vpop.f32.mrf.mxu0
        %v5654 = vadd.f32 0.0, %v5653
        %5655 = vdwg.mxu0
        %v5656 = vsel %vm5556, %v731, 0
        %v5658 = vsel %vm5556, %v732, 0
        %v5661 = vsel %vm462, %v5654, 0
        %5663 = vmatpush.msra.mxu0 0.0
        %5664 = vmatpush.msra.mxu0 0.0
        %5665 = vmatpush.msra.mxu0 0.0
        %5666 = vmatpush.msra.mxu0 0.0
        %5667 = vmatpush.msra.mxu0 0.0
        %5668 = vmatpush.msra.mxu0 0.0
        %5669 = vmatpush.msra.mxu0 0.0
        %5670 = vmatpush.msra.mxu0 0.0
        %5671 = vmatpush.msra.mxu0 0.0
        %5672 = vmatpush.msra.mxu0 0.0
        %5673 = vmatpush.msra.mxu0 0.0
        %5674 = vmatpush.msra.mxu0 0.0
        %5675 = vmatpush.msra.mxu0 0.0
        %5676 = vmatpush.msra.mxu0 0.0
        %5677 = vmatpush.msra.mxu0 %v5661
        %5678 = vmatpush.msra.mxu0 %v5651
        %5679 = vmatmul.f32.gmra.mxu0 %v5656
        %v5680 = vpop.f32.mrf.mxu0
        %v5681 = vadd.f32 0.0, %v5680
        %5682 = vmatmul.f32.gmra.mxu0 %v5658
        %v5683 = vpop.f32.mrf.mxu0
        %v5684 = vadd.f32 0.0, %v5683
        %5685 = vdwg.mxu0
        %v5686 = vadd.f32 %v5612, %v5681
        %v5687 = vadd.f32 %v5615, %v5684
        %v5688 = vld [vmem:[#allocation2 + $0x1b68] sm:$0x1]
        %v5689 = vperm.slane %v5688, 0
        %v5690 = vmul.f32 %v5686, %v5689
        %v5691 = vmul.f32 %v5687, %v5689
        %v5692 = vld [vmem:[#allocation2 + $0x1b70] sm:$0x1]
        %v5693 = vperm.slane %v5692, 0
        %v5694 = vadd.f32 %v5690, %v5693
        %v5695 = vadd.f32 %v5691, %v5693
        %v5696 = vadd.f32 %v5694, %v5243
        %v5697 = vadd.f32 %v5695, %v5244
        %v5698 = vmax.f32 %v5696, 0.0
        %v5699 = vmax.f32 %v5697, 0.0
        %v5700 = vld [vmem:[#allocation2 + $0x1c08] sm:$0xff]
        %v5701 = vld [vmem:[#allocation2 + $0x1c10] sm:$0x1f]
        %v5702 = vadd.f32 %v5698, %v5700
        %v5703 = vadd.f32 %v5699, %v5701
        %v5704 = vld [vmem:[#allocation2 + $0x1c18] sm:$0xff]
        %v5705 = vld [vmem:[#allocation2 + $0x1c20] sm:$0xff]
        %v5706 = vld [vmem:[#allocation2 + $0x1c28] sm:$0xff]
        %v5707 = vld [vmem:[#allocation2 + $0x1c30] sm:$0xff]
        %v5708 = vld [vmem:[#allocation2 + $0x1c38] sm:$0xff]
        %v5709 = vld [vmem:[#allocation2 + $0x1c40] sm:$0xff]
        %v5710 = vld [vmem:[#allocation2 + $0x1c48] sm:$0xff]
        %v5711 = vld [vmem:[#allocation2 + $0x1c50] sm:$0xff]
        %v5712 = vld [vmem:[#allocation2 + $0x1c58] sm:$0xff]
        %v5713 = vld [vmem:[#allocation2 + $0x1c60] sm:$0xff]
        %v5714 = vld [vmem:[#allocation2 + $0x1c68] sm:$0xff]
        %v5715 = vld [vmem:[#allocation2 + $0x1c70] sm:$0xff]
        %v5716 = vld [vmem:[#allocation2 + $0x1c78] sm:$0xff]
        %v5717 = vld [vmem:[#allocation2 + $0x1c80] sm:$0xff]
        %v5718 = vld [vmem:[#allocation2 + $0x1c88] sm:$0xff]
        %v5719 = vld [vmem:[#allocation2 + $0x1c90] sm:$0xff]
        %v5720 = vld [vmem:[#allocation2 + $0x1c98] sm:$0x1]
        %v5721 = vperm.slane %v5720, 0
        %5722 = vmatpush.msra.mxu0 %v5719
        %5723 = vmatpush.msra.mxu0 %v5718
        %5724 = vmatpush.msra.mxu0 %v5717
        %5725 = vmatpush.msra.mxu0 %v5716
        %5726 = vmatpush.msra.mxu0 %v5715
        %5727 = vmatpush.msra.mxu0 %v5714
        %5728 = vmatpush.msra.mxu0 %v5713
        %5729 = vmatpush.msra.mxu0 %v5712
        %5730 = vmatpush.msra.mxu0 %v5711
        %5731 = vmatpush.msra.mxu0 %v5710
        %5732 = vmatpush.msra.mxu0 %v5709
        %5733 = vmatpush.msra.mxu0 %v5708
        %5734 = vmatpush.msra.mxu0 %v5707
        %5735 = vmatpush.msra.mxu0 %v5706
        %5736 = vmatpush.msra.mxu0 %v5705
        %5737 = vmatpush.msra.mxu0 %v5704
        %5738 = vmatmul.f32.gmra.mxu0 %v5702
        %v5739 = vpop.f32.mrf.mxu0
        %v5740 = vadd.f32 %v5721, %v5739
        %5741 = vmatmul.f32.gmra.mxu0 %v5703
        %v5742 = vpop.f32.mrf.mxu0
        %v5743 = vadd.f32 %v5721, %v5742
        %5744 = vdwg.mxu0
        %v5745 = vld [vmem:[#allocation2 + $0x1ca0] sm:$0xff]
        %v5746 = vld [vmem:[#allocation2 + $0x1ca8] sm:$0xff]
        %v5747 = vld [vmem:[#allocation2 + $0x1cb0] sm:$0xff]
        %v5748 = vld [vmem:[#allocation2 + $0x1cb8] sm:$0xff]
        %v5749 = vld [vmem:[#allocation2 + $0x1cc0] sm:$0xff]
        %v5750 = vld [vmem:[#allocation2 + $0x1cc8] sm:$0xff]
        %v5751 = vld [vmem:[#allocation2 + $0x1cd0] sm:$0xff]
        %v5752 = vld [vmem:[#allocation2 + $0x1cd8] sm:$0xff]
        %v5753 = vld [vmem:[#allocation2 + $0x1ce0] sm:$0xff]
        %v5754 = vld [vmem:[#allocation2 + $0x1ce8] sm:$0xff]
        %v5755 = vld [vmem:[#allocation2 + $0x1cf0] sm:$0xff]
        %v5756 = vld [vmem:[#allocation2 + $0x1cf8] sm:$0xff]
        %v5757 = vld [vmem:[#allocation2 + $0x1d00] sm:$0xff]
        %v5758 = vld [vmem:[#allocation2 + $0x1d08] sm:$0xff]
        %v5759 = vld [vmem:[#allocation2 + $0x1d10] sm:$0xff]
        %v5760 = vld [vmem:[#allocation2 + $0x1d18] sm:$0xff]
        %v5761 = vld [vmem:[#allocation2 + $0x1d20] sm:$0x1]
        %v5762 = vperm.slane %v5761, 0
        %5763 = vmatpush.msra.mxu0 %v5760
        %5764 = vmatpush.msra.mxu0 %v5759
        %5765 = vmatpush.msra.mxu0 %v5758
        %5766 = vmatpush.msra.mxu0 %v5757
        %5767 = vmatpush.msra.mxu0 %v5756
        %5768 = vmatpush.msra.mxu0 %v5755
        %5769 = vmatpush.msra.mxu0 %v5754
        %5770 = vmatpush.msra.mxu0 %v5753
        %5771 = vmatpush.msra.mxu0 %v5752
        %5772 = vmatpush.msra.mxu0 %v5751
        %5773 = vmatpush.msra.mxu0 %v5750
        %5774 = vmatpush.msra.mxu0 %v5749
        %5775 = vmatpush.msra.mxu0 %v5748
        %5776 = vmatpush.msra.mxu0 %v5747
        %5777 = vmatpush.msra.mxu0 %v5746
        %5778 = vmatpush.msra.mxu0 %v5745
        %5779 = vmatmul.f32.gmra.mxu0 %v5702
        %v5780 = vpop.f32.mrf.mxu0
        %v5781 = vadd.f32 %v5762, %v5780
        %5782 = vmatmul.f32.gmra.mxu0 %v5703
        %v5783 = vpop.f32.mrf.mxu0
        %v5784 = vadd.f32 %v5762, %v5783
        %5785 = vdwg.mxu0
        %v5786 = vld [vmem:[#allocation2 + $0x1d28] sm:$0xff]
        %v5787 = vld [vmem:[#allocation2 + $0x1d30] sm:$0xff]
        %v5788 = vld [vmem:[#allocation2 + $0x1d38] sm:$0xff]
        %v5789 = vld [vmem:[#allocation2 + $0x1d40] sm:$0xff]
        %v5790 = vld [vmem:[#allocation2 + $0x1d48] sm:$0xff]
        %v5791 = vld [vmem:[#allocation2 + $0x1d50] sm:$0xff]
        %v5792 = vld [vmem:[#allocation2 + $0x1d58] sm:$0xff]
        %v5793 = vld [vmem:[#allocation2 + $0x1d60] sm:$0xff]
        %v5794 = vld [vmem:[#allocation2 + $0x1d68] sm:$0xff]
        %v5795 = vld [vmem:[#allocation2 + $0x1d70] sm:$0xff]
        %v5796 = vld [vmem:[#allocation2 + $0x1d78] sm:$0xff]
        %v5797 = vld [vmem:[#allocation2 + $0x1d80] sm:$0xff]
        %v5798 = vld [vmem:[#allocation2 + $0x1d88] sm:$0xff]
        %v5799 = vld [vmem:[#allocation2 + $0x1d90] sm:$0xff]
        %v5800 = vld [vmem:[#allocation2 + $0x1d98] sm:$0xff]
        %v5801 = vld [vmem:[#allocation2 + $0x1da0] sm:$0xff]
        %v5802 = vld [vmem:[#allocation2 + $0x1da8] sm:$0x1]
        %v5803 = vperm.slane %v5802, 0
        %5804 = vmatpush.msra.mxu0 %v5801
        %5805 = vmatpush.msra.mxu0 %v5800
        %5806 = vmatpush.msra.mxu0 %v5799
        %5807 = vmatpush.msra.mxu0 %v5798
        %5808 = vmatpush.msra.mxu0 %v5797
        %5809 = vmatpush.msra.mxu0 %v5796
        %5810 = vmatpush.msra.mxu0 %v5795
        %5811 = vmatpush.msra.mxu0 %v5794
        %5812 = vmatpush.msra.mxu0 %v5793
        %5813 = vmatpush.msra.mxu0 %v5792
        %5814 = vmatpush.msra.mxu0 %v5791
        %5815 = vmatpush.msra.mxu0 %v5790
        %5816 = vmatpush.msra.mxu0 %v5789
        %5817 = vmatpush.msra.mxu0 %v5788
        %5818 = vmatpush.msra.mxu0 %v5787
        %5819 = vmatpush.msra.mxu0 %v5786
        %5820 = vmatmul.f32.gmra.mxu0 %v5702
        %v5821 = vpop.f32.mrf.mxu0
        %v5822 = vadd.f32 %v5803, %v5821
        %5823 = vmatmul.f32.gmra.mxu0 %v5703
        %v5824 = vpop.f32.mrf.mxu0
        %v5825 = vadd.f32 %v5803, %v5824
        %5826 = vdwg.mxu0
        %5827 = vmatpush.xpose.msra.mxu0 0.0
        %5828 = vmatpush.xpose.msra.mxu0 0.0
        %5829 = vmatpush.xpose.msra.mxu0 0.0
        %5830 = vmatpush.xpose.msra.mxu0 0.0
        %5831 = vmatpush.xpose.msra.mxu0 0.0
        %5832 = vmatpush.xpose.msra.mxu0 0.0
        %5833 = vmatpush.xpose.msra.mxu0 0.0
        %5834 = vmatpush.xpose.msra.mxu0 0.0
        %5835 = vmatpush.xpose.msra.mxu0 0.0
        %5836 = vmatpush.xpose.msra.mxu0 0.0
        %5837 = vmatpush.xpose.msra.mxu0 0.0
        %5838 = vmatpush.xpose.msra.mxu0 0.0
        %5839 = vmatpush.xpose.msra.mxu0 0.0
        %5840 = vmatpush.xpose.msra.mxu0 0.0
        %5841 = vmatpush.xpose.msra.mxu0 %v5784
        %5842 = vmatpush.xpose.msra.mxu0 %v5781
        %5843 = vmatmul.f32.gmra.mxu0 %v5740
        %v5844 = vpop.f32.mrf.mxu0
        %v5845 = vadd.f32 0.0, %v5844
        %5846 = vmatmul.f32.gmra.mxu0 %v5743
        %v5847 = vpop.f32.mrf.mxu0
        %v5848 = vadd.f32 0.0, %v5847
        %5849 = vdwg.mxu0
        %v5850 = vmul.f32 %v5845, 0.10910895
        %v5851 = vmul.f32 %v5848, 0.10910895
        %v5852 = vsel %vm5556, %v5850, -inf
        %5853 = vmax.xlane.f32.xlu0 %v5852
        %v5854 = vpop.xlane.xlu0 %5853
        %vm5855 = vcmask 102400
        %v5856 = vsel %vm5855, %v5851, -inf
        %5857 = vmax.xlane.f32.xlu0 %v5856
        %v5858 = vpop.xlane.xlu0 %5857
        %v5859 = vsub.f32 %v5850, %v5854
        %v5860 = vsub.f32 %v5851, %v5858
        %v5861 = vmul.f32 %v5859, 1.442695
        %v5862 = vpow.pop %v5861
        %v5863 = vmul.f32 %v5860, 1.442695
        %v5864 = vpow.pop %v5863
        %v5865 = vsel %vm5556, %v5862, 0.0
        %5866 = vadd.xlane.f32.xlu0 %v5865
        %v5867 = vpop.xlane.xlu0 %5866
        %v5868 = vsel %vm5855, %v5864, 0.0
        %5869 = vadd.xlane.f32.xlu0 %v5868
        %v5870 = vpop.xlane.xlu0 %5869
        %v5871 = vrcp.pop %v5867
        %v5872 = vrcp.pop %v5870
        %v5873 = vmul.f32 %v5862, %v5871
        %v5874 = vmul.f32 %v5864, %v5872
        %v5876 = vsel %vm5556, %v5873, 0
        %v5879 = vsel %vm5556, %v5874, 0
        %v5882 = vsel %vm462, %v5825, 0
        %5884 = vmatpush.msra.mxu0 0.0
        %5885 = vmatpush.msra.mxu0 0.0
        %5886 = vmatpush.msra.mxu0 0.0
        %5887 = vmatpush.msra.mxu0 0.0
        %5888 = vmatpush.msra.mxu0 0.0
        %5889 = vmatpush.msra.mxu0 0.0
        %5890 = vmatpush.msra.mxu0 0.0
        %5891 = vmatpush.msra.mxu0 0.0
        %5892 = vmatpush.msra.mxu0 0.0
        %5893 = vmatpush.msra.mxu0 0.0
        %5894 = vmatpush.msra.mxu0 0.0
        %5895 = vmatpush.msra.mxu0 0.0
        %5896 = vmatpush.msra.mxu0 0.0
        %5897 = vmatpush.msra.mxu0 0.0
        %5898 = vmatpush.msra.mxu0 %v5882
        %5899 = vmatpush.msra.mxu0 %v5822
        %5900 = vmatmul.f32.gmra.mxu0 %v5876
        %v5901 = vpop.f32.mrf.mxu0
        %v5902 = vadd.f32 0.0, %v5901
        %5903 = vmatmul.f32.gmra.mxu0 %v5879
        %v5904 = vpop.f32.mrf.mxu0
        %v5905 = vadd.f32 0.0, %v5904
        %5906 = vdwg.mxu0
        %v5907 = vld [vmem:[#allocation2 + $0x1db0] sm:$0xff]
        %v5908 = vld [vmem:[#allocation2 + $0x1db8] sm:$0xff]
        %v5909 = vld [vmem:[#allocation2 + $0x1dc0] sm:$0xff]
        %v5910 = vld [vmem:[#allocation2 + $0x1dc8] sm:$0xff]
        %v5911 = vld [vmem:[#allocation2 + $0x1dd0] sm:$0xff]
        %v5912 = vld [vmem:[#allocation2 + $0x1dd8] sm:$0xff]
        %v5913 = vld [vmem:[#allocation2 + $0x1de0] sm:$0xff]
        %v5914 = vld [vmem:[#allocation2 + $0x1de8] sm:$0xff]
        %v5915 = vld [vmem:[#allocation2 + $0x1df0] sm:$0xff]
        %v5916 = vld [vmem:[#allocation2 + $0x1df8] sm:$0xff]
        %v5917 = vld [vmem:[#allocation2 + $0x1e00] sm:$0xff]
        %v5918 = vld [vmem:[#allocation2 + $0x1e08] sm:$0xff]
        %v5919 = vld [vmem:[#allocation2 + $0x1e10] sm:$0xff]
        %v5920 = vld [vmem:[#allocation2 + $0x1e18] sm:$0xff]
        %v5921 = vld [vmem:[#allocation2 + $0x1e20] sm:$0xff]
        %v5922 = vld [vmem:[#allocation2 + $0x1e28] sm:$0xff]
        %v5923 = vld [vmem:[#allocation2 + $0x1e30] sm:$0x1]
        %v5924 = vperm.slane %v5923, 0
        %5925 = vmatpush.msra.mxu0 %v5922
        %5926 = vmatpush.msra.mxu0 %v5921
        %5927 = vmatpush.msra.mxu0 %v5920
        %5928 = vmatpush.msra.mxu0 %v5919
        %5929 = vmatpush.msra.mxu0 %v5918
        %5930 = vmatpush.msra.mxu0 %v5917
        %5931 = vmatpush.msra.mxu0 %v5916
        %5932 = vmatpush.msra.mxu0 %v5915
        %5933 = vmatpush.msra.mxu0 %v5914
        %5934 = vmatpush.msra.mxu0 %v5913
        %5935 = vmatpush.msra.mxu0 %v5912
        %5936 = vmatpush.msra.mxu0 %v5911
        %5937 = vmatpush.msra.mxu0 %v5910
        %5938 = vmatpush.msra.mxu0 %v5909
        %5939 = vmatpush.msra.mxu0 %v5908
        %5940 = vmatpush.msra.mxu0 %v5907
        %5941 = vmatmul.f32.gmra.mxu0 %v5902
        %v5942 = vpop.f32.mrf.mxu0
        %v5943 = vadd.f32 %v5924, %v5942
        %5944 = vmatmul.f32.gmra.mxu0 %v5905
        %v5945 = vpop.f32.mrf.mxu0
        %v5946 = vadd.f32 %v5924, %v5945
        %5947 = vdwg.mxu0
        %v5948 = vld [vmem:[#allocation2 + $0x1e38] sm:$0xff]
        %v5949 = vld [vmem:[#allocation2 + $0x1e40] sm:$0xff]
        %v5950 = vld [vmem:[#allocation2 + $0x1e48] sm:$0xff]
        %v5951 = vld [vmem:[#allocation2 + $0x1e50] sm:$0xff]
        %v5952 = vld [vmem:[#allocation2 + $0x1e58] sm:$0xff]
        %v5953 = vld [vmem:[#allocation2 + $0x1e60] sm:$0xff]
        %v5954 = vld [vmem:[#allocation2 + $0x1e68] sm:$0xff]
        %v5955 = vld [vmem:[#allocation2 + $0x1e70] sm:$0xff]
        %v5956 = vld [vmem:[#allocation2 + $0x1e78] sm:$0xff]
        %v5957 = vld [vmem:[#allocation2 + $0x1e80] sm:$0xff]
        %v5958 = vld [vmem:[#allocation2 + $0x1e88] sm:$0xff]
        %v5959 = vld [vmem:[#allocation2 + $0x1e90] sm:$0xff]
        %v5960 = vld [vmem:[#allocation2 + $0x1e98] sm:$0xff]
        %v5961 = vld [vmem:[#allocation2 + $0x1ea0] sm:$0xff]
        %v5962 = vld [vmem:[#allocation2 + $0x1ea8] sm:$0xff]
        %v5963 = vld [vmem:[#allocation2 + $0x1eb0] sm:$0xff]
        %5964 = vmatpush.msra.mxu0 %v5963
        %5965 = vmatpush.msra.mxu0 %v5962
        %5966 = vmatpush.msra.mxu0 %v5961
        %5967 = vmatpush.msra.mxu0 %v5960
        %5968 = vmatpush.msra.mxu0 %v5959
        %5969 = vmatpush.msra.mxu0 %v5958
        %5970 = vmatpush.msra.mxu0 %v5957
        %5971 = vmatpush.msra.mxu0 %v5956
        %5972 = vmatpush.msra.mxu0 %v5955
        %5973 = vmatpush.msra.mxu0 %v5954
        %5974 = vmatpush.msra.mxu0 %v5953
        %5975 = vmatpush.msra.mxu0 %v5952
        %5976 = vmatpush.msra.mxu0 %v5951
        %5977 = vmatpush.msra.mxu0 %v5950
        %5978 = vmatpush.msra.mxu0 %v5949
        %5979 = vmatpush.msra.mxu0 %v5948
        %5980 = vmatmul.f32.gmra.mxu0 %v5943
        %v5981 = vpop.f32.mrf.mxu0
        %v5982 = vadd.f32 0.0, %v5981
        %5983 = vmatmul.f32.gmra.mxu0 %v5946
        %v5984 = vpop.f32.mrf.mxu0
        %v5985 = vadd.f32 0.0, %v5984
        %5986 = vdwg.mxu0
        %v5987 = vld [vmem:[#allocation2 + $0x1eb8] sm:$0xff]
        %v5988 = vld [vmem:[#allocation2 + $0x1ec0] sm:$0xff]
        %v5989 = vld [vmem:[#allocation2 + $0x1ec8] sm:$0xff]
        %v5990 = vld [vmem:[#allocation2 + $0x1ed0] sm:$0xff]
        %v5991 = vld [vmem:[#allocation2 + $0x1ed8] sm:$0xff]
        %v5992 = vld [vmem:[#allocation2 + $0x1ee0] sm:$0xff]
        %v5993 = vld [vmem:[#allocation2 + $0x1ee8] sm:$0xff]
        %v5994 = vld [vmem:[#allocation2 + $0x1ef0] sm:$0xff]
        %v5995 = vld [vmem:[#allocation2 + $0x1ef8] sm:$0xff]
        %v5996 = vld [vmem:[#allocation2 + $0x1f00] sm:$0xff]
        %v5997 = vld [vmem:[#allocation2 + $0x1f08] sm:$0xff]
        %v5998 = vld [vmem:[#allocation2 + $0x1f10] sm:$0xff]
        %v5999 = vld [vmem:[#allocation2 + $0x1f18] sm:$0xff]
        %v6000 = vld [vmem:[#allocation2 + $0x1f20] sm:$0xff]
        %v6001 = vld [vmem:[#allocation2 + $0x1f28] sm:$0xff]
        %v6002 = vld [vmem:[#allocation2 + $0x1f30] sm:$0xff]
        %6003 = vmatpush.msra.mxu0 %v6002
        %6004 = vmatpush.msra.mxu0 %v6001
        %6005 = vmatpush.msra.mxu0 %v6000
        %6006 = vmatpush.msra.mxu0 %v5999
        %6007 = vmatpush.msra.mxu0 %v5998
        %6008 = vmatpush.msra.mxu0 %v5997
        %6009 = vmatpush.msra.mxu0 %v5996
        %6010 = vmatpush.msra.mxu0 %v5995
        %6011 = vmatpush.msra.mxu0 %v5994
        %6012 = vmatpush.msra.mxu0 %v5993
        %6013 = vmatpush.msra.mxu0 %v5992
        %6014 = vmatpush.msra.mxu0 %v5991
        %6015 = vmatpush.msra.mxu0 %v5990
        %6016 = vmatpush.msra.mxu0 %v5989
        %6017 = vmatpush.msra.mxu0 %v5988
        %6018 = vmatpush.msra.mxu0 %v5987
        %6019 = vmatmul.f32.gmra.mxu0 %v5943
        %v6020 = vpop.f32.mrf.mxu0
        %v6021 = vadd.f32 0.0, %v6020
        %6022 = vmatmul.f32.gmra.mxu0 %v5946
        %v6023 = vpop.f32.mrf.mxu0
        %v6024 = vadd.f32 0.0, %v6023
        %6025 = vdwg.mxu0
        %v6027 = vsel %vm462, %v6024, 0
        %6029 = vmatpush.msra.mxu0 0.0
        %6030 = vmatpush.msra.mxu0 0.0
        %6031 = vmatpush.msra.mxu0 0.0
        %6032 = vmatpush.msra.mxu0 0.0
        %6033 = vmatpush.msra.mxu0 0.0
        %6034 = vmatpush.msra.mxu0 0.0
        %6035 = vmatpush.msra.mxu0 0.0
        %6036 = vmatpush.msra.mxu0 0.0
        %6037 = vmatpush.msra.mxu0 0.0
        %6038 = vmatpush.msra.mxu0 0.0
        %6039 = vmatpush.msra.mxu0 0.0
        %6040 = vmatpush.msra.mxu0 0.0
        %6041 = vmatpush.msra.mxu0 0.0
        %6042 = vmatpush.msra.mxu0 0.0
        %6043 = vmatpush.msra.mxu0 %v6027
        %6044 = vmatpush.msra.mxu0 %v6021
        %6045 = vmatmul.f32.gmra.mxu0 %v5557
        %v6046 = vpop.f32.mrf.mxu0
        %v6047 = vadd.f32 0.0, %v6046
        %6048 = vmatmul.f32.gmra.mxu0 %v5559
        %v6049 = vpop.f32.mrf.mxu0
        %v6050 = vadd.f32 0.0, %v6049
        %6051 = vdwg.mxu0
        %v6053 = vsel %vm462, %v5985, 0
        %6055 = vmatpush.msra.mxu0 0.0
        %6056 = vmatpush.msra.mxu0 0.0
        %6057 = vmatpush.msra.mxu0 0.0
        %6058 = vmatpush.msra.mxu0 0.0
        %6059 = vmatpush.msra.mxu0 0.0
        %6060 = vmatpush.msra.mxu0 0.0
        %6061 = vmatpush.msra.mxu0 0.0
        %6062 = vmatpush.msra.mxu0 0.0
        %6063 = vmatpush.msra.mxu0 0.0
        %6064 = vmatpush.msra.mxu0 0.0
        %6065 = vmatpush.msra.mxu0 0.0
        %6066 = vmatpush.msra.mxu0 0.0
        %6067 = vmatpush.msra.mxu0 0.0
        %6068 = vmatpush.msra.mxu0 0.0
        %6069 = vmatpush.msra.mxu0 %v6053
        %6070 = vmatpush.msra.mxu0 %v5982
        %6071 = vmatmul.f32.gmra.mxu0 %v5587
        %v6072 = vpop.f32.mrf.mxu0
        %v6073 = vadd.f32 %v6047, %v6072
        %6074 = vmatmul.f32.gmra.mxu0 %v5589
        %v6075 = vpop.f32.mrf.mxu0
        %v6076 = vadd.f32 %v6050, %v6075
        %6077 = vdwg.mxu0
        %v6078 = vld [vmem:[#allocation2 + $0x1f38] sm:$0xff]
        %v6079 = vld [vmem:[#allocation2 + $0x1f40] sm:$0xff]
        %v6080 = vld [vmem:[#allocation2 + $0x1f48] sm:$0xff]
        %v6081 = vld [vmem:[#allocation2 + $0x1f50] sm:$0xff]
        %v6082 = vld [vmem:[#allocation2 + $0x1f58] sm:$0xff]
        %v6083 = vld [vmem:[#allocation2 + $0x1f60] sm:$0xff]
        %v6084 = vld [vmem:[#allocation2 + $0x1f68] sm:$0xff]
        %v6085 = vld [vmem:[#allocation2 + $0x1f70] sm:$0xff]
        %v6086 = vld [vmem:[#allocation2 + $0x1f78] sm:$0xff]
        %v6087 = vld [vmem:[#allocation2 + $0x1f80] sm:$0xff]
        %v6088 = vld [vmem:[#allocation2 + $0x1f88] sm:$0xff]
        %v6089 = vld [vmem:[#allocation2 + $0x1f90] sm:$0xff]
        %v6090 = vld [vmem:[#allocation2 + $0x1f98] sm:$0xff]
        %v6091 = vld [vmem:[#allocation2 + $0x1fa0] sm:$0xff]
        %v6092 = vld [vmem:[#allocation2 + $0x1fa8] sm:$0xff]
        %v6093 = vld [vmem:[#allocation2 + $0x1fb0] sm:$0xff]
        %6094 = vmatpush.msra.mxu0 %v6093
        %6095 = vmatpush.msra.mxu0 %v6092
        %6096 = vmatpush.msra.mxu0 %v6091
        %6097 = vmatpush.msra.mxu0 %v6090
        %6098 = vmatpush.msra.mxu0 %v6089
        %6099 = vmatpush.msra.mxu0 %v6088
        %6100 = vmatpush.msra.mxu0 %v6087
        %6101 = vmatpush.msra.mxu0 %v6086
        %6102 = vmatpush.msra.mxu0 %v6085
        %6103 = vmatpush.msra.mxu0 %v6084
        %6104 = vmatpush.msra.mxu0 %v6083
        %6105 = vmatpush.msra.mxu0 %v6082
        %6106 = vmatpush.msra.mxu0 %v6081
        %6107 = vmatpush.msra.mxu0 %v6080
        %6108 = vmatpush.msra.mxu0 %v6079
        %6109 = vmatpush.msra.mxu0 %v6078
        %6110 = vmatmul.f32.gmra.mxu0 %v5943
        %v6111 = vpop.f32.mrf.mxu0
        %v6112 = vadd.f32 0.0, %v6111
        %6113 = vmatmul.f32.gmra.mxu0 %v5946
        %v6114 = vpop.f32.mrf.mxu0
        %v6115 = vadd.f32 0.0, %v6114
        %6116 = vdwg.mxu0
        %v6118 = vsel %vm462, %v6115, 0
        %6120 = vmatpush.msra.mxu0 0.0
        %6121 = vmatpush.msra.mxu0 0.0
        %6122 = vmatpush.msra.mxu0 0.0
        %6123 = vmatpush.msra.mxu0 0.0
        %6124 = vmatpush.msra.mxu0 0.0
        %6125 = vmatpush.msra.mxu0 0.0
        %6126 = vmatpush.msra.mxu0 0.0
        %6127 = vmatpush.msra.mxu0 0.0
        %6128 = vmatpush.msra.mxu0 0.0
        %6129 = vmatpush.msra.mxu0 0.0
        %6130 = vmatpush.msra.mxu0 0.0
        %6131 = vmatpush.msra.mxu0 0.0
        %6132 = vmatpush.msra.mxu0 0.0
        %6133 = vmatpush.msra.mxu0 0.0
        %6134 = vmatpush.msra.mxu0 %v6118
        %6135 = vmatpush.msra.mxu0 %v6112
        %6136 = vmatmul.f32.gmra.mxu0 %v5656
        %v6137 = vpop.f32.mrf.mxu0
        %v6138 = vadd.f32 0.0, %v6137
        %6139 = vmatmul.f32.gmra.mxu0 %v5658
        %v6140 = vpop.f32.mrf.mxu0
        %v6141 = vadd.f32 0.0, %v6140
        %6142 = vdwg.mxu0
        %v6143 = vadd.f32 %v6073, %v6138
        %v6144 = vadd.f32 %v6076, %v6141
        %v6145 = vld [vmem:[#allocation2 + $0x1fb8] sm:$0x1]
        %v6146 = vperm.slane %v6145, 0
        %v6147 = vmul.f32 %v6143, %v6146
        %v6148 = vmul.f32 %v6144, %v6146
        %v6149 = vld [vmem:[#allocation2 + $0x1fc0] sm:$0x1]
        %v6150 = vperm.slane %v6149, 0
        %v6151 = vadd.f32 %v6147, %v6150
        %v6152 = vadd.f32 %v6148, %v6150
        %v6153 = vmax.f32 %v6151, 0.0
        %v6154 = vmax.f32 %v6152, 0.0
        %v6155 = vld [vmem:[#allocation2 + $0x1fc8] sm:$0xff]
        %v6156 = vld [vmem:[#allocation2 + $0x1fd0] sm:$0xff]
        %v6157 = vld [vmem:[#allocation2 + $0x1fd8] sm:$0xff]
        %v6158 = vld [vmem:[#allocation2 + $0x1fe0] sm:$0xff]
        %v6159 = vld [vmem:[#allocation2 + $0x1fe8] sm:$0xff]
        %v6160 = vld [vmem:[#allocation2 + $0x1ff0] sm:$0xff]
        %v6161 = vld [vmem:[#allocation2 + $0x1ff8] sm:$0xff]
        %v6162 = vld [vmem:[#allocation2 + $0x2000] sm:$0xff]
        %v6163 = vld [vmem:[#allocation2 + $0x2008] sm:$0xff]
        %v6164 = vld [vmem:[#allocation2 + $0x2010] sm:$0xff]
        %v6165 = vld [vmem:[#allocation2 + $0x2018] sm:$0xff]
        %v6166 = vld [vmem:[#allocation2 + $0x2020] sm:$0xff]
        %v6167 = vld [vmem:[#allocation2 + $0x2028] sm:$0xff]
        %v6168 = vld [vmem:[#allocation2 + $0x2030] sm:$0xff]
        %v6169 = vld [vmem:[#allocation2 + $0x2038] sm:$0xff]
        %v6170 = vld [vmem:[#allocation2 + $0x2040] sm:$0xff]
        %6171 = vmatpush.msra.mxu0 %v6170
        %6172 = vmatpush.msra.mxu0 %v6169
        %6173 = vmatpush.msra.mxu0 %v6168
        %6174 = vmatpush.msra.mxu0 %v6167
        %6175 = vmatpush.msra.mxu0 %v6166
        %6176 = vmatpush.msra.mxu0 %v6165
        %6177 = vmatpush.msra.mxu0 %v6164
        %6178 = vmatpush.msra.mxu0 %v6163
        %6179 = vmatpush.msra.mxu0 %v6162
        %6180 = vmatpush.msra.mxu0 %v6161
        %6181 = vmatpush.msra.mxu0 %v6160
        %6182 = vmatpush.msra.mxu0 %v6159
        %6183 = vmatpush.msra.mxu0 %v6158
        %6184 = vmatpush.msra.mxu0 %v6157
        %6185 = vmatpush.msra.mxu0 %v6156
        %6186 = vmatpush.msra.mxu0 %v6155
        %6187 = vmatmul.f32.gmra.mxu0 %v6153
        %v6188 = vpop.f32.mrf.mxu0
        %v6189 = vadd.f32 0.0, %v6188
        %6190 = vmatmul.f32.gmra.mxu0 %v6154
        %v6191 = vpop.f32.mrf.mxu0
        %v6192 = vadd.f32 0.0, %v6191
        %6193 = vdwg.mxu0
        %v6194 = vld [vmem:[#allocation2 + $0x2048] sm:$0xff]
        %v6195 = vld [vmem:[#allocation2 + $0x2050] sm:$0xff]
        %v6196 = vld [vmem:[#allocation2 + $0x2058] sm:$0xff]
        %v6197 = vld [vmem:[#allocation2 + $0x2060] sm:$0xff]
        %v6198 = vld [vmem:[#allocation2 + $0x2068] sm:$0xff]
        %v6199 = vld [vmem:[#allocation2 + $0x2070] sm:$0xff]
        %v6200 = vld [vmem:[#allocation2 + $0x2078] sm:$0xff]
        %v6201 = vld [vmem:[#allocation2 + $0x2080] sm:$0xff]
        %v6202 = vld [vmem:[#allocation2 + $0x2088] sm:$0xff]
        %v6203 = vld [vmem:[#allocation2 + $0x2090] sm:$0xff]
        %v6204 = vld [vmem:[#allocation2 + $0x2098] sm:$0xff]
        %v6205 = vld [vmem:[#allocation2 + $0x20a0] sm:$0xff]
        %v6206 = vld [vmem:[#allocation2 + $0x20a8] sm:$0xff]
        %v6207 = vld [vmem:[#allocation2 + $0x20b0] sm:$0xff]
        %v6208 = vld [vmem:[#allocation2 + $0x20b8] sm:$0xff]
        %v6209 = vld [vmem:[#allocation2 + $0x20c0] sm:$0xff]
        %6210 = vmatpush.msra.mxu0 %v6209
        %6211 = vmatpush.msra.mxu0 %v6208
        %6212 = vmatpush.msra.mxu0 %v6207
        %6213 = vmatpush.msra.mxu0 %v6206
        %6214 = vmatpush.msra.mxu0 %v6205
        %6215 = vmatpush.msra.mxu0 %v6204
        %6216 = vmatpush.msra.mxu0 %v6203
        %6217 = vmatpush.msra.mxu0 %v6202
        %6218 = vmatpush.msra.mxu0 %v6201
        %6219 = vmatpush.msra.mxu0 %v6200
        %6220 = vmatpush.msra.mxu0 %v6199
        %6221 = vmatpush.msra.mxu0 %v6198
        %6222 = vmatpush.msra.mxu0 %v6197
        %6223 = vmatpush.msra.mxu0 %v6196
        %6224 = vmatpush.msra.mxu0 %v6195
        %6225 = vmatpush.msra.mxu0 %v6194
        %6226 = vmatmul.f32.gmra.mxu0 %v6153
        %v6227 = vpop.f32.mrf.mxu0
        %v6228 = vadd.f32 0.0, %v6227
        %6229 = vmatmul.f32.gmra.mxu0 %v6154
        %v6230 = vpop.f32.mrf.mxu0
        %v6231 = vadd.f32 0.0, %v6230
        %6232 = vdwg.mxu0
        %v6234 = vsel %vm462, %v6231, 0
        %6236 = vmatpush.msra.mxu0 0.0
        %6237 = vmatpush.msra.mxu0 0.0
        %6238 = vmatpush.msra.mxu0 0.0
        %6239 = vmatpush.msra.mxu0 0.0
        %6240 = vmatpush.msra.mxu0 0.0
        %6241 = vmatpush.msra.mxu0 0.0
        %6242 = vmatpush.msra.mxu0 0.0
        %6243 = vmatpush.msra.mxu0 0.0
        %6244 = vmatpush.msra.mxu0 0.0
        %6245 = vmatpush.msra.mxu0 0.0
        %6246 = vmatpush.msra.mxu0 0.0
        %6247 = vmatpush.msra.mxu0 0.0
        %6248 = vmatpush.msra.mxu0 0.0
        %6249 = vmatpush.msra.mxu0 0.0
        %6250 = vmatpush.msra.mxu0 %v6234
        %6251 = vmatpush.msra.mxu0 %v6228
        %6252 = vmatmul.f32.gmra.mxu0 %v5557
        %v6253 = vpop.f32.mrf.mxu0
        %v6254 = vadd.f32 0.0, %v6253
        %6255 = vmatmul.f32.gmra.mxu0 %v5559
        %v6256 = vpop.f32.mrf.mxu0
        %v6257 = vadd.f32 0.0, %v6256
        %6258 = vdwg.mxu0
        %v6260 = vsel %vm462, %v6192, 0
        %6262 = vmatpush.msra.mxu0 0.0
        %6263 = vmatpush.msra.mxu0 0.0
        %6264 = vmatpush.msra.mxu0 0.0
        %6265 = vmatpush.msra.mxu0 0.0
        %6266 = vmatpush.msra.mxu0 0.0
        %6267 = vmatpush.msra.mxu0 0.0
        %6268 = vmatpush.msra.mxu0 0.0
        %6269 = vmatpush.msra.mxu0 0.0
        %6270 = vmatpush.msra.mxu0 0.0
        %6271 = vmatpush.msra.mxu0 0.0
        %6272 = vmatpush.msra.mxu0 0.0
        %6273 = vmatpush.msra.mxu0 0.0
        %6274 = vmatpush.msra.mxu0 0.0
        %6275 = vmatpush.msra.mxu0 0.0
        %6276 = vmatpush.msra.mxu0 %v6260
        %6277 = vmatpush.msra.mxu0 %v6189
        %6278 = vmatmul.f32.gmra.mxu0 %v5587
        %v6279 = vpop.f32.mrf.mxu0
        %v6280 = vadd.f32 %v6254, %v6279
        %6281 = vmatmul.f32.gmra.mxu0 %v5589
        %v6282 = vpop.f32.mrf.mxu0
        %v6283 = vadd.f32 %v6257, %v6282
        %6284 = vdwg.mxu0
        %v6285 = vld [vmem:[#allocation2 + $0x20c8] sm:$0xff]
        %v6286 = vld [vmem:[#allocation2 + $0x20d0] sm:$0xff]
        %v6287 = vld [vmem:[#allocation2 + $0x20d8] sm:$0xff]
        %v6288 = vld [vmem:[#allocation2 + $0x20e0] sm:$0xff]
        %v6289 = vld [vmem:[#allocation2 + $0x20e8] sm:$0xff]
        %v6290 = vld [vmem:[#allocation2 + $0x20f0] sm:$0xff]
        %v6291 = vld [vmem:[#allocation2 + $0x20f8] sm:$0xff]
        %v6292 = vld [vmem:[#allocation2 + $0x2100] sm:$0xff]
        %v6293 = vld [vmem:[#allocation2 + $0x2108] sm:$0xff]
        %v6294 = vld [vmem:[#allocation2 + $0x2110] sm:$0xff]
        %v6295 = vld [vmem:[#allocation2 + $0x2118] sm:$0xff]
        %v6296 = vld [vmem:[#allocation2 + $0x2120] sm:$0xff]
        %v6297 = vld [vmem:[#allocation2 + $0x2128] sm:$0xff]
        %v6298 = vld [vmem:[#allocation2 + $0x2130] sm:$0xff]
        %v6299 = vld [vmem:[#allocation2 + $0x2138] sm:$0xff]
        %v6300 = vld [vmem:[#allocation2 + $0x2140] sm:$0xff]
        %6301 = vmatpush.msra.mxu0 %v6300
        %6302 = vmatpush.msra.mxu0 %v6299
        %6303 = vmatpush.msra.mxu0 %v6298
        %6304 = vmatpush.msra.mxu0 %v6297
        %6305 = vmatpush.msra.mxu0 %v6296
        %6306 = vmatpush.msra.mxu0 %v6295
        %6307 = vmatpush.msra.mxu0 %v6294
        %6308 = vmatpush.msra.mxu0 %v6293
        %6309 = vmatpush.msra.mxu0 %v6292
        %6310 = vmatpush.msra.mxu0 %v6291
        %6311 = vmatpush.msra.mxu0 %v6290
        %6312 = vmatpush.msra.mxu0 %v6289
        %6313 = vmatpush.msra.mxu0 %v6288
        %6314 = vmatpush.msra.mxu0 %v6287
        %6315 = vmatpush.msra.mxu0 %v6286
        %6316 = vmatpush.msra.mxu0 %v6285
        %6317 = vmatmul.f32.gmra.mxu0 %v6153
        %v6318 = vpop.f32.mrf.mxu0
        %v6319 = vadd.f32 0.0, %v6318
        %6320 = vmatmul.f32.gmra.mxu0 %v6154
        %v6321 = vpop.f32.mrf.mxu0
        %v6322 = vadd.f32 0.0, %v6321
        %6323 = vdwg.mxu0
        %v6325 = vsel %vm462, %v6322, 0
        %6327 = vmatpush.msra.mxu0 0.0
        %6328 = vmatpush.msra.mxu0 0.0
        %6329 = vmatpush.msra.mxu0 0.0
        %6330 = vmatpush.msra.mxu0 0.0
        %6331 = vmatpush.msra.mxu0 0.0
        %6332 = vmatpush.msra.mxu0 0.0
        %6333 = vmatpush.msra.mxu0 0.0
        %6334 = vmatpush.msra.mxu0 0.0
        %6335 = vmatpush.msra.mxu0 0.0
        %6336 = vmatpush.msra.mxu0 0.0
        %6337 = vmatpush.msra.mxu0 0.0
        %6338 = vmatpush.msra.mxu0 0.0
        %6339 = vmatpush.msra.mxu0 0.0
        %6340 = vmatpush.msra.mxu0 0.0
        %6341 = vmatpush.msra.mxu0 %v6325
        %6342 = vmatpush.msra.mxu0 %v6319
        %6343 = vmatmul.f32.gmra.mxu0 %v5656
        %v6344 = vpop.f32.mrf.mxu0
        %v6345 = vadd.f32 0.0, %v6344
        %6346 = vmatmul.f32.gmra.mxu0 %v5658
        %v6347 = vpop.f32.mrf.mxu0
        %v6348 = vadd.f32 0.0, %v6347
        %6349 = vdwg.mxu0
        %v6350 = vadd.f32 %v6280, %v6345
        %v6351 = vadd.f32 %v6283, %v6348
        %v6352 = vld [vmem:[#allocation2 + $0x2148] sm:$0x1]
        %v6353 = vperm.slane %v6352, 0
        %v6354 = vmul.f32 %v6350, %v6353
        %v6355 = vmul.f32 %v6351, %v6353
        %v6356 = vld [vmem:[#allocation2 + $0x2150] sm:$0x1]
        %v6357 = vperm.slane %v6356, 0
        %v6358 = vadd.f32 %v6354, %v6357
        %v6359 = vadd.f32 %v6355, %v6357
        %v6360 = vadd.f32 %v6358, %v5943
        %v6361 = vadd.f32 %v6359, %v5946
        %v6362 = vmax.f32 %v6360, 0.0
        %v6363 = vmax.f32 %v6361, 0.0
        %v6364 = vld [vmem:[#allocation2 + $0x2158] sm:$0xff]
        %v6365 = vld [vmem:[#allocation2 + $0x2160] sm:$0x1f]
        %v6366 = vadd.f32 %v6362, %v6364
        %v6367 = vadd.f32 %v6363, %v6365
        %v6368 = vld [vmem:[#allocation2 + $0x2168] sm:$0xff]
        %v6369 = vld [vmem:[#allocation2 + $0x2170] sm:$0xff]
        %v6370 = vld [vmem:[#allocation2 + $0x2178] sm:$0xff]
        %v6371 = vld [vmem:[#allocation2 + $0x2180] sm:$0xff]
        %v6372 = vld [vmem:[#allocation2 + $0x2188] sm:$0xff]
        %v6373 = vld [vmem:[#allocation2 + $0x2190] sm:$0xff]
        %v6374 = vld [vmem:[#allocation2 + $0x2198] sm:$0xff]
        %v6375 = vld [vmem:[#allocation2 + $0x21a0] sm:$0xff]
        %v6376 = vld [vmem:[#allocation2 + $0x21a8] sm:$0xff]
        %v6377 = vld [vmem:[#allocation2 + $0x21b0] sm:$0xff]
        %v6378 = vld [vmem:[#allocation2 + $0x21b8] sm:$0xff]
        %v6379 = vld [vmem:[#allocation2 + $0x21c0] sm:$0xff]
        %v6380 = vld [vmem:[#allocation2 + $0x21c8] sm:$0xff]
        %v6381 = vld [vmem:[#allocation2 + $0x21d0] sm:$0xff]
        %v6382 = vld [vmem:[#allocation2 + $0x21d8] sm:$0xff]
        %v6383 = vld [vmem:[#allocation2 + $0x21e0] sm:$0xff]
        %v6384 = vld [vmem:[#allocation2 + $0x21e8] sm:$0x1]
        %v6385 = vperm.slane %v6384, 0
        %6386 = vmatpush.msra.mxu0 %v6383
        %6387 = vmatpush.msra.mxu0 %v6382
        %6388 = vmatpush.msra.mxu0 %v6381
        %6389 = vmatpush.msra.mxu0 %v6380
        %6390 = vmatpush.msra.mxu0 %v6379
        %6391 = vmatpush.msra.mxu0 %v6378
        %6392 = vmatpush.msra.mxu0 %v6377
        %6393 = vmatpush.msra.mxu0 %v6376
        %6394 = vmatpush.msra.mxu0 %v6375
        %6395 = vmatpush.msra.mxu0 %v6374
        %6396 = vmatpush.msra.mxu0 %v6373
        %6397 = vmatpush.msra.mxu0 %v6372
        %6398 = vmatpush.msra.mxu0 %v6371
        %6399 = vmatpush.msra.mxu0 %v6370
        %6400 = vmatpush.msra.mxu0 %v6369
        %6401 = vmatpush.msra.mxu0 %v6368
        %6402 = vmatmul.f32.gmra.mxu0 %v6366
        %v6403 = vpop.f32.mrf.mxu0
        %v6404 = vadd.f32 %v6385, %v6403
        %6405 = vmatmul.f32.gmra.mxu0 %v6367
        %v6406 = vpop.f32.mrf.mxu0
        %v6407 = vadd.f32 %v6385, %v6406
        %6408 = vdwg.mxu0
        %v6409 = vld [vmem:[#allocation2 + $0x21f0] sm:$0xff]
        %v6410 = vld [vmem:[#allocation2 + $0x21f8] sm:$0xff]
        %v6411 = vld [vmem:[#allocation2 + $0x2200] sm:$0xff]
        %v6412 = vld [vmem:[#allocation2 + $0x2208] sm:$0xff]
        %v6413 = vld [vmem:[#allocation2 + $0x2210] sm:$0xff]
        %v6414 = vld [vmem:[#allocation2 + $0x2218] sm:$0xff]
        %v6415 = vld [vmem:[#allocation2 + $0x2220] sm:$0xff]
        %v6416 = vld [vmem:[#allocation2 + $0x2228] sm:$0xff]
        %v6417 = vld [vmem:[#allocation2 + $0x2230] sm:$0xff]
        %v6418 = vld [vmem:[#allocation2 + $0x2238] sm:$0xff]
        %v6419 = vld [vmem:[#allocation2 + $0x2240] sm:$0xff]
        %v6420 = vld [vmem:[#allocation2 + $0x2248] sm:$0xff]
        %v6421 = vld [vmem:[#allocation2 + $0x2250] sm:$0xff]
        %v6422 = vld [vmem:[#allocation2 + $0x2258] sm:$0xff]
        %v6423 = vld [vmem:[#allocation2 + $0x2260] sm:$0xff]
        %v6424 = vld [vmem:[#allocation2 + $0x2268] sm:$0xff]
        %v6425 = vld [vmem:[#allocation2 + $0x2270] sm:$0x1]
        %v6426 = vperm.slane %v6425, 0
        %6427 = vmatpush.msra.mxu0 %v6424
        %6428 = vmatpush.msra.mxu0 %v6423
        %6429 = vmatpush.msra.mxu0 %v6422
        %6430 = vmatpush.msra.mxu0 %v6421
        %6431 = vmatpush.msra.mxu0 %v6420
        %6432 = vmatpush.msra.mxu0 %v6419
        %6433 = vmatpush.msra.mxu0 %v6418
        %6434 = vmatpush.msra.mxu0 %v6417
        %6435 = vmatpush.msra.mxu0 %v6416
        %6436 = vmatpush.msra.mxu0 %v6415
        %6437 = vmatpush.msra.mxu0 %v6414
        %6438 = vmatpush.msra.mxu0 %v6413
        %6439 = vmatpush.msra.mxu0 %v6412
        %6440 = vmatpush.msra.mxu0 %v6411
        %6441 = vmatpush.msra.mxu0 %v6410
        %6442 = vmatpush.msra.mxu0 %v6409
        %6443 = vmatmul.f32.gmra.mxu0 %v6366
        %v6444 = vpop.f32.mrf.mxu0
        %v6445 = vadd.f32 %v6426, %v6444
        %6446 = vmatmul.f32.gmra.mxu0 %v6367
        %v6447 = vpop.f32.mrf.mxu0
        %v6448 = vadd.f32 %v6426, %v6447
        %6449 = vdwg.mxu0
        %v6450 = vld [vmem:[#allocation2 + $0x2278] sm:$0xff]
        %v6451 = vld [vmem:[#allocation2 + $0x2280] sm:$0xff]
        %v6452 = vld [vmem:[#allocation2 + $0x2288] sm:$0xff]
        %v6453 = vld [vmem:[#allocation2 + $0x2290] sm:$0xff]
        %v6454 = vld [vmem:[#allocation2 + $0x2298] sm:$0xff]
        %v6455 = vld [vmem:[#allocation2 + $0x22a0] sm:$0xff]
        %v6456 = vld [vmem:[#allocation2 + $0x22a8] sm:$0xff]
        %v6457 = vld [vmem:[#allocation2 + $0x22b0] sm:$0xff]
        %v6458 = vld [vmem:[#allocation2 + $0x22b8] sm:$0xff]
        %v6459 = vld [vmem:[#allocation2 + $0x22c0] sm:$0xff]
        %v6460 = vld [vmem:[#allocation2 + $0x22c8] sm:$0xff]
        %v6461 = vld [vmem:[#allocation2 + $0x22d0] sm:$0xff]
        %v6462 = vld [vmem:[#allocation2 + $0x22d8] sm:$0xff]
        %v6463 = vld [vmem:[#allocation2 + $0x22e0] sm:$0xff]
        %v6464 = vld [vmem:[#allocation2 + $0x22e8] sm:$0xff]
        %v6465 = vld [vmem:[#allocation2 + $0x22f0] sm:$0xff]
        %v6466 = vld [vmem:[#allocation2 + $0x22f8] sm:$0x1]
        %v6467 = vperm.slane %v6466, 0
        %6468 = vmatpush.msra.mxu0 %v6465
        %6469 = vmatpush.msra.mxu0 %v6464
        %6470 = vmatpush.msra.mxu0 %v6463
        %6471 = vmatpush.msra.mxu0 %v6462
        %6472 = vmatpush.msra.mxu0 %v6461
        %6473 = vmatpush.msra.mxu0 %v6460
        %6474 = vmatpush.msra.mxu0 %v6459
        %6475 = vmatpush.msra.mxu0 %v6458
        %6476 = vmatpush.msra.mxu0 %v6457
        %6477 = vmatpush.msra.mxu0 %v6456
        %6478 = vmatpush.msra.mxu0 %v6455
        %6479 = vmatpush.msra.mxu0 %v6454
        %6480 = vmatpush.msra.mxu0 %v6453
        %6481 = vmatpush.msra.mxu0 %v6452
        %6482 = vmatpush.msra.mxu0 %v6451
        %6483 = vmatpush.msra.mxu0 %v6450
        %6484 = vmatmul.f32.gmra.mxu0 %v6366
        %v6485 = vpop.f32.mrf.mxu0
        %v6486 = vadd.f32 %v6467, %v6485
        %6487 = vmatmul.f32.gmra.mxu0 %v6367
        %v6488 = vpop.f32.mrf.mxu0
        %v6489 = vadd.f32 %v6467, %v6488
        %6490 = vdwg.mxu0
        %6491 = vmatpush.xpose.msra.mxu0 0.0
        %6492 = vmatpush.xpose.msra.mxu0 0.0
        %6493 = vmatpush.xpose.msra.mxu0 0.0
        %6494 = vmatpush.xpose.msra.mxu0 0.0
        %6495 = vmatpush.xpose.msra.mxu0 0.0
        %6496 = vmatpush.xpose.msra.mxu0 0.0
        %6497 = vmatpush.xpose.msra.mxu0 0.0
        %6498 = vmatpush.xpose.msra.mxu0 0.0
        %6499 = vmatpush.xpose.msra.mxu0 0.0
        %6500 = vmatpush.xpose.msra.mxu0 0.0
        %6501 = vmatpush.xpose.msra.mxu0 0.0
        %6502 = vmatpush.xpose.msra.mxu0 0.0
        %6503 = vmatpush.xpose.msra.mxu0 0.0
        %6504 = vmatpush.xpose.msra.mxu0 0.0
        %6505 = vmatpush.xpose.msra.mxu0 %v6448
        %6506 = vmatpush.xpose.msra.mxu0 %v6445
        %6507 = vmatmul.f32.gmra.mxu0 %v6404
        %v6508 = vpop.f32.mrf.mxu0
        %v6509 = vadd.f32 0.0, %v6508
        %6510 = vmatmul.f32.gmra.mxu0 %v6407
        %v6511 = vpop.f32.mrf.mxu0
        %v6512 = vadd.f32 0.0, %v6511
        %6513 = vdwg.mxu0
        %v6514 = vmul.f32 %v6509, 0.10910895
        %v6515 = vmul.f32 %v6512, 0.10910895
        %v6516 = vsel %vm5556, %v6514, -inf
        %6517 = vmax.xlane.f32.xlu0 %v6516
        %v6518 = vpop.xlane.xlu0 %6517
        %v6519 = vsel %vm5855, %v6515, -inf
        %6520 = vmax.xlane.f32.xlu0 %v6519
        %v6521 = vpop.xlane.xlu0 %6520
        %v6522 = vsub.f32 %v6514, %v6518
        %v6523 = vsub.f32 %v6515, %v6521
        %v6524 = vmul.f32 %v6522, 1.442695
        %v6525 = vpow.pop %v6524
        %v6526 = vmul.f32 %v6523, 1.442695
        %v6527 = vpow.pop %v6526
        %v6528 = vsel %vm5556, %v6525, 0.0
        %6529 = vadd.xlane.f32.xlu0 %v6528
        %v6530 = vpop.xlane.xlu0 %6529
        %v6531 = vsel %vm5855, %v6527, 0.0
        %6532 = vadd.xlane.f32.xlu0 %v6531
        %v6533 = vpop.xlane.xlu0 %6532
        %v6534 = vrcp.pop %v6530
        %v6535 = vrcp.pop %v6533
        %v6536 = vmul.f32 %v6525, %v6534
        %v6537 = vmul.f32 %v6527, %v6535
        %v6539 = vsel %vm5556, %v6536, 0
        %v6542 = vsel %vm5556, %v6537, 0
        %v6545 = vsel %vm462, %v6489, 0
        %6547 = vmatpush.msra.mxu0 0.0
        %6548 = vmatpush.msra.mxu0 0.0
        %6549 = vmatpush.msra.mxu0 0.0
        %6550 = vmatpush.msra.mxu0 0.0
        %6551 = vmatpush.msra.mxu0 0.0
        %6552 = vmatpush.msra.mxu0 0.0
        %6553 = vmatpush.msra.mxu0 0.0
        %6554 = vmatpush.msra.mxu0 0.0
        %6555 = vmatpush.msra.mxu0 0.0
        %6556 = vmatpush.msra.mxu0 0.0
        %6557 = vmatpush.msra.mxu0 0.0
        %6558 = vmatpush.msra.mxu0 0.0
        %6559 = vmatpush.msra.mxu0 0.0
        %6560 = vmatpush.msra.mxu0 0.0
        %6561 = vmatpush.msra.mxu0 %v6545
        %6562 = vmatpush.msra.mxu0 %v6486
        %6563 = vmatmul.f32.gmra.mxu0 %v6539
        %v6564 = vpop.f32.mrf.mxu0
        %v6565 = vadd.f32 0.0, %v6564
        %6566 = vmatmul.f32.gmra.mxu0 %v6542
        %v6567 = vpop.f32.mrf.mxu0
        %v6568 = vadd.f32 0.0, %v6567
        %6569 = vdwg.mxu0
        %v6570 = vld [vmem:[#allocation2 + $0x2300] sm:$0xff]
        %v6571 = vld [vmem:[#allocation2 + $0x2308] sm:$0xff]
        %v6572 = vld [vmem:[#allocation2 + $0x2310] sm:$0xff]
        %v6573 = vld [vmem:[#allocation2 + $0x2318] sm:$0xff]
        %v6574 = vld [vmem:[#allocation2 + $0x2320] sm:$0xff]
        %v6575 = vld [vmem:[#allocation2 + $0x2328] sm:$0xff]
        %v6576 = vld [vmem:[#allocation2 + $0x2330] sm:$0xff]
        %v6577 = vld [vmem:[#allocation2 + $0x2338] sm:$0xff]
        %v6578 = vld [vmem:[#allocation2 + $0x2340] sm:$0xff]
        %v6579 = vld [vmem:[#allocation2 + $0x2348] sm:$0xff]
        %v6580 = vld [vmem:[#allocation2 + $0x2350] sm:$0xff]
        %v6581 = vld [vmem:[#allocation2 + $0x2358] sm:$0xff]
        %v6582 = vld [vmem:[#allocation2 + $0x2360] sm:$0xff]
        %v6583 = vld [vmem:[#allocation2 + $0x2368] sm:$0xff]
        %v6584 = vld [vmem:[#allocation2 + $0x2370] sm:$0xff]
        %v6585 = vld [vmem:[#allocation2 + $0x2378] sm:$0xff]
        %v6586 = vld [vmem:[#allocation2 + $0x2380] sm:$0x1]
        %v6587 = vperm.slane %v6586, 0
        %6588 = vmatpush.msra.mxu0 %v6585
        %6589 = vmatpush.msra.mxu0 %v6584
        %6590 = vmatpush.msra.mxu0 %v6583
        %6591 = vmatpush.msra.mxu0 %v6582
        %6592 = vmatpush.msra.mxu0 %v6581
        %6593 = vmatpush.msra.mxu0 %v6580
        %6594 = vmatpush.msra.mxu0 %v6579
        %6595 = vmatpush.msra.mxu0 %v6578
        %6596 = vmatpush.msra.mxu0 %v6577
        %6597 = vmatpush.msra.mxu0 %v6576
        %6598 = vmatpush.msra.mxu0 %v6575
        %6599 = vmatpush.msra.mxu0 %v6574
        %6600 = vmatpush.msra.mxu0 %v6573
        %6601 = vmatpush.msra.mxu0 %v6572
        %6602 = vmatpush.msra.mxu0 %v6571
        %6603 = vmatpush.msra.mxu0 %v6570
        %6604 = vmatmul.f32.gmra.mxu0 %v6565
        %v6605 = vpop.f32.mrf.mxu0
        %v6606 = vadd.f32 %v6587, %v6605
        %6607 = vmatmul.f32.gmra.mxu0 %v6568
        %v6608 = vpop.f32.mrf.mxu0
        %v6609 = vadd.f32 %v6587, %v6608
        %6610 = vdwg.mxu0
        %v6611 = vsel %vm462, %v6609, 0.0
        %v6612 = vadd.f32 %v6606, %v6611
        %v6613 = vrot.slane %v6612, 4
        %v6614 = vadd.f32 %v6612, %v6613
        %v6615 = vrot.slane %v6614, 2
        %v6616 = vadd.f32 %v6614, %v6615
        %v6617 = vrot.slane %v6616, 1
        %v6618 = vadd.f32 %v6616, %v6617
        %v6619 = vrcp.pop 13.0
        %v6620 = vmul.f32 13.0, %v6619
        %v6621 = vsub.f32 1.0, %v6620
        %v6622 = vmul.f32 %v6619, %v6621
        %v6623 = vadd.f32 %v6619, %v6622
        %vm6624 = vweird.f32 %v6619
        %v6625 = vsel %vm6624, %v6619, %v6623
        %v6626 = vmul.f32 %v6618, %v6625
        %v6627 = vld [vmem:[#allocation2 + $0x2388] sm:$0xff]
        %v6628 = vld [vmem:[#allocation2 + $0x2390] sm:$0xff]
        %v6629 = vld [vmem:[#allocation2 + $0x2398] sm:$0xff]
        %v6630 = vld [vmem:[#allocation2 + $0x23a0] sm:$0xff]
        %v6631 = vld [vmem:[#allocation2 + $0x23a8] sm:$0xff]
        %v6632 = vld [vmem:[#allocation2 + $0x23b0] sm:$0xff]
        %v6633 = vld [vmem:[#allocation2 + $0x23b8] sm:$0xff]
        %v6634 = vld [vmem:[#allocation2 + $0x23c0] sm:$0xff]
        %v6635 = vld [vmem:[#allocation2 + $0x23c8] sm:$0xff]
        %v6636 = vld [vmem:[#allocation2 + $0x23d0] sm:$0xff]
        %v6637 = vld [vmem:[#allocation2 + $0x23d8] sm:$0xff]
        %v6638 = vld [vmem:[#allocation2 + $0x23e0] sm:$0xff]
        %v6639 = vld [vmem:[#allocation2 + $0x23e8] sm:$0xff]
        %v6640 = vld [vmem:[#allocation2 + $0x23f0] sm:$0xff]
        %v6641 = vld [vmem:[#allocation2 + $0x23f8] sm:$0xff]
        %v6642 = vld [vmem:[#allocation2 + $0x2400] sm:$0xff]
        %v6643 = vld [vmem:[#allocation2 + $0x2408] sm:$0x1]
        %6644 = vmatpush.msra.mxu0 %v6642
        %6645 = vmatpush.msra.mxu0 %v6641
        %6646 = vmatpush.msra.mxu0 %v6640
        %6647 = vmatpush.msra.mxu0 %v6639
        %6648 = vmatpush.msra.mxu0 %v6638
        %6649 = vmatpush.msra.mxu0 %v6637
        %6650 = vmatpush.msra.mxu0 %v6636
        %6651 = vmatpush.msra.mxu0 %v6635
        %6652 = vmatpush.msra.mxu0 %v6634
        %6653 = vmatpush.msra.mxu0 %v6633
        %6654 = vmatpush.msra.mxu0 %v6632
        %6655 = vmatpush.msra.mxu0 %v6631
        %6656 = vmatpush.msra.mxu0 %v6630
        %6657 = vmatpush.msra.mxu0 %v6629
        %6658 = vmatpush.msra.mxu0 %v6628
        %6659 = vmatpush.msra.mxu0 %v6627
        %6660 = vmatmul.f32.gmra.mxu0 %v6626
        %v6661 = vpop.f32.mrf.mxu0
        %v6662 = vadd.f32 %v6643, %v6661
        %6663 = vdwg.mxu0
        %6664 = vst [vmem:[%s152] sm:$0x1] %v6662
        %s6665 = sand.u32 %s72, 1
        %s6666 = scalar_lea.sflag [#allocation4], %s6665
        %s6667 = sand.u32 %s72, 1
        %s6668 = scalar_lea.vmem [#allocation5], %s6667
        // Predicated region
        $region33: #{forward.1} parent=27 // pred_check
          %p6669 = pneg %p82
        $region34: #{forward.1} parent=27 // pred_check_branch
          %6671 = sbr.rel (%p6669) target = $region36
        $region35: #{forward.1} parent=27 // pred_region
          %6673 = vsyncadd %s6666, 0
          %s6674 = scalar_lea.hbm %s2, %s17
          %s6676 = sshll.u32 %s6668, 4
          %s6677 = int_to_ptr.vmem [resolvable:$true] %s6676
          %s6678 = sshll.u32 %s6674, 4
          %s6679 = int_to_ptr.hbm [resolvable:$true] %s6678
          %6681 = dma.vmem_to_hbm [thread:$0]  %s6677, 16, %s6679, %s6666
        $region36: #{forward.1} parent=27 // pred_fallthru
          _
      $region28: #{forward.1} parent=5 // pred_fallthru
        _
      %p6682 = scmp.le.s32.totalorder 2, %s12
      // Predicated region
      $region37: #{forward.1} parent=5 // pred_check
        %p6683 = pneg %p6682
      $region38: #{forward.1} parent=5 // pred_check_branch
        %6685 = sbr.rel (%p6683) target = $region40
      $region39: #{forward.1} parent=5 // pred_region
        %s6686 = ssub.s32 %s12, 2
        // Predicated region
        $region41: #{forward.1} parent=39 // pred_check
          %p6687 = pneg %p88
        $region42: #{forward.1} parent=39 // pred_check_branch
          %6689 = sbr.rel (%p6687) target = $region44
        $region43: #{forward.1} parent=39 // pred_region
          %s6690 = sand.u32 %s73, 1
          %s6691 = scalar_lea.sflag [#allocation4], %s6690
          %s6692 = sand.u32 %s73, 1
          %s6693 = scalar_lea.vmem [#allocation5], %s6692
          %6695 = dma.done %s6691, 16
        $region44: #{forward.1} parent=39 // pred_fallthru
          _
      $region40: #{forward.1} parent=5 // pred_fallthru
        _
    $region6: #{forward.1} parent=1 // loop_footer
      %s16 = sadd.s32 1, %s12
    $region7: #{forward.1} parent=1 // loop_footer_branch
      %11 = sbr.rel target = $region3
    $region8: #{forward.1} parent=1 // loop_exit
      _
    %6696 = vsyncpa [#allocation3], 1
    %s6697 = scalar_lea.sflag [#allocation3], 1
    %6698 = vsyncpa %s6697, 1
    %6699 = vsyncpa [#allocation4], 1
    %s6700 = scalar_lea.sflag [#allocation4], 1
    %6701 = vsyncpa %s6700, 1

</llo_original>
